<compile_context>
chip_gen: v7x
topology: tpu7x:2x2x1
jax: 0.10.0
libtpu: 0.0.40
codegen_flags: <defaults>
</compile_context>

<pallas_src>
import math

import numpy as np
import jax
import jax.numpy as jnp
from jax.experimental import pallas as pl
from jax.experimental.pallas import tpu as pltpu

# ---------------- configuration (small, deterministic) ----------------
LAMBDA_MAX = 2
NUM_ITERATIONS = 2
BATCH = 8

D = 2 * LAMBDA_MAX + 1          # 5
D2 = D * D                      # 25
P = (LAMBDA_MAX + 1) * D2       # 75   real packed width (i, j, o indices)
IPAD = 80                       # i axis padded to a sublane multiple (8 | 80)
PP = 128                        # o axis (and wig rows) padded to full 128 lanes
CHUNK_I = 16                    # i-rows per M-build chunk -> 16*128 = 2048 output cols
N_CHUNKS = IPAD // CHUNK_I      # 5


# ---------------- Clebsch-Gordan coefficients (Racah formula) ----------------
def _cg_coefficient(j1, m1, j2, m2, j3, m3):
    if m1 + m2 != m3:
        return 0.0
    if j3 < abs(j1 - j2) or j3 > j1 + j2:
        return 0.0
    if abs(m1) > j1 or abs(m2) > j2 or abs(m3) > j3:
        return 0.0
    f = math.factorial
    pref = math.sqrt(
        (2 * j3 + 1) * f(j1 + j2 - j3) * f(j1 - j2 + j3) * f(-j1 + j2 + j3)
        / f(j1 + j2 + j3 + 1))
    pref *= math.sqrt(
        f(j1 + m1) * f(j1 - m1) * f(j2 + m2) * f(j2 - m2) * f(j3 + m3) * f(j3 - m3))
    s = 0.0
    for k in range(0, j1 + j2 + 1):
        d = (k, j1 + j2 - j3 - k, j1 - m1 - k, j2 + m2 - k,
             j3 - j2 + m1 + k, j3 - j1 - m2 + k)
        if min(d) < 0:
            continue
        s += (-1) ** k / (f(d[0]) * f(d[1]) * f(d[2]) * f(d[3]) * f(d[4]) * f(d[5]))
    return pref * s


def build_cg_tensors(lam_max):
    """cg[(l1, l2, lam)] = dense C[m1, m2, mu] (zero off the mu = m1+m2 rule)."""
    cg = {}
    for l1 in range(lam_max + 1):
        for l2 in range(lam_max + 1):
            for lam in range(abs(l1 - l2), min(l1 + l2, lam_max) + 1):
                C = np.zeros((2 * l1 + 1, 2 * l2 + 1, 2 * lam + 1), dtype=np.float64)
                for a in range(2 * l1 + 1):
                    for b in range(2 * l2 + 1):
                        for m in range(2 * lam + 1):
                            C[a, b, m] = _cg_coefficient(
                                l1, a - l1, l2, b - l2, lam, m - lam)
                cg[(l1, l2, lam)] = C
    return cg


def build_pair_tensor_2d(cg):
    """V2d[j, i*128 + o] = W[i, j, o] = sum_{(l1,l2,lam)} C[m1,m2,mu]*C[p1,p2,nu].

    i = l1*25 + m1*5 + p1, j = l2*25 + m2*5 + p2, o = lam*25 + mu*5 + nu.
    i padded to IPAD=80 (sublane multiple), o padded to 128 lanes, j kept at 75.
    """
    W = np.zeros((P, P, P), dtype=np.float64)                 # [i, j, o]
    for (l1, l2, lam), C in cg.items():
        Cp = np.zeros((D, D, D), dtype=np.float64)
        Cp[:2 * l1 + 1, :2 * l2 + 1, :2 * lam + 1] = C
        # axes: x=m1, z=p1 (-> i), y=m2, w=p2 (-> j), m=mu, n=nu (-> o)
        blk = np.einsum('xym,zwn->xzywmn', Cp, Cp).reshape(D2, D2, D2)
        W[l1 * D2:(l1 + 1) * D2, l2 * D2:(l2 + 1) * D2, lam * D2:(lam + 1) * D2] += blk
    V2 = np.zeros((P, IPAD, PP), dtype=np.float32)            # [j, i, o]
    V2[:, :P, :P] = np.transpose(W, (1, 0, 2))
    return jnp.asarray(V2.reshape(P, IPAD * PP))              # [75, 10240] ~ 3.1 MB f32


def pack_levels(X_levels):
    """Pack dict-of-levels into [B, 128] (zero-padded), row-major (l, m, m')."""
    B = X_levels[0].shape[0]
    xp = np.zeros((B, PP), dtype=np.float32)
    for l, x in enumerate(X_levels):
        d = 2 * l + 1
        tile = np.zeros((B, D, D), dtype=np.float32)
        tile[:, :d, :d] = np.asarray(x, dtype=np.float32)
        xp[:, l * D2:(l + 1) * D2] = tile.reshape(B, D2)
    return jnp.asarray(xp)


# ---------------- Pallas kernel ----------------
def _wigner_chain_kernel(x_ref, v_ref, o_ref, m_ref):
    # x_ref : VMEM [BATCH, 128]        packed X rows (also the initial wig)
    # v_ref : VMEM [75, IPAD*128]      constant V2d[j, i*128 + o] = W[i, j, o]
    # o_ref : VMEM [BATCH, 128]        packed result of the last Wigner combine
    # m_ref : VMEM scratch [IPAD, BATCH, 128]   per-row matrices M_b[i, o]
    x = x_ref[...]                                             # [BATCH, 128]
    xs = x[:, :P]                                              # [BATCH, 75]

    # --- M-build on the MXU, chunked over the fused (i, o) output axis so the live
    # result stays ~16 vregs (no register-file spill), each chunk stored immediately.
    # Mflat[b, i*128 + o] = sum_j x[b, j] * W[i, j, o]
    for c in range(N_CHUNKS):
        i0 = c * CHUNK_I
        chunk = jnp.dot(xs, v_ref[:, i0 * PP:(i0 + CHUNK_I) * PP],
                        preferred_element_type=jnp.float32)    # [BATCH, CHUNK_I*128]
        # Un-fuse (i, o): lane-aligned 128-wide slices -> one full unmasked (8,128)
        # vreg store per i (scratch laid out [IPAD, BATCH, 128]).
        for ii in range(CHUNK_I):
            m_ref[i0 + ii] = chunk[:, ii * PP:(ii + 1) * PP]

    # --- chain: num_iterations full combines + the final lambda_max=0 combine.
    # Iteration-outer / batch-inner so the BATCH independent M=1 matvecs of each
    # iteration are issued back-to-back (hides MXU push->pop latency).  Per-row M is
    # read back as a strided sublane load m_ref[:, b, :] (vld slot, not vst).
    # Only packed element o == 0 of the last combine is needed (lam>0 blocks never
    # write o=0), so we run it as a full dense matvec and read o=0 in the wrapper.
    wigs = [x[b:b + 1, :] for b in range(BATCH)]               # BATCH x [1, 128]
    for _ in range(NUM_ITERATIONS + 1):
        new = []
        for b in range(BATCH):
            m_b = m_ref[:, b, :]                               # [IPAD, 128]
            new.append(jnp.dot(wigs[b][:, :IPAD], m_b,
                               preferred_element_type=jnp.float32))  # [1, 128]
        wigs = new

    # One dense (8,128) output store.
    o_ref[...] = jnp.concatenate(wigs, axis=0)


def wigner_forward(x_packed, v2d):
    out = pl.pallas_call(
        _wigner_chain_kernel,
        out_shape=jax.ShapeDtypeStruct((BATCH, PP), jnp.float32),
        # No grid: single step, whole arrays in VMEM, constant V single-buffered and
        # DMA'd exactly once (the v7x 2-core split duplicated the dominant DMA).
        in_specs=[
            pl.BlockSpec(memory_space=pltpu.MemorySpace.VMEM),
            pl.BlockSpec(memory_space=pltpu.MemorySpace.VMEM),
        ],
        out_specs=pl.BlockSpec(memory_space=pltpu.MemorySpace.VMEM),
        scratch_shapes=[pltpu.VMEM((IPAD, BATCH, PP), jnp.float32)],
        compiler_params=pltpu.CompilerParams(
            vmem_limit_bytes=16 * 1024 * 1024),                # ~3.5 MB actually used
    )(x_packed, v2d)
    return out[:, 0]                                           # result['0'][:, 0, 0]


# ---------------- pure-numpy reference (original dict-of-levels semantics) ----------------
def reference_forward(X_levels, cg):
    X = {l: np.asarray(x, dtype=np.float64) for l, x in enumerate(X_levels)}

    def combine(X1, X2, lam_max):
        res = {}
        for (l1, l2, lam), C in cg.items():
            if lam > lam_max:
                continue
            t = np.einsum('xym,zwn,bxz,byw->bmn', C, C, X1[l1], X2[l2])
            res[lam] = res.get(lam, 0.0) + t
        return res

    wig = X
    for _ in range(NUM_ITERATIONS):
        wig = combine(wig, X, LAMBDA_MAX)
    last = combine(wig, X, 0)
    return last[0][:, 0, 0]


if __name__ == "__main__":
    key = jax.random.PRNGKey(0)
    keys = jax.random.split(key, LAMBDA_MAX + 1)
    # X["l"]: [B, 2l+1, 2l+1] equivariant kernel blocks
    X_levels = [
        0.5 * jax.random.normal(keys[l], (BATCH, 2 * l + 1, 2 * l + 1), dtype=jnp.float32)
        for l in range(LAMBDA_MAX + 1)
    ]

    cg = build_cg_tensors(LAMBDA_MAX)          # deterministic "parameter" init
    v2d = build_pair_tensor_2d(cg)             # [75, 10240] f32 constant
    x_packed = pack_levels(X_levels)           # [8, 128] f32

    out = wigner_forward(x_packed, v2d)
    out = jax.block_until_ready(out)

    ref = reference_forward(X_levels, cg)
    scale = max(1e-6, float(np.max(np.abs(ref))))
    np.testing.assert_allclose(np.asarray(out, dtype=np.float64), ref,
                               rtol=5e-3, atol=5e-4 * scale)
    print("KERNEL_OK")
</pallas_src>

<mosaic_0001>
module attributes {stable_mosaic.version = 11 : i64} {
  func.func @_wigner_chain_kernel(%arg0: memref<8x128xf32, #tpu.memory_space<vmem>>, %arg1: memref<75x10240xf32, #tpu.memory_space<vmem>>, %arg2: memref<8x128xf32, #tpu.memory_space<vmem>>, %arg3: memref<80x8x128xf32, #tpu.memory_space<vmem>>) attributes {dimension_semantics = [], scalar_prefetch = 0 : i64, scratch_operands = 1 : i64, tpu.core_type = #tpu.core_type<tc>} {
    %c0 = arith.constant 0 : index
    %c0_0 = arith.constant 0 : index
    %0 = vector.load %arg0[%c0, %c0_0] : memref<8x128xf32, #tpu.memory_space<vmem>>, vector<8x128xf32>
    %1 = vector.extract_strided_slice %0 {offsets = [0, 0], sizes = [8, 75], strides = [1, 1]} : vector<8x128xf32> to vector<8x75xf32>
    %c0_1 = arith.constant 0 : index
    %c0_2 = arith.constant 0 : index
    %2 = vector.load %arg1[%c0_1, %c0_2] : memref<75x10240xf32, #tpu.memory_space<vmem>>, vector<75x2048xf32>
    %cst = arith.constant dense<0.000000e+00> : vector<8x2048xf32>
    %3 = tpu.matmul %1, %2, %cst {dimension_numbers = #tpu.dot_dimension_numbers<[1], [0], [0], [1], [0, 0, 1, 1], [], []>} : vector<8x75xf32>, vector<75x2048xf32>, vector<8x2048xf32> -> vector<8x2048xf32>
    %4 = vector.extract_strided_slice %3 {offsets = [0, 0], sizes = [8, 128], strides = [1, 1]} : vector<8x2048xf32> to vector<8x128xf32>
    %c0_3 = arith.constant 0 : index
    %c0_4 = arith.constant 0 : index
    %c0_5 = arith.constant 0 : index
    %5 = vector.load %arg3[%c0_3, %c0_4, %c0_5] : memref<80x8x128xf32, #tpu.memory_space<vmem>>, vector<1x8x128xf32>
    %6 = vector.shape_cast %5 : vector<1x8x128xf32> to vector<8x128xf32>
    %7 = vector.shape_cast %4 : vector<8x128xf32> to vector<1x8x128xf32>
    tpu.vector_store %arg3[%c0_3, %c0_4, %c0_5], %7 {strides = array<i32>} : memref<80x8x128xf32, #tpu.memory_space<vmem>>, vector<1x8x128xf32>,
    %8 = vector.extract_strided_slice %3 {offsets = [0, 128], sizes = [8, 128], strides = [1, 1]} : vector<8x2048xf32> to vector<8x128xf32>
    %c1 = arith.constant 1 : index
    %c0_6 = arith.constant 0 : index
    %c0_7 = arith.constant 0 : index
    %9 = vector.load %arg3[%c1, %c0_6, %c0_7] : memref<80x8x128xf32, #tpu.memory_space<vmem>>, vector<1x8x128xf32>
    %10 = vector.shape_cast %9 : vector<1x8x128xf32> to vector<8x128xf32>
    %11 = vector.shape_cast %8 : vector<8x128xf32> to vector<1x8x128xf32>
    tpu.vector_store %arg3[%c1, %c0_6, %c0_7], %11 {strides = array<i32>} : memref<80x8x128xf32, #tpu.memory_space<vmem>>, vector<1x8x128xf32>,
    %12 = vector.extract_strided_slice %3 {offsets = [0, 256], sizes = [8, 128], strides = [1, 1]} : vector<8x2048xf32> to vector<8x128xf32>
    %c2 = arith.constant 2 : index
    %c0_8 = arith.constant 0 : index
    %c0_9 = arith.constant 0 : index
    %13 = vector.load %arg3[%c2, %c0_8, %c0_9] : memref<80x8x128xf32, #tpu.memory_space<vmem>>, vector<1x8x128xf32>
    %14 = vector.shape_cast %13 : vector<1x8x128xf32> to vector<8x128xf32>
    %15 = vector.shape_cast %12 : vector<8x128xf32> to vector<1x8x128xf32>
    tpu.vector_store %arg3[%c2, %c0_8, %c0_9], %15 {strides = array<i32>} : memref<80x8x128xf32, #tpu.memory_space<vmem>>, vector<1x8x128xf32>,
    %16 = vector.extract_strided_slice %3 {offsets = [0, 384], sizes = [8, 128], strides = [1, 1]} : vector<8x2048xf32> to vector<8x128xf32>
    %c3 = arith.constant 3 : index
    %c0_10 = arith.constant 0 : index
    %c0_11 = arith.constant 0 : index
    %17 = vector.load %arg3[%c3, %c0_10, %c0_11] : memref<80x8x128xf32, #tpu.memory_space<vmem>>, vector<1x8x128xf32>
    %18 = vector.shape_cast %17 : vector<1x8x128xf32> to vector<8x128xf32>
    %19 = vector.shape_cast %16 : vector<8x128xf32> to vector<1x8x128xf32>
    tpu.vector_store %arg3[%c3, %c0_10, %c0_11], %19 {strides = array<i32>} : memref<80x8x128xf32, #tpu.memory_space<vmem>>, vector<1x8x128xf32>,
    %20 = vector.extract_strided_slice %3 {offsets = [0, 512], sizes = [8, 128], strides = [1, 1]} : vector<8x2048xf32> to vector<8x128xf32>
    %c4 = arith.constant 4 : index
    %c0_12 = arith.constant 0 : index
    %c0_13 = arith.constant 0 : index
    %21 = vector.load %arg3[%c4, %c0_12, %c0_13] : memref<80x8x128xf32, #tpu.memory_space<vmem>>, vector<1x8x128xf32>
    %22 = vector.shape_cast %21 : vector<1x8x128xf32> to vector<8x128xf32>
    %23 = vector.shape_cast %20 : vector<8x128xf32> to vector<1x8x128xf32>
    tpu.vector_store %arg3[%c4, %c0_12, %c0_13], %23 {strides = array<i32>} : memref<80x8x128xf32, #tpu.memory_space<vmem>>, vector<1x8x128xf32>,
    %24 = vector.extract_strided_slice %3 {offsets = [0, 640], sizes = [8, 128], strides = [1, 1]} : vector<8x2048xf32> to vector<8x128xf32>
    %c5 = arith.constant 5 : index
    %c0_14 = arith.constant 0 : index
    %c0_15 = arith.constant 0 : index
    %25 = vector.load %arg3[%c5, %c0_14, %c0_15] : memref<80x8x128xf32, #tpu.memory_space<vmem>>, vector<1x8x128xf32>
    %26 = vector.shape_cast %25 : vector<1x8x128xf32> to vector<8x128xf32>
    %27 = vector.shape_cast %24 : vector<8x128xf32> to vector<1x8x128xf32>
    tpu.vector_store %arg3[%c5, %c0_14, %c0_15], %27 {strides = array<i32>} : memref<80x8x128xf32, #tpu.memory_space<vmem>>, vector<1x8x128xf32>,
    %28 = vector.extract_strided_slice %3 {offsets = [0, 768], sizes = [8, 128], strides = [1, 1]} : vector<8x2048xf32> to vector<8x128xf32>
    %c6 = arith.constant 6 : index
    %c0_16 = arith.constant 0 : index
    %c0_17 = arith.constant 0 : index
    %29 = vector.load %arg3[%c6, %c0_16, %c0_17] : memref<80x8x128xf32, #tpu.memory_space<vmem>>, vector<1x8x128xf32>
    %30 = vector.shape_cast %29 : vector<1x8x128xf32> to vector<8x128xf32>
    %31 = vector.shape_cast %28 : vector<8x128xf32> to vector<1x8x128xf32>
    tpu.vector_store %arg3[%c6, %c0_16, %c0_17], %31 {strides = array<i32>} : memref<80x8x128xf32, #tpu.memory_space<vmem>>, vector<1x8x128xf32>,
    %32 = vector.extract_strided_slice %3 {offsets = [0, 896], sizes = [8, 128], strides = [1, 1]} : vector<8x2048xf32> to vector<8x128xf32>
    %c7 = arith.constant 7 : index
    %c0_18 = arith.constant 0 : index
    %c0_19 = arith.constant 0 : index
    %33 = vector.load %arg3[%c7, %c0_18, %c0_19] : memref<80x8x128xf32, #tpu.memory_space<vmem>>, vector<1x8x128xf32>
    %34 = vector.shape_cast %33 : vector<1x8x128xf32> to vector<8x128xf32>
    %35 = vector.shape_cast %32 : vector<8x128xf32> to vector<1x8x128xf32>
    tpu.vector_store %arg3[%c7, %c0_18, %c0_19], %35 {strides = array<i32>} : memref<80x8x128xf32, #tpu.memory_space<vmem>>, vector<1x8x128xf32>,
    %36 = vector.extract_strided_slice %3 {offsets = [0, 1024], sizes = [8, 128], strides = [1, 1]} : vector<8x2048xf32> to vector<8x128xf32>
    %c8 = arith.constant 8 : index
    %c0_20 = arith.constant 0 : index
    %c0_21 = arith.constant 0 : index
    %37 = vector.load %arg3[%c8, %c0_20, %c0_21] : memref<80x8x128xf32, #tpu.memory_space<vmem>>, vector<1x8x128xf32>
    %38 = vector.shape_cast %37 : vector<1x8x128xf32> to vector<8x128xf32>
    %39 = vector.shape_cast %36 : vector<8x128xf32> to vector<1x8x128xf32>
    tpu.vector_store %arg3[%c8, %c0_20, %c0_21], %39 {strides = array<i32>} : memref<80x8x128xf32, #tpu.memory_space<vmem>>, vector<1x8x128xf32>,
    %40 = vector.extract_strided_slice %3 {offsets = [0, 1152], sizes = [8, 128], strides = [1, 1]} : vector<8x2048xf32> to vector<8x128xf32>
    %c9 = arith.constant 9 : index
    %c0_22 = arith.constant 0 : index
    %c0_23 = arith.constant 0 : index
    %41 = vector.load %arg3[%c9, %c0_22, %c0_23] : memref<80x8x128xf32, #tpu.memory_space<vmem>>, vector<1x8x128xf32>
    %42 = vector.shape_cast %41 : vector<1x8x128xf32> to vector<8x128xf32>
    %43 = vector.shape_cast %40 : vector<8x128xf32> to vector<1x8x128xf32>
    tpu.vector_store %arg3[%c9, %c0_22, %c0_23], %43 {strides = array<i32>} : memref<80x8x128xf32, #tpu.memory_space<vmem>>, vector<1x8x128xf32>,
    %44 = vector.extract_strided_slice %3 {offsets = [0, 1280], sizes = [8, 128], strides = [1, 1]} : vector<8x2048xf32> to vector<8x128xf32>
    %c10 = arith.constant 10 : index
    %c0_24 = arith.constant 0 : index
    %c0_25 = arith.constant 0 : index
    %45 = vector.load %arg3[%c10, %c0_24, %c0_25] : memref<80x8x128xf32, #tpu.memory_space<vmem>>, vector<1x8x128xf32>
    %46 = vector.shape_cast %45 : vector<1x8x128xf32> to vector<8x128xf32>
    %47 = vector.shape_cast %44 : vector<8x128xf32> to vector<1x8x128xf32>
    tpu.vector_store %arg3[%c10, %c0_24, %c0_25], %47 {strides = array<i32>} : memref<80x8x128xf32, #tpu.memory_space<vmem>>, vector<1x8x128xf32>,
    %48 = vector.extract_strided_slice %3 {offsets = [0, 1408], sizes = [8, 128], strides = [1, 1]} : vector<8x2048xf32> to vector<8x128xf32>
    %c11 = arith.constant 11 : index
    %c0_26 = arith.constant 0 : index
    %c0_27 = arith.constant 0 : index
    %49 = vector.load %arg3[%c11, %c0_26, %c0_27] : memref<80x8x128xf32, #tpu.memory_space<vmem>>, vector<1x8x128xf32>
    %50 = vector.shape_cast %49 : vector<1x8x128xf32> to vector<8x128xf32>
    %51 = vector.shape_cast %48 : vector<8x128xf32> to vector<1x8x128xf32>
    tpu.vector_store %arg3[%c11, %c0_26, %c0_27], %51 {strides = array<i32>} : memref<80x8x128xf32, #tpu.memory_space<vmem>>, vector<1x8x128xf32>,
    %52 = vector.extract_strided_slice %3 {offsets = [0, 1536], sizes = [8, 128], strides = [1, 1]} : vector<8x2048xf32> to vector<8x128xf32>
    %c12 = arith.constant 12 : index
    %c0_28 = arith.constant 0 : index
    %c0_29 = arith.constant 0 : index
    %53 = vector.load %arg3[%c12, %c0_28, %c0_29] : memref<80x8x128xf32, #tpu.memory_space<vmem>>, vector<1x8x128xf32>
    %54 = vector.shape_cast %53 : vector<1x8x128xf32> to vector<8x128xf32>
    %55 = vector.shape_cast %52 : vector<8x128xf32> to vector<1x8x128xf32>
    tpu.vector_store %arg3[%c12, %c0_28, %c0_29], %55 {strides = array<i32>} : memref<80x8x128xf32, #tpu.memory_space<vmem>>, vector<1x8x128xf32>,
    %56 = vector.extract_strided_slice %3 {offsets = [0, 1664], sizes = [8, 128], strides = [1, 1]} : vector<8x2048xf32> to vector<8x128xf32>
    %c13 = arith.constant 13 : index
    %c0_30 = arith.constant 0 : index
    %c0_31 = arith.constant 0 : index
    %57 = vector.load %arg3[%c13, %c0_30, %c0_31] : memref<80x8x128xf32, #tpu.memory_space<vmem>>, vector<1x8x128xf32>
    %58 = vector.shape_cast %57 : vector<1x8x128xf32> to vector<8x128xf32>
    %59 = vector.shape_cast %56 : vector<8x128xf32> to vector<1x8x128xf32>
    tpu.vector_store %arg3[%c13, %c0_30, %c0_31], %59 {strides = array<i32>} : memref<80x8x128xf32, #tpu.memory_space<vmem>>, vector<1x8x128xf32>,
    %60 = vector.extract_strided_slice %3 {offsets = [0, 1792], sizes = [8, 128], strides = [1, 1]} : vector<8x2048xf32> to vector<8x128xf32>
    %c14 = arith.constant 14 : index
    %c0_32 = arith.constant 0 : index
    %c0_33 = arith.constant 0 : index
    %61 = vector.load %arg3[%c14, %c0_32, %c0_33] : memref<80x8x128xf32, #tpu.memory_space<vmem>>, vector<1x8x128xf32>
    %62 = vector.shape_cast %61 : vector<1x8x128xf32> to vector<8x128xf32>
    %63 = vector.shape_cast %60 : vector<8x128xf32> to vector<1x8x128xf32>
    tpu.vector_store %arg3[%c14, %c0_32, %c0_33], %63 {strides = array<i32>} : memref<80x8x128xf32, #tpu.memory_space<vmem>>, vector<1x8x128xf32>,
    %64 = vector.extract_strided_slice %3 {offsets = [0, 1920], sizes = [8, 128], strides = [1, 1]} : vector<8x2048xf32> to vector<8x128xf32>
    %c15 = arith.constant 15 : index
    %c0_34 = arith.constant 0 : index
    %c0_35 = arith.constant 0 : index
    %65 = vector.load %arg3[%c15, %c0_34, %c0_35] : memref<80x8x128xf32, #tpu.memory_space<vmem>>, vector<1x8x128xf32>
    %66 = vector.shape_cast %65 : vector<1x8x128xf32> to vector<8x128xf32>
    %67 = vector.shape_cast %64 : vector<8x128xf32> to vector<1x8x128xf32>
    tpu.vector_store %arg3[%c15, %c0_34, %c0_35], %67 {strides = array<i32>} : memref<80x8x128xf32, #tpu.memory_space<vmem>>, vector<1x8x128xf32>,
    %c0_36 = arith.constant 0 : index
    %c2048 = arith.constant 2048 : index
    %68 = vector.load %arg1[%c0_36, %c2048] : memref<75x10240xf32, #tpu.memory_space<vmem>>, vector<75x2048xf32>
    %cst_37 = arith.constant dense<0.000000e+00> : vector<8x2048xf32>
    %69 = tpu.matmul %1, %68, %cst_37 {dimension_numbers = #tpu.dot_dimension_numbers<[1], [0], [0], [1], [0, 0, 1, 1], [], []>} : vector<8x75xf32>, vector<75x2048xf32>, vector<8x2048xf32> -> vector<8x2048xf32>
    %70 = vector.extract_strided_slice %69 {offsets = [0, 0], sizes = [8, 128], strides = [1, 1]} : vector<8x2048xf32> to vector<8x128xf32>
    %c16 = arith.constant 16 : index
    %c0_38 = arith.constant 0 : index
    %c0_39 = arith.constant 0 : index
    %71 = vector.load %arg3[%c16, %c0_38, %c0_39] : memref<80x8x128xf32, #tpu.memory_space<vmem>>, vector<1x8x128xf32>
    %72 = vector.shape_cast %71 : vector<1x8x128xf32> to vector<8x128xf32>
    %73 = vector.shape_cast %70 : vector<8x128xf32> to vector<1x8x128xf32>
    tpu.vector_store %arg3[%c16, %c0_38, %c0_39], %73 {strides = array<i32>} : memref<80x8x128xf32, #tpu.memory_space<vmem>>, vector<1x8x128xf32>,
    %74 = vector.extract_strided_slice %69 {offsets = [0, 128], sizes = [8, 128], strides = [1, 1]} : vector<8x2048xf32> to vector<8x128xf32>
    %c17 = arith.constant 17 : index
    %c0_40 = arith.constant 0 : index
    %c0_41 = arith.constant 0 : index
    %75 = vector.load %arg3[%c17, %c0_40, %c0_41] : memref<80x8x128xf32, #tpu.memory_space<vmem>>, vector<1x8x128xf32>
    %76 = vector.shape_cast %75 : vector<1x8x128xf32> to vector<8x128xf32>
    %77 = vector.shape_cast %74 : vector<8x128xf32> to vector<1x8x128xf32>
    tpu.vector_store %arg3[%c17, %c0_40, %c0_41], %77 {strides = array<i32>} : memref<80x8x128xf32, #tpu.memory_space<vmem>>, vector<1x8x128xf32>,
    %78 = vector.extract_strided_slice %69 {offsets = [0, 256], sizes = [8, 128], strides = [1, 1]} : vector<8x2048xf32> to vector<8x128xf32>
    %c18 = arith.constant 18 : index
    %c0_42 = arith.constant 0 : index
    %c0_43 = arith.constant 0 : index
    %79 = vector.load %arg3[%c18, %c0_42, %c0_43] : memref<80x8x128xf32, #tpu.memory_space<vmem>>, vector<1x8x128xf32>
    %80 = vector.shape_cast %79 : vector<1x8x128xf32> to vector<8x128xf32>
    %81 = vector.shape_cast %78 : vector<8x128xf32> to vector<1x8x128xf32>
    tpu.vector_store %arg3[%c18, %c0_42, %c0_43], %81 {strides = array<i32>} : memref<80x8x128xf32, #tpu.memory_space<vmem>>, vector<1x8x128xf32>,
    %82 = vector.extract_strided_slice %69 {offsets = [0, 384], sizes = [8, 128], strides = [1, 1]} : vector<8x2048xf32> to vector<8x128xf32>
    %c19 = arith.constant 19 : index
    %c0_44 = arith.constant 0 : index
    %c0_45 = arith.constant 0 : index
    %83 = vector.load %arg3[%c19, %c0_44, %c0_45] : memref<80x8x128xf32, #tpu.memory_space<vmem>>, vector<1x8x128xf32>
    %84 = vector.shape_cast %83 : vector<1x8x128xf32> to vector<8x128xf32>
    %85 = vector.shape_cast %82 : vector<8x128xf32> to vector<1x8x128xf32>
    tpu.vector_store %arg3[%c19, %c0_44, %c0_45], %85 {strides = array<i32>} : memref<80x8x128xf32, #tpu.memory_space<vmem>>, vector<1x8x128xf32>,
    %86 = vector.extract_strided_slice %69 {offsets = [0, 512], sizes = [8, 128], strides = [1, 1]} : vector<8x2048xf32> to vector<8x128xf32>
    %c20 = arith.constant 20 : index
    %c0_46 = arith.constant 0 : index
    %c0_47 = arith.constant 0 : index
    %87 = vector.load %arg3[%c20, %c0_46, %c0_47] : memref<80x8x128xf32, #tpu.memory_space<vmem>>, vector<1x8x128xf32>
    %88 = vector.shape_cast %87 : vector<1x8x128xf32> to vector<8x128xf32>
    %89 = vector.shape_cast %86 : vector<8x128xf32> to vector<1x8x128xf32>
    tpu.vector_store %arg3[%c20, %c0_46, %c0_47], %89 {strides = array<i32>} : memref<80x8x128xf32, #tpu.memory_space<vmem>>, vector<1x8x128xf32>,
    %90 = vector.extract_strided_slice %69 {offsets = [0, 640], sizes = [8, 128], strides = [1, 1]} : vector<8x2048xf32> to vector<8x128xf32>
    %c21 = arith.constant 21 : index
    %c0_48 = arith.constant 0 : index
    %c0_49 = arith.constant 0 : index
    %91 = vector.load %arg3[%c21, %c0_48, %c0_49] : memref<80x8x128xf32, #tpu.memory_space<vmem>>, vector<1x8x128xf32>
    %92 = vector.shape_cast %91 : vector<1x8x128xf32> to vector<8x128xf32>
    %93 = vector.shape_cast %90 : vector<8x128xf32> to vector<1x8x128xf32>
    tpu.vector_store %arg3[%c21, %c0_48, %c0_49], %93 {strides = array<i32>} : memref<80x8x128xf32, #tpu.memory_space<vmem>>, vector<1x8x128xf32>,
    %94 = vector.extract_strided_slice %69 {offsets = [0, 768], sizes = [8, 128], strides = [1, 1]} : vector<8x2048xf32> to vector<8x128xf32>
    %c22 = arith.constant 22 : index
    %c0_50 = arith.constant 0 : index
    %c0_51 = arith.constant 0 : index
    %95 = vector.load %arg3[%c22, %c0_50, %c0_51] : memref<80x8x128xf32, #tpu.memory_space<vmem>>, vector<1x8x128xf32>
    %96 = vector.shape_cast %95 : vector<1x8x128xf32> to vector<8x128xf32>
    %97 = vector.shape_cast %94 : vector<8x128xf32> to vector<1x8x128xf32>
    tpu.vector_store %arg3[%c22, %c0_50, %c0_51], %97 {strides = array<i32>} : memref<80x8x128xf32, #tpu.memory_space<vmem>>, vector<1x8x128xf32>,
    %98 = vector.extract_strided_slice %69 {offsets = [0, 896], sizes = [8, 128], strides = [1, 1]} : vector<8x2048xf32> to vector<8x128xf32>
    %c23 = arith.constant 23 : index
    %c0_52 = arith.constant 0 : index
    %c0_53 = arith.constant 0 : index
    %99 = vector.load %arg3[%c23, %c0_52, %c0_53] : memref<80x8x128xf32, #tpu.memory_space<vmem>>, vector<1x8x128xf32>
    %100 = vector.shape_cast %99 : vector<1x8x128xf32> to vector<8x128xf32>
    %101 = vector.shape_cast %98 : vector<8x128xf32> to vector<1x8x128xf32>
    tpu.vector_store %arg3[%c23, %c0_52, %c0_53], %101 {strides = array<i32>} : memref<80x8x128xf32, #tpu.memory_space<vmem>>, vector<1x8x128xf32>,
    %102 = vector.extract_strided_slice %69 {offsets = [0, 1024], sizes = [8, 128], strides = [1, 1]} : vector<8x2048xf32> to vector<8x128xf32>
    %c24 = arith.constant 24 : index
    %c0_54 = arith.constant 0 : index
    %c0_55 = arith.constant 0 : index
    %103 = vector.load %arg3[%c24, %c0_54, %c0_55] : memref<80x8x128xf32, #tpu.memory_space<vmem>>, vector<1x8x128xf32>
    %104 = vector.shape_cast %103 : vector<1x8x128xf32> to vector<8x128xf32>
    %105 = vector.shape_cast %102 : vector<8x128xf32> to vector<1x8x128xf32>
    tpu.vector_store %arg3[%c24, %c0_54, %c0_55], %105 {strides = array<i32>} : memref<80x8x128xf32, #tpu.memory_space<vmem>>, vector<1x8x128xf32>,
    %106 = vector.extract_strided_slice %69 {offsets = [0, 1152], sizes = [8, 128], strides = [1, 1]} : vector<8x2048xf32> to vector<8x128xf32>
    %c25 = arith.constant 25 : index
    %c0_56 = arith.constant 0 : index
    %c0_57 = arith.constant 0 : index
    %107 = vector.load %arg3[%c25, %c0_56, %c0_57] : memref<80x8x128xf32, #tpu.memory_space<vmem>>, vector<1x8x128xf32>
    %108 = vector.shape_cast %107 : vector<1x8x128xf32> to vector<8x128xf32>
    %109 = vector.shape_cast %106 : vector<8x128xf32> to vector<1x8x128xf32>
    tpu.vector_store %arg3[%c25, %c0_56, %c0_57], %109 {strides = array<i32>} : memref<80x8x128xf32, #tpu.memory_space<vmem>>, vector<1x8x128xf32>,
    %110 = vector.extract_strided_slice %69 {offsets = [0, 1280], sizes = [8, 128], strides = [1, 1]} : vector<8x2048xf32> to vector<8x128xf32>
    %c26 = arith.constant 26 : index
    %c0_58 = arith.constant 0 : index
    %c0_59 = arith.constant 0 : index
    %111 = vector.load %arg3[%c26, %c0_58, %c0_59] : memref<80x8x128xf32, #tpu.memory_space<vmem>>, vector<1x8x128xf32>
    %112 = vector.shape_cast %111 : vector<1x8x128xf32> to vector<8x128xf32>
    %113 = vector.shape_cast %110 : vector<8x128xf32> to vector<1x8x128xf32>
    tpu.vector_store %arg3[%c26, %c0_58, %c0_59], %113 {strides = array<i32>} : memref<80x8x128xf32, #tpu.memory_space<vmem>>, vector<1x8x128xf32>,
    %114 = vector.extract_strided_slice %69 {offsets = [0, 1408], sizes = [8, 128], strides = [1, 1]} : vector<8x2048xf32> to vector<8x128xf32>
    %c27 = arith.constant 27 : index
    %c0_60 = arith.constant 0 : index
    %c0_61 = arith.constant 0 : index
    %115 = vector.load %arg3[%c27, %c0_60, %c0_61] : memref<80x8x128xf32, #tpu.memory_space<vmem>>, vector<1x8x128xf32>
    %116 = vector.shape_cast %115 : vector<1x8x128xf32> to vector<8x128xf32>
    %117 = vector.shape_cast %114 : vector<8x128xf32> to vector<1x8x128xf32>
    tpu.vector_store %arg3[%c27, %c0_60, %c0_61], %117 {strides = array<i32>} : memref<80x8x128xf32, #tpu.memory_space<vmem>>, vector<1x8x128xf32>,
    %118 = vector.extract_strided_slice %69 {offsets = [0, 1536], sizes = [8, 128], strides = [1, 1]} : vector<8x2048xf32> to vector<8x128xf32>
    %c28 = arith.constant 28 : index
    %c0_62 = arith.constant 0 : index
    %c0_63 = arith.constant 0 : index
    %119 = vector.load %arg3[%c28, %c0_62, %c0_63] : memref<80x8x128xf32, #tpu.memory_space<vmem>>, vector<1x8x128xf32>
    %120 = vector.shape_cast %119 : vector<1x8x128xf32> to vector<8x128xf32>
    %121 = vector.shape_cast %118 : vector<8x128xf32> to vector<1x8x128xf32>
    tpu.vector_store %arg3[%c28, %c0_62, %c0_63], %121 {strides = array<i32>} : memref<80x8x128xf32, #tpu.memory_space<vmem>>, vector<1x8x128xf32>,
    %122 = vector.extract_strided_slice %69 {offsets = [0, 1664], sizes = [8, 128], strides = [1, 1]} : vector<8x2048xf32> to vector<8x128xf32>
    %c29 = arith.constant 29 : index
    %c0_64 = arith.constant 0 : index
    %c0_65 = arith.constant 0 : index
    %123 = vector.load %arg3[%c29, %c0_64, %c0_65] : memref<80x8x128xf32, #tpu.memory_space<vmem>>, vector<1x8x128xf32>
    %124 = vector.shape_cast %123 : vector<1x8x128xf32> to vector<8x128xf32>
    %125 = vector.shape_cast %122 : vector<8x128xf32> to vector<1x8x128xf32>
    tpu.vector_store %arg3[%c29, %c0_64, %c0_65], %125 {strides = array<i32>} : memref<80x8x128xf32, #tpu.memory_space<vmem>>, vector<1x8x128xf32>,
    %126 = vector.extract_strided_slice %69 {offsets = [0, 1792], sizes = [8, 128], strides = [1, 1]} : vector<8x2048xf32> to vector<8x128xf32>
    %c30 = arith.constant 30 : index
    %c0_66 = arith.constant 0 : index
    %c0_67 = arith.constant 0 : index
    %127 = vector.load %arg3[%c30, %c0_66, %c0_67] : memref<80x8x128xf32, #tpu.memory_space<vmem>>, vector<1x8x128xf32>
    %128 = vector.shape_cast %127 : vector<1x8x128xf32> to vector<8x128xf32>
    %129 = vector.shape_cast %126 : vector<8x128xf32> to vector<1x8x128xf32>
    tpu.vector_store %arg3[%c30, %c0_66, %c0_67], %129 {strides = array<i32>} : memref<80x8x128xf32, #tpu.memory_space<vmem>>, vector<1x8x128xf32>,
    %130 = vector.extract_strided_slice %69 {offsets = [0, 1920], sizes = [8, 128], strides = [1, 1]} : vector<8x2048xf32> to vector<8x128xf32>
    %c31 = arith.constant 31 : index
    %c0_68 = arith.constant 0 : index
    %c0_69 = arith.constant 0 : index
    %131 = vector.load %arg3[%c31, %c0_68, %c0_69] : memref<80x8x128xf32, #tpu.memory_space<vmem>>, vector<1x8x128xf32>
    %132 = vector.shape_cast %131 : vector<1x8x128xf32> to vector<8x128xf32>
    %133 = vector.shape_cast %130 : vector<8x128xf32> to vector<1x8x128xf32>
    tpu.vector_store %arg3[%c31, %c0_68, %c0_69], %133 {strides = array<i32>} : memref<80x8x128xf32, #tpu.memory_space<vmem>>, vector<1x8x128xf32>,
    %c0_70 = arith.constant 0 : index
    %c4096 = arith.constant 4096 : index
    %134 = vector.load %arg1[%c0_70, %c4096] : memref<75x10240xf32, #tpu.memory_space<vmem>>, vector<75x2048xf32>
    %cst_71 = arith.constant dense<0.000000e+00> : vector<8x2048xf32>
    %135 = tpu.matmul %1, %134, %cst_71 {dimension_numbers = #tpu.dot_dimension_numbers<[1], [0], [0], [1], [0, 0, 1, 1], [], []>} : vector<8x75xf32>, vector<75x2048xf32>, vector<8x2048xf32> -> vector<8x2048xf32>
    %136 = vector.extract_strided_slice %135 {offsets = [0, 0], sizes = [8, 128], strides = [1, 1]} : vector<8x2048xf32> to vector<8x128xf32>
    %c32 = arith.constant 32 : index
    %c0_72 = arith.constant 0 : index
    %c0_73 = arith.constant 0 : index
    %137 = vector.load %arg3[%c32, %c0_72, %c0_73] : memref<80x8x128xf32, #tpu.memory_space<vmem>>, vector<1x8x128xf32>
    %138 = vector.shape_cast %137 : vector<1x8x128xf32> to vector<8x128xf32>
    %139 = vector.shape_cast %136 : vector<8x128xf32> to vector<1x8x128xf32>
    tpu.vector_store %arg3[%c32, %c0_72, %c0_73], %139 {strides = array<i32>} : memref<80x8x128xf32, #tpu.memory_space<vmem>>, vector<1x8x128xf32>,
    %140 = vector.extract_strided_slice %135 {offsets = [0, 128], sizes = [8, 128], strides = [1, 1]} : vector<8x2048xf32> to vector<8x128xf32>
    %c33 = arith.constant 33 : index
    %c0_74 = arith.constant 0 : index
    %c0_75 = arith.constant 0 : index
    %141 = vector.load %arg3[%c33, %c0_74, %c0_75] : memref<80x8x128xf32, #tpu.memory_space<vmem>>, vector<1x8x128xf32>
    %142 = vector.shape_cast %141 : vector<1x8x128xf32> to vector<8x128xf32>
    %143 = vector.shape_cast %140 : vector<8x128xf32> to vector<1x8x128xf32>
    tpu.vector_store %arg3[%c33, %c0_74, %c0_75], %143 {strides = array<i32>} : memref<80x8x128xf32, #tpu.memory_space<vmem>>, vector<1x8x128xf32>,
    %144 = vector.extract_strided_slice %135 {offsets = [0, 256], sizes = [8, 128], strides = [1, 1]} : vector<8x2048xf32> to vector<8x128xf32>
    %c34 = arith.constant 34 : index
    %c0_76 = arith.constant 0 : index
    %c0_77 = arith.constant 0 : index
    %145 = vector.load %arg3[%c34, %c0_76, %c0_77] : memref<80x8x128xf32, #tpu.memory_space<vmem>>, vector<1x8x128xf32>
    %146 = vector.shape_cast %145 : vector<1x8x128xf32> to vector<8x128xf32>
    %147 = vector.shape_cast %144 : vector<8x128xf32> to vector<1x8x128xf32>
    tpu.vector_store %arg3[%c34, %c0_76, %c0_77], %147 {strides = array<i32>} : memref<80x8x128xf32, #tpu.memory_space<vmem>>, vector<1x8x128xf32>,
    %148 = vector.extract_strided_slice %135 {offsets = [0, 384], sizes = [8, 128], strides = [1, 1]} : vector<8x2048xf32> to vector<8x128xf32>
    %c35 = arith.constant 35 : index
    %c0_78 = arith.constant 0 : index
    %c0_79 = arith.constant 0 : index
    %149 = vector.load %arg3[%c35, %c0_78, %c0_79] : memref<80x8x128xf32, #tpu.memory_space<vmem>>, vector<1x8x128xf32>
    %150 = vector.shape_cast %149 : vector<1x8x128xf32> to vector<8x128xf32>
    %151 = vector.shape_cast %148 : vector<8x128xf32> to vector<1x8x128xf32>
    tpu.vector_store %arg3[%c35, %c0_78, %c0_79], %151 {strides = array<i32>} : memref<80x8x128xf32, #tpu.memory_space<vmem>>, vector<1x8x128xf32>,
    %152 = vector.extract_strided_slice %135 {offsets = [0, 512], sizes = [8, 128], strides = [1, 1]} : vector<8x2048xf32> to vector<8x128xf32>
    %c36 = arith.constant 36 : index
    %c0_80 = arith.constant 0 : index
    %c0_81 = arith.constant 0 : index
    %153 = vector.load %arg3[%c36, %c0_80, %c0_81] : memref<80x8x128xf32, #tpu.memory_space<vmem>>, vector<1x8x128xf32>
    %154 = vector.shape_cast %153 : vector<1x8x128xf32> to vector<8x128xf32>
    %155 = vector.shape_cast %152 : vector<8x128xf32> to vector<1x8x128xf32>
    tpu.vector_store %arg3[%c36, %c0_80, %c0_81], %155 {strides = array<i32>} : memref<80x8x128xf32, #tpu.memory_space<vmem>>, vector<1x8x128xf32>,
    %156 = vector.extract_strided_slice %135 {offsets = [0, 640], sizes = [8, 128], strides = [1, 1]} : vector<8x2048xf32> to vector<8x128xf32>
    %c37 = arith.constant 37 : index
    %c0_82 = arith.constant 0 : index
    %c0_83 = arith.constant 0 : index
    %157 = vector.load %arg3[%c37, %c0_82, %c0_83] : memref<80x8x128xf32, #tpu.memory_space<vmem>>, vector<1x8x128xf32>
    %158 = vector.shape_cast %157 : vector<1x8x128xf32> to vector<8x128xf32>
    %159 = vector.shape_cast %156 : vector<8x128xf32> to vector<1x8x128xf32>
    tpu.vector_store %arg3[%c37, %c0_82, %c0_83], %159 {strides = array<i32>} : memref<80x8x128xf32, #tpu.memory_space<vmem>>, vector<1x8x128xf32>,
    %160 = vector.extract_strided_slice %135 {offsets = [0, 768], sizes = [8, 128], strides = [1, 1]} : vector<8x2048xf32> to vector<8x128xf32>
    %c38 = arith.constant 38 : index
    %c0_84 = arith.constant 0 : index
    %c0_85 = arith.constant 0 : index
    %161 = vector.load %arg3[%c38, %c0_84, %c0_85] : memref<80x8x128xf32, #tpu.memory_space<vmem>>, vector<1x8x128xf32>
    %162 = vector.shape_cast %161 : vector<1x8x128xf32> to vector<8x128xf32>
    %163 = vector.shape_cast %160 : vector<8x128xf32> to vector<1x8x128xf32>
    tpu.vector_store %arg3[%c38, %c0_84, %c0_85], %163 {strides = array<i32>} : memref<80x8x128xf32, #tpu.memory_space<vmem>>, vector<1x8x128xf32>,
    %164 = vector.extract_strided_slice %135 {offsets = [0, 896], sizes = [8, 128], strides = [1, 1]} : vector<8x2048xf32> to vector<8x128xf32>
    %c39 = arith.constant 39 : index
    %c0_86 = arith.constant 0 : index
    %c0_87 = arith.constant 0 : index
    %165 = vector.load %arg3[%c39, %c0_86, %c0_87] : memref<80x8x128xf32, #tpu.memory_space<vmem>>, vector<1x8x128xf32>
    %166 = vector.shape_cast %165 : vector<1x8x128xf32> to vector<8x128xf32>
    %167 = vector.shape_cast %164 : vector<8x128xf32> to vector<1x8x128xf32>
    tpu.vector_store %arg3[%c39, %c0_86, %c0_87], %167 {strides = array<i32>} : memref<80x8x128xf32, #tpu.memory_space<vmem>>, vector<1x8x128xf32>,
    %168 = vector.extract_strided_slice %135 {offsets = [0, 1024], sizes = [8, 128], strides = [1, 1]} : vector<8x2048xf32> to vector<8x128xf32>
    %c40 = arith.constant 40 : index
    %c0_88 = arith.constant 0 : index
    %c0_89 = arith.constant 0 : index
    %169 = vector.load %arg3[%c40, %c0_88, %c0_89] : memref<80x8x128xf32, #tpu.memory_space<vmem>>, vector<1x8x128xf32>
    %170 = vector.shape_cast %169 : vector<1x8x128xf32> to vector<8x128xf32>
    %171 = vector.shape_cast %168 : vector<8x128xf32> to vector<1x8x128xf32>
    tpu.vector_store %arg3[%c40, %c0_88, %c0_89], %171 {strides = array<i32>} : memref<80x8x128xf32, #tpu.memory_space<vmem>>, vector<1x8x128xf32>,
    %172 = vector.extract_strided_slice %135 {offsets = [0, 1152], sizes = [8, 128], strides = [1, 1]} : vector<8x2048xf32> to vector<8x128xf32>
    %c41 = arith.constant 41 : index
    %c0_90 = arith.constant 0 : index
    %c0_91 = arith.constant 0 : index
    %173 = vector.load %arg3[%c41, %c0_90, %c0_91] : memref<80x8x128xf32, #tpu.memory_space<vmem>>, vector<1x8x128xf32>
    %174 = vector.shape_cast %173 : vector<1x8x128xf32> to vector<8x128xf32>
    %175 = vector.shape_cast %172 : vector<8x128xf32> to vector<1x8x128xf32>
    tpu.vector_store %arg3[%c41, %c0_90, %c0_91], %175 {strides = array<i32>} : memref<80x8x128xf32, #tpu.memory_space<vmem>>, vector<1x8x128xf32>,
    %176 = vector.extract_strided_slice %135 {offsets = [0, 1280], sizes = [8, 128], strides = [1, 1]} : vector<8x2048xf32> to vector<8x128xf32>
    %c42 = arith.constant 42 : index
    %c0_92 = arith.constant 0 : index
    %c0_93 = arith.constant 0 : index
    %177 = vector.load %arg3[%c42, %c0_92, %c0_93] : memref<80x8x128xf32, #tpu.memory_space<vmem>>, vector<1x8x128xf32>
    %178 = vector.shape_cast %177 : vector<1x8x128xf32> to vector<8x128xf32>
    %179 = vector.shape_cast %176 : vector<8x128xf32> to vector<1x8x128xf32>
    tpu.vector_store %arg3[%c42, %c0_92, %c0_93], %179 {strides = array<i32>} : memref<80x8x128xf32, #tpu.memory_space<vmem>>, vector<1x8x128xf32>,
    %180 = vector.extract_strided_slice %135 {offsets = [0, 1408], sizes = [8, 128], strides = [1, 1]} : vector<8x2048xf32> to vector<8x128xf32>
    %c43 = arith.constant 43 : index
    %c0_94 = arith.constant 0 : index
    %c0_95 = arith.constant 0 : index
    %181 = vector.load %arg3[%c43, %c0_94, %c0_95] : memref<80x8x128xf32, #tpu.memory_space<vmem>>, vector<1x8x128xf32>
    %182 = vector.shape_cast %181 : vector<1x8x128xf32> to vector<8x128xf32>
    %183 = vector.shape_cast %180 : vector<8x128xf32> to vector<1x8x128xf32>
    tpu.vector_store %arg3[%c43, %c0_94, %c0_95], %183 {strides = array<i32>} : memref<80x8x128xf32, #tpu.memory_space<vmem>>, vector<1x8x128xf32>,
    %184 = vector.extract_strided_slice %135 {offsets = [0, 1536], sizes = [8, 128], strides = [1, 1]} : vector<8x2048xf32> to vector<8x128xf32>
    %c44 = arith.constant 44 : index
    %c0_96 = arith.constant 0 : index
    %c0_97 = arith.constant 0 : index
    %185 = vector.load %arg3[%c44, %c0_96, %c0_97] : memref<80x8x128xf32, #tpu.memory_space<vmem>>, vector<1x8x128xf32>
    %186 = vector.shape_cast %185 : vector<1x8x128xf32> to vector<8x128xf32>
    %187 = vector.shape_cast %184 : vector<8x128xf32> to vector<1x8x128xf32>
    tpu.vector_store %arg3[%c44, %c0_96, %c0_97], %187 {strides = array<i32>} : memref<80x8x128xf32, #tpu.memory_space<vmem>>, vector<1x8x128xf32>,
    %188 = vector.extract_strided_slice %135 {offsets = [0, 1664], sizes = [8, 128], strides = [1, 1]} : vector<8x2048xf32> to vector<8x128xf32>
    %c45 = arith.constant 45 : index
    %c0_98 = arith.constant 0 : index
    %c0_99 = arith.constant 0 : index
    %189 = vector.load %arg3[%c45, %c0_98, %c0_99] : memref<80x8x128xf32, #tpu.memory_space<vmem>>, vector<1x8x128xf32>
    %190 = vector.shape_cast %189 : vector<1x8x128xf32> to vector<8x128xf32>
    %191 = vector.shape_cast %188 : vector<8x128xf32> to vector<1x8x128xf32>
    tpu.vector_store %arg3[%c45, %c0_98, %c0_99], %191 {strides = array<i32>} : memref<80x8x128xf32, #tpu.memory_space<vmem>>, vector<1x8x128xf32>,
    %192 = vector.extract_strided_slice %135 {offsets = [0, 1792], sizes = [8, 128], strides = [1, 1]} : vector<8x2048xf32> to vector<8x128xf32>
    %c46 = arith.constant 46 : index
    %c0_100 = arith.constant 0 : index
    %c0_101 = arith.constant 0 : index
    %193 = vector.load %arg3[%c46, %c0_100, %c0_101] : memref<80x8x128xf32, #tpu.memory_space<vmem>>, vector<1x8x128xf32>
    %194 = vector.shape_cast %193 : vector<1x8x128xf32> to vector<8x128xf32>
    %195 = vector.shape_cast %192 : vector<8x128xf32> to vector<1x8x128xf32>
    tpu.vector_store %arg3[%c46, %c0_100, %c0_101], %195 {strides = array<i32>} : memref<80x8x128xf32, #tpu.memory_space<vmem>>, vector<1x8x128xf32>,
    %196 = vector.extract_strided_slice %135 {offsets = [0, 1920], sizes = [8, 128], strides = [1, 1]} : vector<8x2048xf32> to vector<8x128xf32>
    %c47 = arith.constant 47 : index
    %c0_102 = arith.constant 0 : index
    %c0_103 = arith.constant 0 : index
    %197 = vector.load %arg3[%c47, %c0_102, %c0_103] : memref<80x8x128xf32, #tpu.memory_space<vmem>>, vector<1x8x128xf32>
    %198 = vector.shape_cast %197 : vector<1x8x128xf32> to vector<8x128xf32>
    %199 = vector.shape_cast %196 : vector<8x128xf32> to vector<1x8x128xf32>
    tpu.vector_store %arg3[%c47, %c0_102, %c0_103], %199 {strides = array<i32>} : memref<80x8x128xf32, #tpu.memory_space<vmem>>, vector<1x8x128xf32>,
    %c0_104 = arith.constant 0 : index
    %c6144 = arith.constant 6144 : index
    %200 = vector.load %arg1[%c0_104, %c6144] : memref<75x10240xf32, #tpu.memory_space<vmem>>, vector<75x2048xf32>
    %cst_105 = arith.constant dense<0.000000e+00> : vector<8x2048xf32>
    %201 = tpu.matmul %1, %200, %cst_105 {dimension_numbers = #tpu.dot_dimension_numbers<[1], [0], [0], [1], [0, 0, 1, 1], [], []>} : vector<8x75xf32>, vector<75x2048xf32>, vector<8x2048xf32> -> vector<8x2048xf32>
    %202 = vector.extract_strided_slice %201 {offsets = [0, 0], sizes = [8, 128], strides = [1, 1]} : vector<8x2048xf32> to vector<8x128xf32>
    %c48 = arith.constant 48 : index
    %c0_106 = arith.constant 0 : index
    %c0_107 = arith.constant 0 : index
    %203 = vector.load %arg3[%c48, %c0_106, %c0_107] : memref<80x8x128xf32, #tpu.memory_space<vmem>>, vector<1x8x128xf32>
    %204 = vector.shape_cast %203 : vector<1x8x128xf32> to vector<8x128xf32>
    %205 = vector.shape_cast %202 : vector<8x128xf32> to vector<1x8x128xf32>
    tpu.vector_store %arg3[%c48, %c0_106, %c0_107], %205 {strides = array<i32>} : memref<80x8x128xf32, #tpu.memory_space<vmem>>, vector<1x8x128xf32>,
    %206 = vector.extract_strided_slice %201 {offsets = [0, 128], sizes = [8, 128], strides = [1, 1]} : vector<8x2048xf32> to vector<8x128xf32>
    %c49 = arith.constant 49 : index
    %c0_108 = arith.constant 0 : index
    %c0_109 = arith.constant 0 : index
    %207 = vector.load %arg3[%c49, %c0_108, %c0_109] : memref<80x8x128xf32, #tpu.memory_space<vmem>>, vector<1x8x128xf32>
    %208 = vector.shape_cast %207 : vector<1x8x128xf32> to vector<8x128xf32>
    %209 = vector.shape_cast %206 : vector<8x128xf32> to vector<1x8x128xf32>
    tpu.vector_store %arg3[%c49, %c0_108, %c0_109], %209 {strides = array<i32>} : memref<80x8x128xf32, #tpu.memory_space<vmem>>, vector<1x8x128xf32>,
    %210 = vector.extract_strided_slice %201 {offsets = [0, 256], sizes = [8, 128], strides = [1, 1]} : vector<8x2048xf32> to vector<8x128xf32>
    %c50 = arith.constant 50 : index
    %c0_110 = arith.constant 0 : index
    %c0_111 = arith.constant 0 : index
    %211 = vector.load %arg3[%c50, %c0_110, %c0_111] : memref<80x8x128xf32, #tpu.memory_space<vmem>>, vector<1x8x128xf32>
    %212 = vector.shape_cast %211 : vector<1x8x128xf32> to vector<8x128xf32>
    %213 = vector.shape_cast %210 : vector<8x128xf32> to vector<1x8x128xf32>
    tpu.vector_store %arg3[%c50, %c0_110, %c0_111], %213 {strides = array<i32>} : memref<80x8x128xf32, #tpu.memory_space<vmem>>, vector<1x8x128xf32>,
    %214 = vector.extract_strided_slice %201 {offsets = [0, 384], sizes = [8, 128], strides = [1, 1]} : vector<8x2048xf32> to vector<8x128xf32>
    %c51 = arith.constant 51 : index
    %c0_112 = arith.constant 0 : index
    %c0_113 = arith.constant 0 : index
    %215 = vector.load %arg3[%c51, %c0_112, %c0_113] : memref<80x8x128xf32, #tpu.memory_space<vmem>>, vector<1x8x128xf32>
    %216 = vector.shape_cast %215 : vector<1x8x128xf32> to vector<8x128xf32>
    %217 = vector.shape_cast %214 : vector<8x128xf32> to vector<1x8x128xf32>
    tpu.vector_store %arg3[%c51, %c0_112, %c0_113], %217 {strides = array<i32>} : memref<80x8x128xf32, #tpu.memory_space<vmem>>, vector<1x8x128xf32>,
    %218 = vector.extract_strided_slice %201 {offsets = [0, 512], sizes = [8, 128], strides = [1, 1]} : vector<8x2048xf32> to vector<8x128xf32>
    %c52 = arith.constant 52 : index
    %c0_114 = arith.constant 0 : index
    %c0_115 = arith.constant 0 : index
    %219 = vector.load %arg3[%c52, %c0_114, %c0_115] : memref<80x8x128xf32, #tpu.memory_space<vmem>>, vector<1x8x128xf32>
    %220 = vector.shape_cast %219 : vector<1x8x128xf32> to vector<8x128xf32>
    %221 = vector.shape_cast %218 : vector<8x128xf32> to vector<1x8x128xf32>
    tpu.vector_store %arg3[%c52, %c0_114, %c0_115], %221 {strides = array<i32>} : memref<80x8x128xf32, #tpu.memory_space<vmem>>, vector<1x8x128xf32>,
    %222 = vector.extract_strided_slice %201 {offsets = [0, 640], sizes = [8, 128], strides = [1, 1]} : vector<8x2048xf32> to vector<8x128xf32>
    %c53 = arith.constant 53 : index
    %c0_116 = arith.constant 0 : index
    %c0_117 = arith.constant 0 : index
    %223 = vector.load %arg3[%c53, %c0_116, %c0_117] : memref<80x8x128xf32, #tpu.memory_space<vmem>>, vector<1x8x128xf32>
    %224 = vector.shape_cast %223 : vector<1x8x128xf32> to vector<8x128xf32>
    %225 = vector.shape_cast %222 : vector<8x128xf32> to vector<1x8x128xf32>
    tpu.vector_store %arg3[%c53, %c0_116, %c0_117], %225 {strides = array<i32>} : memref<80x8x128xf32, #tpu.memory_space<vmem>>, vector<1x8x128xf32>,
    %226 = vector.extract_strided_slice %201 {offsets = [0, 768], sizes = [8, 128], strides = [1, 1]} : vector<8x2048xf32> to vector<8x128xf32>
    %c54 = arith.constant 54 : index
    %c0_118 = arith.constant 0 : index
    %c0_119 = arith.constant 0 : index
    %227 = vector.load %arg3[%c54, %c0_118, %c0_119] : memref<80x8x128xf32, #tpu.memory_space<vmem>>, vector<1x8x128xf32>
    %228 = vector.shape_cast %227 : vector<1x8x128xf32> to vector<8x128xf32>
    %229 = vector.shape_cast %226 : vector<8x128xf32> to vector<1x8x128xf32>
    tpu.vector_store %arg3[%c54, %c0_118, %c0_119], %229 {strides = array<i32>} : memref<80x8x128xf32, #tpu.memory_space<vmem>>, vector<1x8x128xf32>,
    %230 = vector.extract_strided_slice %201 {offsets = [0, 896], sizes = [8, 128], strides = [1, 1]} : vector<8x2048xf32> to vector<8x128xf32>
    %c55 = arith.constant 55 : index
    %c0_120 = arith.constant 0 : index
    %c0_121 = arith.constant 0 : index
    %231 = vector.load %arg3[%c55, %c0_120, %c0_121] : memref<80x8x128xf32, #tpu.memory_space<vmem>>, vector<1x8x128xf32>
    %232 = vector.shape_cast %231 : vector<1x8x128xf32> to vector<8x128xf32>
    %233 = vector.shape_cast %230 : vector<8x128xf32> to vector<1x8x128xf32>
    tpu.vector_store %arg3[%c55, %c0_120, %c0_121], %233 {strides = array<i32>} : memref<80x8x128xf32, #tpu.memory_space<vmem>>, vector<1x8x128xf32>,
    %234 = vector.extract_strided_slice %201 {offsets = [0, 1024], sizes = [8, 128], strides = [1, 1]} : vector<8x2048xf32> to vector<8x128xf32>
    %c56 = arith.constant 56 : index
    %c0_122 = arith.constant 0 : index
    %c0_123 = arith.constant 0 : index
    %235 = vector.load %arg3[%c56, %c0_122, %c0_123] : memref<80x8x128xf32, #tpu.memory_space<vmem>>, vector<1x8x128xf32>
    %236 = vector.shape_cast %235 : vector<1x8x128xf32> to vector<8x128xf32>
    %237 = vector.shape_cast %234 : vector<8x128xf32> to vector<1x8x128xf32>
    tpu.vector_store %arg3[%c56, %c0_122, %c0_123], %237 {strides = array<i32>} : memref<80x8x128xf32, #tpu.memory_space<vmem>>, vector<1x8x128xf32>,
    %238 = vector.extract_strided_slice %201 {offsets = [0, 1152], sizes = [8, 128], strides = [1, 1]} : vector<8x2048xf32> to vector<8x128xf32>
    %c57 = arith.constant 57 : index
    %c0_124 = arith.constant 0 : index
    %c0_125 = arith.constant 0 : index
    %239 = vector.load %arg3[%c57, %c0_124, %c0_125] : memref<80x8x128xf32, #tpu.memory_space<vmem>>, vector<1x8x128xf32>
    %240 = vector.shape_cast %239 : vector<1x8x128xf32> to vector<8x128xf32>
    %241 = vector.shape_cast %238 : vector<8x128xf32> to vector<1x8x128xf32>
    tpu.vector_store %arg3[%c57, %c0_124, %c0_125], %241 {strides = array<i32>} : memref<80x8x128xf32, #tpu.memory_space<vmem>>, vector<1x8x128xf32>,
    %242 = vector.extract_strided_slice %201 {offsets = [0, 1280], sizes = [8, 128], strides = [1, 1]} : vector<8x2048xf32> to vector<8x128xf32>
    %c58 = arith.constant 58 : index
    %c0_126 = arith.constant 0 : index
    %c0_127 = arith.constant 0 : index
    %243 = vector.load %arg3[%c58, %c0_126, %c0_127] : memref<80x8x128xf32, #tpu.memory_space<vmem>>, vector<1x8x128xf32>
    %244 = vector.shape_cast %243 : vector<1x8x128xf32> to vector<8x128xf32>
    %245 = vector.shape_cast %242 : vector<8x128xf32> to vector<1x8x128xf32>
    tpu.vector_store %arg3[%c58, %c0_126, %c0_127], %245 {strides = array<i32>} : memref<80x8x128xf32, #tpu.memory_space<vmem>>, vector<1x8x128xf32>,
    %246 = vector.extract_strided_slice %201 {offsets = [0, 1408], sizes = [8, 128], strides = [1, 1]} : vector<8x2048xf32> to vector<8x128xf32>
    %c59 = arith.constant 59 : index
    %c0_128 = arith.constant 0 : index
    %c0_129 = arith.constant 0 : index
    %247 = vector.load %arg3[%c59, %c0_128, %c0_129] : memref<80x8x128xf32, #tpu.memory_space<vmem>>, vector<1x8x128xf32>
    %248 = vector.shape_cast %247 : vector<1x8x128xf32> to vector<8x128xf32>
    %249 = vector.shape_cast %246 : vector<8x128xf32> to vector<1x8x128xf32>
    tpu.vector_store %arg3[%c59, %c0_128, %c0_129], %249 {strides = array<i32>} : memref<80x8x128xf32, #tpu.memory_space<vmem>>, vector<1x8x128xf32>,
    %250 = vector.extract_strided_slice %201 {offsets = [0, 1536], sizes = [8, 128], strides = [1, 1]} : vector<8x2048xf32> to vector<8x128xf32>
    %c60 = arith.constant 60 : index
    %c0_130 = arith.constant 0 : index
    %c0_131 = arith.constant 0 : index
    %251 = vector.load %arg3[%c60, %c0_130, %c0_131] : memref<80x8x128xf32, #tpu.memory_space<vmem>>, vector<1x8x128xf32>
    %252 = vector.shape_cast %251 : vector<1x8x128xf32> to vector<8x128xf32>
    %253 = vector.shape_cast %250 : vector<8x128xf32> to vector<1x8x128xf32>
    tpu.vector_store %arg3[%c60, %c0_130, %c0_131], %253 {strides = array<i32>} : memref<80x8x128xf32, #tpu.memory_space<vmem>>, vector<1x8x128xf32>,
    %254 = vector.extract_strided_slice %201 {offsets = [0, 1664], sizes = [8, 128], strides = [1, 1]} : vector<8x2048xf32> to vector<8x128xf32>
    %c61 = arith.constant 61 : index
    %c0_132 = arith.constant 0 : index
    %c0_133 = arith.constant 0 : index
    %255 = vector.load %arg3[%c61, %c0_132, %c0_133] : memref<80x8x128xf32, #tpu.memory_space<vmem>>, vector<1x8x128xf32>
    %256 = vector.shape_cast %255 : vector<1x8x128xf32> to vector<8x128xf32>
    %257 = vector.shape_cast %254 : vector<8x128xf32> to vector<1x8x128xf32>
    tpu.vector_store %arg3[%c61, %c0_132, %c0_133], %257 {strides = array<i32>} : memref<80x8x128xf32, #tpu.memory_space<vmem>>, vector<1x8x128xf32>,
    %258 = vector.extract_strided_slice %201 {offsets = [0, 1792], sizes = [8, 128], strides = [1, 1]} : vector<8x2048xf32> to vector<8x128xf32>
    %c62 = arith.constant 62 : index
    %c0_134 = arith.constant 0 : index
    %c0_135 = arith.constant 0 : index
    %259 = vector.load %arg3[%c62, %c0_134, %c0_135] : memref<80x8x128xf32, #tpu.memory_space<vmem>>, vector<1x8x128xf32>
    %260 = vector.shape_cast %259 : vector<1x8x128xf32> to vector<8x128xf32>
    %261 = vector.shape_cast %258 : vector<8x128xf32> to vector<1x8x128xf32>
    tpu.vector_store %arg3[%c62, %c0_134, %c0_135], %261 {strides = array<i32>} : memref<80x8x128xf32, #tpu.memory_space<vmem>>, vector<1x8x128xf32>,
    %262 = vector.extract_strided_slice %201 {offsets = [0, 1920], sizes = [8, 128], strides = [1, 1]} : vector<8x2048xf32> to vector<8x128xf32>
    %c63 = arith.constant 63 : index
    %c0_136 = arith.constant 0 : index
    %c0_137 = arith.constant 0 : index
    %263 = vector.load %arg3[%c63, %c0_136, %c0_137] : memref<80x8x128xf32, #tpu.memory_space<vmem>>, vector<1x8x128xf32>
    %264 = vector.shape_cast %263 : vector<1x8x128xf32> to vector<8x128xf32>
    %265 = vector.shape_cast %262 : vector<8x128xf32> to vector<1x8x128xf32>
    tpu.vector_store %arg3[%c63, %c0_136, %c0_137], %265 {strides = array<i32>} : memref<80x8x128xf32, #tpu.memory_space<vmem>>, vector<1x8x128xf32>,
    %c0_138 = arith.constant 0 : index
    %c8192 = arith.constant 8192 : index
    %266 = vector.load %arg1[%c0_138, %c8192] : memref<75x10240xf32, #tpu.memory_space<vmem>>, vector<75x2048xf32>
    %cst_139 = arith.constant dense<0.000000e+00> : vector<8x2048xf32>
    %267 = tpu.matmul %1, %266, %cst_139 {dimension_numbers = #tpu.dot_dimension_numbers<[1], [0], [0], [1], [0, 0, 1, 1], [], []>} : vector<8x75xf32>, vector<75x2048xf32>, vector<8x2048xf32> -> vector<8x2048xf32>
    %268 = vector.extract_strided_slice %267 {offsets = [0, 0], sizes = [8, 128], strides = [1, 1]} : vector<8x2048xf32> to vector<8x128xf32>
    %c64 = arith.constant 64 : index
    %c0_140 = arith.constant 0 : index
    %c0_141 = arith.constant 0 : index
    %269 = vector.load %arg3[%c64, %c0_140, %c0_141] : memref<80x8x128xf32, #tpu.memory_space<vmem>>, vector<1x8x128xf32>
    %270 = vector.shape_cast %269 : vector<1x8x128xf32> to vector<8x128xf32>
    %271 = vector.shape_cast %268 : vector<8x128xf32> to vector<1x8x128xf32>
    tpu.vector_store %arg3[%c64, %c0_140, %c0_141], %271 {strides = array<i32>} : memref<80x8x128xf32, #tpu.memory_space<vmem>>, vector<1x8x128xf32>,
    %272 = vector.extract_strided_slice %267 {offsets = [0, 128], sizes = [8, 128], strides = [1, 1]} : vector<8x2048xf32> to vector<8x128xf32>
    %c65 = arith.constant 65 : index
    %c0_142 = arith.constant 0 : index
    %c0_143 = arith.constant 0 : index
    %273 = vector.load %arg3[%c65, %c0_142, %c0_143] : memref<80x8x128xf32, #tpu.memory_space<vmem>>, vector<1x8x128xf32>
    %274 = vector.shape_cast %273 : vector<1x8x128xf32> to vector<8x128xf32>
    %275 = vector.shape_cast %272 : vector<8x128xf32> to vector<1x8x128xf32>
    tpu.vector_store %arg3[%c65, %c0_142, %c0_143], %275 {strides = array<i32>} : memref<80x8x128xf32, #tpu.memory_space<vmem>>, vector<1x8x128xf32>,
    %276 = vector.extract_strided_slice %267 {offsets = [0, 256], sizes = [8, 128], strides = [1, 1]} : vector<8x2048xf32> to vector<8x128xf32>
    %c66 = arith.constant 66 : index
    %c0_144 = arith.constant 0 : index
    %c0_145 = arith.constant 0 : index
    %277 = vector.load %arg3[%c66, %c0_144, %c0_145] : memref<80x8x128xf32, #tpu.memory_space<vmem>>, vector<1x8x128xf32>
    %278 = vector.shape_cast %277 : vector<1x8x128xf32> to vector<8x128xf32>
    %279 = vector.shape_cast %276 : vector<8x128xf32> to vector<1x8x128xf32>
    tpu.vector_store %arg3[%c66, %c0_144, %c0_145], %279 {strides = array<i32>} : memref<80x8x128xf32, #tpu.memory_space<vmem>>, vector<1x8x128xf32>,
    %280 = vector.extract_strided_slice %267 {offsets = [0, 384], sizes = [8, 128], strides = [1, 1]} : vector<8x2048xf32> to vector<8x128xf32>
    %c67 = arith.constant 67 : index
    %c0_146 = arith.constant 0 : index
    %c0_147 = arith.constant 0 : index
    %281 = vector.load %arg3[%c67, %c0_146, %c0_147] : memref<80x8x128xf32, #tpu.memory_space<vmem>>, vector<1x8x128xf32>
    %282 = vector.shape_cast %281 : vector<1x8x128xf32> to vector<8x128xf32>
    %283 = vector.shape_cast %280 : vector<8x128xf32> to vector<1x8x128xf32>
    tpu.vector_store %arg3[%c67, %c0_146, %c0_147], %283 {strides = array<i32>} : memref<80x8x128xf32, #tpu.memory_space<vmem>>, vector<1x8x128xf32>,
    %284 = vector.extract_strided_slice %267 {offsets = [0, 512], sizes = [8, 128], strides = [1, 1]} : vector<8x2048xf32> to vector<8x128xf32>
    %c68 = arith.constant 68 : index
    %c0_148 = arith.constant 0 : index
    %c0_149 = arith.constant 0 : index
    %285 = vector.load %arg3[%c68, %c0_148, %c0_149] : memref<80x8x128xf32, #tpu.memory_space<vmem>>, vector<1x8x128xf32>
    %286 = vector.shape_cast %285 : vector<1x8x128xf32> to vector<8x128xf32>
    %287 = vector.shape_cast %284 : vector<8x128xf32> to vector<1x8x128xf32>
    tpu.vector_store %arg3[%c68, %c0_148, %c0_149], %287 {strides = array<i32>} : memref<80x8x128xf32, #tpu.memory_space<vmem>>, vector<1x8x128xf32>,
    %288 = vector.extract_strided_slice %267 {offsets = [0, 640], sizes = [8, 128], strides = [1, 1]} : vector<8x2048xf32> to vector<8x128xf32>
    %c69 = arith.constant 69 : index
    %c0_150 = arith.constant 0 : index
    %c0_151 = arith.constant 0 : index
    %289 = vector.load %arg3[%c69, %c0_150, %c0_151] : memref<80x8x128xf32, #tpu.memory_space<vmem>>, vector<1x8x128xf32>
    %290 = vector.shape_cast %289 : vector<1x8x128xf32> to vector<8x128xf32>
    %291 = vector.shape_cast %288 : vector<8x128xf32> to vector<1x8x128xf32>
    tpu.vector_store %arg3[%c69, %c0_150, %c0_151], %291 {strides = array<i32>} : memref<80x8x128xf32, #tpu.memory_space<vmem>>, vector<1x8x128xf32>,
    %292 = vector.extract_strided_slice %267 {offsets = [0, 768], sizes = [8, 128], strides = [1, 1]} : vector<8x2048xf32> to vector<8x128xf32>
    %c70 = arith.constant 70 : index
    %c0_152 = arith.constant 0 : index
    %c0_153 = arith.constant 0 : index
    %293 = vector.load %arg3[%c70, %c0_152, %c0_153] : memref<80x8x128xf32, #tpu.memory_space<vmem>>, vector<1x8x128xf32>
    %294 = vector.shape_cast %293 : vector<1x8x128xf32> to vector<8x128xf32>
    %295 = vector.shape_cast %292 : vector<8x128xf32> to vector<1x8x128xf32>
    tpu.vector_store %arg3[%c70, %c0_152, %c0_153], %295 {strides = array<i32>} : memref<80x8x128xf32, #tpu.memory_space<vmem>>, vector<1x8x128xf32>,
    %296 = vector.extract_strided_slice %267 {offsets = [0, 896], sizes = [8, 128], strides = [1, 1]} : vector<8x2048xf32> to vector<8x128xf32>
    %c71 = arith.constant 71 : index
    %c0_154 = arith.constant 0 : index
    %c0_155 = arith.constant 0 : index
    %297 = vector.load %arg3[%c71, %c0_154, %c0_155] : memref<80x8x128xf32, #tpu.memory_space<vmem>>, vector<1x8x128xf32>
    %298 = vector.shape_cast %297 : vector<1x8x128xf32> to vector<8x128xf32>
    %299 = vector.shape_cast %296 : vector<8x128xf32> to vector<1x8x128xf32>
    tpu.vector_store %arg3[%c71, %c0_154, %c0_155], %299 {strides = array<i32>} : memref<80x8x128xf32, #tpu.memory_space<vmem>>, vector<1x8x128xf32>,
    %300 = vector.extract_strided_slice %267 {offsets = [0, 1024], sizes = [8, 128], strides = [1, 1]} : vector<8x2048xf32> to vector<8x128xf32>
    %c72 = arith.constant 72 : index
    %c0_156 = arith.constant 0 : index
    %c0_157 = arith.constant 0 : index
    %301 = vector.load %arg3[%c72, %c0_156, %c0_157] : memref<80x8x128xf32, #tpu.memory_space<vmem>>, vector<1x8x128xf32>
    %302 = vector.shape_cast %301 : vector<1x8x128xf32> to vector<8x128xf32>
    %303 = vector.shape_cast %300 : vector<8x128xf32> to vector<1x8x128xf32>
    tpu.vector_store %arg3[%c72, %c0_156, %c0_157], %303 {strides = array<i32>} : memref<80x8x128xf32, #tpu.memory_space<vmem>>, vector<1x8x128xf32>,
    %304 = vector.extract_strided_slice %267 {offsets = [0, 1152], sizes = [8, 128], strides = [1, 1]} : vector<8x2048xf32> to vector<8x128xf32>
    %c73 = arith.constant 73 : index
    %c0_158 = arith.constant 0 : index
    %c0_159 = arith.constant 0 : index
    %305 = vector.load %arg3[%c73, %c0_158, %c0_159] : memref<80x8x128xf32, #tpu.memory_space<vmem>>, vector<1x8x128xf32>
    %306 = vector.shape_cast %305 : vector<1x8x128xf32> to vector<8x128xf32>
    %307 = vector.shape_cast %304 : vector<8x128xf32> to vector<1x8x128xf32>
    tpu.vector_store %arg3[%c73, %c0_158, %c0_159], %307 {strides = array<i32>} : memref<80x8x128xf32, #tpu.memory_space<vmem>>, vector<1x8x128xf32>,
    %308 = vector.extract_strided_slice %267 {offsets = [0, 1280], sizes = [8, 128], strides = [1, 1]} : vector<8x2048xf32> to vector<8x128xf32>
    %c74 = arith.constant 74 : index
    %c0_160 = arith.constant 0 : index
    %c0_161 = arith.constant 0 : index
    %309 = vector.load %arg3[%c74, %c0_160, %c0_161] : memref<80x8x128xf32, #tpu.memory_space<vmem>>, vector<1x8x128xf32>
    %310 = vector.shape_cast %309 : vector<1x8x128xf32> to vector<8x128xf32>
    %311 = vector.shape_cast %308 : vector<8x128xf32> to vector<1x8x128xf32>
    tpu.vector_store %arg3[%c74, %c0_160, %c0_161], %311 {strides = array<i32>} : memref<80x8x128xf32, #tpu.memory_space<vmem>>, vector<1x8x128xf32>,
    %312 = vector.extract_strided_slice %267 {offsets = [0, 1408], sizes = [8, 128], strides = [1, 1]} : vector<8x2048xf32> to vector<8x128xf32>
    %c75 = arith.constant 75 : index
    %c0_162 = arith.constant 0 : index
    %c0_163 = arith.constant 0 : index
    %313 = vector.load %arg3[%c75, %c0_162, %c0_163] : memref<80x8x128xf32, #tpu.memory_space<vmem>>, vector<1x8x128xf32>
    %314 = vector.shape_cast %313 : vector<1x8x128xf32> to vector<8x128xf32>
    %315 = vector.shape_cast %312 : vector<8x128xf32> to vector<1x8x128xf32>
    tpu.vector_store %arg3[%c75, %c0_162, %c0_163], %315 {strides = array<i32>} : memref<80x8x128xf32, #tpu.memory_space<vmem>>, vector<1x8x128xf32>,
    %316 = vector.extract_strided_slice %267 {offsets = [0, 1536], sizes = [8, 128], strides = [1, 1]} : vector<8x2048xf32> to vector<8x128xf32>
    %c76 = arith.constant 76 : index
    %c0_164 = arith.constant 0 : index
    %c0_165 = arith.constant 0 : index
    %317 = vector.load %arg3[%c76, %c0_164, %c0_165] : memref<80x8x128xf32, #tpu.memory_space<vmem>>, vector<1x8x128xf32>
    %318 = vector.shape_cast %317 : vector<1x8x128xf32> to vector<8x128xf32>
    %319 = vector.shape_cast %316 : vector<8x128xf32> to vector<1x8x128xf32>
    tpu.vector_store %arg3[%c76, %c0_164, %c0_165], %319 {strides = array<i32>} : memref<80x8x128xf32, #tpu.memory_space<vmem>>, vector<1x8x128xf32>,
    %320 = vector.extract_strided_slice %267 {offsets = [0, 1664], sizes = [8, 128], strides = [1, 1]} : vector<8x2048xf32> to vector<8x128xf32>
    %c77 = arith.constant 77 : index
    %c0_166 = arith.constant 0 : index
    %c0_167 = arith.constant 0 : index
    %321 = vector.load %arg3[%c77, %c0_166, %c0_167] : memref<80x8x128xf32, #tpu.memory_space<vmem>>, vector<1x8x128xf32>
    %322 = vector.shape_cast %321 : vector<1x8x128xf32> to vector<8x128xf32>
    %323 = vector.shape_cast %320 : vector<8x128xf32> to vector<1x8x128xf32>
    tpu.vector_store %arg3[%c77, %c0_166, %c0_167], %323 {strides = array<i32>} : memref<80x8x128xf32, #tpu.memory_space<vmem>>, vector<1x8x128xf32>,
    %324 = vector.extract_strided_slice %267 {offsets = [0, 1792], sizes = [8, 128], strides = [1, 1]} : vector<8x2048xf32> to vector<8x128xf32>
    %c78 = arith.constant 78 : index
    %c0_168 = arith.constant 0 : index
    %c0_169 = arith.constant 0 : index
    %325 = vector.load %arg3[%c78, %c0_168, %c0_169] : memref<80x8x128xf32, #tpu.memory_space<vmem>>, vector<1x8x128xf32>
    %326 = vector.shape_cast %325 : vector<1x8x128xf32> to vector<8x128xf32>
    %327 = vector.shape_cast %324 : vector<8x128xf32> to vector<1x8x128xf32>
    tpu.vector_store %arg3[%c78, %c0_168, %c0_169], %327 {strides = array<i32>} : memref<80x8x128xf32, #tpu.memory_space<vmem>>, vector<1x8x128xf32>,
    %328 = vector.extract_strided_slice %267 {offsets = [0, 1920], sizes = [8, 128], strides = [1, 1]} : vector<8x2048xf32> to vector<8x128xf32>
    %c79 = arith.constant 79 : index
    %c0_170 = arith.constant 0 : index
    %c0_171 = arith.constant 0 : index
    %329 = vector.load %arg3[%c79, %c0_170, %c0_171] : memref<80x8x128xf32, #tpu.memory_space<vmem>>, vector<1x8x128xf32>
    %330 = vector.shape_cast %329 : vector<1x8x128xf32> to vector<8x128xf32>
    %331 = vector.shape_cast %328 : vector<8x128xf32> to vector<1x8x128xf32>
    tpu.vector_store %arg3[%c79, %c0_170, %c0_171], %331 {strides = array<i32>} : memref<80x8x128xf32, #tpu.memory_space<vmem>>, vector<1x8x128xf32>,
    %332 = vector.extract_strided_slice %0 {offsets = [0, 0], sizes = [1, 128], strides = [1, 1]} : vector<8x128xf32> to vector<1x128xf32>
    %333 = vector.extract_strided_slice %0 {offsets = [1, 0], sizes = [1, 128], strides = [1, 1]} : vector<8x128xf32> to vector<1x128xf32>
    %334 = vector.extract_strided_slice %0 {offsets = [2, 0], sizes = [1, 128], strides = [1, 1]} : vector<8x128xf32> to vector<1x128xf32>
    %335 = vector.extract_strided_slice %0 {offsets = [3, 0], sizes = [1, 128], strides = [1, 1]} : vector<8x128xf32> to vector<1x128xf32>
    %336 = vector.extract_strided_slice %0 {offsets = [4, 0], sizes = [1, 128], strides = [1, 1]} : vector<8x128xf32> to vector<1x128xf32>
    %337 = vector.extract_strided_slice %0 {offsets = [5, 0], sizes = [1, 128], strides = [1, 1]} : vector<8x128xf32> to vector<1x128xf32>
    %338 = vector.extract_strided_slice %0 {offsets = [6, 0], sizes = [1, 128], strides = [1, 1]} : vector<8x128xf32> to vector<1x128xf32>
    %339 = vector.extract_strided_slice %0 {offsets = [7, 0], sizes = [1, 128], strides = [1, 1]} : vector<8x128xf32> to vector<1x128xf32>
    %c0_172 = arith.constant 0 : index
    %c0_173 = arith.constant 0 : index
    %c0_174 = arith.constant 0 : index
    %340 = vector.load %arg3[%c0_172, %c0_173, %c0_174] : memref<80x8x128xf32, #tpu.memory_space<vmem>>, vector<80x1x128xf32>
    %341 = vector.shape_cast %340 : vector<80x1x128xf32> to vector<80x128xf32>
    %342 = vector.extract_strided_slice %332 {offsets = [0, 0], sizes = [1, 80], strides = [1, 1]} : vector<1x128xf32> to vector<1x80xf32>
    %cst_175 = arith.constant dense<0.000000e+00> : vector<1x128xf32>
    %343 = tpu.matmul %342, %341, %cst_175 {dimension_numbers = #tpu.dot_dimension_numbers<[1], [0], [0], [1], [0, 0, 1, 1], [], []>} : vector<1x80xf32>, vector<80x128xf32>, vector<1x128xf32> -> vector<1x128xf32>
    %c0_176 = arith.constant 0 : index
    %c1_177 = arith.constant 1 : index
    %c0_178 = arith.constant 0 : index
    %344 = vector.load %arg3[%c0_176, %c1_177, %c0_178] : memref<80x8x128xf32, #tpu.memory_space<vmem>>, vector<80x1x128xf32>
    %345 = vector.shape_cast %344 : vector<80x1x128xf32> to vector<80x128xf32>
    %346 = vector.extract_strided_slice %333 {offsets = [0, 0], sizes = [1, 80], strides = [1, 1]} : vector<1x128xf32> to vector<1x80xf32>
    %cst_179 = arith.constant dense<0.000000e+00> : vector<1x128xf32>
    %347 = tpu.matmul %346, %345, %cst_179 {dimension_numbers = #tpu.dot_dimension_numbers<[1], [0], [0], [1], [0, 0, 1, 1], [], []>} : vector<1x80xf32>, vector<80x128xf32>, vector<1x128xf32> -> vector<1x128xf32>
    %c0_180 = arith.constant 0 : index
    %c2_181 = arith.constant 2 : index
    %c0_182 = arith.constant 0 : index
    %348 = vector.load %arg3[%c0_180, %c2_181, %c0_182] : memref<80x8x128xf32, #tpu.memory_space<vmem>>, vector<80x1x128xf32>
    %349 = vector.shape_cast %348 : vector<80x1x128xf32> to vector<80x128xf32>
    %350 = vector.extract_strided_slice %334 {offsets = [0, 0], sizes = [1, 80], strides = [1, 1]} : vector<1x128xf32> to vector<1x80xf32>
    %cst_183 = arith.constant dense<0.000000e+00> : vector<1x128xf32>
    %351 = tpu.matmul %350, %349, %cst_183 {dimension_numbers = #tpu.dot_dimension_numbers<[1], [0], [0], [1], [0, 0, 1, 1], [], []>} : vector<1x80xf32>, vector<80x128xf32>, vector<1x128xf32> -> vector<1x128xf32>
    %c0_184 = arith.constant 0 : index
    %c3_185 = arith.constant 3 : index
    %c0_186 = arith.constant 0 : index
    %352 = vector.load %arg3[%c0_184, %c3_185, %c0_186] : memref<80x8x128xf32, #tpu.memory_space<vmem>>, vector<80x1x128xf32>
    %353 = vector.shape_cast %352 : vector<80x1x128xf32> to vector<80x128xf32>
    %354 = vector.extract_strided_slice %335 {offsets = [0, 0], sizes = [1, 80], strides = [1, 1]} : vector<1x128xf32> to vector<1x80xf32>
    %cst_187 = arith.constant dense<0.000000e+00> : vector<1x128xf32>
    %355 = tpu.matmul %354, %353, %cst_187 {dimension_numbers = #tpu.dot_dimension_numbers<[1], [0], [0], [1], [0, 0, 1, 1], [], []>} : vector<1x80xf32>, vector<80x128xf32>, vector<1x128xf32> -> vector<1x128xf32>
    %c0_188 = arith.constant 0 : index
    %c4_189 = arith.constant 4 : index
    %c0_190 = arith.constant 0 : index
    %356 = vector.load %arg3[%c0_188, %c4_189, %c0_190] : memref<80x8x128xf32, #tpu.memory_space<vmem>>, vector<80x1x128xf32>
    %357 = vector.shape_cast %356 : vector<80x1x128xf32> to vector<80x128xf32>
    %358 = vector.extract_strided_slice %336 {offsets = [0, 0], sizes = [1, 80], strides = [1, 1]} : vector<1x128xf32> to vector<1x80xf32>
    %cst_191 = arith.constant dense<0.000000e+00> : vector<1x128xf32>
    %359 = tpu.matmul %358, %357, %cst_191 {dimension_numbers = #tpu.dot_dimension_numbers<[1], [0], [0], [1], [0, 0, 1, 1], [], []>} : vector<1x80xf32>, vector<80x128xf32>, vector<1x128xf32> -> vector<1x128xf32>
    %c0_192 = arith.constant 0 : index
    %c5_193 = arith.constant 5 : index
    %c0_194 = arith.constant 0 : index
    %360 = vector.load %arg3[%c0_192, %c5_193, %c0_194] : memref<80x8x128xf32, #tpu.memory_space<vmem>>, vector<80x1x128xf32>
    %361 = vector.shape_cast %360 : vector<80x1x128xf32> to vector<80x128xf32>
    %362 = vector.extract_strided_slice %337 {offsets = [0, 0], sizes = [1, 80], strides = [1, 1]} : vector<1x128xf32> to vector<1x80xf32>
    %cst_195 = arith.constant dense<0.000000e+00> : vector<1x128xf32>
    %363 = tpu.matmul %362, %361, %cst_195 {dimension_numbers = #tpu.dot_dimension_numbers<[1], [0], [0], [1], [0, 0, 1, 1], [], []>} : vector<1x80xf32>, vector<80x128xf32>, vector<1x128xf32> -> vector<1x128xf32>
    %c0_196 = arith.constant 0 : index
    %c6_197 = arith.constant 6 : index
    %c0_198 = arith.constant 0 : index
    %364 = vector.load %arg3[%c0_196, %c6_197, %c0_198] : memref<80x8x128xf32, #tpu.memory_space<vmem>>, vector<80x1x128xf32>
    %365 = vector.shape_cast %364 : vector<80x1x128xf32> to vector<80x128xf32>
    %366 = vector.extract_strided_slice %338 {offsets = [0, 0], sizes = [1, 80], strides = [1, 1]} : vector<1x128xf32> to vector<1x80xf32>
    %cst_199 = arith.constant dense<0.000000e+00> : vector<1x128xf32>
    %367 = tpu.matmul %366, %365, %cst_199 {dimension_numbers = #tpu.dot_dimension_numbers<[1], [0], [0], [1], [0, 0, 1, 1], [], []>} : vector<1x80xf32>, vector<80x128xf32>, vector<1x128xf32> -> vector<1x128xf32>
    %c0_200 = arith.constant 0 : index
    %c7_201 = arith.constant 7 : index
    %c0_202 = arith.constant 0 : index
    %368 = vector.load %arg3[%c0_200, %c7_201, %c0_202] : memref<80x8x128xf32, #tpu.memory_space<vmem>>, vector<80x1x128xf32>
    %369 = vector.shape_cast %368 : vector<80x1x128xf32> to vector<80x128xf32>
    %370 = vector.extract_strided_slice %339 {offsets = [0, 0], sizes = [1, 80], strides = [1, 1]} : vector<1x128xf32> to vector<1x80xf32>
    %cst_203 = arith.constant dense<0.000000e+00> : vector<1x128xf32>
    %371 = tpu.matmul %370, %369, %cst_203 {dimension_numbers = #tpu.dot_dimension_numbers<[1], [0], [0], [1], [0, 0, 1, 1], [], []>} : vector<1x80xf32>, vector<80x128xf32>, vector<1x128xf32> -> vector<1x128xf32>
    %c0_204 = arith.constant 0 : index
    %c0_205 = arith.constant 0 : index
    %c0_206 = arith.constant 0 : index
    %372 = vector.load %arg3[%c0_204, %c0_205, %c0_206] : memref<80x8x128xf32, #tpu.memory_space<vmem>>, vector<80x1x128xf32>
    %373 = vector.shape_cast %372 : vector<80x1x128xf32> to vector<80x128xf32>
    %374 = vector.extract_strided_slice %343 {offsets = [0, 0], sizes = [1, 80], strides = [1, 1]} : vector<1x128xf32> to vector<1x80xf32>
    %cst_207 = arith.constant dense<0.000000e+00> : vector<1x128xf32>
    %375 = tpu.matmul %374, %373, %cst_207 {dimension_numbers = #tpu.dot_dimension_numbers<[1], [0], [0], [1], [0, 0, 1, 1], [], []>} : vector<1x80xf32>, vector<80x128xf32>, vector<1x128xf32> -> vector<1x128xf32>
    %c0_208 = arith.constant 0 : index
    %c1_209 = arith.constant 1 : index
    %c0_210 = arith.constant 0 : index
    %376 = vector.load %arg3[%c0_208, %c1_209, %c0_210] : memref<80x8x128xf32, #tpu.memory_space<vmem>>, vector<80x1x128xf32>
    %377 = vector.shape_cast %376 : vector<80x1x128xf32> to vector<80x128xf32>
    %378 = vector.extract_strided_slice %347 {offsets = [0, 0], sizes = [1, 80], strides = [1, 1]} : vector<1x128xf32> to vector<1x80xf32>
    %cst_211 = arith.constant dense<0.000000e+00> : vector<1x128xf32>
    %379 = tpu.matmul %378, %377, %cst_211 {dimension_numbers = #tpu.dot_dimension_numbers<[1], [0], [0], [1], [0, 0, 1, 1], [], []>} : vector<1x80xf32>, vector<80x128xf32>, vector<1x128xf32> -> vector<1x128xf32>
    %c0_212 = arith.constant 0 : index
    %c2_213 = arith.constant 2 : index
    %c0_214 = arith.constant 0 : index
    %380 = vector.load %arg3[%c0_212, %c2_213, %c0_214] : memref<80x8x128xf32, #tpu.memory_space<vmem>>, vector<80x1x128xf32>
    %381 = vector.shape_cast %380 : vector<80x1x128xf32> to vector<80x128xf32>
    %382 = vector.extract_strided_slice %351 {offsets = [0, 0], sizes = [1, 80], strides = [1, 1]} : vector<1x128xf32> to vector<1x80xf32>
    %cst_215 = arith.constant dense<0.000000e+00> : vector<1x128xf32>
    %383 = tpu.matmul %382, %381, %cst_215 {dimension_numbers = #tpu.dot_dimension_numbers<[1], [0], [0], [1], [0, 0, 1, 1], [], []>} : vector<1x80xf32>, vector<80x128xf32>, vector<1x128xf32> -> vector<1x128xf32>
    %c0_216 = arith.constant 0 : index
    %c3_217 = arith.constant 3 : index
    %c0_218 = arith.constant 0 : index
    %384 = vector.load %arg3[%c0_216, %c3_217, %c0_218] : memref<80x8x128xf32, #tpu.memory_space<vmem>>, vector<80x1x128xf32>
    %385 = vector.shape_cast %384 : vector<80x1x128xf32> to vector<80x128xf32>
    %386 = vector.extract_strided_slice %355 {offsets = [0, 0], sizes = [1, 80], strides = [1, 1]} : vector<1x128xf32> to vector<1x80xf32>
    %cst_219 = arith.constant dense<0.000000e+00> : vector<1x128xf32>
    %387 = tpu.matmul %386, %385, %cst_219 {dimension_numbers = #tpu.dot_dimension_numbers<[1], [0], [0], [1], [0, 0, 1, 1], [], []>} : vector<1x80xf32>, vector<80x128xf32>, vector<1x128xf32> -> vector<1x128xf32>
    %c0_220 = arith.constant 0 : index
    %c4_221 = arith.constant 4 : index
    %c0_222 = arith.constant 0 : index
    %388 = vector.load %arg3[%c0_220, %c4_221, %c0_222] : memref<80x8x128xf32, #tpu.memory_space<vmem>>, vector<80x1x128xf32>
    %389 = vector.shape_cast %388 : vector<80x1x128xf32> to vector<80x128xf32>
    %390 = vector.extract_strided_slice %359 {offsets = [0, 0], sizes = [1, 80], strides = [1, 1]} : vector<1x128xf32> to vector<1x80xf32>
    %cst_223 = arith.constant dense<0.000000e+00> : vector<1x128xf32>
    %391 = tpu.matmul %390, %389, %cst_223 {dimension_numbers = #tpu.dot_dimension_numbers<[1], [0], [0], [1], [0, 0, 1, 1], [], []>} : vector<1x80xf32>, vector<80x128xf32>, vector<1x128xf32> -> vector<1x128xf32>
    %c0_224 = arith.constant 0 : index
    %c5_225 = arith.constant 5 : index
    %c0_226 = arith.constant 0 : index
    %392 = vector.load %arg3[%c0_224, %c5_225, %c0_226] : memref<80x8x128xf32, #tpu.memory_space<vmem>>, vector<80x1x128xf32>
    %393 = vector.shape_cast %392 : vector<80x1x128xf32> to vector<80x128xf32>
    %394 = vector.extract_strided_slice %363 {offsets = [0, 0], sizes = [1, 80], strides = [1, 1]} : vector<1x128xf32> to vector<1x80xf32>
    %cst_227 = arith.constant dense<0.000000e+00> : vector<1x128xf32>
    %395 = tpu.matmul %394, %393, %cst_227 {dimension_numbers = #tpu.dot_dimension_numbers<[1], [0], [0], [1], [0, 0, 1, 1], [], []>} : vector<1x80xf32>, vector<80x128xf32>, vector<1x128xf32> -> vector<1x128xf32>
    %c0_228 = arith.constant 0 : index
    %c6_229 = arith.constant 6 : index
    %c0_230 = arith.constant 0 : index
    %396 = vector.load %arg3[%c0_228, %c6_229, %c0_230] : memref<80x8x128xf32, #tpu.memory_space<vmem>>, vector<80x1x128xf32>
    %397 = vector.shape_cast %396 : vector<80x1x128xf32> to vector<80x128xf32>
    %398 = vector.extract_strided_slice %367 {offsets = [0, 0], sizes = [1, 80], strides = [1, 1]} : vector<1x128xf32> to vector<1x80xf32>
    %cst_231 = arith.constant dense<0.000000e+00> : vector<1x128xf32>
    %399 = tpu.matmul %398, %397, %cst_231 {dimension_numbers = #tpu.dot_dimension_numbers<[1], [0], [0], [1], [0, 0, 1, 1], [], []>} : vector<1x80xf32>, vector<80x128xf32>, vector<1x128xf32> -> vector<1x128xf32>
    %c0_232 = arith.constant 0 : index
    %c7_233 = arith.constant 7 : index
    %c0_234 = arith.constant 0 : index
    %400 = vector.load %arg3[%c0_232, %c7_233, %c0_234] : memref<80x8x128xf32, #tpu.memory_space<vmem>>, vector<80x1x128xf32>
    %401 = vector.shape_cast %400 : vector<80x1x128xf32> to vector<80x128xf32>
    %402 = vector.extract_strided_slice %371 {offsets = [0, 0], sizes = [1, 80], strides = [1, 1]} : vector<1x128xf32> to vector<1x80xf32>
    %cst_235 = arith.constant dense<0.000000e+00> : vector<1x128xf32>
    %403 = tpu.matmul %402, %401, %cst_235 {dimension_numbers = #tpu.dot_dimension_numbers<[1], [0], [0], [1], [0, 0, 1, 1], [], []>} : vector<1x80xf32>, vector<80x128xf32>, vector<1x128xf32> -> vector<1x128xf32>
    %c0_236 = arith.constant 0 : index
    %c0_237 = arith.constant 0 : index
    %c0_238 = arith.constant 0 : index
    %404 = vector.load %arg3[%c0_236, %c0_237, %c0_238] : memref<80x8x128xf32, #tpu.memory_space<vmem>>, vector<80x1x128xf32>
    %405 = vector.shape_cast %404 : vector<80x1x128xf32> to vector<80x128xf32>
    %406 = vector.extract_strided_slice %375 {offsets = [0, 0], sizes = [1, 80], strides = [1, 1]} : vector<1x128xf32> to vector<1x80xf32>
    %cst_239 = arith.constant dense<0.000000e+00> : vector<1x128xf32>
    %407 = tpu.matmul %406, %405, %cst_239 {dimension_numbers = #tpu.dot_dimension_numbers<[1], [0], [0], [1], [0, 0, 1, 1], [], []>} : vector<1x80xf32>, vector<80x128xf32>, vector<1x128xf32> -> vector<1x128xf32>
    %c0_240 = arith.constant 0 : index
    %c1_241 = arith.constant 1 : index
    %c0_242 = arith.constant 0 : index
    %408 = vector.load %arg3[%c0_240, %c1_241, %c0_242] : memref<80x8x128xf32, #tpu.memory_space<vmem>>, vector<80x1x128xf32>
    %409 = vector.shape_cast %408 : vector<80x1x128xf32> to vector<80x128xf32>
    %410 = vector.extract_strided_slice %379 {offsets = [0, 0], sizes = [1, 80], strides = [1, 1]} : vector<1x128xf32> to vector<1x80xf32>
    %cst_243 = arith.constant dense<0.000000e+00> : vector<1x128xf32>
    %411 = tpu.matmul %410, %409, %cst_243 {dimension_numbers = #tpu.dot_dimension_numbers<[1], [0], [0], [1], [0, 0, 1, 1], [], []>} : vector<1x80xf32>, vector<80x128xf32>, vector<1x128xf32> -> vector<1x128xf32>
    %c0_244 = arith.constant 0 : index
    %c2_245 = arith.constant 2 : index
    %c0_246 = arith.constant 0 : index
    %412 = vector.load %arg3[%c0_244, %c2_245, %c0_246] : memref<80x8x128xf32, #tpu.memory_space<vmem>>, vector<80x1x128xf32>
    %413 = vector.shape_cast %412 : vector<80x1x128xf32> to vector<80x128xf32>
    %414 = vector.extract_strided_slice %383 {offsets = [0, 0], sizes = [1, 80], strides = [1, 1]} : vector<1x128xf32> to vector<1x80xf32>
    %cst_247 = arith.constant dense<0.000000e+00> : vector<1x128xf32>
    %415 = tpu.matmul %414, %413, %cst_247 {dimension_numbers = #tpu.dot_dimension_numbers<[1], [0], [0], [1], [0, 0, 1, 1], [], []>} : vector<1x80xf32>, vector<80x128xf32>, vector<1x128xf32> -> vector<1x128xf32>
    %c0_248 = arith.constant 0 : index
    %c3_249 = arith.constant 3 : index
    %c0_250 = arith.constant 0 : index
    %416 = vector.load %arg3[%c0_248, %c3_249, %c0_250] : memref<80x8x128xf32, #tpu.memory_space<vmem>>, vector<80x1x128xf32>
    %417 = vector.shape_cast %416 : vector<80x1x128xf32> to vector<80x128xf32>
    %418 = vector.extract_strided_slice %387 {offsets = [0, 0], sizes = [1, 80], strides = [1, 1]} : vector<1x128xf32> to vector<1x80xf32>
    %cst_251 = arith.constant dense<0.000000e+00> : vector<1x128xf32>
    %419 = tpu.matmul %418, %417, %cst_251 {dimension_numbers = #tpu.dot_dimension_numbers<[1], [0], [0], [1], [0, 0, 1, 1], [], []>} : vector<1x80xf32>, vector<80x128xf32>, vector<1x128xf32> -> vector<1x128xf32>
    %c0_252 = arith.constant 0 : index
    %c4_253 = arith.constant 4 : index
    %c0_254 = arith.constant 0 : index
    %420 = vector.load %arg3[%c0_252, %c4_253, %c0_254] : memref<80x8x128xf32, #tpu.memory_space<vmem>>, vector<80x1x128xf32>
    %421 = vector.shape_cast %420 : vector<80x1x128xf32> to vector<80x128xf32>
    %422 = vector.extract_strided_slice %391 {offsets = [0, 0], sizes = [1, 80], strides = [1, 1]} : vector<1x128xf32> to vector<1x80xf32>
    %cst_255 = arith.constant dense<0.000000e+00> : vector<1x128xf32>
    %423 = tpu.matmul %422, %421, %cst_255 {dimension_numbers = #tpu.dot_dimension_numbers<[1], [0], [0], [1], [0, 0, 1, 1], [], []>} : vector<1x80xf32>, vector<80x128xf32>, vector<1x128xf32> -> vector<1x128xf32>
    %c0_256 = arith.constant 0 : index
    %c5_257 = arith.constant 5 : index
    %c0_258 = arith.constant 0 : index
    %424 = vector.load %arg3[%c0_256, %c5_257, %c0_258] : memref<80x8x128xf32, #tpu.memory_space<vmem>>, vector<80x1x128xf32>
    %425 = vector.shape_cast %424 : vector<80x1x128xf32> to vector<80x128xf32>
    %426 = vector.extract_strided_slice %395 {offsets = [0, 0], sizes = [1, 80], strides = [1, 1]} : vector<1x128xf32> to vector<1x80xf32>
    %cst_259 = arith.constant dense<0.000000e+00> : vector<1x128xf32>
    %427 = tpu.matmul %426, %425, %cst_259 {dimension_numbers = #tpu.dot_dimension_numbers<[1], [0], [0], [1], [0, 0, 1, 1], [], []>} : vector<1x80xf32>, vector<80x128xf32>, vector<1x128xf32> -> vector<1x128xf32>
    %c0_260 = arith.constant 0 : index
    %c6_261 = arith.constant 6 : index
    %c0_262 = arith.constant 0 : index
    %428 = vector.load %arg3[%c0_260, %c6_261, %c0_262] : memref<80x8x128xf32, #tpu.memory_space<vmem>>, vector<80x1x128xf32>
    %429 = vector.shape_cast %428 : vector<80x1x128xf32> to vector<80x128xf32>
    %430 = vector.extract_strided_slice %399 {offsets = [0, 0], sizes = [1, 80], strides = [1, 1]} : vector<1x128xf32> to vector<1x80xf32>
    %cst_263 = arith.constant dense<0.000000e+00> : vector<1x128xf32>
    %431 = tpu.matmul %430, %429, %cst_263 {dimension_numbers = #tpu.dot_dimension_numbers<[1], [0], [0], [1], [0, 0, 1, 1], [], []>} : vector<1x80xf32>, vector<80x128xf32>, vector<1x128xf32> -> vector<1x128xf32>
    %c0_264 = arith.constant 0 : index
    %c7_265 = arith.constant 7 : index
    %c0_266 = arith.constant 0 : index
    %432 = vector.load %arg3[%c0_264, %c7_265, %c0_266] : memref<80x8x128xf32, #tpu.memory_space<vmem>>, vector<80x1x128xf32>
    %433 = vector.shape_cast %432 : vector<80x1x128xf32> to vector<80x128xf32>
    %434 = vector.extract_strided_slice %403 {offsets = [0, 0], sizes = [1, 80], strides = [1, 1]} : vector<1x128xf32> to vector<1x80xf32>
    %cst_267 = arith.constant dense<0.000000e+00> : vector<1x128xf32>
    %435 = tpu.matmul %434, %433, %cst_267 {dimension_numbers = #tpu.dot_dimension_numbers<[1], [0], [0], [1], [0, 0, 1, 1], [], []>} : vector<1x80xf32>, vector<80x128xf32>, vector<1x128xf32> -> vector<1x128xf32>
    %436 = tpu.concatenate %407, %411, %415, %419, %423, %427, %431, %435 in 0 : vector<1x128xf32>, vector<1x128xf32>, vector<1x128xf32>, vector<1x128xf32>, vector<1x128xf32>, vector<1x128xf32>, vector<1x128xf32>, vector<1x128xf32> -> vector<8x128xf32>
    %c0_268 = arith.constant 0 : index
    %c0_269 = arith.constant 0 : index
    %437 = vector.load %arg2[%c0_268, %c0_269] : memref<8x128xf32, #tpu.memory_space<vmem>>, vector<8x128xf32>
    tpu.vector_store %arg2[%c0_268, %c0_269], %436 {strides = array<i32>} : memref<8x128xf32, #tpu.memory_space<vmem>>, vector<8x128xf32>,
    return
  }
}

</mosaic_0001>

<llo_original>
// kernel: tpu_custom_call.1
$region0: #{tpu_custom_call.1}
  #allocation0 [shape = 'u32[]', space=smem, size = 0x4, offset = 0x4, fixed_abs, tag = 'smem constant byte address 0x4 - core index']
  #allocation1 [shape = 'u32[144,128]{1,0:T(1,128)}', space=vmem, size = 0x12000, scoped, tag = 'internal scratch']
  #allocation2 [shape = 'f32[80,8,128]{2,1,0:T(8,128)}', space=vmem, size = 0x50000, scoped, tag = 'scratch operand']
  %s0 = inlined_call_operand.hbm [shape: f32[8,128], index: 0, kind: input, shape index: {}]
  %s1 = inlined_call_operand.hbm [shape: f32[75,10240], index: 1, kind: input, shape index: {}]
  %s2 = inlined_call_operand.hbm [shape: f32[8,128], index: 2, kind: output, shape index: {}]
  %s3 = sld [smem:[#allocation0]]
  $region26: #{tpu_custom_call.1} parent=0
    _
  %s5 = ssub.s32 1, %s3
  %s6 = scalar_select 0, %s5, %s3
  $region1: #{tpu_custom_call.1} parent=0
    #allocation3 [shape = 'u8[4096]{0}', space=vmem, size = 0x1000, scoped, tag = 'input window, operand 0, single buffered']
    #allocation4 [shape = 's32[1]{0}', space=sflag, size = 0x4, scoped, tag = 'scoped memory for tpu_custom_call.1']
    #allocation5 [shape = 's32[1]{0}', space=sflag, size = 0x4, scoped, tag = 'scoped memory for tpu_custom_call.1']
    #allocation6 [shape = 'u8[3276800]{0}', space=vmem, size = 0x320000, scoped, tag = 'input window, operand 1, single buffered']
    #allocation7 [shape = 's32[1]{0}', space=sflag, size = 0x4, scoped, tag = 'scoped memory for tpu_custom_call.1']
    #allocation8 [shape = 'u8[4096]{0}', space=vmem, size = 0x1000, scoped, tag = 'output window, operand 0, single buffered']
    %7 = vsyncpa [#allocation4], 0
    %8 = vsyncpa [#allocation7], 0
    %9 = vsyncpa [#allocation5], 0
    // Predicated region
    $region2: #{tpu_custom_call.1} parent=1 // pred_check
      _
    $region3: #{tpu_custom_call.1} parent=1 // pred_check_branch
      %11 = sbr.rel (0) target = $region5
    $region4: #{tpu_custom_call.1} parent=1 // pred_region
      %s13 = ssub.s32 128, 128
      %14 = vsyncadd [#allocation4], %s13
      %s16 = sshll.u32 [#allocation3], 4
      %s17 = int_to_ptr.vmem [resolvable:$true] %s16
      %19 = dma.hbm_to_vmem [thread:$0]  %s0, 128, %s17, [#allocation4]
    $region5: #{tpu_custom_call.1} parent=1 // pred_fallthru
      _
    // Predicated region
    $region6: #{tpu_custom_call.1} parent=1 // pred_check
      _
    $region7: #{tpu_custom_call.1} parent=1 // pred_check_branch
      %21 = sbr.rel (0) target = $region9
    $region8: #{tpu_custom_call.1} parent=1 // pred_region
      %s23 = ssub.s32 102400, 102400
      %24 = vsyncadd [#allocation7], %s23
      %s25 = sshll.u32 [#allocation6], 4
      %s26 = int_to_ptr.vmem [resolvable:$true] %s25
      %31 = dma.hbm_to_vmem [thread:$0]  %s1, 102400, %s26, [#allocation7], 10240, 10240, 640
    $region9: #{tpu_custom_call.1} parent=1 // pred_fallthru
      _
    // Predicated region
    $region10: #{tpu_custom_call.1} parent=1 // pred_check
      _
    $region11: #{tpu_custom_call.1} parent=1 // pred_check_branch
      %33 = sbr.rel (0) target = $region13
    $region12: #{tpu_custom_call.1} parent=1 // pred_region
      %34 = dma.done [#allocation4], 128
    $region13: #{tpu_custom_call.1} parent=1 // pred_fallthru
      _
    // Predicated region
    $region14: #{tpu_custom_call.1} parent=1 // pred_check
      _
    $region15: #{tpu_custom_call.1} parent=1 // pred_check_branch
      %36 = sbr.rel (0) target = $region17
    $region16: #{tpu_custom_call.1} parent=1 // pred_region
      %37 = dma.done [#allocation7], 102400
    $region17: #{tpu_custom_call.1} parent=1 // pred_fallthru
      _
    %v38 = vld [vmem:[#allocation3] sm:$0xff]
    %v39 = vld [vmem:[#allocation6] sm:$0xff]
    %v40 = vld [vmem:[#allocation6 + $0x8] sm:$0xff]
    %v41 = vld [vmem:[#allocation6 + $0x10] sm:$0xff]
    %v42 = vld [vmem:[#allocation6 + $0x18] sm:$0xff]
    %v43 = vld [vmem:[#allocation6 + $0x20] sm:$0xff]
    %v44 = vld [vmem:[#allocation6 + $0x28] sm:$0xff]
    %v45 = vld [vmem:[#allocation6 + $0x30] sm:$0xff]
    %v46 = vld [vmem:[#allocation6 + $0x38] sm:$0xff]
    %v47 = vld [vmem:[#allocation6 + $0x40] sm:$0xff]
    %v48 = vld [vmem:[#allocation6 + $0x48] sm:$0xff]
    %v49 = vld [vmem:[#allocation6 + $0x50] sm:$0xff]
    %v50 = vld [vmem:[#allocation6 + $0x58] sm:$0xff]
    %v51 = vld [vmem:[#allocation6 + $0x60] sm:$0xff]
    %v52 = vld [vmem:[#allocation6 + $0x68] sm:$0xff]
    %v53 = vld [vmem:[#allocation6 + $0x70] sm:$0xff]
    %v54 = vld [vmem:[#allocation6 + $0x78] sm:$0xff]
    %v55 = vld [vmem:[#allocation6 + $0x280] sm:$0xff]
    %v56 = vld [vmem:[#allocation6 + $0x288] sm:$0xff]
    %v57 = vld [vmem:[#allocation6 + $0x290] sm:$0xff]
    %v58 = vld [vmem:[#allocation6 + $0x298] sm:$0xff]
    %v59 = vld [vmem:[#allocation6 + $0x2a0] sm:$0xff]
    %v60 = vld [vmem:[#allocation6 + $0x2a8] sm:$0xff]
    %v61 = vld [vmem:[#allocation6 + $0x2b0] sm:$0xff]
    %v62 = vld [vmem:[#allocation6 + $0x2b8] sm:$0xff]
    %v63 = vld [vmem:[#allocation6 + $0x2c0] sm:$0xff]
    %v64 = vld [vmem:[#allocation6 + $0x2c8] sm:$0xff]
    %v65 = vld [vmem:[#allocation6 + $0x2d0] sm:$0xff]
    %v66 = vld [vmem:[#allocation6 + $0x2d8] sm:$0xff]
    %v67 = vld [vmem:[#allocation6 + $0x2e0] sm:$0xff]
    %v68 = vld [vmem:[#allocation6 + $0x2e8] sm:$0xff]
    %v69 = vld [vmem:[#allocation6 + $0x2f0] sm:$0xff]
    %v70 = vld [vmem:[#allocation6 + $0x2f8] sm:$0xff]
    %v71 = vld [vmem:[#allocation6 + $0x500] sm:$0xff]
    %v72 = vld [vmem:[#allocation6 + $0x508] sm:$0xff]
    %v73 = vld [vmem:[#allocation6 + $0x510] sm:$0xff]
    %v74 = vld [vmem:[#allocation6 + $0x518] sm:$0xff]
    %v75 = vld [vmem:[#allocation6 + $0x520] sm:$0xff]
    %v76 = vld [vmem:[#allocation6 + $0x528] sm:$0xff]
    %v77 = vld [vmem:[#allocation6 + $0x530] sm:$0xff]
    %v78 = vld [vmem:[#allocation6 + $0x538] sm:$0xff]
    %v79 = vld [vmem:[#allocation6 + $0x540] sm:$0xff]
    %v80 = vld [vmem:[#allocation6 + $0x548] sm:$0xff]
    %v81 = vld [vmem:[#allocation6 + $0x550] sm:$0xff]
    %v82 = vld [vmem:[#allocation6 + $0x558] sm:$0xff]
    %v83 = vld [vmem:[#allocation6 + $0x560] sm:$0xff]
    %v84 = vld [vmem:[#allocation6 + $0x568] sm:$0xff]
    %v85 = vld [vmem:[#allocation6 + $0x570] sm:$0xff]
    %v86 = vld [vmem:[#allocation6 + $0x578] sm:$0xff]
    %v87 = vld [vmem:[#allocation6 + $0x780] sm:$0xff]
    %v88 = vld [vmem:[#allocation6 + $0x788] sm:$0xff]
    %v89 = vld [vmem:[#allocation6 + $0x790] sm:$0xff]
    %v90 = vld [vmem:[#allocation6 + $0x798] sm:$0xff]
    %v91 = vld [vmem:[#allocation6 + $0x7a0] sm:$0xff]
    %v92 = vld [vmem:[#allocation6 + $0x7a8] sm:$0xff]
    %v93 = vld [vmem:[#allocation6 + $0x7b0] sm:$0xff]
    %v94 = vld [vmem:[#allocation6 + $0x7b8] sm:$0xff]
    %v95 = vld [vmem:[#allocation6 + $0x7c0] sm:$0xff]
    %v96 = vld [vmem:[#allocation6 + $0x7c8] sm:$0xff]
    %v97 = vld [vmem:[#allocation6 + $0x7d0] sm:$0xff]
    %v98 = vld [vmem:[#allocation6 + $0x7d8] sm:$0xff]
    %v99 = vld [vmem:[#allocation6 + $0x7e0] sm:$0xff]
    %v100 = vld [vmem:[#allocation6 + $0x7e8] sm:$0xff]
    %v101 = vld [vmem:[#allocation6 + $0x7f0] sm:$0xff]
    %v102 = vld [vmem:[#allocation6 + $0x7f8] sm:$0xff]
    %v103 = vld [vmem:[#allocation6 + $0xa00] sm:$0xff]
    %v104 = vld [vmem:[#allocation6 + $0xa08] sm:$0xff]
    %v105 = vld [vmem:[#allocation6 + $0xa10] sm:$0xff]
    %v106 = vld [vmem:[#allocation6 + $0xa18] sm:$0xff]
    %v107 = vld [vmem:[#allocation6 + $0xa20] sm:$0xff]
    %v108 = vld [vmem:[#allocation6 + $0xa28] sm:$0xff]
    %v109 = vld [vmem:[#allocation6 + $0xa30] sm:$0xff]
    %v110 = vld [vmem:[#allocation6 + $0xa38] sm:$0xff]
    %v111 = vld [vmem:[#allocation6 + $0xa40] sm:$0xff]
    %v112 = vld [vmem:[#allocation6 + $0xa48] sm:$0xff]
    %v113 = vld [vmem:[#allocation6 + $0xa50] sm:$0xff]
    %v114 = vld [vmem:[#allocation6 + $0xa58] sm:$0xff]
    %v115 = vld [vmem:[#allocation6 + $0xa60] sm:$0xff]
    %v116 = vld [vmem:[#allocation6 + $0xa68] sm:$0xff]
    %v117 = vld [vmem:[#allocation6 + $0xa70] sm:$0xff]
    %v118 = vld [vmem:[#allocation6 + $0xa78] sm:$0xff]
    %v119 = vld [vmem:[#allocation6 + $0xc80] sm:$0xff]
    %v120 = vld [vmem:[#allocation6 + $0xc88] sm:$0xff]
    %v121 = vld [vmem:[#allocation6 + $0xc90] sm:$0xff]
    %v122 = vld [vmem:[#allocation6 + $0xc98] sm:$0xff]
    %v123 = vld [vmem:[#allocation6 + $0xca0] sm:$0xff]
    %v124 = vld [vmem:[#allocation6 + $0xca8] sm:$0xff]
    %v125 = vld [vmem:[#allocation6 + $0xcb0] sm:$0xff]
    %v126 = vld [vmem:[#allocation6 + $0xcb8] sm:$0xff]
    %v127 = vld [vmem:[#allocation6 + $0xcc0] sm:$0xff]
    %v128 = vld [vmem:[#allocation6 + $0xcc8] sm:$0xff]
    %v129 = vld [vmem:[#allocation6 + $0xcd0] sm:$0xff]
    %v130 = vld [vmem:[#allocation6 + $0xcd8] sm:$0xff]
    %v131 = vld [vmem:[#allocation6 + $0xce0] sm:$0xff]
    %v132 = vld [vmem:[#allocation6 + $0xce8] sm:$0xff]
    %v133 = vld [vmem:[#allocation6 + $0xcf0] sm:$0xff]
    %v134 = vld [vmem:[#allocation6 + $0xcf8] sm:$0xff]
    %v135 = vld [vmem:[#allocation6 + $0xf00] sm:$0xff]
    %v136 = vld [vmem:[#allocation6 + $0xf08] sm:$0xff]
    %v137 = vld [vmem:[#allocation6 + $0xf10] sm:$0xff]
    %v138 = vld [vmem:[#allocation6 + $0xf18] sm:$0xff]
    %v139 = vld [vmem:[#allocation6 + $0xf20] sm:$0xff]
    %v140 = vld [vmem:[#allocation6 + $0xf28] sm:$0xff]
    %v141 = vld [vmem:[#allocation6 + $0xf30] sm:$0xff]
    %v142 = vld [vmem:[#allocation6 + $0xf38] sm:$0xff]
    %v143 = vld [vmem:[#allocation6 + $0xf40] sm:$0xff]
    %v144 = vld [vmem:[#allocation6 + $0xf48] sm:$0xff]
    %v145 = vld [vmem:[#allocation6 + $0xf50] sm:$0xff]
    %v146 = vld [vmem:[#allocation6 + $0xf58] sm:$0xff]
    %v147 = vld [vmem:[#allocation6 + $0xf60] sm:$0xff]
    %v148 = vld [vmem:[#allocation6 + $0xf68] sm:$0xff]
    %v149 = vld [vmem:[#allocation6 + $0xf70] sm:$0xff]
    %v150 = vld [vmem:[#allocation6 + $0xf78] sm:$0xff]
    %v151 = vld [vmem:[#allocation6 + $0x1180] sm:$0xff]
    %v152 = vld [vmem:[#allocation6 + $0x1188] sm:$0xff]
    %v153 = vld [vmem:[#allocation6 + $0x1190] sm:$0xff]
    %v154 = vld [vmem:[#allocation6 + $0x1198] sm:$0xff]
    %v155 = vld [vmem:[#allocation6 + $0x11a0] sm:$0xff]
    %v156 = vld [vmem:[#allocation6 + $0x11a8] sm:$0xff]
    %v157 = vld [vmem:[#allocation6 + $0x11b0] sm:$0xff]
    %v158 = vld [vmem:[#allocation6 + $0x11b8] sm:$0xff]
    %v159 = vld [vmem:[#allocation6 + $0x11c0] sm:$0xff]
    %v160 = vld [vmem:[#allocation6 + $0x11c8] sm:$0xff]
    %v161 = vld [vmem:[#allocation6 + $0x11d0] sm:$0xff]
    %v162 = vld [vmem:[#allocation6 + $0x11d8] sm:$0xff]
    %v163 = vld [vmem:[#allocation6 + $0x11e0] sm:$0xff]
    %v164 = vld [vmem:[#allocation6 + $0x11e8] sm:$0xff]
    %v165 = vld [vmem:[#allocation6 + $0x11f0] sm:$0xff]
    %v166 = vld [vmem:[#allocation6 + $0x11f8] sm:$0xff]
    %v167 = vld [vmem:[#allocation6 + $0x1400] sm:$0xff]
    %v168 = vld [vmem:[#allocation6 + $0x1408] sm:$0xff]
    %v169 = vld [vmem:[#allocation6 + $0x1410] sm:$0xff]
    %v170 = vld [vmem:[#allocation6 + $0x1418] sm:$0xff]
    %v171 = vld [vmem:[#allocation6 + $0x1420] sm:$0xff]
    %v172 = vld [vmem:[#allocation6 + $0x1428] sm:$0xff]
    %v173 = vld [vmem:[#allocation6 + $0x1430] sm:$0xff]
    %v174 = vld [vmem:[#allocation6 + $0x1438] sm:$0xff]
    %v175 = vld [vmem:[#allocation6 + $0x1440] sm:$0xff]
    %v176 = vld [vmem:[#allocation6 + $0x1448] sm:$0xff]
    %v177 = vld [vmem:[#allocation6 + $0x1450] sm:$0xff]
    %v178 = vld [vmem:[#allocation6 + $0x1458] sm:$0xff]
    %v179 = vld [vmem:[#allocation6 + $0x1460] sm:$0xff]
    %v180 = vld [vmem:[#allocation6 + $0x1468] sm:$0xff]
    %v181 = vld [vmem:[#allocation6 + $0x1470] sm:$0xff]
    %v182 = vld [vmem:[#allocation6 + $0x1478] sm:$0xff]
    %v183 = vld [vmem:[#allocation6 + $0x1680] sm:$0x7]
    %v184 = vld [vmem:[#allocation6 + $0x1688] sm:$0x7]
    %v185 = vld [vmem:[#allocation6 + $0x1690] sm:$0x7]
    %v186 = vld [vmem:[#allocation6 + $0x1698] sm:$0x7]
    %v187 = vld [vmem:[#allocation6 + $0x16a0] sm:$0x7]
    %v188 = vld [vmem:[#allocation6 + $0x16a8] sm:$0x7]
    %v189 = vld [vmem:[#allocation6 + $0x16b0] sm:$0x7]
    %v190 = vld [vmem:[#allocation6 + $0x16b8] sm:$0x7]
    %v191 = vld [vmem:[#allocation6 + $0x16c0] sm:$0x7]
    %v192 = vld [vmem:[#allocation6 + $0x16c8] sm:$0x7]
    %v193 = vld [vmem:[#allocation6 + $0x16d0] sm:$0x7]
    %v194 = vld [vmem:[#allocation6 + $0x16d8] sm:$0x7]
    %v195 = vld [vmem:[#allocation6 + $0x16e0] sm:$0x7]
    %v196 = vld [vmem:[#allocation6 + $0x16e8] sm:$0x7]
    %v197 = vld [vmem:[#allocation6 + $0x16f0] sm:$0x7]
    %v198 = vld [vmem:[#allocation6 + $0x16f8] sm:$0x7]
    %vm199 = vcmask 613376
    %v201 = vsel %vm199, %v38, 0
    %vm203 = vcmask 1042432
    %v205 = vsel %vm203, %v183, 0
    %v208 = vsel %vm203, %v184, 0
    %v211 = vsel %vm203, %v185, 0
    %v214 = vsel %vm203, %v186, 0
    %v217 = vsel %vm203, %v187, 0
    %v220 = vsel %vm203, %v188, 0
    %v223 = vsel %vm203, %v189, 0
    %v226 = vsel %vm203, %v190, 0
    %v229 = vsel %vm203, %v191, 0
    %v232 = vsel %vm203, %v192, 0
    %v235 = vsel %vm203, %v193, 0
    %v238 = vsel %vm203, %v194, 0
    %v241 = vsel %vm203, %v195, 0
    %v244 = vsel %vm203, %v196, 0
    %v247 = vsel %vm203, %v197, 0
    %v250 = vsel %vm203, %v198, 0
    %252 = vmatprep.subr.mxu0 %v40
    %253 = vmatpush1.msra.mxu0 %v39
    %254 = vmatprep.subr.mxu0 %v56
    %255 = vmatpush1.msra.mxu0 %v55
    %256 = vmatprep.subr.mxu0 %v72
    %257 = vmatpush1.msra.mxu0 %v71
    %258 = vmatprep.subr.mxu0 %v88
    %259 = vmatpush1.msra.mxu0 %v87
    %260 = vmatprep.subr.mxu0 %v104
    %261 = vmatpush1.msra.mxu0 %v103
    %262 = vmatprep.subr.mxu0 %v120
    %263 = vmatpush1.msra.mxu0 %v119
    %264 = vmatprep.subr.mxu0 %v136
    %265 = vmatpush1.msra.mxu0 %v135
    %266 = vmatprep.subr.mxu0 %v152
    %267 = vmatpush1.msra.mxu0 %v151
    %268 = vmatprep.subr.mxu0 %v168
    %269 = vmatpush1.msra.mxu0 %v167
    %270 = vmatprep.subr.mxu0 %v208
    %271 = vmatpush1.msra.mxu0 %v205
    %272 = vmatprep.subr.mxu0 0.0
    %273 = vmatpush1.msra.mxu0 0.0
    %274 = vmatprep.subr.mxu0 0.0
    %275 = vmatpush1.msra.mxu0 0.0
    %276 = vmatprep.subr.mxu0 0.0
    %277 = vmatpush1.msra.mxu0 0.0
    %278 = vmatprep.subr.mxu0 0.0
    %279 = vmatpush1.msra.mxu0 0.0
    %280 = vmatprep.subr.mxu0 0.0
    %281 = vmatpush1.msra.mxu0 0.0
    %282 = vmatprep.subr.mxu0 0.0
    %283 = vmatpush1.msra.mxu0 0.0
    %284 = vmatprep.subr.mxu0 0.0
    %285 = vmatpush1.msra.mxu0 0.0
    %286 = vmatprep.subr.mxu0 0.0
    %287 = vmatpush1.msra.mxu0 0.0
    %288 = vmatprep.subr.mxu0 0.0
    %289 = vmatpush1.msra.mxu0 0.0
    %290 = vmatprep.subr.mxu0 0.0
    %291 = vmatpush1.msra.mxu0 0.0
    %292 = vmatprep.subr.mxu0 0.0
    %293 = vmatpush1.msra.mxu0 0.0
    %294 = vmatprep.subr.mxu0 0.0
    %295 = vmatpush1.msra.mxu0 0.0
    %296 = vmatprep.subr.mxu0 0.0
    %297 = vmatpush1.msra.mxu0 0.0
    %298 = vmatprep.subr.mxu0 0.0
    %299 = vmatpush1.msra.mxu0 0.0
    %300 = vmatprep.subr.mxu0 0.0
    %301 = vmatpush1.msra.mxu0 0.0
    %302 = vmatprep.subr.mxu0 0.0
    %303 = vmatpush1.msra.mxu0 0.0
    %304 = vmatprep.subr.mxu0 0.0
    %305 = vmatpush1.msra.mxu0 0.0
    %306 = vmatprep.subr.mxu0 0.0
    %307 = vmatpush1.msra.mxu0 0.0
    %308 = vmatprep.subr.mxu0 0.0
    %309 = vmatpush1.msra.mxu0 0.0
    %310 = vmatprep.subr.mxu0 0.0
    %311 = vmatpush1.msra.mxu0 0.0
    %312 = vmatprep.subr.mxu0 0.0
    %313 = vmatpush1.msra.mxu0 0.0
    %314 = vmatprep.subr.mxu0 0.0
    %315 = vmatpush1.msra.mxu0 0.0
    %316 = vmatprep.mubr.f32.mxu0 0.0
    %317 = vmatmul.mubr.f32.gmra.mrb[0].mxu0 %v201
    %v318 = vpop.f32.mrb[0].mxu0
    %v319 = vadd.f32 0.0, %v318
    %v320 = vpop.f32.mrb[0].mxu0
    %v321 = vadd.f32 0.0, %v320
    %322 = vdwg.mxu0
    %323 = vmatprep.subr.mxu0 %v42
    %324 = vmatpush1.msra.mxu0 %v41
    %325 = vmatprep.subr.mxu0 %v58
    %326 = vmatpush1.msra.mxu0 %v57
    %327 = vmatprep.subr.mxu0 %v74
    %328 = vmatpush1.msra.mxu0 %v73
    %329 = vmatprep.subr.mxu0 %v90
    %330 = vmatpush1.msra.mxu0 %v89
    %331 = vmatprep.subr.mxu0 %v106
    %332 = vmatpush1.msra.mxu0 %v105
    %333 = vmatprep.subr.mxu0 %v122
    %334 = vmatpush1.msra.mxu0 %v121
    %335 = vmatprep.subr.mxu0 %v138
    %336 = vmatpush1.msra.mxu0 %v137
    %337 = vmatprep.subr.mxu0 %v154
    %338 = vmatpush1.msra.mxu0 %v153
    %339 = vmatprep.subr.mxu0 %v170
    %340 = vmatpush1.msra.mxu0 %v169
    %341 = vmatprep.subr.mxu0 %v214
    %342 = vmatpush1.msra.mxu0 %v211
    %343 = vmatprep.subr.mxu0 0.0
    %344 = vmatpush1.msra.mxu0 0.0
    %345 = vmatprep.subr.mxu0 0.0
    %346 = vmatpush1.msra.mxu0 0.0
    %347 = vmatprep.subr.mxu0 0.0
    %348 = vmatpush1.msra.mxu0 0.0
    %349 = vmatprep.subr.mxu0 0.0
    %350 = vmatpush1.msra.mxu0 0.0
    %351 = vmatprep.subr.mxu0 0.0
    %352 = vmatpush1.msra.mxu0 0.0
    %353 = vmatprep.subr.mxu0 0.0
    %354 = vmatpush1.msra.mxu0 0.0
    %355 = vmatprep.subr.mxu0 0.0
    %356 = vmatpush1.msra.mxu0 0.0
    %357 = vmatprep.subr.mxu0 0.0
    %358 = vmatpush1.msra.mxu0 0.0
    %359 = vmatprep.subr.mxu0 0.0
    %360 = vmatpush1.msra.mxu0 0.0
    %361 = vmatprep.subr.mxu0 0.0
    %362 = vmatpush1.msra.mxu0 0.0
    %363 = vmatprep.subr.mxu0 0.0
    %364 = vmatpush1.msra.mxu0 0.0
    %365 = vmatprep.subr.mxu0 0.0
    %366 = vmatpush1.msra.mxu0 0.0
    %367 = vmatprep.subr.mxu0 0.0
    %368 = vmatpush1.msra.mxu0 0.0
    %369 = vmatprep.subr.mxu0 0.0
    %370 = vmatpush1.msra.mxu0 0.0
    %371 = vmatprep.subr.mxu0 0.0
    %372 = vmatpush1.msra.mxu0 0.0
    %373 = vmatprep.subr.mxu0 0.0
    %374 = vmatpush1.msra.mxu0 0.0
    %375 = vmatprep.subr.mxu0 0.0
    %376 = vmatpush1.msra.mxu0 0.0
    %377 = vmatprep.subr.mxu0 0.0
    %378 = vmatpush1.msra.mxu0 0.0
    %379 = vmatprep.subr.mxu0 0.0
    %380 = vmatpush1.msra.mxu0 0.0
    %381 = vmatprep.subr.mxu0 0.0
    %382 = vmatpush1.msra.mxu0 0.0
    %383 = vmatprep.subr.mxu0 0.0
    %384 = vmatpush1.msra.mxu0 0.0
    %385 = vmatprep.subr.mxu0 0.0
    %386 = vmatpush1.msra.mxu0 0.0
    %387 = vmatprep.mubr.f32.mxu0 0.0
    %388 = vmatmul.mubr.f32.gmra.mrb[0].mxu0 %v201
    %v389 = vpop.f32.mrb[0].mxu0
    %v390 = vadd.f32 0.0, %v389
    %v391 = vpop.f32.mrb[0].mxu0
    %v392 = vadd.f32 0.0, %v391
    %393 = vdwg.mxu0
    %394 = vmatprep.subr.mxu0 %v44
    %395 = vmatpush1.msra.mxu0 %v43
    %396 = vmatprep.subr.mxu0 %v60
    %397 = vmatpush1.msra.mxu0 %v59
    %398 = vmatprep.subr.mxu0 %v76
    %399 = vmatpush1.msra.mxu0 %v75
    %400 = vmatprep.subr.mxu0 %v92
    %401 = vmatpush1.msra.mxu0 %v91
    %402 = vmatprep.subr.mxu0 %v108
    %403 = vmatpush1.msra.mxu0 %v107
    %404 = vmatprep.subr.mxu0 %v124
    %405 = vmatpush1.msra.mxu0 %v123
    %406 = vmatprep.subr.mxu0 %v140
    %407 = vmatpush1.msra.mxu0 %v139
    %408 = vmatprep.subr.mxu0 %v156
    %409 = vmatpush1.msra.mxu0 %v155
    %410 = vmatprep.subr.mxu0 %v172
    %411 = vmatpush1.msra.mxu0 %v171
    %412 = vmatprep.subr.mxu0 %v220
    %413 = vmatpush1.msra.mxu0 %v217
    %414 = vmatprep.subr.mxu0 0.0
    %415 = vmatpush1.msra.mxu0 0.0
    %416 = vmatprep.subr.mxu0 0.0
    %417 = vmatpush1.msra.mxu0 0.0
    %418 = vmatprep.subr.mxu0 0.0
    %419 = vmatpush1.msra.mxu0 0.0
    %420 = vmatprep.subr.mxu0 0.0
    %421 = vmatpush1.msra.mxu0 0.0
    %422 = vmatprep.subr.mxu0 0.0
    %423 = vmatpush1.msra.mxu0 0.0
    %424 = vmatprep.subr.mxu0 0.0
    %425 = vmatpush1.msra.mxu0 0.0
    %426 = vmatprep.subr.mxu0 0.0
    %427 = vmatpush1.msra.mxu0 0.0
    %428 = vmatprep.subr.mxu0 0.0
    %429 = vmatpush1.msra.mxu0 0.0
    %430 = vmatprep.subr.mxu0 0.0
    %431 = vmatpush1.msra.mxu0 0.0
    %432 = vmatprep.subr.mxu0 0.0
    %433 = vmatpush1.msra.mxu0 0.0
    %434 = vmatprep.subr.mxu0 0.0
    %435 = vmatpush1.msra.mxu0 0.0
    %436 = vmatprep.subr.mxu0 0.0
    %437 = vmatpush1.msra.mxu0 0.0
    %438 = vmatprep.subr.mxu0 0.0
    %439 = vmatpush1.msra.mxu0 0.0
    %440 = vmatprep.subr.mxu0 0.0
    %441 = vmatpush1.msra.mxu0 0.0
    %442 = vmatprep.subr.mxu0 0.0
    %443 = vmatpush1.msra.mxu0 0.0
    %444 = vmatprep.subr.mxu0 0.0
    %445 = vmatpush1.msra.mxu0 0.0
    %446 = vmatprep.subr.mxu0 0.0
    %447 = vmatpush1.msra.mxu0 0.0
    %448 = vmatprep.subr.mxu0 0.0
    %449 = vmatpush1.msra.mxu0 0.0
    %450 = vmatprep.subr.mxu0 0.0
    %451 = vmatpush1.msra.mxu0 0.0
    %452 = vmatprep.subr.mxu0 0.0
    %453 = vmatpush1.msra.mxu0 0.0
    %454 = vmatprep.subr.mxu0 0.0
    %455 = vmatpush1.msra.mxu0 0.0
    %456 = vmatprep.subr.mxu0 0.0
    %457 = vmatpush1.msra.mxu0 0.0
    %458 = vmatprep.mubr.f32.mxu0 0.0
    %459 = vmatmul.mubr.f32.gmra.mrb[0].mxu0 %v201
    %v460 = vpop.f32.mrb[0].mxu0
    %v461 = vadd.f32 0.0, %v460
    %v462 = vpop.f32.mrb[0].mxu0
    %v463 = vadd.f32 0.0, %v462
    %464 = vdwg.mxu0
    %465 = vmatprep.subr.mxu0 %v46
    %466 = vmatpush1.msra.mxu0 %v45
    %467 = vmatprep.subr.mxu0 %v62
    %468 = vmatpush1.msra.mxu0 %v61
    %469 = vmatprep.subr.mxu0 %v78
    %470 = vmatpush1.msra.mxu0 %v77
    %471 = vmatprep.subr.mxu0 %v94
    %472 = vmatpush1.msra.mxu0 %v93
    %473 = vmatprep.subr.mxu0 %v110
    %474 = vmatpush1.msra.mxu0 %v109
    %475 = vmatprep.subr.mxu0 %v126
    %476 = vmatpush1.msra.mxu0 %v125
    %477 = vmatprep.subr.mxu0 %v142
    %478 = vmatpush1.msra.mxu0 %v141
    %479 = vmatprep.subr.mxu0 %v158
    %480 = vmatpush1.msra.mxu0 %v157
    %481 = vmatprep.subr.mxu0 %v174
    %482 = vmatpush1.msra.mxu0 %v173
    %483 = vmatprep.subr.mxu0 %v226
    %484 = vmatpush1.msra.mxu0 %v223
    %485 = vmatprep.subr.mxu0 0.0
    %486 = vmatpush1.msra.mxu0 0.0
    %487 = vmatprep.subr.mxu0 0.0
    %488 = vmatpush1.msra.mxu0 0.0
    %489 = vmatprep.subr.mxu0 0.0
    %490 = vmatpush1.msra.mxu0 0.0
    %491 = vmatprep.subr.mxu0 0.0
    %492 = vmatpush1.msra.mxu0 0.0
    %493 = vmatprep.subr.mxu0 0.0
    %494 = vmatpush1.msra.mxu0 0.0
    %495 = vmatprep.subr.mxu0 0.0
    %496 = vmatpush1.msra.mxu0 0.0
    %497 = vmatprep.subr.mxu0 0.0
    %498 = vmatpush1.msra.mxu0 0.0
    %499 = vmatprep.subr.mxu0 0.0
    %500 = vmatpush1.msra.mxu0 0.0
    %501 = vmatprep.subr.mxu0 0.0
    %502 = vmatpush1.msra.mxu0 0.0
    %503 = vmatprep.subr.mxu0 0.0
    %504 = vmatpush1.msra.mxu0 0.0
    %505 = vmatprep.subr.mxu0 0.0
    %506 = vmatpush1.msra.mxu0 0.0
    %507 = vmatprep.subr.mxu0 0.0
    %508 = vmatpush1.msra.mxu0 0.0
    %509 = vmatprep.subr.mxu0 0.0
    %510 = vmatpush1.msra.mxu0 0.0
    %511 = vmatprep.subr.mxu0 0.0
    %512 = vmatpush1.msra.mxu0 0.0
    %513 = vmatprep.subr.mxu0 0.0
    %514 = vmatpush1.msra.mxu0 0.0
    %515 = vmatprep.subr.mxu0 0.0
    %516 = vmatpush1.msra.mxu0 0.0
    %517 = vmatprep.subr.mxu0 0.0
    %518 = vmatpush1.msra.mxu0 0.0
    %519 = vmatprep.subr.mxu0 0.0
    %520 = vmatpush1.msra.mxu0 0.0
    %521 = vmatprep.subr.mxu0 0.0
    %522 = vmatpush1.msra.mxu0 0.0
    %523 = vmatprep.subr.mxu0 0.0
    %524 = vmatpush1.msra.mxu0 0.0
    %525 = vmatprep.subr.mxu0 0.0
    %526 = vmatpush1.msra.mxu0 0.0
    %527 = vmatprep.subr.mxu0 0.0
    %528 = vmatpush1.msra.mxu0 0.0
    %529 = vmatprep.mubr.f32.mxu0 0.0
    %530 = vmatmul.mubr.f32.gmra.mrb[0].mxu0 %v201
    %v531 = vpop.f32.mrb[0].mxu0
    %v532 = vadd.f32 0.0, %v531
    %v533 = vpop.f32.mrb[0].mxu0
    %v534 = vadd.f32 0.0, %v533
    %535 = vdwg.mxu0
    %536 = vmatprep.subr.mxu0 %v48
    %537 = vmatpush1.msra.mxu0 %v47
    %538 = vmatprep.subr.mxu0 %v64
    %539 = vmatpush1.msra.mxu0 %v63
    %540 = vmatprep.subr.mxu0 %v80
    %541 = vmatpush1.msra.mxu0 %v79
    %542 = vmatprep.subr.mxu0 %v96
    %543 = vmatpush1.msra.mxu0 %v95
    %544 = vmatprep.subr.mxu0 %v112
    %545 = vmatpush1.msra.mxu0 %v111
    %546 = vmatprep.subr.mxu0 %v128
    %547 = vmatpush1.msra.mxu0 %v127
    %548 = vmatprep.subr.mxu0 %v144
    %549 = vmatpush1.msra.mxu0 %v143
    %550 = vmatprep.subr.mxu0 %v160
    %551 = vmatpush1.msra.mxu0 %v159
    %552 = vmatprep.subr.mxu0 %v176
    %553 = vmatpush1.msra.mxu0 %v175
    %554 = vmatprep.subr.mxu0 %v232
    %555 = vmatpush1.msra.mxu0 %v229
    %556 = vmatprep.subr.mxu0 0.0
    %557 = vmatpush1.msra.mxu0 0.0
    %558 = vmatprep.subr.mxu0 0.0
    %559 = vmatpush1.msra.mxu0 0.0
    %560 = vmatprep.subr.mxu0 0.0
    %561 = vmatpush1.msra.mxu0 0.0
    %562 = vmatprep.subr.mxu0 0.0
    %563 = vmatpush1.msra.mxu0 0.0
    %564 = vmatprep.subr.mxu0 0.0
    %565 = vmatpush1.msra.mxu0 0.0
    %566 = vmatprep.subr.mxu0 0.0
    %567 = vmatpush1.msra.mxu0 0.0
    %568 = vmatprep.subr.mxu0 0.0
    %569 = vmatpush1.msra.mxu0 0.0
    %570 = vmatprep.subr.mxu0 0.0
    %571 = vmatpush1.msra.mxu0 0.0
    %572 = vmatprep.subr.mxu0 0.0
    %573 = vmatpush1.msra.mxu0 0.0
    %574 = vmatprep.subr.mxu0 0.0
    %575 = vmatpush1.msra.mxu0 0.0
    %576 = vmatprep.subr.mxu0 0.0
    %577 = vmatpush1.msra.mxu0 0.0
    %578 = vmatprep.subr.mxu0 0.0
    %579 = vmatpush1.msra.mxu0 0.0
    %580 = vmatprep.subr.mxu0 0.0
    %581 = vmatpush1.msra.mxu0 0.0
    %582 = vmatprep.subr.mxu0 0.0
    %583 = vmatpush1.msra.mxu0 0.0
    %584 = vmatprep.subr.mxu0 0.0
    %585 = vmatpush1.msra.mxu0 0.0
    %586 = vmatprep.subr.mxu0 0.0
    %587 = vmatpush1.msra.mxu0 0.0
    %588 = vmatprep.subr.mxu0 0.0
    %589 = vmatpush1.msra.mxu0 0.0
    %590 = vmatprep.subr.mxu0 0.0
    %591 = vmatpush1.msra.mxu0 0.0
    %592 = vmatprep.subr.mxu0 0.0
    %593 = vmatpush1.msra.mxu0 0.0
    %594 = vmatprep.subr.mxu0 0.0
    %595 = vmatpush1.msra.mxu0 0.0
    %596 = vmatprep.subr.mxu0 0.0
    %597 = vmatpush1.msra.mxu0 0.0
    %598 = vmatprep.subr.mxu0 0.0
    %599 = vmatpush1.msra.mxu0 0.0
    %600 = vmatprep.mubr.f32.mxu0 0.0
    %601 = vmatmul.mubr.f32.gmra.mrb[0].mxu0 %v201
    %v602 = vpop.f32.mrb[0].mxu0
    %v603 = vadd.f32 0.0, %v602
    %v604 = vpop.f32.mrb[0].mxu0
    %v605 = vadd.f32 0.0, %v604
    %606 = vdwg.mxu0
    %607 = vmatprep.subr.mxu0 %v50
    %608 = vmatpush1.msra.mxu0 %v49
    %609 = vmatprep.subr.mxu0 %v66
    %610 = vmatpush1.msra.mxu0 %v65
    %611 = vmatprep.subr.mxu0 %v82
    %612 = vmatpush1.msra.mxu0 %v81
    %613 = vmatprep.subr.mxu0 %v98
    %614 = vmatpush1.msra.mxu0 %v97
    %615 = vmatprep.subr.mxu0 %v114
    %616 = vmatpush1.msra.mxu0 %v113
    %617 = vmatprep.subr.mxu0 %v130
    %618 = vmatpush1.msra.mxu0 %v129
    %619 = vmatprep.subr.mxu0 %v146
    %620 = vmatpush1.msra.mxu0 %v145
    %621 = vmatprep.subr.mxu0 %v162
    %622 = vmatpush1.msra.mxu0 %v161
    %623 = vmatprep.subr.mxu0 %v178
    %624 = vmatpush1.msra.mxu0 %v177
    %625 = vmatprep.subr.mxu0 %v238
    %626 = vmatpush1.msra.mxu0 %v235
    %627 = vmatprep.subr.mxu0 0.0
    %628 = vmatpush1.msra.mxu0 0.0
    %629 = vmatprep.subr.mxu0 0.0
    %630 = vmatpush1.msra.mxu0 0.0
    %631 = vmatprep.subr.mxu0 0.0
    %632 = vmatpush1.msra.mxu0 0.0
    %633 = vmatprep.subr.mxu0 0.0
    %634 = vmatpush1.msra.mxu0 0.0
    %635 = vmatprep.subr.mxu0 0.0
    %636 = vmatpush1.msra.mxu0 0.0
    %637 = vmatprep.subr.mxu0 0.0
    %638 = vmatpush1.msra.mxu0 0.0
    %639 = vmatprep.subr.mxu0 0.0
    %640 = vmatpush1.msra.mxu0 0.0
    %641 = vmatprep.subr.mxu0 0.0
    %642 = vmatpush1.msra.mxu0 0.0
    %643 = vmatprep.subr.mxu0 0.0
    %644 = vmatpush1.msra.mxu0 0.0
    %645 = vmatprep.subr.mxu0 0.0
    %646 = vmatpush1.msra.mxu0 0.0
    %647 = vmatprep.subr.mxu0 0.0
    %648 = vmatpush1.msra.mxu0 0.0
    %649 = vmatprep.subr.mxu0 0.0
    %650 = vmatpush1.msra.mxu0 0.0
    %651 = vmatprep.subr.mxu0 0.0
    %652 = vmatpush1.msra.mxu0 0.0
    %653 = vmatprep.subr.mxu0 0.0
    %654 = vmatpush1.msra.mxu0 0.0
    %655 = vmatprep.subr.mxu0 0.0
    %656 = vmatpush1.msra.mxu0 0.0
    %657 = vmatprep.subr.mxu0 0.0
    %658 = vmatpush1.msra.mxu0 0.0
    %659 = vmatprep.subr.mxu0 0.0
    %660 = vmatpush1.msra.mxu0 0.0
    %661 = vmatprep.subr.mxu0 0.0
    %662 = vmatpush1.msra.mxu0 0.0
    %663 = vmatprep.subr.mxu0 0.0
    %664 = vmatpush1.msra.mxu0 0.0
    %665 = vmatprep.subr.mxu0 0.0
    %666 = vmatpush1.msra.mxu0 0.0
    %667 = vmatprep.subr.mxu0 0.0
    %668 = vmatpush1.msra.mxu0 0.0
    %669 = vmatprep.subr.mxu0 0.0
    %670 = vmatpush1.msra.mxu0 0.0
    %671 = vmatprep.mubr.f32.mxu0 0.0
    %672 = vmatmul.mubr.f32.gmra.mrb[0].mxu0 %v201
    %v673 = vpop.f32.mrb[0].mxu0
    %v674 = vadd.f32 0.0, %v673
    %v675 = vpop.f32.mrb[0].mxu0
    %v676 = vadd.f32 0.0, %v675
    %677 = vdwg.mxu0
    %678 = vmatprep.subr.mxu0 %v52
    %679 = vmatpush1.msra.mxu0 %v51
    %680 = vmatprep.subr.mxu0 %v68
    %681 = vmatpush1.msra.mxu0 %v67
    %682 = vmatprep.subr.mxu0 %v84
    %683 = vmatpush1.msra.mxu0 %v83
    %684 = vmatprep.subr.mxu0 %v100
    %685 = vmatpush1.msra.mxu0 %v99
    %686 = vmatprep.subr.mxu0 %v116
    %687 = vmatpush1.msra.mxu0 %v115
    %688 = vmatprep.subr.mxu0 %v132
    %689 = vmatpush1.msra.mxu0 %v131
    %690 = vmatprep.subr.mxu0 %v148
    %691 = vmatpush1.msra.mxu0 %v147
    %692 = vmatprep.subr.mxu0 %v164
    %693 = vmatpush1.msra.mxu0 %v163
    %694 = vmatprep.subr.mxu0 %v180
    %695 = vmatpush1.msra.mxu0 %v179
    %696 = vmatprep.subr.mxu0 %v244
    %697 = vmatpush1.msra.mxu0 %v241
    %698 = vmatprep.subr.mxu0 0.0
    %699 = vmatpush1.msra.mxu0 0.0
    %700 = vmatprep.subr.mxu0 0.0
    %701 = vmatpush1.msra.mxu0 0.0
    %702 = vmatprep.subr.mxu0 0.0
    %703 = vmatpush1.msra.mxu0 0.0
    %704 = vmatprep.subr.mxu0 0.0
    %705 = vmatpush1.msra.mxu0 0.0
    %706 = vmatprep.subr.mxu0 0.0
    %707 = vmatpush1.msra.mxu0 0.0
    %708 = vmatprep.subr.mxu0 0.0
    %709 = vmatpush1.msra.mxu0 0.0
    %710 = vmatprep.subr.mxu0 0.0
    %711 = vmatpush1.msra.mxu0 0.0
    %712 = vmatprep.subr.mxu0 0.0
    %713 = vmatpush1.msra.mxu0 0.0
    %714 = vmatprep.subr.mxu0 0.0
    %715 = vmatpush1.msra.mxu0 0.0
    %716 = vmatprep.subr.mxu0 0.0
    %717 = vmatpush1.msra.mxu0 0.0
    %718 = vmatprep.subr.mxu0 0.0
    %719 = vmatpush1.msra.mxu0 0.0
    %720 = vmatprep.subr.mxu0 0.0
    %721 = vmatpush1.msra.mxu0 0.0
    %722 = vmatprep.subr.mxu0 0.0
    %723 = vmatpush1.msra.mxu0 0.0
    %724 = vmatprep.subr.mxu0 0.0
    %725 = vmatpush1.msra.mxu0 0.0
    %726 = vmatprep.subr.mxu0 0.0
    %727 = vmatpush1.msra.mxu0 0.0
    %728 = vmatprep.subr.mxu0 0.0
    %729 = vmatpush1.msra.mxu0 0.0
    %730 = vmatprep.subr.mxu0 0.0
    %731 = vmatpush1.msra.mxu0 0.0
    %732 = vmatprep.subr.mxu0 0.0
    %733 = vmatpush1.msra.mxu0 0.0
    %734 = vmatprep.subr.mxu0 0.0
    %735 = vmatpush1.msra.mxu0 0.0
    %736 = vmatprep.subr.mxu0 0.0
    %737 = vmatpush1.msra.mxu0 0.0
    %738 = vmatprep.subr.mxu0 0.0
    %739 = vmatpush1.msra.mxu0 0.0
    %740 = vmatprep.subr.mxu0 0.0
    %741 = vmatpush1.msra.mxu0 0.0
    %742 = vmatprep.mubr.f32.mxu0 0.0
    %743 = vmatmul.mubr.f32.gmra.mrb[0].mxu0 %v201
    %v744 = vpop.f32.mrb[0].mxu0
    %v745 = vadd.f32 0.0, %v744
    %v746 = vpop.f32.mrb[0].mxu0
    %v747 = vadd.f32 0.0, %v746
    %748 = vdwg.mxu0
    %749 = vmatprep.subr.mxu0 %v54
    %750 = vmatpush1.msra.mxu0 %v53
    %751 = vmatprep.subr.mxu0 %v70
    %752 = vmatpush1.msra.mxu0 %v69
    %753 = vmatprep.subr.mxu0 %v86
    %754 = vmatpush1.msra.mxu0 %v85
    %755 = vmatprep.subr.mxu0 %v102
    %756 = vmatpush1.msra.mxu0 %v101
    %757 = vmatprep.subr.mxu0 %v118
    %758 = vmatpush1.msra.mxu0 %v117
    %759 = vmatprep.subr.mxu0 %v134
    %760 = vmatpush1.msra.mxu0 %v133
    %761 = vmatprep.subr.mxu0 %v150
    %762 = vmatpush1.msra.mxu0 %v149
    %763 = vmatprep.subr.mxu0 %v166
    %764 = vmatpush1.msra.mxu0 %v165
    %765 = vmatprep.subr.mxu0 %v182
    %766 = vmatpush1.msra.mxu0 %v181
    %767 = vmatprep.subr.mxu0 %v250
    %768 = vmatpush1.msra.mxu0 %v247
    %769 = vmatprep.subr.mxu0 0.0
    %770 = vmatpush1.msra.mxu0 0.0
    %771 = vmatprep.subr.mxu0 0.0
    %772 = vmatpush1.msra.mxu0 0.0
    %773 = vmatprep.subr.mxu0 0.0
    %774 = vmatpush1.msra.mxu0 0.0
    %775 = vmatprep.subr.mxu0 0.0
    %776 = vmatpush1.msra.mxu0 0.0
    %777 = vmatprep.subr.mxu0 0.0
    %778 = vmatpush1.msra.mxu0 0.0
    %779 = vmatprep.subr.mxu0 0.0
    %780 = vmatpush1.msra.mxu0 0.0
    %781 = vmatprep.subr.mxu0 0.0
    %782 = vmatpush1.msra.mxu0 0.0
    %783 = vmatprep.subr.mxu0 0.0
    %784 = vmatpush1.msra.mxu0 0.0
    %785 = vmatprep.subr.mxu0 0.0
    %786 = vmatpush1.msra.mxu0 0.0
    %787 = vmatprep.subr.mxu0 0.0
    %788 = vmatpush1.msra.mxu0 0.0
    %789 = vmatprep.subr.mxu0 0.0
    %790 = vmatpush1.msra.mxu0 0.0
    %791 = vmatprep.subr.mxu0 0.0
    %792 = vmatpush1.msra.mxu0 0.0
    %793 = vmatprep.subr.mxu0 0.0
    %794 = vmatpush1.msra.mxu0 0.0
    %795 = vmatprep.subr.mxu0 0.0
    %796 = vmatpush1.msra.mxu0 0.0
    %797 = vmatprep.subr.mxu0 0.0
    %798 = vmatpush1.msra.mxu0 0.0
    %799 = vmatprep.subr.mxu0 0.0
    %800 = vmatpush1.msra.mxu0 0.0
    %801 = vmatprep.subr.mxu0 0.0
    %802 = vmatpush1.msra.mxu0 0.0
    %803 = vmatprep.subr.mxu0 0.0
    %804 = vmatpush1.msra.mxu0 0.0
    %805 = vmatprep.subr.mxu0 0.0
    %806 = vmatpush1.msra.mxu0 0.0
    %807 = vmatprep.subr.mxu0 0.0
    %808 = vmatpush1.msra.mxu0 0.0
    %809 = vmatprep.subr.mxu0 0.0
    %810 = vmatpush1.msra.mxu0 0.0
    %811 = vmatprep.subr.mxu0 0.0
    %812 = vmatpush1.msra.mxu0 0.0
    %813 = vmatprep.mubr.f32.mxu0 0.0
    %814 = vmatmul.mubr.f32.gmra.mrb[0].mxu0 %v201
    %v815 = vpop.f32.mrb[0].mxu0
    %v816 = vadd.f32 0.0, %v815
    %v817 = vpop.f32.mrb[0].mxu0
    %v818 = vadd.f32 0.0, %v817
    %819 = vdwg.mxu0
    %820 = vst [vmem:[#allocation2] sm:$0xff] %v319
    %s821 = scalar_lea.vmem [#allocation2], 8
    %822 = vst [vmem:[%s821] sm:$0xff] %v321
    %s823 = scalar_lea.vmem [#allocation2], 16
    %824 = vst [vmem:[%s823] sm:$0xff] %v390
    %s825 = scalar_lea.vmem [#allocation2], 24
    %826 = vst [vmem:[%s825] sm:$0xff] %v392
    %s827 = scalar_lea.vmem [#allocation2], 32
    %828 = vst [vmem:[%s827] sm:$0xff] %v461
    %s829 = scalar_lea.vmem [#allocation2], 40
    %830 = vst [vmem:[%s829] sm:$0xff] %v463
    %s831 = scalar_lea.vmem [#allocation2], 48
    %832 = vst [vmem:[%s831] sm:$0xff] %v532
    %s833 = scalar_lea.vmem [#allocation2], 56
    %834 = vst [vmem:[%s833] sm:$0xff] %v534
    %s835 = scalar_lea.vmem [#allocation2], 64
    %836 = vst [vmem:[%s835] sm:$0xff] %v603
    %s837 = scalar_lea.vmem [#allocation2], 72
    %838 = vst [vmem:[%s837] sm:$0xff] %v605
    %s839 = scalar_lea.vmem [#allocation2], 80
    %840 = vst [vmem:[%s839] sm:$0xff] %v674
    %s841 = scalar_lea.vmem [#allocation2], 88
    %842 = vst [vmem:[%s841] sm:$0xff] %v676
    %s843 = scalar_lea.vmem [#allocation2], 96
    %844 = vst [vmem:[%s843] sm:$0xff] %v745
    %s845 = scalar_lea.vmem [#allocation2], 104
    %846 = vst [vmem:[%s845] sm:$0xff] %v747
    %s847 = scalar_lea.vmem [#allocation2], 112
    %848 = vst [vmem:[%s847] sm:$0xff] %v816
    %s849 = scalar_lea.vmem [#allocation2], 120
    %850 = vst [vmem:[%s849] sm:$0xff] %v818
    %v851 = vld [vmem:[#allocation6 + $0x80] sm:$0xff]
    %v852 = vld [vmem:[#allocation6 + $0x88] sm:$0xff]
    %v853 = vld [vmem:[#allocation6 + $0x90] sm:$0xff]
    %v854 = vld [vmem:[#allocation6 + $0x98] sm:$0xff]
    %v855 = vld [vmem:[#allocation6 + $0xa0] sm:$0xff]
    %v856 = vld [vmem:[#allocation6 + $0xa8] sm:$0xff]
    %v857 = vld [vmem:[#allocation6 + $0xb0] sm:$0xff]
    %v858 = vld [vmem:[#allocation6 + $0xb8] sm:$0xff]
    %v859 = vld [vmem:[#allocation6 + $0xc0] sm:$0xff]
    %v860 = vld [vmem:[#allocation6 + $0xc8] sm:$0xff]
    %v861 = vld [vmem:[#allocation6 + $0xd0] sm:$0xff]
    %v862 = vld [vmem:[#allocation6 + $0xd8] sm:$0xff]
    %v863 = vld [vmem:[#allocation6 + $0xe0] sm:$0xff]
    %v864 = vld [vmem:[#allocation6 + $0xe8] sm:$0xff]
    %v865 = vld [vmem:[#allocation6 + $0xf0] sm:$0xff]
    %v866 = vld [vmem:[#allocation6 + $0xf8] sm:$0xff]
    %v867 = vld [vmem:[#allocation6 + $0x300] sm:$0xff]
    %v868 = vld [vmem:[#allocation6 + $0x308] sm:$0xff]
    %v869 = vld [vmem:[#allocation6 + $0x310] sm:$0xff]
    %v870 = vld [vmem:[#allocation6 + $0x318] sm:$0xff]
    %v871 = vld [vmem:[#allocation6 + $0x320] sm:$0xff]
    %v872 = vld [vmem:[#allocation6 + $0x328] sm:$0xff]
    %v873 = vld [vmem:[#allocation6 + $0x330] sm:$0xff]
    %v874 = vld [vmem:[#allocation6 + $0x338] sm:$0xff]
    %v875 = vld [vmem:[#allocation6 + $0x340] sm:$0xff]
    %v876 = vld [vmem:[#allocation6 + $0x348] sm:$0xff]
    %v877 = vld [vmem:[#allocation6 + $0x350] sm:$0xff]
    %v878 = vld [vmem:[#allocation6 + $0x358] sm:$0xff]
    %v879 = vld [vmem:[#allocation6 + $0x360] sm:$0xff]
    %v880 = vld [vmem:[#allocation6 + $0x368] sm:$0xff]
    %v881 = vld [vmem:[#allocation6 + $0x370] sm:$0xff]
    %v882 = vld [vmem:[#allocation6 + $0x378] sm:$0xff]
    %v883 = vld [vmem:[#allocation6 + $0x580] sm:$0xff]
    %v884 = vld [vmem:[#allocation6 + $0x588] sm:$0xff]
    %v885 = vld [vmem:[#allocation6 + $0x590] sm:$0xff]
    %v886 = vld [vmem:[#allocation6 + $0x598] sm:$0xff]
    %v887 = vld [vmem:[#allocation6 + $0x5a0] sm:$0xff]
    %v888 = vld [vmem:[#allocation6 + $0x5a8] sm:$0xff]
    %v889 = vld [vmem:[#allocation6 + $0x5b0] sm:$0xff]
    %v890 = vld [vmem:[#allocation6 + $0x5b8] sm:$0xff]
    %v891 = vld [vmem:[#allocation6 + $0x5c0] sm:$0xff]
    %v892 = vld [vmem:[#allocation6 + $0x5c8] sm:$0xff]
    %v893 = vld [vmem:[#allocation6 + $0x5d0] sm:$0xff]
    %v894 = vld [vmem:[#allocation6 + $0x5d8] sm:$0xff]
    %v895 = vld [vmem:[#allocation6 + $0x5e0] sm:$0xff]
    %v896 = vld [vmem:[#allocation6 + $0x5e8] sm:$0xff]
    %v897 = vld [vmem:[#allocation6 + $0x5f0] sm:$0xff]
    %v898 = vld [vmem:[#allocation6 + $0x5f8] sm:$0xff]
    %v899 = vld [vmem:[#allocation6 + $0x800] sm:$0xff]
    %v900 = vld [vmem:[#allocation6 + $0x808] sm:$0xff]
    %v901 = vld [vmem:[#allocation6 + $0x810] sm:$0xff]
    %v902 = vld [vmem:[#allocation6 + $0x818] sm:$0xff]
    %v903 = vld [vmem:[#allocation6 + $0x820] sm:$0xff]
    %v904 = vld [vmem:[#allocation6 + $0x828] sm:$0xff]
    %v905 = vld [vmem:[#allocation6 + $0x830] sm:$0xff]
    %v906 = vld [vmem:[#allocation6 + $0x838] sm:$0xff]
    %v907 = vld [vmem:[#allocation6 + $0x840] sm:$0xff]
    %v908 = vld [vmem:[#allocation6 + $0x848] sm:$0xff]
    %v909 = vld [vmem:[#allocation6 + $0x850] sm:$0xff]
    %v910 = vld [vmem:[#allocation6 + $0x858] sm:$0xff]
    %v911 = vld [vmem:[#allocation6 + $0x860] sm:$0xff]
    %v912 = vld [vmem:[#allocation6 + $0x868] sm:$0xff]
    %v913 = vld [vmem:[#allocation6 + $0x870] sm:$0xff]
    %v914 = vld [vmem:[#allocation6 + $0x878] sm:$0xff]
    %v915 = vld [vmem:[#allocation6 + $0xa80] sm:$0xff]
    %v916 = vld [vmem:[#allocation6 + $0xa88] sm:$0xff]
    %v917 = vld [vmem:[#allocation6 + $0xa90] sm:$0xff]
    %v918 = vld [vmem:[#allocation6 + $0xa98] sm:$0xff]
    %v919 = vld [vmem:[#allocation6 + $0xaa0] sm:$0xff]
    %v920 = vld [vmem:[#allocation6 + $0xaa8] sm:$0xff]
    %v921 = vld [vmem:[#allocation6 + $0xab0] sm:$0xff]
    %v922 = vld [vmem:[#allocation6 + $0xab8] sm:$0xff]
    %v923 = vld [vmem:[#allocation6 + $0xac0] sm:$0xff]
    %v924 = vld [vmem:[#allocation6 + $0xac8] sm:$0xff]
    %v925 = vld [vmem:[#allocation6 + $0xad0] sm:$0xff]
    %v926 = vld [vmem:[#allocation6 + $0xad8] sm:$0xff]
    %v927 = vld [vmem:[#allocation6 + $0xae0] sm:$0xff]
    %v928 = vld [vmem:[#allocation6 + $0xae8] sm:$0xff]
    %v929 = vld [vmem:[#allocation6 + $0xaf0] sm:$0xff]
    %v930 = vld [vmem:[#allocation6 + $0xaf8] sm:$0xff]
    %v931 = vld [vmem:[#allocation6 + $0xd00] sm:$0xff]
    %v932 = vld [vmem:[#allocation6 + $0xd08] sm:$0xff]
    %v933 = vld [vmem:[#allocation6 + $0xd10] sm:$0xff]
    %v934 = vld [vmem:[#allocation6 + $0xd18] sm:$0xff]
    %v935 = vld [vmem:[#allocation6 + $0xd20] sm:$0xff]
    %v936 = vld [vmem:[#allocation6 + $0xd28] sm:$0xff]
    %v937 = vld [vmem:[#allocation6 + $0xd30] sm:$0xff]
    %v938 = vld [vmem:[#allocation6 + $0xd38] sm:$0xff]
    %v939 = vld [vmem:[#allocation6 + $0xd40] sm:$0xff]
    %v940 = vld [vmem:[#allocation6 + $0xd48] sm:$0xff]
    %v941 = vld [vmem:[#allocation6 + $0xd50] sm:$0xff]
    %v942 = vld [vmem:[#allocation6 + $0xd58] sm:$0xff]
    %v943 = vld [vmem:[#allocation6 + $0xd60] sm:$0xff]
    %v944 = vld [vmem:[#allocation6 + $0xd68] sm:$0xff]
    %v945 = vld [vmem:[#allocation6 + $0xd70] sm:$0xff]
    %v946 = vld [vmem:[#allocation6 + $0xd78] sm:$0xff]
    %v947 = vld [vmem:[#allocation6 + $0xf80] sm:$0xff]
    %v948 = vld [vmem:[#allocation6 + $0xf88] sm:$0xff]
    %v949 = vld [vmem:[#allocation6 + $0xf90] sm:$0xff]
    %v950 = vld [vmem:[#allocation6 + $0xf98] sm:$0xff]
    %v951 = vld [vmem:[#allocation6 + $0xfa0] sm:$0xff]
    %v952 = vld [vmem:[#allocation6 + $0xfa8] sm:$0xff]
    %v953 = vld [vmem:[#allocation6 + $0xfb0] sm:$0xff]
    %v954 = vld [vmem:[#allocation6 + $0xfb8] sm:$0xff]
    %v955 = vld [vmem:[#allocation6 + $0xfc0] sm:$0xff]
    %v956 = vld [vmem:[#allocation6 + $0xfc8] sm:$0xff]
    %v957 = vld [vmem:[#allocation6 + $0xfd0] sm:$0xff]
    %v958 = vld [vmem:[#allocation6 + $0xfd8] sm:$0xff]
    %v959 = vld [vmem:[#allocation6 + $0xfe0] sm:$0xff]
    %v960 = vld [vmem:[#allocation6 + $0xfe8] sm:$0xff]
    %v961 = vld [vmem:[#allocation6 + $0xff0] sm:$0xff]
    %v962 = vld [vmem:[#allocation6 + $0xff8] sm:$0xff]
    %v963 = vld [vmem:[#allocation6 + $0x1200] sm:$0xff]
    %v964 = vld [vmem:[#allocation6 + $0x1208] sm:$0xff]
    %v965 = vld [vmem:[#allocation6 + $0x1210] sm:$0xff]
    %v966 = vld [vmem:[#allocation6 + $0x1218] sm:$0xff]
    %v967 = vld [vmem:[#allocation6 + $0x1220] sm:$0xff]
    %v968 = vld [vmem:[#allocation6 + $0x1228] sm:$0xff]
    %v969 = vld [vmem:[#allocation6 + $0x1230] sm:$0xff]
    %v970 = vld [vmem:[#allocation6 + $0x1238] sm:$0xff]
    %v971 = vld [vmem:[#allocation6 + $0x1240] sm:$0xff]
    %v972 = vld [vmem:[#allocation6 + $0x1248] sm:$0xff]
    %v973 = vld [vmem:[#allocation6 + $0x1250] sm:$0xff]
    %v974 = vld [vmem:[#allocation6 + $0x1258] sm:$0xff]
    %v975 = vld [vmem:[#allocation6 + $0x1260] sm:$0xff]
    %v976 = vld [vmem:[#allocation6 + $0x1268] sm:$0xff]
    %v977 = vld [vmem:[#allocation6 + $0x1270] sm:$0xff]
    %v978 = vld [vmem:[#allocation6 + $0x1278] sm:$0xff]
    %v979 = vld [vmem:[#allocation6 + $0x1480] sm:$0xff]
    %v980 = vld [vmem:[#allocation6 + $0x1488] sm:$0xff]
    %v981 = vld [vmem:[#allocation6 + $0x1490] sm:$0xff]
    %v982 = vld [vmem:[#allocation6 + $0x1498] sm:$0xff]
    %v983 = vld [vmem:[#allocation6 + $0x14a0] sm:$0xff]
    %v984 = vld [vmem:[#allocation6 + $0x14a8] sm:$0xff]
    %v985 = vld [vmem:[#allocation6 + $0x14b0] sm:$0xff]
    %v986 = vld [vmem:[#allocation6 + $0x14b8] sm:$0xff]
    %v987 = vld [vmem:[#allocation6 + $0x14c0] sm:$0xff]
    %v988 = vld [vmem:[#allocation6 + $0x14c8] sm:$0xff]
    %v989 = vld [vmem:[#allocation6 + $0x14d0] sm:$0xff]
    %v990 = vld [vmem:[#allocation6 + $0x14d8] sm:$0xff]
    %v991 = vld [vmem:[#allocation6 + $0x14e0] sm:$0xff]
    %v992 = vld [vmem:[#allocation6 + $0x14e8] sm:$0xff]
    %v993 = vld [vmem:[#allocation6 + $0x14f0] sm:$0xff]
    %v994 = vld [vmem:[#allocation6 + $0x14f8] sm:$0xff]
    %v995 = vld [vmem:[#allocation6 + $0x1700] sm:$0x7]
    %v996 = vld [vmem:[#allocation6 + $0x1708] sm:$0x7]
    %v997 = vld [vmem:[#allocation6 + $0x1710] sm:$0x7]
    %v998 = vld [vmem:[#allocation6 + $0x1718] sm:$0x7]
    %v999 = vld [vmem:[#allocation6 + $0x1720] sm:$0x7]
    %v1000 = vld [vmem:[#allocation6 + $0x1728] sm:$0x7]
    %v1001 = vld [vmem:[#allocation6 + $0x1730] sm:$0x7]
    %v1002 = vld [vmem:[#allocation6 + $0x1738] sm:$0x7]
    %v1003 = vld [vmem:[#allocation6 + $0x1740] sm:$0x7]
    %v1004 = vld [vmem:[#allocation6 + $0x1748] sm:$0x7]
    %v1005 = vld [vmem:[#allocation6 + $0x1750] sm:$0x7]
    %v1006 = vld [vmem:[#allocation6 + $0x1758] sm:$0x7]
    %v1007 = vld [vmem:[#allocation6 + $0x1760] sm:$0x7]
    %v1008 = vld [vmem:[#allocation6 + $0x1768] sm:$0x7]
    %v1009 = vld [vmem:[#allocation6 + $0x1770] sm:$0x7]
    %v1010 = vld [vmem:[#allocation6 + $0x1778] sm:$0x7]
    %v1012 = vsel %vm203, %v995, 0
    %v1015 = vsel %vm203, %v996, 0
    %v1018 = vsel %vm203, %v997, 0
    %v1021 = vsel %vm203, %v998, 0
    %v1024 = vsel %vm203, %v999, 0
    %v1027 = vsel %vm203, %v1000, 0
    %v1030 = vsel %vm203, %v1001, 0
    %v1033 = vsel %vm203, %v1002, 0
    %v1036 = vsel %vm203, %v1003, 0
    %v1039 = vsel %vm203, %v1004, 0
    %v1042 = vsel %vm203, %v1005, 0
    %v1045 = vsel %vm203, %v1006, 0
    %v1048 = vsel %vm203, %v1007, 0
    %v1051 = vsel %vm203, %v1008, 0
    %v1054 = vsel %vm203, %v1009, 0
    %v1057 = vsel %vm203, %v1010, 0
    %1059 = vmatprep.subr.mxu0 %v852
    %1060 = vmatpush1.msra.mxu0 %v851
    %1061 = vmatprep.subr.mxu0 %v868
    %1062 = vmatpush1.msra.mxu0 %v867
    %1063 = vmatprep.subr.mxu0 %v884
    %1064 = vmatpush1.msra.mxu0 %v883
    %1065 = vmatprep.subr.mxu0 %v900
    %1066 = vmatpush1.msra.mxu0 %v899
    %1067 = vmatprep.subr.mxu0 %v916
    %1068 = vmatpush1.msra.mxu0 %v915
    %1069 = vmatprep.subr.mxu0 %v932
    %1070 = vmatpush1.msra.mxu0 %v931
    %1071 = vmatprep.subr.mxu0 %v948
    %1072 = vmatpush1.msra.mxu0 %v947
    %1073 = vmatprep.subr.mxu0 %v964
    %1074 = vmatpush1.msra.mxu0 %v963
    %1075 = vmatprep.subr.mxu0 %v980
    %1076 = vmatpush1.msra.mxu0 %v979
    %1077 = vmatprep.subr.mxu0 %v1015
    %1078 = vmatpush1.msra.mxu0 %v1012
    %1079 = vmatprep.subr.mxu0 0.0
    %1080 = vmatpush1.msra.mxu0 0.0
    %1081 = vmatprep.subr.mxu0 0.0
    %1082 = vmatpush1.msra.mxu0 0.0
    %1083 = vmatprep.subr.mxu0 0.0
    %1084 = vmatpush1.msra.mxu0 0.0
    %1085 = vmatprep.subr.mxu0 0.0
    %1086 = vmatpush1.msra.mxu0 0.0
    %1087 = vmatprep.subr.mxu0 0.0
    %1088 = vmatpush1.msra.mxu0 0.0
    %1089 = vmatprep.subr.mxu0 0.0
    %1090 = vmatpush1.msra.mxu0 0.0
    %1091 = vmatprep.subr.mxu0 0.0
    %1092 = vmatpush1.msra.mxu0 0.0
    %1093 = vmatprep.subr.mxu0 0.0
    %1094 = vmatpush1.msra.mxu0 0.0
    %1095 = vmatprep.subr.mxu0 0.0
    %1096 = vmatpush1.msra.mxu0 0.0
    %1097 = vmatprep.subr.mxu0 0.0
    %1098 = vmatpush1.msra.mxu0 0.0
    %1099 = vmatprep.subr.mxu0 0.0
    %1100 = vmatpush1.msra.mxu0 0.0
    %1101 = vmatprep.subr.mxu0 0.0
    %1102 = vmatpush1.msra.mxu0 0.0
    %1103 = vmatprep.subr.mxu0 0.0
    %1104 = vmatpush1.msra.mxu0 0.0
    %1105 = vmatprep.subr.mxu0 0.0
    %1106 = vmatpush1.msra.mxu0 0.0
    %1107 = vmatprep.subr.mxu0 0.0
    %1108 = vmatpush1.msra.mxu0 0.0
    %1109 = vmatprep.subr.mxu0 0.0
    %1110 = vmatpush1.msra.mxu0 0.0
    %1111 = vmatprep.subr.mxu0 0.0
    %1112 = vmatpush1.msra.mxu0 0.0
    %1113 = vmatprep.subr.mxu0 0.0
    %1114 = vmatpush1.msra.mxu0 0.0
    %1115 = vmatprep.subr.mxu0 0.0
    %1116 = vmatpush1.msra.mxu0 0.0
    %1117 = vmatprep.subr.mxu0 0.0
    %1118 = vmatpush1.msra.mxu0 0.0
    %1119 = vmatprep.subr.mxu0 0.0
    %1120 = vmatpush1.msra.mxu0 0.0
    %1121 = vmatprep.subr.mxu0 0.0
    %1122 = vmatpush1.msra.mxu0 0.0
    %1123 = vmatprep.mubr.f32.mxu0 0.0
    %1124 = vmatmul.mubr.f32.gmra.mrb[0].mxu0 %v201
    %v1125 = vpop.f32.mrb[0].mxu0
    %v1126 = vadd.f32 0.0, %v1125
    %v1127 = vpop.f32.mrb[0].mxu0
    %v1128 = vadd.f32 0.0, %v1127
    %1129 = vdwg.mxu0
    %1130 = vmatprep.subr.mxu0 %v854
    %1131 = vmatpush1.msra.mxu0 %v853
    %1132 = vmatprep.subr.mxu0 %v870
    %1133 = vmatpush1.msra.mxu0 %v869
    %1134 = vmatprep.subr.mxu0 %v886
    %1135 = vmatpush1.msra.mxu0 %v885
    %1136 = vmatprep.subr.mxu0 %v902
    %1137 = vmatpush1.msra.mxu0 %v901
    %1138 = vmatprep.subr.mxu0 %v918
    %1139 = vmatpush1.msra.mxu0 %v917
    %1140 = vmatprep.subr.mxu0 %v934
    %1141 = vmatpush1.msra.mxu0 %v933
    %1142 = vmatprep.subr.mxu0 %v950
    %1143 = vmatpush1.msra.mxu0 %v949
    %1144 = vmatprep.subr.mxu0 %v966
    %1145 = vmatpush1.msra.mxu0 %v965
    %1146 = vmatprep.subr.mxu0 %v982
    %1147 = vmatpush1.msra.mxu0 %v981
    %1148 = vmatprep.subr.mxu0 %v1021
    %1149 = vmatpush1.msra.mxu0 %v1018
    %1150 = vmatprep.subr.mxu0 0.0
    %1151 = vmatpush1.msra.mxu0 0.0
    %1152 = vmatprep.subr.mxu0 0.0
    %1153 = vmatpush1.msra.mxu0 0.0
    %1154 = vmatprep.subr.mxu0 0.0
    %1155 = vmatpush1.msra.mxu0 0.0
    %1156 = vmatprep.subr.mxu0 0.0
    %1157 = vmatpush1.msra.mxu0 0.0
    %1158 = vmatprep.subr.mxu0 0.0
    %1159 = vmatpush1.msra.mxu0 0.0
    %1160 = vmatprep.subr.mxu0 0.0
    %1161 = vmatpush1.msra.mxu0 0.0
    %1162 = vmatprep.subr.mxu0 0.0
    %1163 = vmatpush1.msra.mxu0 0.0
    %1164 = vmatprep.subr.mxu0 0.0
    %1165 = vmatpush1.msra.mxu0 0.0
    %1166 = vmatprep.subr.mxu0 0.0
    %1167 = vmatpush1.msra.mxu0 0.0
    %1168 = vmatprep.subr.mxu0 0.0
    %1169 = vmatpush1.msra.mxu0 0.0
    %1170 = vmatprep.subr.mxu0 0.0
    %1171 = vmatpush1.msra.mxu0 0.0
    %1172 = vmatprep.subr.mxu0 0.0
    %1173 = vmatpush1.msra.mxu0 0.0
    %1174 = vmatprep.subr.mxu0 0.0
    %1175 = vmatpush1.msra.mxu0 0.0
    %1176 = vmatprep.subr.mxu0 0.0
    %1177 = vmatpush1.msra.mxu0 0.0
    %1178 = vmatprep.subr.mxu0 0.0
    %1179 = vmatpush1.msra.mxu0 0.0
    %1180 = vmatprep.subr.mxu0 0.0
    %1181 = vmatpush1.msra.mxu0 0.0
    %1182 = vmatprep.subr.mxu0 0.0
    %1183 = vmatpush1.msra.mxu0 0.0
    %1184 = vmatprep.subr.mxu0 0.0
    %1185 = vmatpush1.msra.mxu0 0.0
    %1186 = vmatprep.subr.mxu0 0.0
    %1187 = vmatpush1.msra.mxu0 0.0
    %1188 = vmatprep.subr.mxu0 0.0
    %1189 = vmatpush1.msra.mxu0 0.0
    %1190 = vmatprep.subr.mxu0 0.0
    %1191 = vmatpush1.msra.mxu0 0.0
    %1192 = vmatprep.subr.mxu0 0.0
    %1193 = vmatpush1.msra.mxu0 0.0
    %1194 = vmatprep.mubr.f32.mxu0 0.0
    %1195 = vmatmul.mubr.f32.gmra.mrb[0].mxu0 %v201
    %v1196 = vpop.f32.mrb[0].mxu0
    %v1197 = vadd.f32 0.0, %v1196
    %v1198 = vpop.f32.mrb[0].mxu0
    %v1199 = vadd.f32 0.0, %v1198
    %1200 = vdwg.mxu0
    %1201 = vmatprep.subr.mxu0 %v856
    %1202 = vmatpush1.msra.mxu0 %v855
    %1203 = vmatprep.subr.mxu0 %v872
    %1204 = vmatpush1.msra.mxu0 %v871
    %1205 = vmatprep.subr.mxu0 %v888
    %1206 = vmatpush1.msra.mxu0 %v887
    %1207 = vmatprep.subr.mxu0 %v904
    %1208 = vmatpush1.msra.mxu0 %v903
    %1209 = vmatprep.subr.mxu0 %v920
    %1210 = vmatpush1.msra.mxu0 %v919
    %1211 = vmatprep.subr.mxu0 %v936
    %1212 = vmatpush1.msra.mxu0 %v935
    %1213 = vmatprep.subr.mxu0 %v952
    %1214 = vmatpush1.msra.mxu0 %v951
    %1215 = vmatprep.subr.mxu0 %v968
    %1216 = vmatpush1.msra.mxu0 %v967
    %1217 = vmatprep.subr.mxu0 %v984
    %1218 = vmatpush1.msra.mxu0 %v983
    %1219 = vmatprep.subr.mxu0 %v1027
    %1220 = vmatpush1.msra.mxu0 %v1024
    %1221 = vmatprep.subr.mxu0 0.0
    %1222 = vmatpush1.msra.mxu0 0.0
    %1223 = vmatprep.subr.mxu0 0.0
    %1224 = vmatpush1.msra.mxu0 0.0
    %1225 = vmatprep.subr.mxu0 0.0
    %1226 = vmatpush1.msra.mxu0 0.0
    %1227 = vmatprep.subr.mxu0 0.0
    %1228 = vmatpush1.msra.mxu0 0.0
    %1229 = vmatprep.subr.mxu0 0.0
    %1230 = vmatpush1.msra.mxu0 0.0
    %1231 = vmatprep.subr.mxu0 0.0
    %1232 = vmatpush1.msra.mxu0 0.0
    %1233 = vmatprep.subr.mxu0 0.0
    %1234 = vmatpush1.msra.mxu0 0.0
    %1235 = vmatprep.subr.mxu0 0.0
    %1236 = vmatpush1.msra.mxu0 0.0
    %1237 = vmatprep.subr.mxu0 0.0
    %1238 = vmatpush1.msra.mxu0 0.0
    %1239 = vmatprep.subr.mxu0 0.0
    %1240 = vmatpush1.msra.mxu0 0.0
    %1241 = vmatprep.subr.mxu0 0.0
    %1242 = vmatpush1.msra.mxu0 0.0
    %1243 = vmatprep.subr.mxu0 0.0
    %1244 = vmatpush1.msra.mxu0 0.0
    %1245 = vmatprep.subr.mxu0 0.0
    %1246 = vmatpush1.msra.mxu0 0.0
    %1247 = vmatprep.subr.mxu0 0.0
    %1248 = vmatpush1.msra.mxu0 0.0
    %1249 = vmatprep.subr.mxu0 0.0
    %1250 = vmatpush1.msra.mxu0 0.0
    %1251 = vmatprep.subr.mxu0 0.0
    %1252 = vmatpush1.msra.mxu0 0.0
    %1253 = vmatprep.subr.mxu0 0.0
    %1254 = vmatpush1.msra.mxu0 0.0
    %1255 = vmatprep.subr.mxu0 0.0
    %1256 = vmatpush1.msra.mxu0 0.0
    %1257 = vmatprep.subr.mxu0 0.0
    %1258 = vmatpush1.msra.mxu0 0.0
    %1259 = vmatprep.subr.mxu0 0.0
    %1260 = vmatpush1.msra.mxu0 0.0
    %1261 = vmatprep.subr.mxu0 0.0
    %1262 = vmatpush1.msra.mxu0 0.0
    %1263 = vmatprep.subr.mxu0 0.0
    %1264 = vmatpush1.msra.mxu0 0.0
    %1265 = vmatprep.mubr.f32.mxu0 0.0
    %1266 = vmatmul.mubr.f32.gmra.mrb[0].mxu0 %v201
    %v1267 = vpop.f32.mrb[0].mxu0
    %v1268 = vadd.f32 0.0, %v1267
    %v1269 = vpop.f32.mrb[0].mxu0
    %v1270 = vadd.f32 0.0, %v1269
    %1271 = vdwg.mxu0
    %1272 = vmatprep.subr.mxu0 %v858
    %1273 = vmatpush1.msra.mxu0 %v857
    %1274 = vmatprep.subr.mxu0 %v874
    %1275 = vmatpush1.msra.mxu0 %v873
    %1276 = vmatprep.subr.mxu0 %v890
    %1277 = vmatpush1.msra.mxu0 %v889
    %1278 = vmatprep.subr.mxu0 %v906
    %1279 = vmatpush1.msra.mxu0 %v905
    %1280 = vmatprep.subr.mxu0 %v922
    %1281 = vmatpush1.msra.mxu0 %v921
    %1282 = vmatprep.subr.mxu0 %v938
    %1283 = vmatpush1.msra.mxu0 %v937
    %1284 = vmatprep.subr.mxu0 %v954
    %1285 = vmatpush1.msra.mxu0 %v953
    %1286 = vmatprep.subr.mxu0 %v970
    %1287 = vmatpush1.msra.mxu0 %v969
    %1288 = vmatprep.subr.mxu0 %v986
    %1289 = vmatpush1.msra.mxu0 %v985
    %1290 = vmatprep.subr.mxu0 %v1033
    %1291 = vmatpush1.msra.mxu0 %v1030
    %1292 = vmatprep.subr.mxu0 0.0
    %1293 = vmatpush1.msra.mxu0 0.0
    %1294 = vmatprep.subr.mxu0 0.0
    %1295 = vmatpush1.msra.mxu0 0.0
    %1296 = vmatprep.subr.mxu0 0.0
    %1297 = vmatpush1.msra.mxu0 0.0
    %1298 = vmatprep.subr.mxu0 0.0
    %1299 = vmatpush1.msra.mxu0 0.0
    %1300 = vmatprep.subr.mxu0 0.0
    %1301 = vmatpush1.msra.mxu0 0.0
    %1302 = vmatprep.subr.mxu0 0.0
    %1303 = vmatpush1.msra.mxu0 0.0
    %1304 = vmatprep.subr.mxu0 0.0
    %1305 = vmatpush1.msra.mxu0 0.0
    %1306 = vmatprep.subr.mxu0 0.0
    %1307 = vmatpush1.msra.mxu0 0.0
    %1308 = vmatprep.subr.mxu0 0.0
    %1309 = vmatpush1.msra.mxu0 0.0
    %1310 = vmatprep.subr.mxu0 0.0
    %1311 = vmatpush1.msra.mxu0 0.0
    %1312 = vmatprep.subr.mxu0 0.0
    %1313 = vmatpush1.msra.mxu0 0.0
    %1314 = vmatprep.subr.mxu0 0.0
    %1315 = vmatpush1.msra.mxu0 0.0
    %1316 = vmatprep.subr.mxu0 0.0
    %1317 = vmatpush1.msra.mxu0 0.0
    %1318 = vmatprep.subr.mxu0 0.0
    %1319 = vmatpush1.msra.mxu0 0.0
    %1320 = vmatprep.subr.mxu0 0.0
    %1321 = vmatpush1.msra.mxu0 0.0
    %1322 = vmatprep.subr.mxu0 0.0
    %1323 = vmatpush1.msra.mxu0 0.0
    %1324 = vmatprep.subr.mxu0 0.0
    %1325 = vmatpush1.msra.mxu0 0.0
    %1326 = vmatprep.subr.mxu0 0.0
    %1327 = vmatpush1.msra.mxu0 0.0
    %1328 = vmatprep.subr.mxu0 0.0
    %1329 = vmatpush1.msra.mxu0 0.0
    %1330 = vmatprep.subr.mxu0 0.0
    %1331 = vmatpush1.msra.mxu0 0.0
    %1332 = vmatprep.subr.mxu0 0.0
    %1333 = vmatpush1.msra.mxu0 0.0
    %1334 = vmatprep.subr.mxu0 0.0
    %1335 = vmatpush1.msra.mxu0 0.0
    %1336 = vmatprep.mubr.f32.mxu0 0.0
    %1337 = vmatmul.mubr.f32.gmra.mrb[0].mxu0 %v201
    %v1338 = vpop.f32.mrb[0].mxu0
    %v1339 = vadd.f32 0.0, %v1338
    %v1340 = vpop.f32.mrb[0].mxu0
    %v1341 = vadd.f32 0.0, %v1340
    %1342 = vdwg.mxu0
    %1343 = vmatprep.subr.mxu0 %v860
    %1344 = vmatpush1.msra.mxu0 %v859
    %1345 = vmatprep.subr.mxu0 %v876
    %1346 = vmatpush1.msra.mxu0 %v875
    %1347 = vmatprep.subr.mxu0 %v892
    %1348 = vmatpush1.msra.mxu0 %v891
    %1349 = vmatprep.subr.mxu0 %v908
    %1350 = vmatpush1.msra.mxu0 %v907
    %1351 = vmatprep.subr.mxu0 %v924
    %1352 = vmatpush1.msra.mxu0 %v923
    %1353 = vmatprep.subr.mxu0 %v940
    %1354 = vmatpush1.msra.mxu0 %v939
    %1355 = vmatprep.subr.mxu0 %v956
    %1356 = vmatpush1.msra.mxu0 %v955
    %1357 = vmatprep.subr.mxu0 %v972
    %1358 = vmatpush1.msra.mxu0 %v971
    %1359 = vmatprep.subr.mxu0 %v988
    %1360 = vmatpush1.msra.mxu0 %v987
    %1361 = vmatprep.subr.mxu0 %v1039
    %1362 = vmatpush1.msra.mxu0 %v1036
    %1363 = vmatprep.subr.mxu0 0.0
    %1364 = vmatpush1.msra.mxu0 0.0
    %1365 = vmatprep.subr.mxu0 0.0
    %1366 = vmatpush1.msra.mxu0 0.0
    %1367 = vmatprep.subr.mxu0 0.0
    %1368 = vmatpush1.msra.mxu0 0.0
    %1369 = vmatprep.subr.mxu0 0.0
    %1370 = vmatpush1.msra.mxu0 0.0
    %1371 = vmatprep.subr.mxu0 0.0
    %1372 = vmatpush1.msra.mxu0 0.0
    %1373 = vmatprep.subr.mxu0 0.0
    %1374 = vmatpush1.msra.mxu0 0.0
    %1375 = vmatprep.subr.mxu0 0.0
    %1376 = vmatpush1.msra.mxu0 0.0
    %1377 = vmatprep.subr.mxu0 0.0
    %1378 = vmatpush1.msra.mxu0 0.0
    %1379 = vmatprep.subr.mxu0 0.0
    %1380 = vmatpush1.msra.mxu0 0.0
    %1381 = vmatprep.subr.mxu0 0.0
    %1382 = vmatpush1.msra.mxu0 0.0
    %1383 = vmatprep.subr.mxu0 0.0
    %1384 = vmatpush1.msra.mxu0 0.0
    %1385 = vmatprep.subr.mxu0 0.0
    %1386 = vmatpush1.msra.mxu0 0.0
    %1387 = vmatprep.subr.mxu0 0.0
    %1388 = vmatpush1.msra.mxu0 0.0
    %1389 = vmatprep.subr.mxu0 0.0
    %1390 = vmatpush1.msra.mxu0 0.0
    %1391 = vmatprep.subr.mxu0 0.0
    %1392 = vmatpush1.msra.mxu0 0.0
    %1393 = vmatprep.subr.mxu0 0.0
    %1394 = vmatpush1.msra.mxu0 0.0
    %1395 = vmatprep.subr.mxu0 0.0
    %1396 = vmatpush1.msra.mxu0 0.0
    %1397 = vmatprep.subr.mxu0 0.0
    %1398 = vmatpush1.msra.mxu0 0.0
    %1399 = vmatprep.subr.mxu0 0.0
    %1400 = vmatpush1.msra.mxu0 0.0
    %1401 = vmatprep.subr.mxu0 0.0
    %1402 = vmatpush1.msra.mxu0 0.0
    %1403 = vmatprep.subr.mxu0 0.0
    %1404 = vmatpush1.msra.mxu0 0.0
    %1405 = vmatprep.subr.mxu0 0.0
    %1406 = vmatpush1.msra.mxu0 0.0
    %1407 = vmatprep.mubr.f32.mxu0 0.0
    %1408 = vmatmul.mubr.f32.gmra.mrb[0].mxu0 %v201
    %v1409 = vpop.f32.mrb[0].mxu0
    %v1410 = vadd.f32 0.0, %v1409
    %v1411 = vpop.f32.mrb[0].mxu0
    %v1412 = vadd.f32 0.0, %v1411
    %1413 = vdwg.mxu0
    %1414 = vmatprep.subr.mxu0 %v862
    %1415 = vmatpush1.msra.mxu0 %v861
    %1416 = vmatprep.subr.mxu0 %v878
    %1417 = vmatpush1.msra.mxu0 %v877
    %1418 = vmatprep.subr.mxu0 %v894
    %1419 = vmatpush1.msra.mxu0 %v893
    %1420 = vmatprep.subr.mxu0 %v910
    %1421 = vmatpush1.msra.mxu0 %v909
    %1422 = vmatprep.subr.mxu0 %v926
    %1423 = vmatpush1.msra.mxu0 %v925
    %1424 = vmatprep.subr.mxu0 %v942
    %1425 = vmatpush1.msra.mxu0 %v941
    %1426 = vmatprep.subr.mxu0 %v958
    %1427 = vmatpush1.msra.mxu0 %v957
    %1428 = vmatprep.subr.mxu0 %v974
    %1429 = vmatpush1.msra.mxu0 %v973
    %1430 = vmatprep.subr.mxu0 %v990
    %1431 = vmatpush1.msra.mxu0 %v989
    %1432 = vmatprep.subr.mxu0 %v1045
    %1433 = vmatpush1.msra.mxu0 %v1042
    %1434 = vmatprep.subr.mxu0 0.0
    %1435 = vmatpush1.msra.mxu0 0.0
    %1436 = vmatprep.subr.mxu0 0.0
    %1437 = vmatpush1.msra.mxu0 0.0
    %1438 = vmatprep.subr.mxu0 0.0
    %1439 = vmatpush1.msra.mxu0 0.0
    %1440 = vmatprep.subr.mxu0 0.0
    %1441 = vmatpush1.msra.mxu0 0.0
    %1442 = vmatprep.subr.mxu0 0.0
    %1443 = vmatpush1.msra.mxu0 0.0
    %1444 = vmatprep.subr.mxu0 0.0
    %1445 = vmatpush1.msra.mxu0 0.0
    %1446 = vmatprep.subr.mxu0 0.0
    %1447 = vmatpush1.msra.mxu0 0.0
    %1448 = vmatprep.subr.mxu0 0.0
    %1449 = vmatpush1.msra.mxu0 0.0
    %1450 = vmatprep.subr.mxu0 0.0
    %1451 = vmatpush1.msra.mxu0 0.0
    %1452 = vmatprep.subr.mxu0 0.0
    %1453 = vmatpush1.msra.mxu0 0.0
    %1454 = vmatprep.subr.mxu0 0.0
    %1455 = vmatpush1.msra.mxu0 0.0
    %1456 = vmatprep.subr.mxu0 0.0
    %1457 = vmatpush1.msra.mxu0 0.0
    %1458 = vmatprep.subr.mxu0 0.0
    %1459 = vmatpush1.msra.mxu0 0.0
    %1460 = vmatprep.subr.mxu0 0.0
    %1461 = vmatpush1.msra.mxu0 0.0
    %1462 = vmatprep.subr.mxu0 0.0
    %1463 = vmatpush1.msra.mxu0 0.0
    %1464 = vmatprep.subr.mxu0 0.0
    %1465 = vmatpush1.msra.mxu0 0.0
    %1466 = vmatprep.subr.mxu0 0.0
    %1467 = vmatpush1.msra.mxu0 0.0
    %1468 = vmatprep.subr.mxu0 0.0
    %1469 = vmatpush1.msra.mxu0 0.0
    %1470 = vmatprep.subr.mxu0 0.0
    %1471 = vmatpush1.msra.mxu0 0.0
    %1472 = vmatprep.subr.mxu0 0.0
    %1473 = vmatpush1.msra.mxu0 0.0
    %1474 = vmatprep.subr.mxu0 0.0
    %1475 = vmatpush1.msra.mxu0 0.0
    %1476 = vmatprep.subr.mxu0 0.0
    %1477 = vmatpush1.msra.mxu0 0.0
    %1478 = vmatprep.mubr.f32.mxu0 0.0
    %1479 = vmatmul.mubr.f32.gmra.mrb[0].mxu0 %v201
    %v1480 = vpop.f32.mrb[0].mxu0
    %v1481 = vadd.f32 0.0, %v1480
    %v1482 = vpop.f32.mrb[0].mxu0
    %v1483 = vadd.f32 0.0, %v1482
    %1484 = vdwg.mxu0
    %1485 = vmatprep.subr.mxu0 %v864
    %1486 = vmatpush1.msra.mxu0 %v863
    %1487 = vmatprep.subr.mxu0 %v880
    %1488 = vmatpush1.msra.mxu0 %v879
    %1489 = vmatprep.subr.mxu0 %v896
    %1490 = vmatpush1.msra.mxu0 %v895
    %1491 = vmatprep.subr.mxu0 %v912
    %1492 = vmatpush1.msra.mxu0 %v911
    %1493 = vmatprep.subr.mxu0 %v928
    %1494 = vmatpush1.msra.mxu0 %v927
    %1495 = vmatprep.subr.mxu0 %v944
    %1496 = vmatpush1.msra.mxu0 %v943
    %1497 = vmatprep.subr.mxu0 %v960
    %1498 = vmatpush1.msra.mxu0 %v959
    %1499 = vmatprep.subr.mxu0 %v976
    %1500 = vmatpush1.msra.mxu0 %v975
    %1501 = vmatprep.subr.mxu0 %v992
    %1502 = vmatpush1.msra.mxu0 %v991
    %1503 = vmatprep.subr.mxu0 %v1051
    %1504 = vmatpush1.msra.mxu0 %v1048
    %1505 = vmatprep.subr.mxu0 0.0
    %1506 = vmatpush1.msra.mxu0 0.0
    %1507 = vmatprep.subr.mxu0 0.0
    %1508 = vmatpush1.msra.mxu0 0.0
    %1509 = vmatprep.subr.mxu0 0.0
    %1510 = vmatpush1.msra.mxu0 0.0
    %1511 = vmatprep.subr.mxu0 0.0
    %1512 = vmatpush1.msra.mxu0 0.0
    %1513 = vmatprep.subr.mxu0 0.0
    %1514 = vmatpush1.msra.mxu0 0.0
    %1515 = vmatprep.subr.mxu0 0.0
    %1516 = vmatpush1.msra.mxu0 0.0
    %1517 = vmatprep.subr.mxu0 0.0
    %1518 = vmatpush1.msra.mxu0 0.0
    %1519 = vmatprep.subr.mxu0 0.0
    %1520 = vmatpush1.msra.mxu0 0.0
    %1521 = vmatprep.subr.mxu0 0.0
    %1522 = vmatpush1.msra.mxu0 0.0
    %1523 = vmatprep.subr.mxu0 0.0
    %1524 = vmatpush1.msra.mxu0 0.0
    %1525 = vmatprep.subr.mxu0 0.0
    %1526 = vmatpush1.msra.mxu0 0.0
    %1527 = vmatprep.subr.mxu0 0.0
    %1528 = vmatpush1.msra.mxu0 0.0
    %1529 = vmatprep.subr.mxu0 0.0
    %1530 = vmatpush1.msra.mxu0 0.0
    %1531 = vmatprep.subr.mxu0 0.0
    %1532 = vmatpush1.msra.mxu0 0.0
    %1533 = vmatprep.subr.mxu0 0.0
    %1534 = vmatpush1.msra.mxu0 0.0
    %1535 = vmatprep.subr.mxu0 0.0
    %1536 = vmatpush1.msra.mxu0 0.0
    %1537 = vmatprep.subr.mxu0 0.0
    %1538 = vmatpush1.msra.mxu0 0.0
    %1539 = vmatprep.subr.mxu0 0.0
    %1540 = vmatpush1.msra.mxu0 0.0
    %1541 = vmatprep.subr.mxu0 0.0
    %1542 = vmatpush1.msra.mxu0 0.0
    %1543 = vmatprep.subr.mxu0 0.0
    %1544 = vmatpush1.msra.mxu0 0.0
    %1545 = vmatprep.subr.mxu0 0.0
    %1546 = vmatpush1.msra.mxu0 0.0
    %1547 = vmatprep.subr.mxu0 0.0
    %1548 = vmatpush1.msra.mxu0 0.0
    %1549 = vmatprep.mubr.f32.mxu0 0.0
    %1550 = vmatmul.mubr.f32.gmra.mrb[0].mxu0 %v201
    %v1551 = vpop.f32.mrb[0].mxu0
    %v1552 = vadd.f32 0.0, %v1551
    %v1553 = vpop.f32.mrb[0].mxu0
    %v1554 = vadd.f32 0.0, %v1553
    %1555 = vdwg.mxu0
    %1556 = vmatprep.subr.mxu0 %v866
    %1557 = vmatpush1.msra.mxu0 %v865
    %1558 = vmatprep.subr.mxu0 %v882
    %1559 = vmatpush1.msra.mxu0 %v881
    %1560 = vmatprep.subr.mxu0 %v898
    %1561 = vmatpush1.msra.mxu0 %v897
    %1562 = vmatprep.subr.mxu0 %v914
    %1563 = vmatpush1.msra.mxu0 %v913
    %1564 = vmatprep.subr.mxu0 %v930
    %1565 = vmatpush1.msra.mxu0 %v929
    %1566 = vmatprep.subr.mxu0 %v946
    %1567 = vmatpush1.msra.mxu0 %v945
    %1568 = vmatprep.subr.mxu0 %v962
    %1569 = vmatpush1.msra.mxu0 %v961
    %1570 = vmatprep.subr.mxu0 %v978
    %1571 = vmatpush1.msra.mxu0 %v977
    %1572 = vmatprep.subr.mxu0 %v994
    %1573 = vmatpush1.msra.mxu0 %v993
    %1574 = vmatprep.subr.mxu0 %v1057
    %1575 = vmatpush1.msra.mxu0 %v1054
    %1576 = vmatprep.subr.mxu0 0.0
    %1577 = vmatpush1.msra.mxu0 0.0
    %1578 = vmatprep.subr.mxu0 0.0
    %1579 = vmatpush1.msra.mxu0 0.0
    %1580 = vmatprep.subr.mxu0 0.0
    %1581 = vmatpush1.msra.mxu0 0.0
    %1582 = vmatprep.subr.mxu0 0.0
    %1583 = vmatpush1.msra.mxu0 0.0
    %1584 = vmatprep.subr.mxu0 0.0
    %1585 = vmatpush1.msra.mxu0 0.0
    %1586 = vmatprep.subr.mxu0 0.0
    %1587 = vmatpush1.msra.mxu0 0.0
    %1588 = vmatprep.subr.mxu0 0.0
    %1589 = vmatpush1.msra.mxu0 0.0
    %1590 = vmatprep.subr.mxu0 0.0
    %1591 = vmatpush1.msra.mxu0 0.0
    %1592 = vmatprep.subr.mxu0 0.0
    %1593 = vmatpush1.msra.mxu0 0.0
    %1594 = vmatprep.subr.mxu0 0.0
    %1595 = vmatpush1.msra.mxu0 0.0
    %1596 = vmatprep.subr.mxu0 0.0
    %1597 = vmatpush1.msra.mxu0 0.0
    %1598 = vmatprep.subr.mxu0 0.0
    %1599 = vmatpush1.msra.mxu0 0.0
    %1600 = vmatprep.subr.mxu0 0.0
    %1601 = vmatpush1.msra.mxu0 0.0
    %1602 = vmatprep.subr.mxu0 0.0
    %1603 = vmatpush1.msra.mxu0 0.0
    %1604 = vmatprep.subr.mxu0 0.0
    %1605 = vmatpush1.msra.mxu0 0.0
    %1606 = vmatprep.subr.mxu0 0.0
    %1607 = vmatpush1.msra.mxu0 0.0
    %1608 = vmatprep.subr.mxu0 0.0
    %1609 = vmatpush1.msra.mxu0 0.0
    %1610 = vmatprep.subr.mxu0 0.0
    %1611 = vmatpush1.msra.mxu0 0.0
    %1612 = vmatprep.subr.mxu0 0.0
    %1613 = vmatpush1.msra.mxu0 0.0
    %1614 = vmatprep.subr.mxu0 0.0
    %1615 = vmatpush1.msra.mxu0 0.0
    %1616 = vmatprep.subr.mxu0 0.0
    %1617 = vmatpush1.msra.mxu0 0.0
    %1618 = vmatprep.subr.mxu0 0.0
    %1619 = vmatpush1.msra.mxu0 0.0
    %1620 = vmatprep.mubr.f32.mxu0 0.0
    %1621 = vmatmul.mubr.f32.gmra.mrb[0].mxu0 %v201
    %v1622 = vpop.f32.mrb[0].mxu0
    %v1623 = vadd.f32 0.0, %v1622
    %v1624 = vpop.f32.mrb[0].mxu0
    %v1625 = vadd.f32 0.0, %v1624
    %1626 = vdwg.mxu0
    %s1627 = scalar_lea.vmem [#allocation2], 128
    %1628 = vst [vmem:[%s1627] sm:$0xff] %v1126
    %s1629 = scalar_lea.vmem [#allocation2], 136
    %1630 = vst [vmem:[%s1629] sm:$0xff] %v1128
    %s1631 = scalar_lea.vmem [#allocation2], 144
    %1632 = vst [vmem:[%s1631] sm:$0xff] %v1197
    %s1633 = scalar_lea.vmem [#allocation2], 152
    %1634 = vst [vmem:[%s1633] sm:$0xff] %v1199
    %s1635 = scalar_lea.vmem [#allocation2], 160
    %1636 = vst [vmem:[%s1635] sm:$0xff] %v1268
    %s1637 = scalar_lea.vmem [#allocation2], 168
    %1638 = vst [vmem:[%s1637] sm:$0xff] %v1270
    %s1639 = scalar_lea.vmem [#allocation2], 176
    %1640 = vst [vmem:[%s1639] sm:$0xff] %v1339
    %s1641 = scalar_lea.vmem [#allocation2], 184
    %1642 = vst [vmem:[%s1641] sm:$0xff] %v1341
    %s1643 = scalar_lea.vmem [#allocation2], 192
    %1644 = vst [vmem:[%s1643] sm:$0xff] %v1410
    %s1645 = scalar_lea.vmem [#allocation2], 200
    %1646 = vst [vmem:[%s1645] sm:$0xff] %v1412
    %s1647 = scalar_lea.vmem [#allocation2], 208
    %1648 = vst [vmem:[%s1647] sm:$0xff] %v1481
    %s1649 = scalar_lea.vmem [#allocation2], 216
    %1650 = vst [vmem:[%s1649] sm:$0xff] %v1483
    %s1651 = scalar_lea.vmem [#allocation2], 224
    %1652 = vst [vmem:[%s1651] sm:$0xff] %v1552
    %s1653 = scalar_lea.vmem [#allocation2], 232
    %1654 = vst [vmem:[%s1653] sm:$0xff] %v1554
    %s1655 = scalar_lea.vmem [#allocation2], 240
    %1656 = vst [vmem:[%s1655] sm:$0xff] %v1623
    %s1657 = scalar_lea.vmem [#allocation2], 248
    %1658 = vst [vmem:[%s1657] sm:$0xff] %v1625
    %v1659 = vld [vmem:[#allocation6 + $0x100] sm:$0xff]
    %v1660 = vld [vmem:[#allocation6 + $0x108] sm:$0xff]
    %v1661 = vld [vmem:[#allocation6 + $0x110] sm:$0xff]
    %v1662 = vld [vmem:[#allocation6 + $0x118] sm:$0xff]
    %v1663 = vld [vmem:[#allocation6 + $0x120] sm:$0xff]
    %v1664 = vld [vmem:[#allocation6 + $0x128] sm:$0xff]
    %v1665 = vld [vmem:[#allocation6 + $0x130] sm:$0xff]
    %v1666 = vld [vmem:[#allocation6 + $0x138] sm:$0xff]
    %v1667 = vld [vmem:[#allocation6 + $0x140] sm:$0xff]
    %v1668 = vld [vmem:[#allocation6 + $0x148] sm:$0xff]
    %v1669 = vld [vmem:[#allocation6 + $0x150] sm:$0xff]
    %v1670 = vld [vmem:[#allocation6 + $0x158] sm:$0xff]
    %v1671 = vld [vmem:[#allocation6 + $0x160] sm:$0xff]
    %v1672 = vld [vmem:[#allocation6 + $0x168] sm:$0xff]
    %v1673 = vld [vmem:[#allocation6 + $0x170] sm:$0xff]
    %v1674 = vld [vmem:[#allocation6 + $0x178] sm:$0xff]
    %v1675 = vld [vmem:[#allocation6 + $0x380] sm:$0xff]
    %v1676 = vld [vmem:[#allocation6 + $0x388] sm:$0xff]
    %v1677 = vld [vmem:[#allocation6 + $0x390] sm:$0xff]
    %v1678 = vld [vmem:[#allocation6 + $0x398] sm:$0xff]
    %v1679 = vld [vmem:[#allocation6 + $0x3a0] sm:$0xff]
    %v1680 = vld [vmem:[#allocation6 + $0x3a8] sm:$0xff]
    %v1681 = vld [vmem:[#allocation6 + $0x3b0] sm:$0xff]
    %v1682 = vld [vmem:[#allocation6 + $0x3b8] sm:$0xff]
    %v1683 = vld [vmem:[#allocation6 + $0x3c0] sm:$0xff]
    %v1684 = vld [vmem:[#allocation6 + $0x3c8] sm:$0xff]
    %v1685 = vld [vmem:[#allocation6 + $0x3d0] sm:$0xff]
    %v1686 = vld [vmem:[#allocation6 + $0x3d8] sm:$0xff]
    %v1687 = vld [vmem:[#allocation6 + $0x3e0] sm:$0xff]
    %v1688 = vld [vmem:[#allocation6 + $0x3e8] sm:$0xff]
    %v1689 = vld [vmem:[#allocation6 + $0x3f0] sm:$0xff]
    %v1690 = vld [vmem:[#allocation6 + $0x3f8] sm:$0xff]
    %v1691 = vld [vmem:[#allocation6 + $0x600] sm:$0xff]
    %v1692 = vld [vmem:[#allocation6 + $0x608] sm:$0xff]
    %v1693 = vld [vmem:[#allocation6 + $0x610] sm:$0xff]
    %v1694 = vld [vmem:[#allocation6 + $0x618] sm:$0xff]
    %v1695 = vld [vmem:[#allocation6 + $0x620] sm:$0xff]
    %v1696 = vld [vmem:[#allocation6 + $0x628] sm:$0xff]
    %v1697 = vld [vmem:[#allocation6 + $0x630] sm:$0xff]
    %v1698 = vld [vmem:[#allocation6 + $0x638] sm:$0xff]
    %v1699 = vld [vmem:[#allocation6 + $0x640] sm:$0xff]
    %v1700 = vld [vmem:[#allocation6 + $0x648] sm:$0xff]
    %v1701 = vld [vmem:[#allocation6 + $0x650] sm:$0xff]
    %v1702 = vld [vmem:[#allocation6 + $0x658] sm:$0xff]
    %v1703 = vld [vmem:[#allocation6 + $0x660] sm:$0xff]
    %v1704 = vld [vmem:[#allocation6 + $0x668] sm:$0xff]
    %v1705 = vld [vmem:[#allocation6 + $0x670] sm:$0xff]
    %v1706 = vld [vmem:[#allocation6 + $0x678] sm:$0xff]
    %v1707 = vld [vmem:[#allocation6 + $0x880] sm:$0xff]
    %v1708 = vld [vmem:[#allocation6 + $0x888] sm:$0xff]
    %v1709 = vld [vmem:[#allocation6 + $0x890] sm:$0xff]
    %v1710 = vld [vmem:[#allocation6 + $0x898] sm:$0xff]
    %v1711 = vld [vmem:[#allocation6 + $0x8a0] sm:$0xff]
    %v1712 = vld [vmem:[#allocation6 + $0x8a8] sm:$0xff]
    %v1713 = vld [vmem:[#allocation6 + $0x8b0] sm:$0xff]
    %v1714 = vld [vmem:[#allocation6 + $0x8b8] sm:$0xff]
    %v1715 = vld [vmem:[#allocation6 + $0x8c0] sm:$0xff]
    %v1716 = vld [vmem:[#allocation6 + $0x8c8] sm:$0xff]
    %v1717 = vld [vmem:[#allocation6 + $0x8d0] sm:$0xff]
    %v1718 = vld [vmem:[#allocation6 + $0x8d8] sm:$0xff]
    %v1719 = vld [vmem:[#allocation6 + $0x8e0] sm:$0xff]
    %v1720 = vld [vmem:[#allocation6 + $0x8e8] sm:$0xff]
    %v1721 = vld [vmem:[#allocation6 + $0x8f0] sm:$0xff]
    %v1722 = vld [vmem:[#allocation6 + $0x8f8] sm:$0xff]
    %v1723 = vld [vmem:[#allocation6 + $0xb00] sm:$0xff]
    %v1724 = vld [vmem:[#allocation6 + $0xb08] sm:$0xff]
    %v1725 = vld [vmem:[#allocation6 + $0xb10] sm:$0xff]
    %v1726 = vld [vmem:[#allocation6 + $0xb18] sm:$0xff]
    %v1727 = vld [vmem:[#allocation6 + $0xb20] sm:$0xff]
    %v1728 = vld [vmem:[#allocation6 + $0xb28] sm:$0xff]
    %v1729 = vld [vmem:[#allocation6 + $0xb30] sm:$0xff]
    %v1730 = vld [vmem:[#allocation6 + $0xb38] sm:$0xff]
    %v1731 = vld [vmem:[#allocation6 + $0xb40] sm:$0xff]
    %v1732 = vld [vmem:[#allocation6 + $0xb48] sm:$0xff]
    %v1733 = vld [vmem:[#allocation6 + $0xb50] sm:$0xff]
    %v1734 = vld [vmem:[#allocation6 + $0xb58] sm:$0xff]
    %v1735 = vld [vmem:[#allocation6 + $0xb60] sm:$0xff]
    %v1736 = vld [vmem:[#allocation6 + $0xb68] sm:$0xff]
    %v1737 = vld [vmem:[#allocation6 + $0xb70] sm:$0xff]
    %v1738 = vld [vmem:[#allocation6 + $0xb78] sm:$0xff]
    %v1739 = vld [vmem:[#allocation6 + $0xd80] sm:$0xff]
    %v1740 = vld [vmem:[#allocation6 + $0xd88] sm:$0xff]
    %v1741 = vld [vmem:[#allocation6 + $0xd90] sm:$0xff]
    %v1742 = vld [vmem:[#allocation6 + $0xd98] sm:$0xff]
    %v1743 = vld [vmem:[#allocation6 + $0xda0] sm:$0xff]
    %v1744 = vld [vmem:[#allocation6 + $0xda8] sm:$0xff]
    %v1745 = vld [vmem:[#allocation6 + $0xdb0] sm:$0xff]
    %v1746 = vld [vmem:[#allocation6 + $0xdb8] sm:$0xff]
    %v1747 = vld [vmem:[#allocation6 + $0xdc0] sm:$0xff]
    %v1748 = vld [vmem:[#allocation6 + $0xdc8] sm:$0xff]
    %v1749 = vld [vmem:[#allocation6 + $0xdd0] sm:$0xff]
    %v1750 = vld [vmem:[#allocation6 + $0xdd8] sm:$0xff]
    %v1751 = vld [vmem:[#allocation6 + $0xde0] sm:$0xff]
    %v1752 = vld [vmem:[#allocation6 + $0xde8] sm:$0xff]
    %v1753 = vld [vmem:[#allocation6 + $0xdf0] sm:$0xff]
    %v1754 = vld [vmem:[#allocation6 + $0xdf8] sm:$0xff]
    %v1755 = vld [vmem:[#allocation6 + $0x1000] sm:$0xff]
    %v1756 = vld [vmem:[#allocation6 + $0x1008] sm:$0xff]
    %v1757 = vld [vmem:[#allocation6 + $0x1010] sm:$0xff]
    %v1758 = vld [vmem:[#allocation6 + $0x1018] sm:$0xff]
    %v1759 = vld [vmem:[#allocation6 + $0x1020] sm:$0xff]
    %v1760 = vld [vmem:[#allocation6 + $0x1028] sm:$0xff]
    %v1761 = vld [vmem:[#allocation6 + $0x1030] sm:$0xff]
    %v1762 = vld [vmem:[#allocation6 + $0x1038] sm:$0xff]
    %v1763 = vld [vmem:[#allocation6 + $0x1040] sm:$0xff]
    %v1764 = vld [vmem:[#allocation6 + $0x1048] sm:$0xff]
    %v1765 = vld [vmem:[#allocation6 + $0x1050] sm:$0xff]
    %v1766 = vld [vmem:[#allocation6 + $0x1058] sm:$0xff]
    %v1767 = vld [vmem:[#allocation6 + $0x1060] sm:$0xff]
    %v1768 = vld [vmem:[#allocation6 + $0x1068] sm:$0xff]
    %v1769 = vld [vmem:[#allocation6 + $0x1070] sm:$0xff]
    %v1770 = vld [vmem:[#allocation6 + $0x1078] sm:$0xff]
    %v1771 = vld [vmem:[#allocation6 + $0x1280] sm:$0xff]
    %v1772 = vld [vmem:[#allocation6 + $0x1288] sm:$0xff]
    %v1773 = vld [vmem:[#allocation6 + $0x1290] sm:$0xff]
    %v1774 = vld [vmem:[#allocation6 + $0x1298] sm:$0xff]
    %v1775 = vld [vmem:[#allocation6 + $0x12a0] sm:$0xff]
    %v1776 = vld [vmem:[#allocation6 + $0x12a8] sm:$0xff]
    %v1777 = vld [vmem:[#allocation6 + $0x12b0] sm:$0xff]
    %v1778 = vld [vmem:[#allocation6 + $0x12b8] sm:$0xff]
    %v1779 = vld [vmem:[#allocation6 + $0x12c0] sm:$0xff]
    %v1780 = vld [vmem:[#allocation6 + $0x12c8] sm:$0xff]
    %v1781 = vld [vmem:[#allocation6 + $0x12d0] sm:$0xff]
    %v1782 = vld [vmem:[#allocation6 + $0x12d8] sm:$0xff]
    %v1783 = vld [vmem:[#allocation6 + $0x12e0] sm:$0xff]
    %v1784 = vld [vmem:[#allocation6 + $0x12e8] sm:$0xff]
    %v1785 = vld [vmem:[#allocation6 + $0x12f0] sm:$0xff]
    %v1786 = vld [vmem:[#allocation6 + $0x12f8] sm:$0xff]
    %v1787 = vld [vmem:[#allocation6 + $0x1500] sm:$0xff]
    %v1788 = vld [vmem:[#allocation6 + $0x1508] sm:$0xff]
    %v1789 = vld [vmem:[#allocation6 + $0x1510] sm:$0xff]
    %v1790 = vld [vmem:[#allocation6 + $0x1518] sm:$0xff]
    %v1791 = vld [vmem:[#allocation6 + $0x1520] sm:$0xff]
    %v1792 = vld [vmem:[#allocation6 + $0x1528] sm:$0xff]
    %v1793 = vld [vmem:[#allocation6 + $0x1530] sm:$0xff]
    %v1794 = vld [vmem:[#allocation6 + $0x1538] sm:$0xff]
    %v1795 = vld [vmem:[#allocation6 + $0x1540] sm:$0xff]
    %v1796 = vld [vmem:[#allocation6 + $0x1548] sm:$0xff]
    %v1797 = vld [vmem:[#allocation6 + $0x1550] sm:$0xff]
    %v1798 = vld [vmem:[#allocation6 + $0x1558] sm:$0xff]
    %v1799 = vld [vmem:[#allocation6 + $0x1560] sm:$0xff]
    %v1800 = vld [vmem:[#allocation6 + $0x1568] sm:$0xff]
    %v1801 = vld [vmem:[#allocation6 + $0x1570] sm:$0xff]
    %v1802 = vld [vmem:[#allocation6 + $0x1578] sm:$0xff]
    %v1803 = vld [vmem:[#allocation6 + $0x1780] sm:$0x7]
    %v1804 = vld [vmem:[#allocation6 + $0x1788] sm:$0x7]
    %v1805 = vld [vmem:[#allocation6 + $0x1790] sm:$0x7]
    %v1806 = vld [vmem:[#allocation6 + $0x1798] sm:$0x7]
    %v1807 = vld [vmem:[#allocation6 + $0x17a0] sm:$0x7]
    %v1808 = vld [vmem:[#allocation6 + $0x17a8] sm:$0x7]
    %v1809 = vld [vmem:[#allocation6 + $0x17b0] sm:$0x7]
    %v1810 = vld [vmem:[#allocation6 + $0x17b8] sm:$0x7]
    %v1811 = vld [vmem:[#allocation6 + $0x17c0] sm:$0x7]
    %v1812 = vld [vmem:[#allocation6 + $0x17c8] sm:$0x7]
    %v1813 = vld [vmem:[#allocation6 + $0x17d0] sm:$0x7]
    %v1814 = vld [vmem:[#allocation6 + $0x17d8] sm:$0x7]
    %v1815 = vld [vmem:[#allocation6 + $0x17e0] sm:$0x7]
    %v1816 = vld [vmem:[#allocation6 + $0x17e8] sm:$0x7]
    %v1817 = vld [vmem:[#allocation6 + $0x17f0] sm:$0x7]
    %v1818 = vld [vmem:[#allocation6 + $0x17f8] sm:$0x7]
    %v1820 = vsel %vm203, %v1803, 0
    %v1823 = vsel %vm203, %v1804, 0
    %v1826 = vsel %vm203, %v1805, 0
    %v1829 = vsel %vm203, %v1806, 0
    %v1832 = vsel %vm203, %v1807, 0
    %v1835 = vsel %vm203, %v1808, 0
    %v1838 = vsel %vm203, %v1809, 0
    %v1841 = vsel %vm203, %v1810, 0
    %v1844 = vsel %vm203, %v1811, 0
    %v1847 = vsel %vm203, %v1812, 0
    %v1850 = vsel %vm203, %v1813, 0
    %v1853 = vsel %vm203, %v1814, 0
    %v1856 = vsel %vm203, %v1815, 0
    %v1859 = vsel %vm203, %v1816, 0
    %v1862 = vsel %vm203, %v1817, 0
    %v1865 = vsel %vm203, %v1818, 0
    %1867 = vmatprep.subr.mxu0 %v1660
    %1868 = vmatpush1.msra.mxu0 %v1659
    %1869 = vmatprep.subr.mxu0 %v1676
    %1870 = vmatpush1.msra.mxu0 %v1675
    %1871 = vmatprep.subr.mxu0 %v1692
    %1872 = vmatpush1.msra.mxu0 %v1691
    %1873 = vmatprep.subr.mxu0 %v1708
    %1874 = vmatpush1.msra.mxu0 %v1707
    %1875 = vmatprep.subr.mxu0 %v1724
    %1876 = vmatpush1.msra.mxu0 %v1723
    %1877 = vmatprep.subr.mxu0 %v1740
    %1878 = vmatpush1.msra.mxu0 %v1739
    %1879 = vmatprep.subr.mxu0 %v1756
    %1880 = vmatpush1.msra.mxu0 %v1755
    %1881 = vmatprep.subr.mxu0 %v1772
    %1882 = vmatpush1.msra.mxu0 %v1771
    %1883 = vmatprep.subr.mxu0 %v1788
    %1884 = vmatpush1.msra.mxu0 %v1787
    %1885 = vmatprep.subr.mxu0 %v1823
    %1886 = vmatpush1.msra.mxu0 %v1820
    %1887 = vmatprep.subr.mxu0 0.0
    %1888 = vmatpush1.msra.mxu0 0.0
    %1889 = vmatprep.subr.mxu0 0.0
    %1890 = vmatpush1.msra.mxu0 0.0
    %1891 = vmatprep.subr.mxu0 0.0
    %1892 = vmatpush1.msra.mxu0 0.0
    %1893 = vmatprep.subr.mxu0 0.0
    %1894 = vmatpush1.msra.mxu0 0.0
    %1895 = vmatprep.subr.mxu0 0.0
    %1896 = vmatpush1.msra.mxu0 0.0
    %1897 = vmatprep.subr.mxu0 0.0
    %1898 = vmatpush1.msra.mxu0 0.0
    %1899 = vmatprep.subr.mxu0 0.0
    %1900 = vmatpush1.msra.mxu0 0.0
    %1901 = vmatprep.subr.mxu0 0.0
    %1902 = vmatpush1.msra.mxu0 0.0
    %1903 = vmatprep.subr.mxu0 0.0
    %1904 = vmatpush1.msra.mxu0 0.0
    %1905 = vmatprep.subr.mxu0 0.0
    %1906 = vmatpush1.msra.mxu0 0.0
    %1907 = vmatprep.subr.mxu0 0.0
    %1908 = vmatpush1.msra.mxu0 0.0
    %1909 = vmatprep.subr.mxu0 0.0
    %1910 = vmatpush1.msra.mxu0 0.0
    %1911 = vmatprep.subr.mxu0 0.0
    %1912 = vmatpush1.msra.mxu0 0.0
    %1913 = vmatprep.subr.mxu0 0.0
    %1914 = vmatpush1.msra.mxu0 0.0
    %1915 = vmatprep.subr.mxu0 0.0
    %1916 = vmatpush1.msra.mxu0 0.0
    %1917 = vmatprep.subr.mxu0 0.0
    %1918 = vmatpush1.msra.mxu0 0.0
    %1919 = vmatprep.subr.mxu0 0.0
    %1920 = vmatpush1.msra.mxu0 0.0
    %1921 = vmatprep.subr.mxu0 0.0
    %1922 = vmatpush1.msra.mxu0 0.0
    %1923 = vmatprep.subr.mxu0 0.0
    %1924 = vmatpush1.msra.mxu0 0.0
    %1925 = vmatprep.subr.mxu0 0.0
    %1926 = vmatpush1.msra.mxu0 0.0
    %1927 = vmatprep.subr.mxu0 0.0
    %1928 = vmatpush1.msra.mxu0 0.0
    %1929 = vmatprep.subr.mxu0 0.0
    %1930 = vmatpush1.msra.mxu0 0.0
    %1931 = vmatprep.mubr.f32.mxu0 0.0
    %1932 = vmatmul.mubr.f32.gmra.mrb[0].mxu0 %v201
    %v1933 = vpop.f32.mrb[0].mxu0
    %v1934 = vadd.f32 0.0, %v1933
    %v1935 = vpop.f32.mrb[0].mxu0
    %v1936 = vadd.f32 0.0, %v1935
    %1937 = vdwg.mxu0
    %1938 = vmatprep.subr.mxu0 %v1662
    %1939 = vmatpush1.msra.mxu0 %v1661
    %1940 = vmatprep.subr.mxu0 %v1678
    %1941 = vmatpush1.msra.mxu0 %v1677
    %1942 = vmatprep.subr.mxu0 %v1694
    %1943 = vmatpush1.msra.mxu0 %v1693
    %1944 = vmatprep.subr.mxu0 %v1710
    %1945 = vmatpush1.msra.mxu0 %v1709
    %1946 = vmatprep.subr.mxu0 %v1726
    %1947 = vmatpush1.msra.mxu0 %v1725
    %1948 = vmatprep.subr.mxu0 %v1742
    %1949 = vmatpush1.msra.mxu0 %v1741
    %1950 = vmatprep.subr.mxu0 %v1758
    %1951 = vmatpush1.msra.mxu0 %v1757
    %1952 = vmatprep.subr.mxu0 %v1774
    %1953 = vmatpush1.msra.mxu0 %v1773
    %1954 = vmatprep.subr.mxu0 %v1790
    %1955 = vmatpush1.msra.mxu0 %v1789
    %1956 = vmatprep.subr.mxu0 %v1829
    %1957 = vmatpush1.msra.mxu0 %v1826
    %1958 = vmatprep.subr.mxu0 0.0
    %1959 = vmatpush1.msra.mxu0 0.0
    %1960 = vmatprep.subr.mxu0 0.0
    %1961 = vmatpush1.msra.mxu0 0.0
    %1962 = vmatprep.subr.mxu0 0.0
    %1963 = vmatpush1.msra.mxu0 0.0
    %1964 = vmatprep.subr.mxu0 0.0
    %1965 = vmatpush1.msra.mxu0 0.0
    %1966 = vmatprep.subr.mxu0 0.0
    %1967 = vmatpush1.msra.mxu0 0.0
    %1968 = vmatprep.subr.mxu0 0.0
    %1969 = vmatpush1.msra.mxu0 0.0
    %1970 = vmatprep.subr.mxu0 0.0
    %1971 = vmatpush1.msra.mxu0 0.0
    %1972 = vmatprep.subr.mxu0 0.0
    %1973 = vmatpush1.msra.mxu0 0.0
    %1974 = vmatprep.subr.mxu0 0.0
    %1975 = vmatpush1.msra.mxu0 0.0
    %1976 = vmatprep.subr.mxu0 0.0
    %1977 = vmatpush1.msra.mxu0 0.0
    %1978 = vmatprep.subr.mxu0 0.0
    %1979 = vmatpush1.msra.mxu0 0.0
    %1980 = vmatprep.subr.mxu0 0.0
    %1981 = vmatpush1.msra.mxu0 0.0
    %1982 = vmatprep.subr.mxu0 0.0
    %1983 = vmatpush1.msra.mxu0 0.0
    %1984 = vmatprep.subr.mxu0 0.0
    %1985 = vmatpush1.msra.mxu0 0.0
    %1986 = vmatprep.subr.mxu0 0.0
    %1987 = vmatpush1.msra.mxu0 0.0
    %1988 = vmatprep.subr.mxu0 0.0
    %1989 = vmatpush1.msra.mxu0 0.0
    %1990 = vmatprep.subr.mxu0 0.0
    %1991 = vmatpush1.msra.mxu0 0.0
    %1992 = vmatprep.subr.mxu0 0.0
    %1993 = vmatpush1.msra.mxu0 0.0
    %1994 = vmatprep.subr.mxu0 0.0
    %1995 = vmatpush1.msra.mxu0 0.0
    %1996 = vmatprep.subr.mxu0 0.0
    %1997 = vmatpush1.msra.mxu0 0.0
    %1998 = vmatprep.subr.mxu0 0.0
    %1999 = vmatpush1.msra.mxu0 0.0
    %2000 = vmatprep.subr.mxu0 0.0
    %2001 = vmatpush1.msra.mxu0 0.0
    %2002 = vmatprep.mubr.f32.mxu0 0.0
    %2003 = vmatmul.mubr.f32.gmra.mrb[0].mxu0 %v201
    %v2004 = vpop.f32.mrb[0].mxu0
    %v2005 = vadd.f32 0.0, %v2004
    %v2006 = vpop.f32.mrb[0].mxu0
    %v2007 = vadd.f32 0.0, %v2006
    %2008 = vdwg.mxu0
    %2009 = vmatprep.subr.mxu0 %v1664
    %2010 = vmatpush1.msra.mxu0 %v1663
    %2011 = vmatprep.subr.mxu0 %v1680
    %2012 = vmatpush1.msra.mxu0 %v1679
    %2013 = vmatprep.subr.mxu0 %v1696
    %2014 = vmatpush1.msra.mxu0 %v1695
    %2015 = vmatprep.subr.mxu0 %v1712
    %2016 = vmatpush1.msra.mxu0 %v1711
    %2017 = vmatprep.subr.mxu0 %v1728
    %2018 = vmatpush1.msra.mxu0 %v1727
    %2019 = vmatprep.subr.mxu0 %v1744
    %2020 = vmatpush1.msra.mxu0 %v1743
    %2021 = vmatprep.subr.mxu0 %v1760
    %2022 = vmatpush1.msra.mxu0 %v1759
    %2023 = vmatprep.subr.mxu0 %v1776
    %2024 = vmatpush1.msra.mxu0 %v1775
    %2025 = vmatprep.subr.mxu0 %v1792
    %2026 = vmatpush1.msra.mxu0 %v1791
    %2027 = vmatprep.subr.mxu0 %v1835
    %2028 = vmatpush1.msra.mxu0 %v1832
    %2029 = vmatprep.subr.mxu0 0.0
    %2030 = vmatpush1.msra.mxu0 0.0
    %2031 = vmatprep.subr.mxu0 0.0
    %2032 = vmatpush1.msra.mxu0 0.0
    %2033 = vmatprep.subr.mxu0 0.0
    %2034 = vmatpush1.msra.mxu0 0.0
    %2035 = vmatprep.subr.mxu0 0.0
    %2036 = vmatpush1.msra.mxu0 0.0
    %2037 = vmatprep.subr.mxu0 0.0
    %2038 = vmatpush1.msra.mxu0 0.0
    %2039 = vmatprep.subr.mxu0 0.0
    %2040 = vmatpush1.msra.mxu0 0.0
    %2041 = vmatprep.subr.mxu0 0.0
    %2042 = vmatpush1.msra.mxu0 0.0
    %2043 = vmatprep.subr.mxu0 0.0
    %2044 = vmatpush1.msra.mxu0 0.0
    %2045 = vmatprep.subr.mxu0 0.0
    %2046 = vmatpush1.msra.mxu0 0.0
    %2047 = vmatprep.subr.mxu0 0.0
    %2048 = vmatpush1.msra.mxu0 0.0
    %2049 = vmatprep.subr.mxu0 0.0
    %2050 = vmatpush1.msra.mxu0 0.0
    %2051 = vmatprep.subr.mxu0 0.0
    %2052 = vmatpush1.msra.mxu0 0.0
    %2053 = vmatprep.subr.mxu0 0.0
    %2054 = vmatpush1.msra.mxu0 0.0
    %2055 = vmatprep.subr.mxu0 0.0
    %2056 = vmatpush1.msra.mxu0 0.0
    %2057 = vmatprep.subr.mxu0 0.0
    %2058 = vmatpush1.msra.mxu0 0.0
    %2059 = vmatprep.subr.mxu0 0.0
    %2060 = vmatpush1.msra.mxu0 0.0
    %2061 = vmatprep.subr.mxu0 0.0
    %2062 = vmatpush1.msra.mxu0 0.0
    %2063 = vmatprep.subr.mxu0 0.0
    %2064 = vmatpush1.msra.mxu0 0.0
    %2065 = vmatprep.subr.mxu0 0.0
    %2066 = vmatpush1.msra.mxu0 0.0
    %2067 = vmatprep.subr.mxu0 0.0
    %2068 = vmatpush1.msra.mxu0 0.0
    %2069 = vmatprep.subr.mxu0 0.0
    %2070 = vmatpush1.msra.mxu0 0.0
    %2071 = vmatprep.subr.mxu0 0.0
    %2072 = vmatpush1.msra.mxu0 0.0
    %2073 = vmatprep.mubr.f32.mxu0 0.0
    %2074 = vmatmul.mubr.f32.gmra.mrb[0].mxu0 %v201
    %v2075 = vpop.f32.mrb[0].mxu0
    %v2076 = vadd.f32 0.0, %v2075
    %v2077 = vpop.f32.mrb[0].mxu0
    %v2078 = vadd.f32 0.0, %v2077
    %2079 = vdwg.mxu0
    %2080 = vmatprep.subr.mxu0 %v1666
    %2081 = vmatpush1.msra.mxu0 %v1665
    %2082 = vmatprep.subr.mxu0 %v1682
    %2083 = vmatpush1.msra.mxu0 %v1681
    %2084 = vmatprep.subr.mxu0 %v1698
    %2085 = vmatpush1.msra.mxu0 %v1697
    %2086 = vmatprep.subr.mxu0 %v1714
    %2087 = vmatpush1.msra.mxu0 %v1713
    %2088 = vmatprep.subr.mxu0 %v1730
    %2089 = vmatpush1.msra.mxu0 %v1729
    %2090 = vmatprep.subr.mxu0 %v1746
    %2091 = vmatpush1.msra.mxu0 %v1745
    %2092 = vmatprep.subr.mxu0 %v1762
    %2093 = vmatpush1.msra.mxu0 %v1761
    %2094 = vmatprep.subr.mxu0 %v1778
    %2095 = vmatpush1.msra.mxu0 %v1777
    %2096 = vmatprep.subr.mxu0 %v1794
    %2097 = vmatpush1.msra.mxu0 %v1793
    %2098 = vmatprep.subr.mxu0 %v1841
    %2099 = vmatpush1.msra.mxu0 %v1838
    %2100 = vmatprep.subr.mxu0 0.0
    %2101 = vmatpush1.msra.mxu0 0.0
    %2102 = vmatprep.subr.mxu0 0.0
    %2103 = vmatpush1.msra.mxu0 0.0
    %2104 = vmatprep.subr.mxu0 0.0
    %2105 = vmatpush1.msra.mxu0 0.0
    %2106 = vmatprep.subr.mxu0 0.0
    %2107 = vmatpush1.msra.mxu0 0.0
    %2108 = vmatprep.subr.mxu0 0.0
    %2109 = vmatpush1.msra.mxu0 0.0
    %2110 = vmatprep.subr.mxu0 0.0
    %2111 = vmatpush1.msra.mxu0 0.0
    %2112 = vmatprep.subr.mxu0 0.0
    %2113 = vmatpush1.msra.mxu0 0.0
    %2114 = vmatprep.subr.mxu0 0.0
    %2115 = vmatpush1.msra.mxu0 0.0
    %2116 = vmatprep.subr.mxu0 0.0
    %2117 = vmatpush1.msra.mxu0 0.0
    %2118 = vmatprep.subr.mxu0 0.0
    %2119 = vmatpush1.msra.mxu0 0.0
    %2120 = vmatprep.subr.mxu0 0.0
    %2121 = vmatpush1.msra.mxu0 0.0
    %2122 = vmatprep.subr.mxu0 0.0
    %2123 = vmatpush1.msra.mxu0 0.0
    %2124 = vmatprep.subr.mxu0 0.0
    %2125 = vmatpush1.msra.mxu0 0.0
    %2126 = vmatprep.subr.mxu0 0.0
    %2127 = vmatpush1.msra.mxu0 0.0
    %2128 = vmatprep.subr.mxu0 0.0
    %2129 = vmatpush1.msra.mxu0 0.0
    %2130 = vmatprep.subr.mxu0 0.0
    %2131 = vmatpush1.msra.mxu0 0.0
    %2132 = vmatprep.subr.mxu0 0.0
    %2133 = vmatpush1.msra.mxu0 0.0
    %2134 = vmatprep.subr.mxu0 0.0
    %2135 = vmatpush1.msra.mxu0 0.0
    %2136 = vmatprep.subr.mxu0 0.0
    %2137 = vmatpush1.msra.mxu0 0.0
    %2138 = vmatprep.subr.mxu0 0.0
    %2139 = vmatpush1.msra.mxu0 0.0
    %2140 = vmatprep.subr.mxu0 0.0
    %2141 = vmatpush1.msra.mxu0 0.0
    %2142 = vmatprep.subr.mxu0 0.0
    %2143 = vmatpush1.msra.mxu0 0.0
    %2144 = vmatprep.mubr.f32.mxu0 0.0
    %2145 = vmatmul.mubr.f32.gmra.mrb[0].mxu0 %v201
    %v2146 = vpop.f32.mrb[0].mxu0
    %v2147 = vadd.f32 0.0, %v2146
    %v2148 = vpop.f32.mrb[0].mxu0
    %v2149 = vadd.f32 0.0, %v2148
    %2150 = vdwg.mxu0
    %2151 = vmatprep.subr.mxu0 %v1668
    %2152 = vmatpush1.msra.mxu0 %v1667
    %2153 = vmatprep.subr.mxu0 %v1684
    %2154 = vmatpush1.msra.mxu0 %v1683
    %2155 = vmatprep.subr.mxu0 %v1700
    %2156 = vmatpush1.msra.mxu0 %v1699
    %2157 = vmatprep.subr.mxu0 %v1716
    %2158 = vmatpush1.msra.mxu0 %v1715
    %2159 = vmatprep.subr.mxu0 %v1732
    %2160 = vmatpush1.msra.mxu0 %v1731
    %2161 = vmatprep.subr.mxu0 %v1748
    %2162 = vmatpush1.msra.mxu0 %v1747
    %2163 = vmatprep.subr.mxu0 %v1764
    %2164 = vmatpush1.msra.mxu0 %v1763
    %2165 = vmatprep.subr.mxu0 %v1780
    %2166 = vmatpush1.msra.mxu0 %v1779
    %2167 = vmatprep.subr.mxu0 %v1796
    %2168 = vmatpush1.msra.mxu0 %v1795
    %2169 = vmatprep.subr.mxu0 %v1847
    %2170 = vmatpush1.msra.mxu0 %v1844
    %2171 = vmatprep.subr.mxu0 0.0
    %2172 = vmatpush1.msra.mxu0 0.0
    %2173 = vmatprep.subr.mxu0 0.0
    %2174 = vmatpush1.msra.mxu0 0.0
    %2175 = vmatprep.subr.mxu0 0.0
    %2176 = vmatpush1.msra.mxu0 0.0
    %2177 = vmatprep.subr.mxu0 0.0
    %2178 = vmatpush1.msra.mxu0 0.0
    %2179 = vmatprep.subr.mxu0 0.0
    %2180 = vmatpush1.msra.mxu0 0.0
    %2181 = vmatprep.subr.mxu0 0.0
    %2182 = vmatpush1.msra.mxu0 0.0
    %2183 = vmatprep.subr.mxu0 0.0
    %2184 = vmatpush1.msra.mxu0 0.0
    %2185 = vmatprep.subr.mxu0 0.0
    %2186 = vmatpush1.msra.mxu0 0.0
    %2187 = vmatprep.subr.mxu0 0.0
    %2188 = vmatpush1.msra.mxu0 0.0
    %2189 = vmatprep.subr.mxu0 0.0
    %2190 = vmatpush1.msra.mxu0 0.0
    %2191 = vmatprep.subr.mxu0 0.0
    %2192 = vmatpush1.msra.mxu0 0.0
    %2193 = vmatprep.subr.mxu0 0.0
    %2194 = vmatpush1.msra.mxu0 0.0
    %2195 = vmatprep.subr.mxu0 0.0
    %2196 = vmatpush1.msra.mxu0 0.0
    %2197 = vmatprep.subr.mxu0 0.0
    %2198 = vmatpush1.msra.mxu0 0.0
    %2199 = vmatprep.subr.mxu0 0.0
    %2200 = vmatpush1.msra.mxu0 0.0
    %2201 = vmatprep.subr.mxu0 0.0
    %2202 = vmatpush1.msra.mxu0 0.0
    %2203 = vmatprep.subr.mxu0 0.0
    %2204 = vmatpush1.msra.mxu0 0.0
    %2205 = vmatprep.subr.mxu0 0.0
    %2206 = vmatpush1.msra.mxu0 0.0
    %2207 = vmatprep.subr.mxu0 0.0
    %2208 = vmatpush1.msra.mxu0 0.0
    %2209 = vmatprep.subr.mxu0 0.0
    %2210 = vmatpush1.msra.mxu0 0.0
    %2211 = vmatprep.subr.mxu0 0.0
    %2212 = vmatpush1.msra.mxu0 0.0
    %2213 = vmatprep.subr.mxu0 0.0
    %2214 = vmatpush1.msra.mxu0 0.0
    %2215 = vmatprep.mubr.f32.mxu0 0.0
    %2216 = vmatmul.mubr.f32.gmra.mrb[0].mxu0 %v201
    %v2217 = vpop.f32.mrb[0].mxu0
    %v2218 = vadd.f32 0.0, %v2217
    %v2219 = vpop.f32.mrb[0].mxu0
    %v2220 = vadd.f32 0.0, %v2219
    %2221 = vdwg.mxu0
    %2222 = vmatprep.subr.mxu0 %v1670
    %2223 = vmatpush1.msra.mxu0 %v1669
    %2224 = vmatprep.subr.mxu0 %v1686
    %2225 = vmatpush1.msra.mxu0 %v1685
    %2226 = vmatprep.subr.mxu0 %v1702
    %2227 = vmatpush1.msra.mxu0 %v1701
    %2228 = vmatprep.subr.mxu0 %v1718
    %2229 = vmatpush1.msra.mxu0 %v1717
    %2230 = vmatprep.subr.mxu0 %v1734
    %2231 = vmatpush1.msra.mxu0 %v1733
    %2232 = vmatprep.subr.mxu0 %v1750
    %2233 = vmatpush1.msra.mxu0 %v1749
    %2234 = vmatprep.subr.mxu0 %v1766
    %2235 = vmatpush1.msra.mxu0 %v1765
    %2236 = vmatprep.subr.mxu0 %v1782
    %2237 = vmatpush1.msra.mxu0 %v1781
    %2238 = vmatprep.subr.mxu0 %v1798
    %2239 = vmatpush1.msra.mxu0 %v1797
    %2240 = vmatprep.subr.mxu0 %v1853
    %2241 = vmatpush1.msra.mxu0 %v1850
    %2242 = vmatprep.subr.mxu0 0.0
    %2243 = vmatpush1.msra.mxu0 0.0
    %2244 = vmatprep.subr.mxu0 0.0
    %2245 = vmatpush1.msra.mxu0 0.0
    %2246 = vmatprep.subr.mxu0 0.0
    %2247 = vmatpush1.msra.mxu0 0.0
    %2248 = vmatprep.subr.mxu0 0.0
    %2249 = vmatpush1.msra.mxu0 0.0
    %2250 = vmatprep.subr.mxu0 0.0
    %2251 = vmatpush1.msra.mxu0 0.0
    %2252 = vmatprep.subr.mxu0 0.0
    %2253 = vmatpush1.msra.mxu0 0.0
    %2254 = vmatprep.subr.mxu0 0.0
    %2255 = vmatpush1.msra.mxu0 0.0
    %2256 = vmatprep.subr.mxu0 0.0
    %2257 = vmatpush1.msra.mxu0 0.0
    %2258 = vmatprep.subr.mxu0 0.0
    %2259 = vmatpush1.msra.mxu0 0.0
    %2260 = vmatprep.subr.mxu0 0.0
    %2261 = vmatpush1.msra.mxu0 0.0
    %2262 = vmatprep.subr.mxu0 0.0
    %2263 = vmatpush1.msra.mxu0 0.0
    %2264 = vmatprep.subr.mxu0 0.0
    %2265 = vmatpush1.msra.mxu0 0.0
    %2266 = vmatprep.subr.mxu0 0.0
    %2267 = vmatpush1.msra.mxu0 0.0
    %2268 = vmatprep.subr.mxu0 0.0
    %2269 = vmatpush1.msra.mxu0 0.0
    %2270 = vmatprep.subr.mxu0 0.0
    %2271 = vmatpush1.msra.mxu0 0.0
    %2272 = vmatprep.subr.mxu0 0.0
    %2273 = vmatpush1.msra.mxu0 0.0
    %2274 = vmatprep.subr.mxu0 0.0
    %2275 = vmatpush1.msra.mxu0 0.0
    %2276 = vmatprep.subr.mxu0 0.0
    %2277 = vmatpush1.msra.mxu0 0.0
    %2278 = vmatprep.subr.mxu0 0.0
    %2279 = vmatpush1.msra.mxu0 0.0
    %2280 = vmatprep.subr.mxu0 0.0
    %2281 = vmatpush1.msra.mxu0 0.0
    %2282 = vmatprep.subr.mxu0 0.0
    %2283 = vmatpush1.msra.mxu0 0.0
    %2284 = vmatprep.subr.mxu0 0.0
    %2285 = vmatpush1.msra.mxu0 0.0
    %2286 = vmatprep.mubr.f32.mxu0 0.0
    %2287 = vmatmul.mubr.f32.gmra.mrb[0].mxu0 %v201
    %v2288 = vpop.f32.mrb[0].mxu0
    %v2289 = vadd.f32 0.0, %v2288
    %v2290 = vpop.f32.mrb[0].mxu0
    %v2291 = vadd.f32 0.0, %v2290
    %2292 = vdwg.mxu0
    %2293 = vmatprep.subr.mxu0 %v1672
    %2294 = vmatpush1.msra.mxu0 %v1671
    %2295 = vmatprep.subr.mxu0 %v1688
    %2296 = vmatpush1.msra.mxu0 %v1687
    %2297 = vmatprep.subr.mxu0 %v1704
    %2298 = vmatpush1.msra.mxu0 %v1703
    %2299 = vmatprep.subr.mxu0 %v1720
    %2300 = vmatpush1.msra.mxu0 %v1719
    %2301 = vmatprep.subr.mxu0 %v1736
    %2302 = vmatpush1.msra.mxu0 %v1735
    %2303 = vmatprep.subr.mxu0 %v1752
    %2304 = vmatpush1.msra.mxu0 %v1751
    %2305 = vmatprep.subr.mxu0 %v1768
    %2306 = vmatpush1.msra.mxu0 %v1767
    %2307 = vmatprep.subr.mxu0 %v1784
    %2308 = vmatpush1.msra.mxu0 %v1783
    %2309 = vmatprep.subr.mxu0 %v1800
    %2310 = vmatpush1.msra.mxu0 %v1799
    %2311 = vmatprep.subr.mxu0 %v1859
    %2312 = vmatpush1.msra.mxu0 %v1856
    %2313 = vmatprep.subr.mxu0 0.0
    %2314 = vmatpush1.msra.mxu0 0.0
    %2315 = vmatprep.subr.mxu0 0.0
    %2316 = vmatpush1.msra.mxu0 0.0
    %2317 = vmatprep.subr.mxu0 0.0
    %2318 = vmatpush1.msra.mxu0 0.0
    %2319 = vmatprep.subr.mxu0 0.0
    %2320 = vmatpush1.msra.mxu0 0.0
    %2321 = vmatprep.subr.mxu0 0.0
    %2322 = vmatpush1.msra.mxu0 0.0
    %2323 = vmatprep.subr.mxu0 0.0
    %2324 = vmatpush1.msra.mxu0 0.0
    %2325 = vmatprep.subr.mxu0 0.0
    %2326 = vmatpush1.msra.mxu0 0.0
    %2327 = vmatprep.subr.mxu0 0.0
    %2328 = vmatpush1.msra.mxu0 0.0
    %2329 = vmatprep.subr.mxu0 0.0
    %2330 = vmatpush1.msra.mxu0 0.0
    %2331 = vmatprep.subr.mxu0 0.0
    %2332 = vmatpush1.msra.mxu0 0.0
    %2333 = vmatprep.subr.mxu0 0.0
    %2334 = vmatpush1.msra.mxu0 0.0
    %2335 = vmatprep.subr.mxu0 0.0
    %2336 = vmatpush1.msra.mxu0 0.0
    %2337 = vmatprep.subr.mxu0 0.0
    %2338 = vmatpush1.msra.mxu0 0.0
    %2339 = vmatprep.subr.mxu0 0.0
    %2340 = vmatpush1.msra.mxu0 0.0
    %2341 = vmatprep.subr.mxu0 0.0
    %2342 = vmatpush1.msra.mxu0 0.0
    %2343 = vmatprep.subr.mxu0 0.0
    %2344 = vmatpush1.msra.mxu0 0.0
    %2345 = vmatprep.subr.mxu0 0.0
    %2346 = vmatpush1.msra.mxu0 0.0
    %2347 = vmatprep.subr.mxu0 0.0
    %2348 = vmatpush1.msra.mxu0 0.0
    %2349 = vmatprep.subr.mxu0 0.0
    %2350 = vmatpush1.msra.mxu0 0.0
    %2351 = vmatprep.subr.mxu0 0.0
    %2352 = vmatpush1.msra.mxu0 0.0
    %2353 = vmatprep.subr.mxu0 0.0
    %2354 = vmatpush1.msra.mxu0 0.0
    %2355 = vmatprep.subr.mxu0 0.0
    %2356 = vmatpush1.msra.mxu0 0.0
    %2357 = vmatprep.mubr.f32.mxu0 0.0
    %2358 = vmatmul.mubr.f32.gmra.mrb[0].mxu0 %v201
    %v2359 = vpop.f32.mrb[0].mxu0
    %v2360 = vadd.f32 0.0, %v2359
    %v2361 = vpop.f32.mrb[0].mxu0
    %v2362 = vadd.f32 0.0, %v2361
    %2363 = vdwg.mxu0
    %2364 = vmatprep.subr.mxu0 %v1674
    %2365 = vmatpush1.msra.mxu0 %v1673
    %2366 = vmatprep.subr.mxu0 %v1690
    %2367 = vmatpush1.msra.mxu0 %v1689
    %2368 = vmatprep.subr.mxu0 %v1706
    %2369 = vmatpush1.msra.mxu0 %v1705
    %2370 = vmatprep.subr.mxu0 %v1722
    %2371 = vmatpush1.msra.mxu0 %v1721
    %2372 = vmatprep.subr.mxu0 %v1738
    %2373 = vmatpush1.msra.mxu0 %v1737
    %2374 = vmatprep.subr.mxu0 %v1754
    %2375 = vmatpush1.msra.mxu0 %v1753
    %2376 = vmatprep.subr.mxu0 %v1770
    %2377 = vmatpush1.msra.mxu0 %v1769
    %2378 = vmatprep.subr.mxu0 %v1786
    %2379 = vmatpush1.msra.mxu0 %v1785
    %2380 = vmatprep.subr.mxu0 %v1802
    %2381 = vmatpush1.msra.mxu0 %v1801
    %2382 = vmatprep.subr.mxu0 %v1865
    %2383 = vmatpush1.msra.mxu0 %v1862
    %2384 = vmatprep.subr.mxu0 0.0
    %2385 = vmatpush1.msra.mxu0 0.0
    %2386 = vmatprep.subr.mxu0 0.0
    %2387 = vmatpush1.msra.mxu0 0.0
    %2388 = vmatprep.subr.mxu0 0.0
    %2389 = vmatpush1.msra.mxu0 0.0
    %2390 = vmatprep.subr.mxu0 0.0
    %2391 = vmatpush1.msra.mxu0 0.0
    %2392 = vmatprep.subr.mxu0 0.0
    %2393 = vmatpush1.msra.mxu0 0.0
    %2394 = vmatprep.subr.mxu0 0.0
    %2395 = vmatpush1.msra.mxu0 0.0
    %2396 = vmatprep.subr.mxu0 0.0
    %2397 = vmatpush1.msra.mxu0 0.0
    %2398 = vmatprep.subr.mxu0 0.0
    %2399 = vmatpush1.msra.mxu0 0.0
    %2400 = vmatprep.subr.mxu0 0.0
    %2401 = vmatpush1.msra.mxu0 0.0
    %2402 = vmatprep.subr.mxu0 0.0
    %2403 = vmatpush1.msra.mxu0 0.0
    %2404 = vmatprep.subr.mxu0 0.0
    %2405 = vmatpush1.msra.mxu0 0.0
    %2406 = vmatprep.subr.mxu0 0.0
    %2407 = vmatpush1.msra.mxu0 0.0
    %2408 = vmatprep.subr.mxu0 0.0
    %2409 = vmatpush1.msra.mxu0 0.0
    %2410 = vmatprep.subr.mxu0 0.0
    %2411 = vmatpush1.msra.mxu0 0.0
    %2412 = vmatprep.subr.mxu0 0.0
    %2413 = vmatpush1.msra.mxu0 0.0
    %2414 = vmatprep.subr.mxu0 0.0
    %2415 = vmatpush1.msra.mxu0 0.0
    %2416 = vmatprep.subr.mxu0 0.0
    %2417 = vmatpush1.msra.mxu0 0.0
    %2418 = vmatprep.subr.mxu0 0.0
    %2419 = vmatpush1.msra.mxu0 0.0
    %2420 = vmatprep.subr.mxu0 0.0
    %2421 = vmatpush1.msra.mxu0 0.0
    %2422 = vmatprep.subr.mxu0 0.0
    %2423 = vmatpush1.msra.mxu0 0.0
    %2424 = vmatprep.subr.mxu0 0.0
    %2425 = vmatpush1.msra.mxu0 0.0
    %2426 = vmatprep.subr.mxu0 0.0
    %2427 = vmatpush1.msra.mxu0 0.0
    %2428 = vmatprep.mubr.f32.mxu0 0.0
    %2429 = vmatmul.mubr.f32.gmra.mrb[0].mxu0 %v201
    %v2430 = vpop.f32.mrb[0].mxu0
    %v2431 = vadd.f32 0.0, %v2430
    %v2432 = vpop.f32.mrb[0].mxu0
    %v2433 = vadd.f32 0.0, %v2432
    %2434 = vdwg.mxu0
    %s2435 = scalar_lea.vmem [#allocation2], 256
    %2436 = vst [vmem:[%s2435] sm:$0xff] %v1934
    %s2437 = scalar_lea.vmem [#allocation2], 264
    %2438 = vst [vmem:[%s2437] sm:$0xff] %v1936
    %s2439 = scalar_lea.vmem [#allocation2], 272
    %2440 = vst [vmem:[%s2439] sm:$0xff] %v2005
    %s2441 = scalar_lea.vmem [#allocation2], 280
    %2442 = vst [vmem:[%s2441] sm:$0xff] %v2007
    %s2443 = scalar_lea.vmem [#allocation2], 288
    %2444 = vst [vmem:[%s2443] sm:$0xff] %v2076
    %s2445 = scalar_lea.vmem [#allocation2], 296
    %2446 = vst [vmem:[%s2445] sm:$0xff] %v2078
    %s2447 = scalar_lea.vmem [#allocation2], 304
    %2448 = vst [vmem:[%s2447] sm:$0xff] %v2147
    %s2449 = scalar_lea.vmem [#allocation2], 312
    %2450 = vst [vmem:[%s2449] sm:$0xff] %v2149
    %s2451 = scalar_lea.vmem [#allocation2], 320
    %2452 = vst [vmem:[%s2451] sm:$0xff] %v2218
    %s2453 = scalar_lea.vmem [#allocation2], 328
    %2454 = vst [vmem:[%s2453] sm:$0xff] %v2220
    %s2455 = scalar_lea.vmem [#allocation2], 336
    %2456 = vst [vmem:[%s2455] sm:$0xff] %v2289
    %s2457 = scalar_lea.vmem [#allocation2], 344
    %2458 = vst [vmem:[%s2457] sm:$0xff] %v2291
    %s2459 = scalar_lea.vmem [#allocation2], 352
    %2460 = vst [vmem:[%s2459] sm:$0xff] %v2360
    %s2461 = scalar_lea.vmem [#allocation2], 360
    %2462 = vst [vmem:[%s2461] sm:$0xff] %v2362
    %s2463 = scalar_lea.vmem [#allocation2], 368
    %2464 = vst [vmem:[%s2463] sm:$0xff] %v2431
    %s2465 = scalar_lea.vmem [#allocation2], 376
    %2466 = vst [vmem:[%s2465] sm:$0xff] %v2433
    %v2467 = vld [vmem:[#allocation6 + $0x180] sm:$0xff]
    %v2468 = vld [vmem:[#allocation6 + $0x188] sm:$0xff]
    %v2469 = vld [vmem:[#allocation6 + $0x190] sm:$0xff]
    %v2470 = vld [vmem:[#allocation6 + $0x198] sm:$0xff]
    %v2471 = vld [vmem:[#allocation6 + $0x1a0] sm:$0xff]
    %v2472 = vld [vmem:[#allocation6 + $0x1a8] sm:$0xff]
    %v2473 = vld [vmem:[#allocation6 + $0x1b0] sm:$0xff]
    %v2474 = vld [vmem:[#allocation6 + $0x1b8] sm:$0xff]
    %v2475 = vld [vmem:[#allocation6 + $0x1c0] sm:$0xff]
    %v2476 = vld [vmem:[#allocation6 + $0x1c8] sm:$0xff]
    %v2477 = vld [vmem:[#allocation6 + $0x1d0] sm:$0xff]
    %v2478 = vld [vmem:[#allocation6 + $0x1d8] sm:$0xff]
    %v2479 = vld [vmem:[#allocation6 + $0x1e0] sm:$0xff]
    %v2480 = vld [vmem:[#allocation6 + $0x1e8] sm:$0xff]
    %v2481 = vld [vmem:[#allocation6 + $0x1f0] sm:$0xff]
    %v2482 = vld [vmem:[#allocation6 + $0x1f8] sm:$0xff]
    %v2483 = vld [vmem:[#allocation6 + $0x400] sm:$0xff]
    %v2484 = vld [vmem:[#allocation6 + $0x408] sm:$0xff]
    %v2485 = vld [vmem:[#allocation6 + $0x410] sm:$0xff]
    %v2486 = vld [vmem:[#allocation6 + $0x418] sm:$0xff]
    %v2487 = vld [vmem:[#allocation6 + $0x420] sm:$0xff]
    %v2488 = vld [vmem:[#allocation6 + $0x428] sm:$0xff]
    %v2489 = vld [vmem:[#allocation6 + $0x430] sm:$0xff]
    %v2490 = vld [vmem:[#allocation6 + $0x438] sm:$0xff]
    %v2491 = vld [vmem:[#allocation6 + $0x440] sm:$0xff]
    %v2492 = vld [vmem:[#allocation6 + $0x448] sm:$0xff]
    %v2493 = vld [vmem:[#allocation6 + $0x450] sm:$0xff]
    %v2494 = vld [vmem:[#allocation6 + $0x458] sm:$0xff]
    %v2495 = vld [vmem:[#allocation6 + $0x460] sm:$0xff]
    %v2496 = vld [vmem:[#allocation6 + $0x468] sm:$0xff]
    %v2497 = vld [vmem:[#allocation6 + $0x470] sm:$0xff]
    %v2498 = vld [vmem:[#allocation6 + $0x478] sm:$0xff]
    %v2499 = vld [vmem:[#allocation6 + $0x680] sm:$0xff]
    %v2500 = vld [vmem:[#allocation6 + $0x688] sm:$0xff]
    %v2501 = vld [vmem:[#allocation6 + $0x690] sm:$0xff]
    %v2502 = vld [vmem:[#allocation6 + $0x698] sm:$0xff]
    %v2503 = vld [vmem:[#allocation6 + $0x6a0] sm:$0xff]
    %v2504 = vld [vmem:[#allocation6 + $0x6a8] sm:$0xff]
    %v2505 = vld [vmem:[#allocation6 + $0x6b0] sm:$0xff]
    %v2506 = vld [vmem:[#allocation6 + $0x6b8] sm:$0xff]
    %v2507 = vld [vmem:[#allocation6 + $0x6c0] sm:$0xff]
    %v2508 = vld [vmem:[#allocation6 + $0x6c8] sm:$0xff]
    %v2509 = vld [vmem:[#allocation6 + $0x6d0] sm:$0xff]
    %v2510 = vld [vmem:[#allocation6 + $0x6d8] sm:$0xff]
    %v2511 = vld [vmem:[#allocation6 + $0x6e0] sm:$0xff]
    %v2512 = vld [vmem:[#allocation6 + $0x6e8] sm:$0xff]
    %v2513 = vld [vmem:[#allocation6 + $0x6f0] sm:$0xff]
    %v2514 = vld [vmem:[#allocation6 + $0x6f8] sm:$0xff]
    %v2515 = vld [vmem:[#allocation6 + $0x900] sm:$0xff]
    %v2516 = vld [vmem:[#allocation6 + $0x908] sm:$0xff]
    %v2517 = vld [vmem:[#allocation6 + $0x910] sm:$0xff]
    %v2518 = vld [vmem:[#allocation6 + $0x918] sm:$0xff]
    %v2519 = vld [vmem:[#allocation6 + $0x920] sm:$0xff]
    %v2520 = vld [vmem:[#allocation6 + $0x928] sm:$0xff]
    %v2521 = vld [vmem:[#allocation6 + $0x930] sm:$0xff]
    %v2522 = vld [vmem:[#allocation6 + $0x938] sm:$0xff]
    %v2523 = vld [vmem:[#allocation6 + $0x940] sm:$0xff]
    %v2524 = vld [vmem:[#allocation6 + $0x948] sm:$0xff]
    %v2525 = vld [vmem:[#allocation6 + $0x950] sm:$0xff]
    %v2526 = vld [vmem:[#allocation6 + $0x958] sm:$0xff]
    %v2527 = vld [vmem:[#allocation6 + $0x960] sm:$0xff]
    %v2528 = vld [vmem:[#allocation6 + $0x968] sm:$0xff]
    %v2529 = vld [vmem:[#allocation6 + $0x970] sm:$0xff]
    %v2530 = vld [vmem:[#allocation6 + $0x978] sm:$0xff]
    %v2531 = vld [vmem:[#allocation6 + $0xb80] sm:$0xff]
    %v2532 = vld [vmem:[#allocation6 + $0xb88] sm:$0xff]
    %v2533 = vld [vmem:[#allocation6 + $0xb90] sm:$0xff]
    %v2534 = vld [vmem:[#allocation6 + $0xb98] sm:$0xff]
    %v2535 = vld [vmem:[#allocation6 + $0xba0] sm:$0xff]
    %v2536 = vld [vmem:[#allocation6 + $0xba8] sm:$0xff]
    %v2537 = vld [vmem:[#allocation6 + $0xbb0] sm:$0xff]
    %v2538 = vld [vmem:[#allocation6 + $0xbb8] sm:$0xff]
    %v2539 = vld [vmem:[#allocation6 + $0xbc0] sm:$0xff]
    %v2540 = vld [vmem:[#allocation6 + $0xbc8] sm:$0xff]
    %v2541 = vld [vmem:[#allocation6 + $0xbd0] sm:$0xff]
    %v2542 = vld [vmem:[#allocation6 + $0xbd8] sm:$0xff]
    %v2543 = vld [vmem:[#allocation6 + $0xbe0] sm:$0xff]
    %v2544 = vld [vmem:[#allocation6 + $0xbe8] sm:$0xff]
    %v2545 = vld [vmem:[#allocation6 + $0xbf0] sm:$0xff]
    %v2546 = vld [vmem:[#allocation6 + $0xbf8] sm:$0xff]
    %v2547 = vld [vmem:[#allocation6 + $0xe00] sm:$0xff]
    %v2548 = vld [vmem:[#allocation6 + $0xe08] sm:$0xff]
    %v2549 = vld [vmem:[#allocation6 + $0xe10] sm:$0xff]
    %v2550 = vld [vmem:[#allocation6 + $0xe18] sm:$0xff]
    %v2551 = vld [vmem:[#allocation6 + $0xe20] sm:$0xff]
    %v2552 = vld [vmem:[#allocation6 + $0xe28] sm:$0xff]
    %v2553 = vld [vmem:[#allocation6 + $0xe30] sm:$0xff]
    %v2554 = vld [vmem:[#allocation6 + $0xe38] sm:$0xff]
    %v2555 = vld [vmem:[#allocation6 + $0xe40] sm:$0xff]
    %v2556 = vld [vmem:[#allocation6 + $0xe48] sm:$0xff]
    %v2557 = vld [vmem:[#allocation6 + $0xe50] sm:$0xff]
    %v2558 = vld [vmem:[#allocation6 + $0xe58] sm:$0xff]
    %v2559 = vld [vmem:[#allocation6 + $0xe60] sm:$0xff]
    %v2560 = vld [vmem:[#allocation6 + $0xe68] sm:$0xff]
    %v2561 = vld [vmem:[#allocation6 + $0xe70] sm:$0xff]
    %v2562 = vld [vmem:[#allocation6 + $0xe78] sm:$0xff]
    %v2563 = vld [vmem:[#allocation6 + $0x1080] sm:$0xff]
    %v2564 = vld [vmem:[#allocation6 + $0x1088] sm:$0xff]
    %v2565 = vld [vmem:[#allocation6 + $0x1090] sm:$0xff]
    %v2566 = vld [vmem:[#allocation6 + $0x1098] sm:$0xff]
    %v2567 = vld [vmem:[#allocation6 + $0x10a0] sm:$0xff]
    %v2568 = vld [vmem:[#allocation6 + $0x10a8] sm:$0xff]
    %v2569 = vld [vmem:[#allocation6 + $0x10b0] sm:$0xff]
    %v2570 = vld [vmem:[#allocation6 + $0x10b8] sm:$0xff]
    %v2571 = vld [vmem:[#allocation6 + $0x10c0] sm:$0xff]
    %v2572 = vld [vmem:[#allocation6 + $0x10c8] sm:$0xff]
    %v2573 = vld [vmem:[#allocation6 + $0x10d0] sm:$0xff]
    %v2574 = vld [vmem:[#allocation6 + $0x10d8] sm:$0xff]
    %v2575 = vld [vmem:[#allocation6 + $0x10e0] sm:$0xff]
    %v2576 = vld [vmem:[#allocation6 + $0x10e8] sm:$0xff]
    %v2577 = vld [vmem:[#allocation6 + $0x10f0] sm:$0xff]
    %v2578 = vld [vmem:[#allocation6 + $0x10f8] sm:$0xff]
    %v2579 = vld [vmem:[#allocation6 + $0x1300] sm:$0xff]
    %v2580 = vld [vmem:[#allocation6 + $0x1308] sm:$0xff]
    %v2581 = vld [vmem:[#allocation6 + $0x1310] sm:$0xff]
    %v2582 = vld [vmem:[#allocation6 + $0x1318] sm:$0xff]
    %v2583 = vld [vmem:[#allocation6 + $0x1320] sm:$0xff]
    %v2584 = vld [vmem:[#allocation6 + $0x1328] sm:$0xff]
    %v2585 = vld [vmem:[#allocation6 + $0x1330] sm:$0xff]
    %v2586 = vld [vmem:[#allocation6 + $0x1338] sm:$0xff]
    %v2587 = vld [vmem:[#allocation6 + $0x1340] sm:$0xff]
    %v2588 = vld [vmem:[#allocation6 + $0x1348] sm:$0xff]
    %v2589 = vld [vmem:[#allocation6 + $0x1350] sm:$0xff]
    %v2590 = vld [vmem:[#allocation6 + $0x1358] sm:$0xff]
    %v2591 = vld [vmem:[#allocation6 + $0x1360] sm:$0xff]
    %v2592 = vld [vmem:[#allocation6 + $0x1368] sm:$0xff]
    %v2593 = vld [vmem:[#allocation6 + $0x1370] sm:$0xff]
    %v2594 = vld [vmem:[#allocation6 + $0x1378] sm:$0xff]
    %v2595 = vld [vmem:[#allocation6 + $0x1580] sm:$0xff]
    %v2596 = vld [vmem:[#allocation6 + $0x1588] sm:$0xff]
    %v2597 = vld [vmem:[#allocation6 + $0x1590] sm:$0xff]
    %v2598 = vld [vmem:[#allocation6 + $0x1598] sm:$0xff]
    %v2599 = vld [vmem:[#allocation6 + $0x15a0] sm:$0xff]
    %v2600 = vld [vmem:[#allocation6 + $0x15a8] sm:$0xff]
    %v2601 = vld [vmem:[#allocation6 + $0x15b0] sm:$0xff]
    %v2602 = vld [vmem:[#allocation6 + $0x15b8] sm:$0xff]
    %v2603 = vld [vmem:[#allocation6 + $0x15c0] sm:$0xff]
    %v2604 = vld [vmem:[#allocation6 + $0x15c8] sm:$0xff]
    %v2605 = vld [vmem:[#allocation6 + $0x15d0] sm:$0xff]
    %v2606 = vld [vmem:[#allocation6 + $0x15d8] sm:$0xff]
    %v2607 = vld [vmem:[#allocation6 + $0x15e0] sm:$0xff]
    %v2608 = vld [vmem:[#allocation6 + $0x15e8] sm:$0xff]
    %v2609 = vld [vmem:[#allocation6 + $0x15f0] sm:$0xff]
    %v2610 = vld [vmem:[#allocation6 + $0x15f8] sm:$0xff]
    %v2611 = vld [vmem:[#allocation6 + $0x1800] sm:$0x7]
    %v2612 = vld [vmem:[#allocation6 + $0x1808] sm:$0x7]
    %v2613 = vld [vmem:[#allocation6 + $0x1810] sm:$0x7]
    %v2614 = vld [vmem:[#allocation6 + $0x1818] sm:$0x7]
    %v2615 = vld [vmem:[#allocation6 + $0x1820] sm:$0x7]
    %v2616 = vld [vmem:[#allocation6 + $0x1828] sm:$0x7]
    %v2617 = vld [vmem:[#allocation6 + $0x1830] sm:$0x7]
    %v2618 = vld [vmem:[#allocation6 + $0x1838] sm:$0x7]
    %v2619 = vld [vmem:[#allocation6 + $0x1840] sm:$0x7]
    %v2620 = vld [vmem:[#allocation6 + $0x1848] sm:$0x7]
    %v2621 = vld [vmem:[#allocation6 + $0x1850] sm:$0x7]
    %v2622 = vld [vmem:[#allocation6 + $0x1858] sm:$0x7]
    %v2623 = vld [vmem:[#allocation6 + $0x1860] sm:$0x7]
    %v2624 = vld [vmem:[#allocation6 + $0x1868] sm:$0x7]
    %v2625 = vld [vmem:[#allocation6 + $0x1870] sm:$0x7]
    %v2626 = vld [vmem:[#allocation6 + $0x1878] sm:$0x7]
    %v2628 = vsel %vm203, %v2611, 0
    %v2631 = vsel %vm203, %v2612, 0
    %v2634 = vsel %vm203, %v2613, 0
    %v2637 = vsel %vm203, %v2614, 0
    %v2640 = vsel %vm203, %v2615, 0
    %v2643 = vsel %vm203, %v2616, 0
    %v2646 = vsel %vm203, %v2617, 0
    %v2649 = vsel %vm203, %v2618, 0
    %v2652 = vsel %vm203, %v2619, 0
    %v2655 = vsel %vm203, %v2620, 0
    %v2658 = vsel %vm203, %v2621, 0
    %v2661 = vsel %vm203, %v2622, 0
    %v2664 = vsel %vm203, %v2623, 0
    %v2667 = vsel %vm203, %v2624, 0
    %v2670 = vsel %vm203, %v2625, 0
    %v2673 = vsel %vm203, %v2626, 0
    %2675 = vmatprep.subr.mxu0 %v2468
    %2676 = vmatpush1.msra.mxu0 %v2467
    %2677 = vmatprep.subr.mxu0 %v2484
    %2678 = vmatpush1.msra.mxu0 %v2483
    %2679 = vmatprep.subr.mxu0 %v2500
    %2680 = vmatpush1.msra.mxu0 %v2499
    %2681 = vmatprep.subr.mxu0 %v2516
    %2682 = vmatpush1.msra.mxu0 %v2515
    %2683 = vmatprep.subr.mxu0 %v2532
    %2684 = vmatpush1.msra.mxu0 %v2531
    %2685 = vmatprep.subr.mxu0 %v2548
    %2686 = vmatpush1.msra.mxu0 %v2547
    %2687 = vmatprep.subr.mxu0 %v2564
    %2688 = vmatpush1.msra.mxu0 %v2563
    %2689 = vmatprep.subr.mxu0 %v2580
    %2690 = vmatpush1.msra.mxu0 %v2579
    %2691 = vmatprep.subr.mxu0 %v2596
    %2692 = vmatpush1.msra.mxu0 %v2595
    %2693 = vmatprep.subr.mxu0 %v2631
    %2694 = vmatpush1.msra.mxu0 %v2628
    %2695 = vmatprep.subr.mxu0 0.0
    %2696 = vmatpush1.msra.mxu0 0.0
    %2697 = vmatprep.subr.mxu0 0.0
    %2698 = vmatpush1.msra.mxu0 0.0
    %2699 = vmatprep.subr.mxu0 0.0
    %2700 = vmatpush1.msra.mxu0 0.0
    %2701 = vmatprep.subr.mxu0 0.0
    %2702 = vmatpush1.msra.mxu0 0.0
    %2703 = vmatprep.subr.mxu0 0.0
    %2704 = vmatpush1.msra.mxu0 0.0
    %2705 = vmatprep.subr.mxu0 0.0
    %2706 = vmatpush1.msra.mxu0 0.0
    %2707 = vmatprep.subr.mxu0 0.0
    %2708 = vmatpush1.msra.mxu0 0.0
    %2709 = vmatprep.subr.mxu0 0.0
    %2710 = vmatpush1.msra.mxu0 0.0
    %2711 = vmatprep.subr.mxu0 0.0
    %2712 = vmatpush1.msra.mxu0 0.0
    %2713 = vmatprep.subr.mxu0 0.0
    %2714 = vmatpush1.msra.mxu0 0.0
    %2715 = vmatprep.subr.mxu0 0.0
    %2716 = vmatpush1.msra.mxu0 0.0
    %2717 = vmatprep.subr.mxu0 0.0
    %2718 = vmatpush1.msra.mxu0 0.0
    %2719 = vmatprep.subr.mxu0 0.0
    %2720 = vmatpush1.msra.mxu0 0.0
    %2721 = vmatprep.subr.mxu0 0.0
    %2722 = vmatpush1.msra.mxu0 0.0
    %2723 = vmatprep.subr.mxu0 0.0
    %2724 = vmatpush1.msra.mxu0 0.0
    %2725 = vmatprep.subr.mxu0 0.0
    %2726 = vmatpush1.msra.mxu0 0.0
    %2727 = vmatprep.subr.mxu0 0.0
    %2728 = vmatpush1.msra.mxu0 0.0
    %2729 = vmatprep.subr.mxu0 0.0
    %2730 = vmatpush1.msra.mxu0 0.0
    %2731 = vmatprep.subr.mxu0 0.0
    %2732 = vmatpush1.msra.mxu0 0.0
    %2733 = vmatprep.subr.mxu0 0.0
    %2734 = vmatpush1.msra.mxu0 0.0
    %2735 = vmatprep.subr.mxu0 0.0
    %2736 = vmatpush1.msra.mxu0 0.0
    %2737 = vmatprep.subr.mxu0 0.0
    %2738 = vmatpush1.msra.mxu0 0.0
    %2739 = vmatprep.mubr.f32.mxu0 0.0
    %2740 = vmatmul.mubr.f32.gmra.mrb[0].mxu0 %v201
    %v2741 = vpop.f32.mrb[0].mxu0
    %v2742 = vadd.f32 0.0, %v2741
    %v2743 = vpop.f32.mrb[0].mxu0
    %v2744 = vadd.f32 0.0, %v2743
    %2745 = vdwg.mxu0
    %2746 = vmatprep.subr.mxu0 %v2470
    %2747 = vmatpush1.msra.mxu0 %v2469
    %2748 = vmatprep.subr.mxu0 %v2486
    %2749 = vmatpush1.msra.mxu0 %v2485
    %2750 = vmatprep.subr.mxu0 %v2502
    %2751 = vmatpush1.msra.mxu0 %v2501
    %2752 = vmatprep.subr.mxu0 %v2518
    %2753 = vmatpush1.msra.mxu0 %v2517
    %2754 = vmatprep.subr.mxu0 %v2534
    %2755 = vmatpush1.msra.mxu0 %v2533
    %2756 = vmatprep.subr.mxu0 %v2550
    %2757 = vmatpush1.msra.mxu0 %v2549
    %2758 = vmatprep.subr.mxu0 %v2566
    %2759 = vmatpush1.msra.mxu0 %v2565
    %2760 = vmatprep.subr.mxu0 %v2582
    %2761 = vmatpush1.msra.mxu0 %v2581
    %2762 = vmatprep.subr.mxu0 %v2598
    %2763 = vmatpush1.msra.mxu0 %v2597
    %2764 = vmatprep.subr.mxu0 %v2637
    %2765 = vmatpush1.msra.mxu0 %v2634
    %2766 = vmatprep.subr.mxu0 0.0
    %2767 = vmatpush1.msra.mxu0 0.0
    %2768 = vmatprep.subr.mxu0 0.0
    %2769 = vmatpush1.msra.mxu0 0.0
    %2770 = vmatprep.subr.mxu0 0.0
    %2771 = vmatpush1.msra.mxu0 0.0
    %2772 = vmatprep.subr.mxu0 0.0
    %2773 = vmatpush1.msra.mxu0 0.0
    %2774 = vmatprep.subr.mxu0 0.0
    %2775 = vmatpush1.msra.mxu0 0.0
    %2776 = vmatprep.subr.mxu0 0.0
    %2777 = vmatpush1.msra.mxu0 0.0
    %2778 = vmatprep.subr.mxu0 0.0
    %2779 = vmatpush1.msra.mxu0 0.0
    %2780 = vmatprep.subr.mxu0 0.0
    %2781 = vmatpush1.msra.mxu0 0.0
    %2782 = vmatprep.subr.mxu0 0.0
    %2783 = vmatpush1.msra.mxu0 0.0
    %2784 = vmatprep.subr.mxu0 0.0
    %2785 = vmatpush1.msra.mxu0 0.0
    %2786 = vmatprep.subr.mxu0 0.0
    %2787 = vmatpush1.msra.mxu0 0.0
    %2788 = vmatprep.subr.mxu0 0.0
    %2789 = vmatpush1.msra.mxu0 0.0
    %2790 = vmatprep.subr.mxu0 0.0
    %2791 = vmatpush1.msra.mxu0 0.0
    %2792 = vmatprep.subr.mxu0 0.0
    %2793 = vmatpush1.msra.mxu0 0.0
    %2794 = vmatprep.subr.mxu0 0.0
    %2795 = vmatpush1.msra.mxu0 0.0
    %2796 = vmatprep.subr.mxu0 0.0
    %2797 = vmatpush1.msra.mxu0 0.0
    %2798 = vmatprep.subr.mxu0 0.0
    %2799 = vmatpush1.msra.mxu0 0.0
    %2800 = vmatprep.subr.mxu0 0.0
    %2801 = vmatpush1.msra.mxu0 0.0
    %2802 = vmatprep.subr.mxu0 0.0
    %2803 = vmatpush1.msra.mxu0 0.0
    %2804 = vmatprep.subr.mxu0 0.0
    %2805 = vmatpush1.msra.mxu0 0.0
    %2806 = vmatprep.subr.mxu0 0.0
    %2807 = vmatpush1.msra.mxu0 0.0
    %2808 = vmatprep.subr.mxu0 0.0
    %2809 = vmatpush1.msra.mxu0 0.0
    %2810 = vmatprep.mubr.f32.mxu0 0.0
    %2811 = vmatmul.mubr.f32.gmra.mrb[0].mxu0 %v201
    %v2812 = vpop.f32.mrb[0].mxu0
    %v2813 = vadd.f32 0.0, %v2812
    %v2814 = vpop.f32.mrb[0].mxu0
    %v2815 = vadd.f32 0.0, %v2814
    %2816 = vdwg.mxu0
    %2817 = vmatprep.subr.mxu0 %v2472
    %2818 = vmatpush1.msra.mxu0 %v2471
    %2819 = vmatprep.subr.mxu0 %v2488
    %2820 = vmatpush1.msra.mxu0 %v2487
    %2821 = vmatprep.subr.mxu0 %v2504
    %2822 = vmatpush1.msra.mxu0 %v2503
    %2823 = vmatprep.subr.mxu0 %v2520
    %2824 = vmatpush1.msra.mxu0 %v2519
    %2825 = vmatprep.subr.mxu0 %v2536
    %2826 = vmatpush1.msra.mxu0 %v2535
    %2827 = vmatprep.subr.mxu0 %v2552
    %2828 = vmatpush1.msra.mxu0 %v2551
    %2829 = vmatprep.subr.mxu0 %v2568
    %2830 = vmatpush1.msra.mxu0 %v2567
    %2831 = vmatprep.subr.mxu0 %v2584
    %2832 = vmatpush1.msra.mxu0 %v2583
    %2833 = vmatprep.subr.mxu0 %v2600
    %2834 = vmatpush1.msra.mxu0 %v2599
    %2835 = vmatprep.subr.mxu0 %v2643
    %2836 = vmatpush1.msra.mxu0 %v2640
    %2837 = vmatprep.subr.mxu0 0.0
    %2838 = vmatpush1.msra.mxu0 0.0
    %2839 = vmatprep.subr.mxu0 0.0
    %2840 = vmatpush1.msra.mxu0 0.0
    %2841 = vmatprep.subr.mxu0 0.0
    %2842 = vmatpush1.msra.mxu0 0.0
    %2843 = vmatprep.subr.mxu0 0.0
    %2844 = vmatpush1.msra.mxu0 0.0
    %2845 = vmatprep.subr.mxu0 0.0
    %2846 = vmatpush1.msra.mxu0 0.0
    %2847 = vmatprep.subr.mxu0 0.0
    %2848 = vmatpush1.msra.mxu0 0.0
    %2849 = vmatprep.subr.mxu0 0.0
    %2850 = vmatpush1.msra.mxu0 0.0
    %2851 = vmatprep.subr.mxu0 0.0
    %2852 = vmatpush1.msra.mxu0 0.0
    %2853 = vmatprep.subr.mxu0 0.0
    %2854 = vmatpush1.msra.mxu0 0.0
    %2855 = vmatprep.subr.mxu0 0.0
    %2856 = vmatpush1.msra.mxu0 0.0
    %2857 = vmatprep.subr.mxu0 0.0
    %2858 = vmatpush1.msra.mxu0 0.0
    %2859 = vmatprep.subr.mxu0 0.0
    %2860 = vmatpush1.msra.mxu0 0.0
    %2861 = vmatprep.subr.mxu0 0.0
    %2862 = vmatpush1.msra.mxu0 0.0
    %2863 = vmatprep.subr.mxu0 0.0
    %2864 = vmatpush1.msra.mxu0 0.0
    %2865 = vmatprep.subr.mxu0 0.0
    %2866 = vmatpush1.msra.mxu0 0.0
    %2867 = vmatprep.subr.mxu0 0.0
    %2868 = vmatpush1.msra.mxu0 0.0
    %2869 = vmatprep.subr.mxu0 0.0
    %2870 = vmatpush1.msra.mxu0 0.0
    %2871 = vmatprep.subr.mxu0 0.0
    %2872 = vmatpush1.msra.mxu0 0.0
    %2873 = vmatprep.subr.mxu0 0.0
    %2874 = vmatpush1.msra.mxu0 0.0
    %2875 = vmatprep.subr.mxu0 0.0
    %2876 = vmatpush1.msra.mxu0 0.0
    %2877 = vmatprep.subr.mxu0 0.0
    %2878 = vmatpush1.msra.mxu0 0.0
    %2879 = vmatprep.subr.mxu0 0.0
    %2880 = vmatpush1.msra.mxu0 0.0
    %2881 = vmatprep.mubr.f32.mxu0 0.0
    %2882 = vmatmul.mubr.f32.gmra.mrb[0].mxu0 %v201
    %v2883 = vpop.f32.mrb[0].mxu0
    %v2884 = vadd.f32 0.0, %v2883
    %v2885 = vpop.f32.mrb[0].mxu0
    %v2886 = vadd.f32 0.0, %v2885
    %2887 = vdwg.mxu0
    %2888 = vmatprep.subr.mxu0 %v2474
    %2889 = vmatpush1.msra.mxu0 %v2473
    %2890 = vmatprep.subr.mxu0 %v2490
    %2891 = vmatpush1.msra.mxu0 %v2489
    %2892 = vmatprep.subr.mxu0 %v2506
    %2893 = vmatpush1.msra.mxu0 %v2505
    %2894 = vmatprep.subr.mxu0 %v2522
    %2895 = vmatpush1.msra.mxu0 %v2521
    %2896 = vmatprep.subr.mxu0 %v2538
    %2897 = vmatpush1.msra.mxu0 %v2537
    %2898 = vmatprep.subr.mxu0 %v2554
    %2899 = vmatpush1.msra.mxu0 %v2553
    %2900 = vmatprep.subr.mxu0 %v2570
    %2901 = vmatpush1.msra.mxu0 %v2569
    %2902 = vmatprep.subr.mxu0 %v2586
    %2903 = vmatpush1.msra.mxu0 %v2585
    %2904 = vmatprep.subr.mxu0 %v2602
    %2905 = vmatpush1.msra.mxu0 %v2601
    %2906 = vmatprep.subr.mxu0 %v2649
    %2907 = vmatpush1.msra.mxu0 %v2646
    %2908 = vmatprep.subr.mxu0 0.0
    %2909 = vmatpush1.msra.mxu0 0.0
    %2910 = vmatprep.subr.mxu0 0.0
    %2911 = vmatpush1.msra.mxu0 0.0
    %2912 = vmatprep.subr.mxu0 0.0
    %2913 = vmatpush1.msra.mxu0 0.0
    %2914 = vmatprep.subr.mxu0 0.0
    %2915 = vmatpush1.msra.mxu0 0.0
    %2916 = vmatprep.subr.mxu0 0.0
    %2917 = vmatpush1.msra.mxu0 0.0
    %2918 = vmatprep.subr.mxu0 0.0
    %2919 = vmatpush1.msra.mxu0 0.0
    %2920 = vmatprep.subr.mxu0 0.0
    %2921 = vmatpush1.msra.mxu0 0.0
    %2922 = vmatprep.subr.mxu0 0.0
    %2923 = vmatpush1.msra.mxu0 0.0
    %2924 = vmatprep.subr.mxu0 0.0
    %2925 = vmatpush1.msra.mxu0 0.0
    %2926 = vmatprep.subr.mxu0 0.0
    %2927 = vmatpush1.msra.mxu0 0.0
    %2928 = vmatprep.subr.mxu0 0.0
    %2929 = vmatpush1.msra.mxu0 0.0
    %2930 = vmatprep.subr.mxu0 0.0
    %2931 = vmatpush1.msra.mxu0 0.0
    %2932 = vmatprep.subr.mxu0 0.0
    %2933 = vmatpush1.msra.mxu0 0.0
    %2934 = vmatprep.subr.mxu0 0.0
    %2935 = vmatpush1.msra.mxu0 0.0
    %2936 = vmatprep.subr.mxu0 0.0
    %2937 = vmatpush1.msra.mxu0 0.0
    %2938 = vmatprep.subr.mxu0 0.0
    %2939 = vmatpush1.msra.mxu0 0.0
    %2940 = vmatprep.subr.mxu0 0.0
    %2941 = vmatpush1.msra.mxu0 0.0
    %2942 = vmatprep.subr.mxu0 0.0
    %2943 = vmatpush1.msra.mxu0 0.0
    %2944 = vmatprep.subr.mxu0 0.0
    %2945 = vmatpush1.msra.mxu0 0.0
    %2946 = vmatprep.subr.mxu0 0.0
    %2947 = vmatpush1.msra.mxu0 0.0
    %2948 = vmatprep.subr.mxu0 0.0
    %2949 = vmatpush1.msra.mxu0 0.0
    %2950 = vmatprep.subr.mxu0 0.0
    %2951 = vmatpush1.msra.mxu0 0.0
    %2952 = vmatprep.mubr.f32.mxu0 0.0
    %2953 = vmatmul.mubr.f32.gmra.mrb[0].mxu0 %v201
    %v2954 = vpop.f32.mrb[0].mxu0
    %v2955 = vadd.f32 0.0, %v2954
    %v2956 = vpop.f32.mrb[0].mxu0
    %v2957 = vadd.f32 0.0, %v2956
    %2958 = vdwg.mxu0
    %2959 = vmatprep.subr.mxu0 %v2476
    %2960 = vmatpush1.msra.mxu0 %v2475
    %2961 = vmatprep.subr.mxu0 %v2492
    %2962 = vmatpush1.msra.mxu0 %v2491
    %2963 = vmatprep.subr.mxu0 %v2508
    %2964 = vmatpush1.msra.mxu0 %v2507
    %2965 = vmatprep.subr.mxu0 %v2524
    %2966 = vmatpush1.msra.mxu0 %v2523
    %2967 = vmatprep.subr.mxu0 %v2540
    %2968 = vmatpush1.msra.mxu0 %v2539
    %2969 = vmatprep.subr.mxu0 %v2556
    %2970 = vmatpush1.msra.mxu0 %v2555
    %2971 = vmatprep.subr.mxu0 %v2572
    %2972 = vmatpush1.msra.mxu0 %v2571
    %2973 = vmatprep.subr.mxu0 %v2588
    %2974 = vmatpush1.msra.mxu0 %v2587
    %2975 = vmatprep.subr.mxu0 %v2604
    %2976 = vmatpush1.msra.mxu0 %v2603
    %2977 = vmatprep.subr.mxu0 %v2655
    %2978 = vmatpush1.msra.mxu0 %v2652
    %2979 = vmatprep.subr.mxu0 0.0
    %2980 = vmatpush1.msra.mxu0 0.0
    %2981 = vmatprep.subr.mxu0 0.0
    %2982 = vmatpush1.msra.mxu0 0.0
    %2983 = vmatprep.subr.mxu0 0.0
    %2984 = vmatpush1.msra.mxu0 0.0
    %2985 = vmatprep.subr.mxu0 0.0
    %2986 = vmatpush1.msra.mxu0 0.0
    %2987 = vmatprep.subr.mxu0 0.0
    %2988 = vmatpush1.msra.mxu0 0.0
    %2989 = vmatprep.subr.mxu0 0.0
    %2990 = vmatpush1.msra.mxu0 0.0
    %2991 = vmatprep.subr.mxu0 0.0
    %2992 = vmatpush1.msra.mxu0 0.0
    %2993 = vmatprep.subr.mxu0 0.0
    %2994 = vmatpush1.msra.mxu0 0.0
    %2995 = vmatprep.subr.mxu0 0.0
    %2996 = vmatpush1.msra.mxu0 0.0
    %2997 = vmatprep.subr.mxu0 0.0
    %2998 = vmatpush1.msra.mxu0 0.0
    %2999 = vmatprep.subr.mxu0 0.0
    %3000 = vmatpush1.msra.mxu0 0.0
    %3001 = vmatprep.subr.mxu0 0.0
    %3002 = vmatpush1.msra.mxu0 0.0
    %3003 = vmatprep.subr.mxu0 0.0
    %3004 = vmatpush1.msra.mxu0 0.0
    %3005 = vmatprep.subr.mxu0 0.0
    %3006 = vmatpush1.msra.mxu0 0.0
    %3007 = vmatprep.subr.mxu0 0.0
    %3008 = vmatpush1.msra.mxu0 0.0
    %3009 = vmatprep.subr.mxu0 0.0
    %3010 = vmatpush1.msra.mxu0 0.0
    %3011 = vmatprep.subr.mxu0 0.0
    %3012 = vmatpush1.msra.mxu0 0.0
    %3013 = vmatprep.subr.mxu0 0.0
    %3014 = vmatpush1.msra.mxu0 0.0
    %3015 = vmatprep.subr.mxu0 0.0
    %3016 = vmatpush1.msra.mxu0 0.0
    %3017 = vmatprep.subr.mxu0 0.0
    %3018 = vmatpush1.msra.mxu0 0.0
    %3019 = vmatprep.subr.mxu0 0.0
    %3020 = vmatpush1.msra.mxu0 0.0
    %3021 = vmatprep.subr.mxu0 0.0
    %3022 = vmatpush1.msra.mxu0 0.0
    %3023 = vmatprep.mubr.f32.mxu0 0.0
    %3024 = vmatmul.mubr.f32.gmra.mrb[0].mxu0 %v201
    %v3025 = vpop.f32.mrb[0].mxu0
    %v3026 = vadd.f32 0.0, %v3025
    %v3027 = vpop.f32.mrb[0].mxu0
    %v3028 = vadd.f32 0.0, %v3027
    %3029 = vdwg.mxu0
    %3030 = vmatprep.subr.mxu0 %v2478
    %3031 = vmatpush1.msra.mxu0 %v2477
    %3032 = vmatprep.subr.mxu0 %v2494
    %3033 = vmatpush1.msra.mxu0 %v2493
    %3034 = vmatprep.subr.mxu0 %v2510
    %3035 = vmatpush1.msra.mxu0 %v2509
    %3036 = vmatprep.subr.mxu0 %v2526
    %3037 = vmatpush1.msra.mxu0 %v2525
    %3038 = vmatprep.subr.mxu0 %v2542
    %3039 = vmatpush1.msra.mxu0 %v2541
    %3040 = vmatprep.subr.mxu0 %v2558
    %3041 = vmatpush1.msra.mxu0 %v2557
    %3042 = vmatprep.subr.mxu0 %v2574
    %3043 = vmatpush1.msra.mxu0 %v2573
    %3044 = vmatprep.subr.mxu0 %v2590
    %3045 = vmatpush1.msra.mxu0 %v2589
    %3046 = vmatprep.subr.mxu0 %v2606
    %3047 = vmatpush1.msra.mxu0 %v2605
    %3048 = vmatprep.subr.mxu0 %v2661
    %3049 = vmatpush1.msra.mxu0 %v2658
    %3050 = vmatprep.subr.mxu0 0.0
    %3051 = vmatpush1.msra.mxu0 0.0
    %3052 = vmatprep.subr.mxu0 0.0
    %3053 = vmatpush1.msra.mxu0 0.0
    %3054 = vmatprep.subr.mxu0 0.0
    %3055 = vmatpush1.msra.mxu0 0.0
    %3056 = vmatprep.subr.mxu0 0.0
    %3057 = vmatpush1.msra.mxu0 0.0
    %3058 = vmatprep.subr.mxu0 0.0
    %3059 = vmatpush1.msra.mxu0 0.0
    %3060 = vmatprep.subr.mxu0 0.0
    %3061 = vmatpush1.msra.mxu0 0.0
    %3062 = vmatprep.subr.mxu0 0.0
    %3063 = vmatpush1.msra.mxu0 0.0
    %3064 = vmatprep.subr.mxu0 0.0
    %3065 = vmatpush1.msra.mxu0 0.0
    %3066 = vmatprep.subr.mxu0 0.0
    %3067 = vmatpush1.msra.mxu0 0.0
    %3068 = vmatprep.subr.mxu0 0.0
    %3069 = vmatpush1.msra.mxu0 0.0
    %3070 = vmatprep.subr.mxu0 0.0
    %3071 = vmatpush1.msra.mxu0 0.0
    %3072 = vmatprep.subr.mxu0 0.0
    %3073 = vmatpush1.msra.mxu0 0.0
    %3074 = vmatprep.subr.mxu0 0.0
    %3075 = vmatpush1.msra.mxu0 0.0
    %3076 = vmatprep.subr.mxu0 0.0
    %3077 = vmatpush1.msra.mxu0 0.0
    %3078 = vmatprep.subr.mxu0 0.0
    %3079 = vmatpush1.msra.mxu0 0.0
    %3080 = vmatprep.subr.mxu0 0.0
    %3081 = vmatpush1.msra.mxu0 0.0
    %3082 = vmatprep.subr.mxu0 0.0
    %3083 = vmatpush1.msra.mxu0 0.0
    %3084 = vmatprep.subr.mxu0 0.0
    %3085 = vmatpush1.msra.mxu0 0.0
    %3086 = vmatprep.subr.mxu0 0.0
    %3087 = vmatpush1.msra.mxu0 0.0
    %3088 = vmatprep.subr.mxu0 0.0
    %3089 = vmatpush1.msra.mxu0 0.0
    %3090 = vmatprep.subr.mxu0 0.0
    %3091 = vmatpush1.msra.mxu0 0.0
    %3092 = vmatprep.subr.mxu0 0.0
    %3093 = vmatpush1.msra.mxu0 0.0
    %3094 = vmatprep.mubr.f32.mxu0 0.0
    %3095 = vmatmul.mubr.f32.gmra.mrb[0].mxu0 %v201
    %v3096 = vpop.f32.mrb[0].mxu0
    %v3097 = vadd.f32 0.0, %v3096
    %v3098 = vpop.f32.mrb[0].mxu0
    %v3099 = vadd.f32 0.0, %v3098
    %3100 = vdwg.mxu0
    %3101 = vmatprep.subr.mxu0 %v2480
    %3102 = vmatpush1.msra.mxu0 %v2479
    %3103 = vmatprep.subr.mxu0 %v2496
    %3104 = vmatpush1.msra.mxu0 %v2495
    %3105 = vmatprep.subr.mxu0 %v2512
    %3106 = vmatpush1.msra.mxu0 %v2511
    %3107 = vmatprep.subr.mxu0 %v2528
    %3108 = vmatpush1.msra.mxu0 %v2527
    %3109 = vmatprep.subr.mxu0 %v2544
    %3110 = vmatpush1.msra.mxu0 %v2543
    %3111 = vmatprep.subr.mxu0 %v2560
    %3112 = vmatpush1.msra.mxu0 %v2559
    %3113 = vmatprep.subr.mxu0 %v2576
    %3114 = vmatpush1.msra.mxu0 %v2575
    %3115 = vmatprep.subr.mxu0 %v2592
    %3116 = vmatpush1.msra.mxu0 %v2591
    %3117 = vmatprep.subr.mxu0 %v2608
    %3118 = vmatpush1.msra.mxu0 %v2607
    %3119 = vmatprep.subr.mxu0 %v2667
    %3120 = vmatpush1.msra.mxu0 %v2664
    %3121 = vmatprep.subr.mxu0 0.0
    %3122 = vmatpush1.msra.mxu0 0.0
    %3123 = vmatprep.subr.mxu0 0.0
    %3124 = vmatpush1.msra.mxu0 0.0
    %3125 = vmatprep.subr.mxu0 0.0
    %3126 = vmatpush1.msra.mxu0 0.0
    %3127 = vmatprep.subr.mxu0 0.0
    %3128 = vmatpush1.msra.mxu0 0.0
    %3129 = vmatprep.subr.mxu0 0.0
    %3130 = vmatpush1.msra.mxu0 0.0
    %3131 = vmatprep.subr.mxu0 0.0
    %3132 = vmatpush1.msra.mxu0 0.0
    %3133 = vmatprep.subr.mxu0 0.0
    %3134 = vmatpush1.msra.mxu0 0.0
    %3135 = vmatprep.subr.mxu0 0.0
    %3136 = vmatpush1.msra.mxu0 0.0
    %3137 = vmatprep.subr.mxu0 0.0
    %3138 = vmatpush1.msra.mxu0 0.0
    %3139 = vmatprep.subr.mxu0 0.0
    %3140 = vmatpush1.msra.mxu0 0.0
    %3141 = vmatprep.subr.mxu0 0.0
    %3142 = vmatpush1.msra.mxu0 0.0
    %3143 = vmatprep.subr.mxu0 0.0
    %3144 = vmatpush1.msra.mxu0 0.0
    %3145 = vmatprep.subr.mxu0 0.0
    %3146 = vmatpush1.msra.mxu0 0.0
    %3147 = vmatprep.subr.mxu0 0.0
    %3148 = vmatpush1.msra.mxu0 0.0
    %3149 = vmatprep.subr.mxu0 0.0
    %3150 = vmatpush1.msra.mxu0 0.0
    %3151 = vmatprep.subr.mxu0 0.0
    %3152 = vmatpush1.msra.mxu0 0.0
    %3153 = vmatprep.subr.mxu0 0.0
    %3154 = vmatpush1.msra.mxu0 0.0
    %3155 = vmatprep.subr.mxu0 0.0
    %3156 = vmatpush1.msra.mxu0 0.0
    %3157 = vmatprep.subr.mxu0 0.0
    %3158 = vmatpush1.msra.mxu0 0.0
    %3159 = vmatprep.subr.mxu0 0.0
    %3160 = vmatpush1.msra.mxu0 0.0
    %3161 = vmatprep.subr.mxu0 0.0
    %3162 = vmatpush1.msra.mxu0 0.0
    %3163 = vmatprep.subr.mxu0 0.0
    %3164 = vmatpush1.msra.mxu0 0.0
    %3165 = vmatprep.mubr.f32.mxu0 0.0
    %3166 = vmatmul.mubr.f32.gmra.mrb[0].mxu0 %v201
    %v3167 = vpop.f32.mrb[0].mxu0
    %v3168 = vadd.f32 0.0, %v3167
    %v3169 = vpop.f32.mrb[0].mxu0
    %v3170 = vadd.f32 0.0, %v3169
    %3171 = vdwg.mxu0
    %3172 = vmatprep.subr.mxu0 %v2482
    %3173 = vmatpush1.msra.mxu0 %v2481
    %3174 = vmatprep.subr.mxu0 %v2498
    %3175 = vmatpush1.msra.mxu0 %v2497
    %3176 = vmatprep.subr.mxu0 %v2514
    %3177 = vmatpush1.msra.mxu0 %v2513
    %3178 = vmatprep.subr.mxu0 %v2530
    %3179 = vmatpush1.msra.mxu0 %v2529
    %3180 = vmatprep.subr.mxu0 %v2546
    %3181 = vmatpush1.msra.mxu0 %v2545
    %3182 = vmatprep.subr.mxu0 %v2562
    %3183 = vmatpush1.msra.mxu0 %v2561
    %3184 = vmatprep.subr.mxu0 %v2578
    %3185 = vmatpush1.msra.mxu0 %v2577
    %3186 = vmatprep.subr.mxu0 %v2594
    %3187 = vmatpush1.msra.mxu0 %v2593
    %3188 = vmatprep.subr.mxu0 %v2610
    %3189 = vmatpush1.msra.mxu0 %v2609
    %3190 = vmatprep.subr.mxu0 %v2673
    %3191 = vmatpush1.msra.mxu0 %v2670
    %3192 = vmatprep.subr.mxu0 0.0
    %3193 = vmatpush1.msra.mxu0 0.0
    %3194 = vmatprep.subr.mxu0 0.0
    %3195 = vmatpush1.msra.mxu0 0.0
    %3196 = vmatprep.subr.mxu0 0.0
    %3197 = vmatpush1.msra.mxu0 0.0
    %3198 = vmatprep.subr.mxu0 0.0
    %3199 = vmatpush1.msra.mxu0 0.0
    %3200 = vmatprep.subr.mxu0 0.0
    %3201 = vmatpush1.msra.mxu0 0.0
    %3202 = vmatprep.subr.mxu0 0.0
    %3203 = vmatpush1.msra.mxu0 0.0
    %3204 = vmatprep.subr.mxu0 0.0
    %3205 = vmatpush1.msra.mxu0 0.0
    %3206 = vmatprep.subr.mxu0 0.0
    %3207 = vmatpush1.msra.mxu0 0.0
    %3208 = vmatprep.subr.mxu0 0.0
    %3209 = vmatpush1.msra.mxu0 0.0
    %3210 = vmatprep.subr.mxu0 0.0
    %3211 = vmatpush1.msra.mxu0 0.0
    %3212 = vmatprep.subr.mxu0 0.0
    %3213 = vmatpush1.msra.mxu0 0.0
    %3214 = vmatprep.subr.mxu0 0.0
    %3215 = vmatpush1.msra.mxu0 0.0
    %3216 = vmatprep.subr.mxu0 0.0
    %3217 = vmatpush1.msra.mxu0 0.0
    %3218 = vmatprep.subr.mxu0 0.0
    %3219 = vmatpush1.msra.mxu0 0.0
    %3220 = vmatprep.subr.mxu0 0.0
    %3221 = vmatpush1.msra.mxu0 0.0
    %3222 = vmatprep.subr.mxu0 0.0
    %3223 = vmatpush1.msra.mxu0 0.0
    %3224 = vmatprep.subr.mxu0 0.0
    %3225 = vmatpush1.msra.mxu0 0.0
    %3226 = vmatprep.subr.mxu0 0.0
    %3227 = vmatpush1.msra.mxu0 0.0
    %3228 = vmatprep.subr.mxu0 0.0
    %3229 = vmatpush1.msra.mxu0 0.0
    %3230 = vmatprep.subr.mxu0 0.0
    %3231 = vmatpush1.msra.mxu0 0.0
    %3232 = vmatprep.subr.mxu0 0.0
    %3233 = vmatpush1.msra.mxu0 0.0
    %3234 = vmatprep.subr.mxu0 0.0
    %3235 = vmatpush1.msra.mxu0 0.0
    %3236 = vmatprep.mubr.f32.mxu0 0.0
    %3237 = vmatmul.mubr.f32.gmra.mrb[0].mxu0 %v201
    %v3238 = vpop.f32.mrb[0].mxu0
    %v3239 = vadd.f32 0.0, %v3238
    %v3240 = vpop.f32.mrb[0].mxu0
    %v3241 = vadd.f32 0.0, %v3240
    %3242 = vdwg.mxu0
    %s3243 = scalar_lea.vmem [#allocation2], 384
    %3244 = vst [vmem:[%s3243] sm:$0xff] %v2742
    %s3245 = scalar_lea.vmem [#allocation2], 392
    %3246 = vst [vmem:[%s3245] sm:$0xff] %v2744
    %s3247 = scalar_lea.vmem [#allocation2], 400
    %3248 = vst [vmem:[%s3247] sm:$0xff] %v2813
    %s3249 = scalar_lea.vmem [#allocation2], 408
    %3250 = vst [vmem:[%s3249] sm:$0xff] %v2815
    %s3251 = scalar_lea.vmem [#allocation2], 416
    %3252 = vst [vmem:[%s3251] sm:$0xff] %v2884
    %s3253 = scalar_lea.vmem [#allocation2], 424
    %3254 = vst [vmem:[%s3253] sm:$0xff] %v2886
    %s3255 = scalar_lea.vmem [#allocation2], 432
    %3256 = vst [vmem:[%s3255] sm:$0xff] %v2955
    %s3257 = scalar_lea.vmem [#allocation2], 440
    %3258 = vst [vmem:[%s3257] sm:$0xff] %v2957
    %s3259 = scalar_lea.vmem [#allocation2], 448
    %3260 = vst [vmem:[%s3259] sm:$0xff] %v3026
    %s3261 = scalar_lea.vmem [#allocation2], 456
    %3262 = vst [vmem:[%s3261] sm:$0xff] %v3028
    %s3263 = scalar_lea.vmem [#allocation2], 464
    %3264 = vst [vmem:[%s3263] sm:$0xff] %v3097
    %s3265 = scalar_lea.vmem [#allocation2], 472
    %3266 = vst [vmem:[%s3265] sm:$0xff] %v3099
    %s3267 = scalar_lea.vmem [#allocation2], 480
    %3268 = vst [vmem:[%s3267] sm:$0xff] %v3168
    %s3269 = scalar_lea.vmem [#allocation2], 488
    %3270 = vst [vmem:[%s3269] sm:$0xff] %v3170
    %s3271 = scalar_lea.vmem [#allocation2], 496
    %3272 = vst [vmem:[%s3271] sm:$0xff] %v3239
    %s3273 = scalar_lea.vmem [#allocation2], 504
    %3274 = vst [vmem:[%s3273] sm:$0xff] %v3241
    %v3275 = vld [vmem:[#allocation6 + $0x200] sm:$0xff]
    %v3276 = vld [vmem:[#allocation6 + $0x208] sm:$0xff]
    %v3277 = vld [vmem:[#allocation6 + $0x210] sm:$0xff]
    %v3278 = vld [vmem:[#allocation6 + $0x218] sm:$0xff]
    %v3279 = vld [vmem:[#allocation6 + $0x220] sm:$0xff]
    %v3280 = vld [vmem:[#allocation6 + $0x228] sm:$0xff]
    %v3281 = vld [vmem:[#allocation6 + $0x230] sm:$0xff]
    %v3282 = vld [vmem:[#allocation6 + $0x238] sm:$0xff]
    %v3283 = vld [vmem:[#allocation6 + $0x240] sm:$0xff]
    %v3284 = vld [vmem:[#allocation6 + $0x248] sm:$0xff]
    %v3285 = vld [vmem:[#allocation6 + $0x250] sm:$0xff]
    %v3286 = vld [vmem:[#allocation6 + $0x258] sm:$0xff]
    %v3287 = vld [vmem:[#allocation6 + $0x260] sm:$0xff]
    %v3288 = vld [vmem:[#allocation6 + $0x268] sm:$0xff]
    %v3289 = vld [vmem:[#allocation6 + $0x270] sm:$0xff]
    %v3290 = vld [vmem:[#allocation6 + $0x278] sm:$0xff]
    %v3291 = vld [vmem:[#allocation6 + $0x480] sm:$0xff]
    %v3292 = vld [vmem:[#allocation6 + $0x488] sm:$0xff]
    %v3293 = vld [vmem:[#allocation6 + $0x490] sm:$0xff]
    %v3294 = vld [vmem:[#allocation6 + $0x498] sm:$0xff]
    %v3295 = vld [vmem:[#allocation6 + $0x4a0] sm:$0xff]
    %v3296 = vld [vmem:[#allocation6 + $0x4a8] sm:$0xff]
    %v3297 = vld [vmem:[#allocation6 + $0x4b0] sm:$0xff]
    %v3298 = vld [vmem:[#allocation6 + $0x4b8] sm:$0xff]
    %v3299 = vld [vmem:[#allocation6 + $0x4c0] sm:$0xff]
    %v3300 = vld [vmem:[#allocation6 + $0x4c8] sm:$0xff]
    %v3301 = vld [vmem:[#allocation6 + $0x4d0] sm:$0xff]
    %v3302 = vld [vmem:[#allocation6 + $0x4d8] sm:$0xff]
    %v3303 = vld [vmem:[#allocation6 + $0x4e0] sm:$0xff]
    %v3304 = vld [vmem:[#allocation6 + $0x4e8] sm:$0xff]
    %v3305 = vld [vmem:[#allocation6 + $0x4f0] sm:$0xff]
    %v3306 = vld [vmem:[#allocation6 + $0x4f8] sm:$0xff]
    %v3307 = vld [vmem:[#allocation6 + $0x700] sm:$0xff]
    %v3308 = vld [vmem:[#allocation6 + $0x708] sm:$0xff]
    %v3309 = vld [vmem:[#allocation6 + $0x710] sm:$0xff]
    %v3310 = vld [vmem:[#allocation6 + $0x718] sm:$0xff]
    %v3311 = vld [vmem:[#allocation6 + $0x720] sm:$0xff]
    %v3312 = vld [vmem:[#allocation6 + $0x728] sm:$0xff]
    %v3313 = vld [vmem:[#allocation6 + $0x730] sm:$0xff]
    %v3314 = vld [vmem:[#allocation6 + $0x738] sm:$0xff]
    %v3315 = vld [vmem:[#allocation6 + $0x740] sm:$0xff]
    %v3316 = vld [vmem:[#allocation6 + $0x748] sm:$0xff]
    %v3317 = vld [vmem:[#allocation6 + $0x750] sm:$0xff]
    %v3318 = vld [vmem:[#allocation6 + $0x758] sm:$0xff]
    %v3319 = vld [vmem:[#allocation6 + $0x760] sm:$0xff]
    %v3320 = vld [vmem:[#allocation6 + $0x768] sm:$0xff]
    %v3321 = vld [vmem:[#allocation6 + $0x770] sm:$0xff]
    %v3322 = vld [vmem:[#allocation6 + $0x778] sm:$0xff]
    %v3323 = vld [vmem:[#allocation6 + $0x980] sm:$0xff]
    %v3324 = vld [vmem:[#allocation6 + $0x988] sm:$0xff]
    %v3325 = vld [vmem:[#allocation6 + $0x990] sm:$0xff]
    %v3326 = vld [vmem:[#allocation6 + $0x998] sm:$0xff]
    %v3327 = vld [vmem:[#allocation6 + $0x9a0] sm:$0xff]
    %v3328 = vld [vmem:[#allocation6 + $0x9a8] sm:$0xff]
    %v3329 = vld [vmem:[#allocation6 + $0x9b0] sm:$0xff]
    %v3330 = vld [vmem:[#allocation6 + $0x9b8] sm:$0xff]
    %v3331 = vld [vmem:[#allocation6 + $0x9c0] sm:$0xff]
    %v3332 = vld [vmem:[#allocation6 + $0x9c8] sm:$0xff]
    %v3333 = vld [vmem:[#allocation6 + $0x9d0] sm:$0xff]
    %v3334 = vld [vmem:[#allocation6 + $0x9d8] sm:$0xff]
    %v3335 = vld [vmem:[#allocation6 + $0x9e0] sm:$0xff]
    %v3336 = vld [vmem:[#allocation6 + $0x9e8] sm:$0xff]
    %v3337 = vld [vmem:[#allocation6 + $0x9f0] sm:$0xff]
    %v3338 = vld [vmem:[#allocation6 + $0x9f8] sm:$0xff]
    %v3339 = vld [vmem:[#allocation6 + $0xc00] sm:$0xff]
    %v3340 = vld [vmem:[#allocation6 + $0xc08] sm:$0xff]
    %v3341 = vld [vmem:[#allocation6 + $0xc10] sm:$0xff]
    %v3342 = vld [vmem:[#allocation6 + $0xc18] sm:$0xff]
    %v3343 = vld [vmem:[#allocation6 + $0xc20] sm:$0xff]
    %v3344 = vld [vmem:[#allocation6 + $0xc28] sm:$0xff]
    %v3345 = vld [vmem:[#allocation6 + $0xc30] sm:$0xff]
    %v3346 = vld [vmem:[#allocation6 + $0xc38] sm:$0xff]
    %v3347 = vld [vmem:[#allocation6 + $0xc40] sm:$0xff]
    %v3348 = vld [vmem:[#allocation6 + $0xc48] sm:$0xff]
    %v3349 = vld [vmem:[#allocation6 + $0xc50] sm:$0xff]
    %v3350 = vld [vmem:[#allocation6 + $0xc58] sm:$0xff]
    %v3351 = vld [vmem:[#allocation6 + $0xc60] sm:$0xff]
    %v3352 = vld [vmem:[#allocation6 + $0xc68] sm:$0xff]
    %v3353 = vld [vmem:[#allocation6 + $0xc70] sm:$0xff]
    %v3354 = vld [vmem:[#allocation6 + $0xc78] sm:$0xff]
    %v3355 = vld [vmem:[#allocation6 + $0xe80] sm:$0xff]
    %v3356 = vld [vmem:[#allocation6 + $0xe88] sm:$0xff]
    %v3357 = vld [vmem:[#allocation6 + $0xe90] sm:$0xff]
    %v3358 = vld [vmem:[#allocation6 + $0xe98] sm:$0xff]
    %v3359 = vld [vmem:[#allocation6 + $0xea0] sm:$0xff]
    %v3360 = vld [vmem:[#allocation6 + $0xea8] sm:$0xff]
    %v3361 = vld [vmem:[#allocation6 + $0xeb0] sm:$0xff]
    %v3362 = vld [vmem:[#allocation6 + $0xeb8] sm:$0xff]
    %v3363 = vld [vmem:[#allocation6 + $0xec0] sm:$0xff]
    %v3364 = vld [vmem:[#allocation6 + $0xec8] sm:$0xff]
    %v3365 = vld [vmem:[#allocation6 + $0xed0] sm:$0xff]
    %v3366 = vld [vmem:[#allocation6 + $0xed8] sm:$0xff]
    %v3367 = vld [vmem:[#allocation6 + $0xee0] sm:$0xff]
    %v3368 = vld [vmem:[#allocation6 + $0xee8] sm:$0xff]
    %v3369 = vld [vmem:[#allocation6 + $0xef0] sm:$0xff]
    %v3370 = vld [vmem:[#allocation6 + $0xef8] sm:$0xff]
    %v3371 = vld [vmem:[#allocation6 + $0x1100] sm:$0xff]
    %v3372 = vld [vmem:[#allocation6 + $0x1108] sm:$0xff]
    %v3373 = vld [vmem:[#allocation6 + $0x1110] sm:$0xff]
    %v3374 = vld [vmem:[#allocation6 + $0x1118] sm:$0xff]
    %v3375 = vld [vmem:[#allocation6 + $0x1120] sm:$0xff]
    %v3376 = vld [vmem:[#allocation6 + $0x1128] sm:$0xff]
    %v3377 = vld [vmem:[#allocation6 + $0x1130] sm:$0xff]
    %v3378 = vld [vmem:[#allocation6 + $0x1138] sm:$0xff]
    %v3379 = vld [vmem:[#allocation6 + $0x1140] sm:$0xff]
    %v3380 = vld [vmem:[#allocation6 + $0x1148] sm:$0xff]
    %v3381 = vld [vmem:[#allocation6 + $0x1150] sm:$0xff]
    %v3382 = vld [vmem:[#allocation6 + $0x1158] sm:$0xff]
    %v3383 = vld [vmem:[#allocation6 + $0x1160] sm:$0xff]
    %v3384 = vld [vmem:[#allocation6 + $0x1168] sm:$0xff]
    %v3385 = vld [vmem:[#allocation6 + $0x1170] sm:$0xff]
    %v3386 = vld [vmem:[#allocation6 + $0x1178] sm:$0xff]
    %v3387 = vld [vmem:[#allocation6 + $0x1380] sm:$0xff]
    %v3388 = vld [vmem:[#allocation6 + $0x1388] sm:$0xff]
    %v3389 = vld [vmem:[#allocation6 + $0x1390] sm:$0xff]
    %v3390 = vld [vmem:[#allocation6 + $0x1398] sm:$0xff]
    %v3391 = vld [vmem:[#allocation6 + $0x13a0] sm:$0xff]
    %v3392 = vld [vmem:[#allocation6 + $0x13a8] sm:$0xff]
    %v3393 = vld [vmem:[#allocation6 + $0x13b0] sm:$0xff]
    %v3394 = vld [vmem:[#allocation6 + $0x13b8] sm:$0xff]
    %v3395 = vld [vmem:[#allocation6 + $0x13c0] sm:$0xff]
    %v3396 = vld [vmem:[#allocation6 + $0x13c8] sm:$0xff]
    %v3397 = vld [vmem:[#allocation6 + $0x13d0] sm:$0xff]
    %v3398 = vld [vmem:[#allocation6 + $0x13d8] sm:$0xff]
    %v3399 = vld [vmem:[#allocation6 + $0x13e0] sm:$0xff]
    %v3400 = vld [vmem:[#allocation6 + $0x13e8] sm:$0xff]
    %v3401 = vld [vmem:[#allocation6 + $0x13f0] sm:$0xff]
    %v3402 = vld [vmem:[#allocation6 + $0x13f8] sm:$0xff]
    %v3403 = vld [vmem:[#allocation6 + $0x1600] sm:$0xff]
    %v3404 = vld [vmem:[#allocation6 + $0x1608] sm:$0xff]
    %v3405 = vld [vmem:[#allocation6 + $0x1610] sm:$0xff]
    %v3406 = vld [vmem:[#allocation6 + $0x1618] sm:$0xff]
    %v3407 = vld [vmem:[#allocation6 + $0x1620] sm:$0xff]
    %v3408 = vld [vmem:[#allocation6 + $0x1628] sm:$0xff]
    %v3409 = vld [vmem:[#allocation6 + $0x1630] sm:$0xff]
    %v3410 = vld [vmem:[#allocation6 + $0x1638] sm:$0xff]
    %v3411 = vld [vmem:[#allocation6 + $0x1640] sm:$0xff]
    %v3412 = vld [vmem:[#allocation6 + $0x1648] sm:$0xff]
    %v3413 = vld [vmem:[#allocation6 + $0x1650] sm:$0xff]
    %v3414 = vld [vmem:[#allocation6 + $0x1658] sm:$0xff]
    %v3415 = vld [vmem:[#allocation6 + $0x1660] sm:$0xff]
    %v3416 = vld [vmem:[#allocation6 + $0x1668] sm:$0xff]
    %v3417 = vld [vmem:[#allocation6 + $0x1670] sm:$0xff]
    %v3418 = vld [vmem:[#allocation6 + $0x1678] sm:$0xff]
    %v3419 = vld [vmem:[#allocation6 + $0x1880] sm:$0x7]
    %v3420 = vld [vmem:[#allocation6 + $0x1888] sm:$0x7]
    %v3421 = vld [vmem:[#allocation6 + $0x1890] sm:$0x7]
    %v3422 = vld [vmem:[#allocation6 + $0x1898] sm:$0x7]
    %v3423 = vld [vmem:[#allocation6 + $0x18a0] sm:$0x7]
    %v3424 = vld [vmem:[#allocation6 + $0x18a8] sm:$0x7]
    %v3425 = vld [vmem:[#allocation6 + $0x18b0] sm:$0x7]
    %v3426 = vld [vmem:[#allocation6 + $0x18b8] sm:$0x7]
    %v3427 = vld [vmem:[#allocation6 + $0x18c0] sm:$0x7]
    %v3428 = vld [vmem:[#allocation6 + $0x18c8] sm:$0x7]
    %v3429 = vld [vmem:[#allocation6 + $0x18d0] sm:$0x7]
    %v3430 = vld [vmem:[#allocation6 + $0x18d8] sm:$0x7]
    %v3431 = vld [vmem:[#allocation6 + $0x18e0] sm:$0x7]
    %v3432 = vld [vmem:[#allocation6 + $0x18e8] sm:$0x7]
    %v3433 = vld [vmem:[#allocation6 + $0x18f0] sm:$0x7]
    %v3434 = vld [vmem:[#allocation6 + $0x18f8] sm:$0x7]
    %v3436 = vsel %vm203, %v3419, 0
    %v3439 = vsel %vm203, %v3420, 0
    %v3442 = vsel %vm203, %v3421, 0
    %v3445 = vsel %vm203, %v3422, 0
    %v3448 = vsel %vm203, %v3423, 0
    %v3451 = vsel %vm203, %v3424, 0
    %v3454 = vsel %vm203, %v3425, 0
    %v3457 = vsel %vm203, %v3426, 0
    %v3460 = vsel %vm203, %v3427, 0
    %v3463 = vsel %vm203, %v3428, 0
    %v3466 = vsel %vm203, %v3429, 0
    %v3469 = vsel %vm203, %v3430, 0
    %v3472 = vsel %vm203, %v3431, 0
    %v3475 = vsel %vm203, %v3432, 0
    %v3478 = vsel %vm203, %v3433, 0
    %v3481 = vsel %vm203, %v3434, 0
    %3483 = vmatprep.subr.mxu0 %v3276
    %3484 = vmatpush1.msra.mxu0 %v3275
    %3485 = vmatprep.subr.mxu0 %v3292
    %3486 = vmatpush1.msra.mxu0 %v3291
    %3487 = vmatprep.subr.mxu0 %v3308
    %3488 = vmatpush1.msra.mxu0 %v3307
    %3489 = vmatprep.subr.mxu0 %v3324
    %3490 = vmatpush1.msra.mxu0 %v3323
    %3491 = vmatprep.subr.mxu0 %v3340
    %3492 = vmatpush1.msra.mxu0 %v3339
    %3493 = vmatprep.subr.mxu0 %v3356
    %3494 = vmatpush1.msra.mxu0 %v3355
    %3495 = vmatprep.subr.mxu0 %v3372
    %3496 = vmatpush1.msra.mxu0 %v3371
    %3497 = vmatprep.subr.mxu0 %v3388
    %3498 = vmatpush1.msra.mxu0 %v3387
    %3499 = vmatprep.subr.mxu0 %v3404
    %3500 = vmatpush1.msra.mxu0 %v3403
    %3501 = vmatprep.subr.mxu0 %v3439
    %3502 = vmatpush1.msra.mxu0 %v3436
    %3503 = vmatprep.subr.mxu0 0.0
    %3504 = vmatpush1.msra.mxu0 0.0
    %3505 = vmatprep.subr.mxu0 0.0
    %3506 = vmatpush1.msra.mxu0 0.0
    %3507 = vmatprep.subr.mxu0 0.0
    %3508 = vmatpush1.msra.mxu0 0.0
    %3509 = vmatprep.subr.mxu0 0.0
    %3510 = vmatpush1.msra.mxu0 0.0
    %3511 = vmatprep.subr.mxu0 0.0
    %3512 = vmatpush1.msra.mxu0 0.0
    %3513 = vmatprep.subr.mxu0 0.0
    %3514 = vmatpush1.msra.mxu0 0.0
    %3515 = vmatprep.subr.mxu0 0.0
    %3516 = vmatpush1.msra.mxu0 0.0
    %3517 = vmatprep.subr.mxu0 0.0
    %3518 = vmatpush1.msra.mxu0 0.0
    %3519 = vmatprep.subr.mxu0 0.0
    %3520 = vmatpush1.msra.mxu0 0.0
    %3521 = vmatprep.subr.mxu0 0.0
    %3522 = vmatpush1.msra.mxu0 0.0
    %3523 = vmatprep.subr.mxu0 0.0
    %3524 = vmatpush1.msra.mxu0 0.0
    %3525 = vmatprep.subr.mxu0 0.0
    %3526 = vmatpush1.msra.mxu0 0.0
    %3527 = vmatprep.subr.mxu0 0.0
    %3528 = vmatpush1.msra.mxu0 0.0
    %3529 = vmatprep.subr.mxu0 0.0
    %3530 = vmatpush1.msra.mxu0 0.0
    %3531 = vmatprep.subr.mxu0 0.0
    %3532 = vmatpush1.msra.mxu0 0.0
    %3533 = vmatprep.subr.mxu0 0.0
    %3534 = vmatpush1.msra.mxu0 0.0
    %3535 = vmatprep.subr.mxu0 0.0
    %3536 = vmatpush1.msra.mxu0 0.0
    %3537 = vmatprep.subr.mxu0 0.0
    %3538 = vmatpush1.msra.mxu0 0.0
    %3539 = vmatprep.subr.mxu0 0.0
    %3540 = vmatpush1.msra.mxu0 0.0
    %3541 = vmatprep.subr.mxu0 0.0
    %3542 = vmatpush1.msra.mxu0 0.0
    %3543 = vmatprep.subr.mxu0 0.0
    %3544 = vmatpush1.msra.mxu0 0.0
    %3545 = vmatprep.subr.mxu0 0.0
    %3546 = vmatpush1.msra.mxu0 0.0
    %3547 = vmatprep.mubr.f32.mxu0 0.0
    %3548 = vmatmul.mubr.f32.gmra.mrb[0].mxu0 %v201
    %v3549 = vpop.f32.mrb[0].mxu0
    %v3550 = vadd.f32 0.0, %v3549
    %v3551 = vpop.f32.mrb[0].mxu0
    %v3552 = vadd.f32 0.0, %v3551
    %3553 = vdwg.mxu0
    %3554 = vmatprep.subr.mxu0 %v3278
    %3555 = vmatpush1.msra.mxu0 %v3277
    %3556 = vmatprep.subr.mxu0 %v3294
    %3557 = vmatpush1.msra.mxu0 %v3293
    %3558 = vmatprep.subr.mxu0 %v3310
    %3559 = vmatpush1.msra.mxu0 %v3309
    %3560 = vmatprep.subr.mxu0 %v3326
    %3561 = vmatpush1.msra.mxu0 %v3325
    %3562 = vmatprep.subr.mxu0 %v3342
    %3563 = vmatpush1.msra.mxu0 %v3341
    %3564 = vmatprep.subr.mxu0 %v3358
    %3565 = vmatpush1.msra.mxu0 %v3357
    %3566 = vmatprep.subr.mxu0 %v3374
    %3567 = vmatpush1.msra.mxu0 %v3373
    %3568 = vmatprep.subr.mxu0 %v3390
    %3569 = vmatpush1.msra.mxu0 %v3389
    %3570 = vmatprep.subr.mxu0 %v3406
    %3571 = vmatpush1.msra.mxu0 %v3405
    %3572 = vmatprep.subr.mxu0 %v3445
    %3573 = vmatpush1.msra.mxu0 %v3442
    %3574 = vmatprep.subr.mxu0 0.0
    %3575 = vmatpush1.msra.mxu0 0.0
    %3576 = vmatprep.subr.mxu0 0.0
    %3577 = vmatpush1.msra.mxu0 0.0
    %3578 = vmatprep.subr.mxu0 0.0
    %3579 = vmatpush1.msra.mxu0 0.0
    %3580 = vmatprep.subr.mxu0 0.0
    %3581 = vmatpush1.msra.mxu0 0.0
    %3582 = vmatprep.subr.mxu0 0.0
    %3583 = vmatpush1.msra.mxu0 0.0
    %3584 = vmatprep.subr.mxu0 0.0
    %3585 = vmatpush1.msra.mxu0 0.0
    %3586 = vmatprep.subr.mxu0 0.0
    %3587 = vmatpush1.msra.mxu0 0.0
    %3588 = vmatprep.subr.mxu0 0.0
    %3589 = vmatpush1.msra.mxu0 0.0
    %3590 = vmatprep.subr.mxu0 0.0
    %3591 = vmatpush1.msra.mxu0 0.0
    %3592 = vmatprep.subr.mxu0 0.0
    %3593 = vmatpush1.msra.mxu0 0.0
    %3594 = vmatprep.subr.mxu0 0.0
    %3595 = vmatpush1.msra.mxu0 0.0
    %3596 = vmatprep.subr.mxu0 0.0
    %3597 = vmatpush1.msra.mxu0 0.0
    %3598 = vmatprep.subr.mxu0 0.0
    %3599 = vmatpush1.msra.mxu0 0.0
    %3600 = vmatprep.subr.mxu0 0.0
    %3601 = vmatpush1.msra.mxu0 0.0
    %3602 = vmatprep.subr.mxu0 0.0
    %3603 = vmatpush1.msra.mxu0 0.0
    %3604 = vmatprep.subr.mxu0 0.0
    %3605 = vmatpush1.msra.mxu0 0.0
    %3606 = vmatprep.subr.mxu0 0.0
    %3607 = vmatpush1.msra.mxu0 0.0
    %3608 = vmatprep.subr.mxu0 0.0
    %3609 = vmatpush1.msra.mxu0 0.0
    %3610 = vmatprep.subr.mxu0 0.0
    %3611 = vmatpush1.msra.mxu0 0.0
    %3612 = vmatprep.subr.mxu0 0.0
    %3613 = vmatpush1.msra.mxu0 0.0
    %3614 = vmatprep.subr.mxu0 0.0
    %3615 = vmatpush1.msra.mxu0 0.0
    %3616 = vmatprep.subr.mxu0 0.0
    %3617 = vmatpush1.msra.mxu0 0.0
    %3618 = vmatprep.mubr.f32.mxu0 0.0
    %3619 = vmatmul.mubr.f32.gmra.mrb[0].mxu0 %v201
    %v3620 = vpop.f32.mrb[0].mxu0
    %v3621 = vadd.f32 0.0, %v3620
    %v3622 = vpop.f32.mrb[0].mxu0
    %v3623 = vadd.f32 0.0, %v3622
    %3624 = vdwg.mxu0
    %3625 = vmatprep.subr.mxu0 %v3280
    %3626 = vmatpush1.msra.mxu0 %v3279
    %3627 = vmatprep.subr.mxu0 %v3296
    %3628 = vmatpush1.msra.mxu0 %v3295
    %3629 = vmatprep.subr.mxu0 %v3312
    %3630 = vmatpush1.msra.mxu0 %v3311
    %3631 = vmatprep.subr.mxu0 %v3328
    %3632 = vmatpush1.msra.mxu0 %v3327
    %3633 = vmatprep.subr.mxu0 %v3344
    %3634 = vmatpush1.msra.mxu0 %v3343
    %3635 = vmatprep.subr.mxu0 %v3360
    %3636 = vmatpush1.msra.mxu0 %v3359
    %3637 = vmatprep.subr.mxu0 %v3376
    %3638 = vmatpush1.msra.mxu0 %v3375
    %3639 = vmatprep.subr.mxu0 %v3392
    %3640 = vmatpush1.msra.mxu0 %v3391
    %3641 = vmatprep.subr.mxu0 %v3408
    %3642 = vmatpush1.msra.mxu0 %v3407
    %3643 = vmatprep.subr.mxu0 %v3451
    %3644 = vmatpush1.msra.mxu0 %v3448
    %3645 = vmatprep.subr.mxu0 0.0
    %3646 = vmatpush1.msra.mxu0 0.0
    %3647 = vmatprep.subr.mxu0 0.0
    %3648 = vmatpush1.msra.mxu0 0.0
    %3649 = vmatprep.subr.mxu0 0.0
    %3650 = vmatpush1.msra.mxu0 0.0
    %3651 = vmatprep.subr.mxu0 0.0
    %3652 = vmatpush1.msra.mxu0 0.0
    %3653 = vmatprep.subr.mxu0 0.0
    %3654 = vmatpush1.msra.mxu0 0.0
    %3655 = vmatprep.subr.mxu0 0.0
    %3656 = vmatpush1.msra.mxu0 0.0
    %3657 = vmatprep.subr.mxu0 0.0
    %3658 = vmatpush1.msra.mxu0 0.0
    %3659 = vmatprep.subr.mxu0 0.0
    %3660 = vmatpush1.msra.mxu0 0.0
    %3661 = vmatprep.subr.mxu0 0.0
    %3662 = vmatpush1.msra.mxu0 0.0
    %3663 = vmatprep.subr.mxu0 0.0
    %3664 = vmatpush1.msra.mxu0 0.0
    %3665 = vmatprep.subr.mxu0 0.0
    %3666 = vmatpush1.msra.mxu0 0.0
    %3667 = vmatprep.subr.mxu0 0.0
    %3668 = vmatpush1.msra.mxu0 0.0
    %3669 = vmatprep.subr.mxu0 0.0
    %3670 = vmatpush1.msra.mxu0 0.0
    %3671 = vmatprep.subr.mxu0 0.0
    %3672 = vmatpush1.msra.mxu0 0.0
    %3673 = vmatprep.subr.mxu0 0.0
    %3674 = vmatpush1.msra.mxu0 0.0
    %3675 = vmatprep.subr.mxu0 0.0
    %3676 = vmatpush1.msra.mxu0 0.0
    %3677 = vmatprep.subr.mxu0 0.0
    %3678 = vmatpush1.msra.mxu0 0.0
    %3679 = vmatprep.subr.mxu0 0.0
    %3680 = vmatpush1.msra.mxu0 0.0
    %3681 = vmatprep.subr.mxu0 0.0
    %3682 = vmatpush1.msra.mxu0 0.0
    %3683 = vmatprep.subr.mxu0 0.0
    %3684 = vmatpush1.msra.mxu0 0.0
    %3685 = vmatprep.subr.mxu0 0.0
    %3686 = vmatpush1.msra.mxu0 0.0
    %3687 = vmatprep.subr.mxu0 0.0
    %3688 = vmatpush1.msra.mxu0 0.0
    %3689 = vmatprep.mubr.f32.mxu0 0.0
    %3690 = vmatmul.mubr.f32.gmra.mrb[0].mxu0 %v201
    %v3691 = vpop.f32.mrb[0].mxu0
    %v3692 = vadd.f32 0.0, %v3691
    %v3693 = vpop.f32.mrb[0].mxu0
    %v3694 = vadd.f32 0.0, %v3693
    %3695 = vdwg.mxu0
    %3696 = vmatprep.subr.mxu0 %v3282
    %3697 = vmatpush1.msra.mxu0 %v3281
    %3698 = vmatprep.subr.mxu0 %v3298
    %3699 = vmatpush1.msra.mxu0 %v3297
    %3700 = vmatprep.subr.mxu0 %v3314
    %3701 = vmatpush1.msra.mxu0 %v3313
    %3702 = vmatprep.subr.mxu0 %v3330
    %3703 = vmatpush1.msra.mxu0 %v3329
    %3704 = vmatprep.subr.mxu0 %v3346
    %3705 = vmatpush1.msra.mxu0 %v3345
    %3706 = vmatprep.subr.mxu0 %v3362
    %3707 = vmatpush1.msra.mxu0 %v3361
    %3708 = vmatprep.subr.mxu0 %v3378
    %3709 = vmatpush1.msra.mxu0 %v3377
    %3710 = vmatprep.subr.mxu0 %v3394
    %3711 = vmatpush1.msra.mxu0 %v3393
    %3712 = vmatprep.subr.mxu0 %v3410
    %3713 = vmatpush1.msra.mxu0 %v3409
    %3714 = vmatprep.subr.mxu0 %v3457
    %3715 = vmatpush1.msra.mxu0 %v3454
    %3716 = vmatprep.subr.mxu0 0.0
    %3717 = vmatpush1.msra.mxu0 0.0
    %3718 = vmatprep.subr.mxu0 0.0
    %3719 = vmatpush1.msra.mxu0 0.0
    %3720 = vmatprep.subr.mxu0 0.0
    %3721 = vmatpush1.msra.mxu0 0.0
    %3722 = vmatprep.subr.mxu0 0.0
    %3723 = vmatpush1.msra.mxu0 0.0
    %3724 = vmatprep.subr.mxu0 0.0
    %3725 = vmatpush1.msra.mxu0 0.0
    %3726 = vmatprep.subr.mxu0 0.0
    %3727 = vmatpush1.msra.mxu0 0.0
    %3728 = vmatprep.subr.mxu0 0.0
    %3729 = vmatpush1.msra.mxu0 0.0
    %3730 = vmatprep.subr.mxu0 0.0
    %3731 = vmatpush1.msra.mxu0 0.0
    %3732 = vmatprep.subr.mxu0 0.0
    %3733 = vmatpush1.msra.mxu0 0.0
    %3734 = vmatprep.subr.mxu0 0.0
    %3735 = vmatpush1.msra.mxu0 0.0
    %3736 = vmatprep.subr.mxu0 0.0
    %3737 = vmatpush1.msra.mxu0 0.0
    %3738 = vmatprep.subr.mxu0 0.0
    %3739 = vmatpush1.msra.mxu0 0.0
    %3740 = vmatprep.subr.mxu0 0.0
    %3741 = vmatpush1.msra.mxu0 0.0
    %3742 = vmatprep.subr.mxu0 0.0
    %3743 = vmatpush1.msra.mxu0 0.0
    %3744 = vmatprep.subr.mxu0 0.0
    %3745 = vmatpush1.msra.mxu0 0.0
    %3746 = vmatprep.subr.mxu0 0.0
    %3747 = vmatpush1.msra.mxu0 0.0
    %3748 = vmatprep.subr.mxu0 0.0
    %3749 = vmatpush1.msra.mxu0 0.0
    %3750 = vmatprep.subr.mxu0 0.0
    %3751 = vmatpush1.msra.mxu0 0.0
    %3752 = vmatprep.subr.mxu0 0.0
    %3753 = vmatpush1.msra.mxu0 0.0
    %3754 = vmatprep.subr.mxu0 0.0
    %3755 = vmatpush1.msra.mxu0 0.0
    %3756 = vmatprep.subr.mxu0 0.0
    %3757 = vmatpush1.msra.mxu0 0.0
    %3758 = vmatprep.subr.mxu0 0.0
    %3759 = vmatpush1.msra.mxu0 0.0
    %3760 = vmatprep.mubr.f32.mxu0 0.0
    %3761 = vmatmul.mubr.f32.gmra.mrb[0].mxu0 %v201
    %v3762 = vpop.f32.mrb[0].mxu0
    %v3763 = vadd.f32 0.0, %v3762
    %v3764 = vpop.f32.mrb[0].mxu0
    %v3765 = vadd.f32 0.0, %v3764
    %3766 = vdwg.mxu0
    %3767 = vmatprep.subr.mxu0 %v3284
    %3768 = vmatpush1.msra.mxu0 %v3283
    %3769 = vmatprep.subr.mxu0 %v3300
    %3770 = vmatpush1.msra.mxu0 %v3299
    %3771 = vmatprep.subr.mxu0 %v3316
    %3772 = vmatpush1.msra.mxu0 %v3315
    %3773 = vmatprep.subr.mxu0 %v3332
    %3774 = vmatpush1.msra.mxu0 %v3331
    %3775 = vmatprep.subr.mxu0 %v3348
    %3776 = vmatpush1.msra.mxu0 %v3347
    %3777 = vmatprep.subr.mxu0 %v3364
    %3778 = vmatpush1.msra.mxu0 %v3363
    %3779 = vmatprep.subr.mxu0 %v3380
    %3780 = vmatpush1.msra.mxu0 %v3379
    %3781 = vmatprep.subr.mxu0 %v3396
    %3782 = vmatpush1.msra.mxu0 %v3395
    %3783 = vmatprep.subr.mxu0 %v3412
    %3784 = vmatpush1.msra.mxu0 %v3411
    %3785 = vmatprep.subr.mxu0 %v3463
    %3786 = vmatpush1.msra.mxu0 %v3460
    %3787 = vmatprep.subr.mxu0 0.0
    %3788 = vmatpush1.msra.mxu0 0.0
    %3789 = vmatprep.subr.mxu0 0.0
    %3790 = vmatpush1.msra.mxu0 0.0
    %3791 = vmatprep.subr.mxu0 0.0
    %3792 = vmatpush1.msra.mxu0 0.0
    %3793 = vmatprep.subr.mxu0 0.0
    %3794 = vmatpush1.msra.mxu0 0.0
    %3795 = vmatprep.subr.mxu0 0.0
    %3796 = vmatpush1.msra.mxu0 0.0
    %3797 = vmatprep.subr.mxu0 0.0
    %3798 = vmatpush1.msra.mxu0 0.0
    %3799 = vmatprep.subr.mxu0 0.0
    %3800 = vmatpush1.msra.mxu0 0.0
    %3801 = vmatprep.subr.mxu0 0.0
    %3802 = vmatpush1.msra.mxu0 0.0
    %3803 = vmatprep.subr.mxu0 0.0
    %3804 = vmatpush1.msra.mxu0 0.0
    %3805 = vmatprep.subr.mxu0 0.0
    %3806 = vmatpush1.msra.mxu0 0.0
    %3807 = vmatprep.subr.mxu0 0.0
    %3808 = vmatpush1.msra.mxu0 0.0
    %3809 = vmatprep.subr.mxu0 0.0
    %3810 = vmatpush1.msra.mxu0 0.0
    %3811 = vmatprep.subr.mxu0 0.0
    %3812 = vmatpush1.msra.mxu0 0.0
    %3813 = vmatprep.subr.mxu0 0.0
    %3814 = vmatpush1.msra.mxu0 0.0
    %3815 = vmatprep.subr.mxu0 0.0
    %3816 = vmatpush1.msra.mxu0 0.0
    %3817 = vmatprep.subr.mxu0 0.0
    %3818 = vmatpush1.msra.mxu0 0.0
    %3819 = vmatprep.subr.mxu0 0.0
    %3820 = vmatpush1.msra.mxu0 0.0
    %3821 = vmatprep.subr.mxu0 0.0
    %3822 = vmatpush1.msra.mxu0 0.0
    %3823 = vmatprep.subr.mxu0 0.0
    %3824 = vmatpush1.msra.mxu0 0.0
    %3825 = vmatprep.subr.mxu0 0.0
    %3826 = vmatpush1.msra.mxu0 0.0
    %3827 = vmatprep.subr.mxu0 0.0
    %3828 = vmatpush1.msra.mxu0 0.0
    %3829 = vmatprep.subr.mxu0 0.0
    %3830 = vmatpush1.msra.mxu0 0.0
    %3831 = vmatprep.mubr.f32.mxu0 0.0
    %3832 = vmatmul.mubr.f32.gmra.mrb[0].mxu0 %v201
    %v3833 = vpop.f32.mrb[0].mxu0
    %v3834 = vadd.f32 0.0, %v3833
    %v3835 = vpop.f32.mrb[0].mxu0
    %v3836 = vadd.f32 0.0, %v3835
    %3837 = vdwg.mxu0
    %3838 = vmatprep.subr.mxu0 %v3286
    %3839 = vmatpush1.msra.mxu0 %v3285
    %3840 = vmatprep.subr.mxu0 %v3302
    %3841 = vmatpush1.msra.mxu0 %v3301
    %3842 = vmatprep.subr.mxu0 %v3318
    %3843 = vmatpush1.msra.mxu0 %v3317
    %3844 = vmatprep.subr.mxu0 %v3334
    %3845 = vmatpush1.msra.mxu0 %v3333
    %3846 = vmatprep.subr.mxu0 %v3350
    %3847 = vmatpush1.msra.mxu0 %v3349
    %3848 = vmatprep.subr.mxu0 %v3366
    %3849 = vmatpush1.msra.mxu0 %v3365
    %3850 = vmatprep.subr.mxu0 %v3382
    %3851 = vmatpush1.msra.mxu0 %v3381
    %3852 = vmatprep.subr.mxu0 %v3398
    %3853 = vmatpush1.msra.mxu0 %v3397
    %3854 = vmatprep.subr.mxu0 %v3414
    %3855 = vmatpush1.msra.mxu0 %v3413
    %3856 = vmatprep.subr.mxu0 %v3469
    %3857 = vmatpush1.msra.mxu0 %v3466
    %3858 = vmatprep.subr.mxu0 0.0
    %3859 = vmatpush1.msra.mxu0 0.0
    %3860 = vmatprep.subr.mxu0 0.0
    %3861 = vmatpush1.msra.mxu0 0.0
    %3862 = vmatprep.subr.mxu0 0.0
    %3863 = vmatpush1.msra.mxu0 0.0
    %3864 = vmatprep.subr.mxu0 0.0
    %3865 = vmatpush1.msra.mxu0 0.0
    %3866 = vmatprep.subr.mxu0 0.0
    %3867 = vmatpush1.msra.mxu0 0.0
    %3868 = vmatprep.subr.mxu0 0.0
    %3869 = vmatpush1.msra.mxu0 0.0
    %3870 = vmatprep.subr.mxu0 0.0
    %3871 = vmatpush1.msra.mxu0 0.0
    %3872 = vmatprep.subr.mxu0 0.0
    %3873 = vmatpush1.msra.mxu0 0.0
    %3874 = vmatprep.subr.mxu0 0.0
    %3875 = vmatpush1.msra.mxu0 0.0
    %3876 = vmatprep.subr.mxu0 0.0
    %3877 = vmatpush1.msra.mxu0 0.0
    %3878 = vmatprep.subr.mxu0 0.0
    %3879 = vmatpush1.msra.mxu0 0.0
    %3880 = vmatprep.subr.mxu0 0.0
    %3881 = vmatpush1.msra.mxu0 0.0
    %3882 = vmatprep.subr.mxu0 0.0
    %3883 = vmatpush1.msra.mxu0 0.0
    %3884 = vmatprep.subr.mxu0 0.0
    %3885 = vmatpush1.msra.mxu0 0.0
    %3886 = vmatprep.subr.mxu0 0.0
    %3887 = vmatpush1.msra.mxu0 0.0
    %3888 = vmatprep.subr.mxu0 0.0
    %3889 = vmatpush1.msra.mxu0 0.0
    %3890 = vmatprep.subr.mxu0 0.0
    %3891 = vmatpush1.msra.mxu0 0.0
    %3892 = vmatprep.subr.mxu0 0.0
    %3893 = vmatpush1.msra.mxu0 0.0
    %3894 = vmatprep.subr.mxu0 0.0
    %3895 = vmatpush1.msra.mxu0 0.0
    %3896 = vmatprep.subr.mxu0 0.0
    %3897 = vmatpush1.msra.mxu0 0.0
    %3898 = vmatprep.subr.mxu0 0.0
    %3899 = vmatpush1.msra.mxu0 0.0
    %3900 = vmatprep.subr.mxu0 0.0
    %3901 = vmatpush1.msra.mxu0 0.0
    %3902 = vmatprep.mubr.f32.mxu0 0.0
    %3903 = vmatmul.mubr.f32.gmra.mrb[0].mxu0 %v201
    %v3904 = vpop.f32.mrb[0].mxu0
    %v3905 = vadd.f32 0.0, %v3904
    %v3906 = vpop.f32.mrb[0].mxu0
    %v3907 = vadd.f32 0.0, %v3906
    %3908 = vdwg.mxu0
    %3909 = vmatprep.subr.mxu0 %v3288
    %3910 = vmatpush1.msra.mxu0 %v3287
    %3911 = vmatprep.subr.mxu0 %v3304
    %3912 = vmatpush1.msra.mxu0 %v3303
    %3913 = vmatprep.subr.mxu0 %v3320
    %3914 = vmatpush1.msra.mxu0 %v3319
    %3915 = vmatprep.subr.mxu0 %v3336
    %3916 = vmatpush1.msra.mxu0 %v3335
    %3917 = vmatprep.subr.mxu0 %v3352
    %3918 = vmatpush1.msra.mxu0 %v3351
    %3919 = vmatprep.subr.mxu0 %v3368
    %3920 = vmatpush1.msra.mxu0 %v3367
    %3921 = vmatprep.subr.mxu0 %v3384
    %3922 = vmatpush1.msra.mxu0 %v3383
    %3923 = vmatprep.subr.mxu0 %v3400
    %3924 = vmatpush1.msra.mxu0 %v3399
    %3925 = vmatprep.subr.mxu0 %v3416
    %3926 = vmatpush1.msra.mxu0 %v3415
    %3927 = vmatprep.subr.mxu0 %v3475
    %3928 = vmatpush1.msra.mxu0 %v3472
    %3929 = vmatprep.subr.mxu0 0.0
    %3930 = vmatpush1.msra.mxu0 0.0
    %3931 = vmatprep.subr.mxu0 0.0
    %3932 = vmatpush1.msra.mxu0 0.0
    %3933 = vmatprep.subr.mxu0 0.0
    %3934 = vmatpush1.msra.mxu0 0.0
    %3935 = vmatprep.subr.mxu0 0.0
    %3936 = vmatpush1.msra.mxu0 0.0
    %3937 = vmatprep.subr.mxu0 0.0
    %3938 = vmatpush1.msra.mxu0 0.0
    %3939 = vmatprep.subr.mxu0 0.0
    %3940 = vmatpush1.msra.mxu0 0.0
    %3941 = vmatprep.subr.mxu0 0.0
    %3942 = vmatpush1.msra.mxu0 0.0
    %3943 = vmatprep.subr.mxu0 0.0
    %3944 = vmatpush1.msra.mxu0 0.0
    %3945 = vmatprep.subr.mxu0 0.0
    %3946 = vmatpush1.msra.mxu0 0.0
    %3947 = vmatprep.subr.mxu0 0.0
    %3948 = vmatpush1.msra.mxu0 0.0
    %3949 = vmatprep.subr.mxu0 0.0
    %3950 = vmatpush1.msra.mxu0 0.0
    %3951 = vmatprep.subr.mxu0 0.0
    %3952 = vmatpush1.msra.mxu0 0.0
    %3953 = vmatprep.subr.mxu0 0.0
    %3954 = vmatpush1.msra.mxu0 0.0
    %3955 = vmatprep.subr.mxu0 0.0
    %3956 = vmatpush1.msra.mxu0 0.0
    %3957 = vmatprep.subr.mxu0 0.0
    %3958 = vmatpush1.msra.mxu0 0.0
    %3959 = vmatprep.subr.mxu0 0.0
    %3960 = vmatpush1.msra.mxu0 0.0
    %3961 = vmatprep.subr.mxu0 0.0
    %3962 = vmatpush1.msra.mxu0 0.0
    %3963 = vmatprep.subr.mxu0 0.0
    %3964 = vmatpush1.msra.mxu0 0.0
    %3965 = vmatprep.subr.mxu0 0.0
    %3966 = vmatpush1.msra.mxu0 0.0
    %3967 = vmatprep.subr.mxu0 0.0
    %3968 = vmatpush1.msra.mxu0 0.0
    %3969 = vmatprep.subr.mxu0 0.0
    %3970 = vmatpush1.msra.mxu0 0.0
    %3971 = vmatprep.subr.mxu0 0.0
    %3972 = vmatpush1.msra.mxu0 0.0
    %3973 = vmatprep.mubr.f32.mxu0 0.0
    %3974 = vmatmul.mubr.f32.gmra.mrb[0].mxu0 %v201
    %v3975 = vpop.f32.mrb[0].mxu0
    %v3976 = vadd.f32 0.0, %v3975
    %v3977 = vpop.f32.mrb[0].mxu0
    %v3978 = vadd.f32 0.0, %v3977
    %3979 = vdwg.mxu0
    %3980 = vmatprep.subr.mxu0 %v3290
    %3981 = vmatpush1.msra.mxu0 %v3289
    %3982 = vmatprep.subr.mxu0 %v3306
    %3983 = vmatpush1.msra.mxu0 %v3305
    %3984 = vmatprep.subr.mxu0 %v3322
    %3985 = vmatpush1.msra.mxu0 %v3321
    %3986 = vmatprep.subr.mxu0 %v3338
    %3987 = vmatpush1.msra.mxu0 %v3337
    %3988 = vmatprep.subr.mxu0 %v3354
    %3989 = vmatpush1.msra.mxu0 %v3353
    %3990 = vmatprep.subr.mxu0 %v3370
    %3991 = vmatpush1.msra.mxu0 %v3369
    %3992 = vmatprep.subr.mxu0 %v3386
    %3993 = vmatpush1.msra.mxu0 %v3385
    %3994 = vmatprep.subr.mxu0 %v3402
    %3995 = vmatpush1.msra.mxu0 %v3401
    %3996 = vmatprep.subr.mxu0 %v3418
    %3997 = vmatpush1.msra.mxu0 %v3417
    %3998 = vmatprep.subr.mxu0 %v3481
    %3999 = vmatpush1.msra.mxu0 %v3478
    %4000 = vmatprep.subr.mxu0 0.0
    %4001 = vmatpush1.msra.mxu0 0.0
    %4002 = vmatprep.subr.mxu0 0.0
    %4003 = vmatpush1.msra.mxu0 0.0
    %4004 = vmatprep.subr.mxu0 0.0
    %4005 = vmatpush1.msra.mxu0 0.0
    %4006 = vmatprep.subr.mxu0 0.0
    %4007 = vmatpush1.msra.mxu0 0.0
    %4008 = vmatprep.subr.mxu0 0.0
    %4009 = vmatpush1.msra.mxu0 0.0
    %4010 = vmatprep.subr.mxu0 0.0
    %4011 = vmatpush1.msra.mxu0 0.0
    %4012 = vmatprep.subr.mxu0 0.0
    %4013 = vmatpush1.msra.mxu0 0.0
    %4014 = vmatprep.subr.mxu0 0.0
    %4015 = vmatpush1.msra.mxu0 0.0
    %4016 = vmatprep.subr.mxu0 0.0
    %4017 = vmatpush1.msra.mxu0 0.0
    %4018 = vmatprep.subr.mxu0 0.0
    %4019 = vmatpush1.msra.mxu0 0.0
    %4020 = vmatprep.subr.mxu0 0.0
    %4021 = vmatpush1.msra.mxu0 0.0
    %4022 = vmatprep.subr.mxu0 0.0
    %4023 = vmatpush1.msra.mxu0 0.0
    %4024 = vmatprep.subr.mxu0 0.0
    %4025 = vmatpush1.msra.mxu0 0.0
    %4026 = vmatprep.subr.mxu0 0.0
    %4027 = vmatpush1.msra.mxu0 0.0
    %4028 = vmatprep.subr.mxu0 0.0
    %4029 = vmatpush1.msra.mxu0 0.0
    %4030 = vmatprep.subr.mxu0 0.0
    %4031 = vmatpush1.msra.mxu0 0.0
    %4032 = vmatprep.subr.mxu0 0.0
    %4033 = vmatpush1.msra.mxu0 0.0
    %4034 = vmatprep.subr.mxu0 0.0
    %4035 = vmatpush1.msra.mxu0 0.0
    %4036 = vmatprep.subr.mxu0 0.0
    %4037 = vmatpush1.msra.mxu0 0.0
    %4038 = vmatprep.subr.mxu0 0.0
    %4039 = vmatpush1.msra.mxu0 0.0
    %4040 = vmatprep.subr.mxu0 0.0
    %4041 = vmatpush1.msra.mxu0 0.0
    %4042 = vmatprep.subr.mxu0 0.0
    %4043 = vmatpush1.msra.mxu0 0.0
    %4044 = vmatprep.mubr.f32.mxu0 0.0
    %4045 = vmatmul.mubr.f32.gmra.mrb[0].mxu0 %v201
    %v4046 = vpop.f32.mrb[0].mxu0
    %v4047 = vadd.f32 0.0, %v4046
    %v4048 = vpop.f32.mrb[0].mxu0
    %v4049 = vadd.f32 0.0, %v4048
    %4050 = vdwg.mxu0
    %s4051 = scalar_lea.vmem [#allocation2], 512
    %4052 = vst [vmem:[%s4051] sm:$0xff] %v3550
    %s4053 = scalar_lea.vmem [#allocation2], 520
    %4054 = vst [vmem:[%s4053] sm:$0xff] %v3552
    %s4055 = scalar_lea.vmem [#allocation2], 528
    %4056 = vst [vmem:[%s4055] sm:$0xff] %v3621
    %s4057 = scalar_lea.vmem [#allocation2], 536
    %4058 = vst [vmem:[%s4057] sm:$0xff] %v3623
    %s4059 = scalar_lea.vmem [#allocation2], 544
    %4060 = vst [vmem:[%s4059] sm:$0xff] %v3692
    %s4061 = scalar_lea.vmem [#allocation2], 552
    %4062 = vst [vmem:[%s4061] sm:$0xff] %v3694
    %s4063 = scalar_lea.vmem [#allocation2], 560
    %4064 = vst [vmem:[%s4063] sm:$0xff] %v3763
    %s4065 = scalar_lea.vmem [#allocation2], 568
    %4066 = vst [vmem:[%s4065] sm:$0xff] %v3765
    %s4067 = scalar_lea.vmem [#allocation2], 576
    %4068 = vst [vmem:[%s4067] sm:$0xff] %v3834
    %s4069 = scalar_lea.vmem [#allocation2], 584
    %4070 = vst [vmem:[%s4069] sm:$0xff] %v3836
    %s4071 = scalar_lea.vmem [#allocation2], 592
    %4072 = vst [vmem:[%s4071] sm:$0xff] %v3905
    %s4073 = scalar_lea.vmem [#allocation2], 600
    %4074 = vst [vmem:[%s4073] sm:$0xff] %v3907
    %s4075 = scalar_lea.vmem [#allocation2], 608
    %4076 = vst [vmem:[%s4075] sm:$0xff] %v3976
    %s4077 = scalar_lea.vmem [#allocation2], 616
    %4078 = vst [vmem:[%s4077] sm:$0xff] %v3978
    %s4079 = scalar_lea.vmem [#allocation2], 624
    %4080 = vst [vmem:[%s4079] sm:$0xff] %v4047
    %s4081 = scalar_lea.vmem [#allocation2], 632
    %4082 = vst [vmem:[%s4081] sm:$0xff] %v4049
    %v4083 = vld [vmem:[#allocation2] sm:$0x1]
    %v4084 = vld [vmem:[#allocation2 + $0x8] sm:$0x1]
    %v4085 = vld [vmem:[#allocation2 + $0x10] sm:$0x1]
    %v4086 = vld [vmem:[#allocation2 + $0x18] sm:$0x1]
    %v4087 = vld [vmem:[#allocation2 + $0x20] sm:$0x1]
    %v4088 = vld [vmem:[#allocation2 + $0x28] sm:$0x1]
    %v4089 = vld [vmem:[#allocation2 + $0x30] sm:$0x1]
    %v4090 = vld [vmem:[#allocation2 + $0x38] sm:$0x1]
    %v4091 = vld [vmem:[#allocation2 + $0x40] sm:$0x1]
    %v4092 = vld [vmem:[#allocation2 + $0x48] sm:$0x1]
    %v4093 = vld [vmem:[#allocation2 + $0x50] sm:$0x1]
    %v4094 = vld [vmem:[#allocation2 + $0x58] sm:$0x1]
    %v4095 = vld [vmem:[#allocation2 + $0x60] sm:$0x1]
    %v4096 = vld [vmem:[#allocation2 + $0x68] sm:$0x1]
    %v4097 = vld [vmem:[#allocation2 + $0x70] sm:$0x1]
    %v4098 = vld [vmem:[#allocation2 + $0x78] sm:$0x1]
    %v4099 = vld [vmem:[#allocation2 + $0x80] sm:$0x1]
    %v4100 = vld [vmem:[#allocation2 + $0x88] sm:$0x1]
    %v4101 = vld [vmem:[#allocation2 + $0x90] sm:$0x1]
    %v4102 = vld [vmem:[#allocation2 + $0x98] sm:$0x1]
    %v4103 = vld [vmem:[#allocation2 + $0xa0] sm:$0x1]
    %v4104 = vld [vmem:[#allocation2 + $0xa8] sm:$0x1]
    %v4105 = vld [vmem:[#allocation2 + $0xb0] sm:$0x1]
    %v4106 = vld [vmem:[#allocation2 + $0xb8] sm:$0x1]
    %v4107 = vld [vmem:[#allocation2 + $0xc0] sm:$0x1]
    %v4108 = vld [vmem:[#allocation2 + $0xc8] sm:$0x1]
    %v4109 = vld [vmem:[#allocation2 + $0xd0] sm:$0x1]
    %v4110 = vld [vmem:[#allocation2 + $0xd8] sm:$0x1]
    %v4111 = vld [vmem:[#allocation2 + $0xe0] sm:$0x1]
    %v4112 = vld [vmem:[#allocation2 + $0xe8] sm:$0x1]
    %v4113 = vld [vmem:[#allocation2 + $0xf0] sm:$0x1]
    %v4114 = vld [vmem:[#allocation2 + $0xf8] sm:$0x1]
    %v4115 = vld [vmem:[#allocation2 + $0x100] sm:$0x1]
    %v4116 = vld [vmem:[#allocation2 + $0x108] sm:$0x1]
    %v4117 = vld [vmem:[#allocation2 + $0x110] sm:$0x1]
    %v4118 = vld [vmem:[#allocation2 + $0x118] sm:$0x1]
    %v4119 = vld [vmem:[#allocation2 + $0x120] sm:$0x1]
    %v4120 = vld [vmem:[#allocation2 + $0x128] sm:$0x1]
    %v4121 = vld [vmem:[#allocation2 + $0x130] sm:$0x1]
    %v4122 = vld [vmem:[#allocation2 + $0x138] sm:$0x1]
    %v4123 = vld [vmem:[#allocation2 + $0x140] sm:$0x1]
    %v4124 = vld [vmem:[#allocation2 + $0x148] sm:$0x1]
    %v4125 = vld [vmem:[#allocation2 + $0x150] sm:$0x1]
    %v4126 = vld [vmem:[#allocation2 + $0x158] sm:$0x1]
    %v4127 = vld [vmem:[#allocation2 + $0x160] sm:$0x1]
    %v4128 = vld [vmem:[#allocation2 + $0x168] sm:$0x1]
    %v4129 = vld [vmem:[#allocation2 + $0x170] sm:$0x1]
    %v4130 = vld [vmem:[#allocation2 + $0x178] sm:$0x1]
    %v4131 = vld [vmem:[#allocation2 + $0x180] sm:$0x1]
    %v4132 = vld [vmem:[#allocation2 + $0x188] sm:$0x1]
    %v4133 = vld [vmem:[#allocation2 + $0x190] sm:$0x1]
    %v4134 = vld [vmem:[#allocation2 + $0x198] sm:$0x1]
    %v4135 = vld [vmem:[#allocation2 + $0x1a0] sm:$0x1]
    %v4136 = vld [vmem:[#allocation2 + $0x1a8] sm:$0x1]
    %v4137 = vld [vmem:[#allocation2 + $0x1b0] sm:$0x1]
    %v4138 = vld [vmem:[#allocation2 + $0x1b8] sm:$0x1]
    %v4139 = vld [vmem:[#allocation2 + $0x1c0] sm:$0x1]
    %v4140 = vld [vmem:[#allocation2 + $0x1c8] sm:$0x1]
    %v4141 = vld [vmem:[#allocation2 + $0x1d0] sm:$0x1]
    %v4142 = vld [vmem:[#allocation2 + $0x1d8] sm:$0x1]
    %v4143 = vld [vmem:[#allocation2 + $0x1e0] sm:$0x1]
    %v4144 = vld [vmem:[#allocation2 + $0x1e8] sm:$0x1]
    %v4145 = vld [vmem:[#allocation2 + $0x1f0] sm:$0x1]
    %v4146 = vld [vmem:[#allocation2 + $0x1f8] sm:$0x1]
    %v4147 = vld [vmem:[#allocation2 + $0x200] sm:$0x1]
    %v4148 = vld [vmem:[#allocation2 + $0x208] sm:$0x1]
    %v4149 = vld [vmem:[#allocation2 + $0x210] sm:$0x1]
    %v4150 = vld [vmem:[#allocation2 + $0x218] sm:$0x1]
    %v4151 = vld [vmem:[#allocation2 + $0x220] sm:$0x1]
    %v4152 = vld [vmem:[#allocation2 + $0x228] sm:$0x1]
    %v4153 = vld [vmem:[#allocation2 + $0x230] sm:$0x1]
    %v4154 = vld [vmem:[#allocation2 + $0x238] sm:$0x1]
    %v4155 = vld [vmem:[#allocation2 + $0x240] sm:$0x1]
    %v4156 = vld [vmem:[#allocation2 + $0x248] sm:$0x1]
    %v4157 = vld [vmem:[#allocation2 + $0x250] sm:$0x1]
    %v4158 = vld [vmem:[#allocation2 + $0x258] sm:$0x1]
    %v4159 = vld [vmem:[#allocation2 + $0x260] sm:$0x1]
    %v4160 = vld [vmem:[#allocation2 + $0x268] sm:$0x1]
    %v4161 = vld [vmem:[#allocation2 + $0x270] sm:$0x1]
    %v4162 = vld [vmem:[#allocation2 + $0x278] sm:$0x1]
    %v4243 = vrot.slane %v4084, 7
    %vm4244 = vcmask 1041409
    %v4245 = vsel %vm4244, %v4243, %v4083
    %v4246 = vrot.slane %v4085, 6
    %vm4247 = vcmask 1042434
    %v4248 = vsel %vm4247, %v4246, %v4245
    %v4249 = vrot.slane %v4086, 5
    %vm4250 = vcmask 1043459
    %v4251 = vsel %vm4250, %v4249, %v4248
    %v4252 = vrot.slane %v4087, 4
    %vm4253 = vcmask 1044484
    %v4254 = vsel %vm4253, %v4252, %v4251
    %v4255 = vrot.slane %v4088, 3
    %vm4256 = vcmask 1045509
    %v4257 = vsel %vm4256, %v4255, %v4254
    %v4258 = vrot.slane %v4089, 2
    %vm4259 = vcmask 1046534
    %v4260 = vsel %vm4259, %v4258, %v4257
    %v4261 = vrot.slane %v4090, 1
    %vm4262 = vcmask 1047559
    %v4263 = vsel %vm4262, %v4261, %v4260
    %v4264 = vrot.slane %v4092, 7
    %v4265 = vsel %vm4244, %v4264, %v4091
    %v4266 = vrot.slane %v4093, 6
    %v4267 = vsel %vm4247, %v4266, %v4265
    %v4268 = vrot.slane %v4094, 5
    %v4269 = vsel %vm4250, %v4268, %v4267
    %v4270 = vrot.slane %v4095, 4
    %v4271 = vsel %vm4253, %v4270, %v4269
    %v4272 = vrot.slane %v4096, 3
    %v4273 = vsel %vm4256, %v4272, %v4271
    %v4274 = vrot.slane %v4097, 2
    %v4275 = vsel %vm4259, %v4274, %v4273
    %v4276 = vrot.slane %v4098, 1
    %v4277 = vsel %vm4262, %v4276, %v4275
    %v4278 = vrot.slane %v4100, 7
    %v4279 = vsel %vm4244, %v4278, %v4099
    %v4280 = vrot.slane %v4101, 6
    %v4281 = vsel %vm4247, %v4280, %v4279
    %v4282 = vrot.slane %v4102, 5
    %v4283 = vsel %vm4250, %v4282, %v4281
    %v4284 = vrot.slane %v4103, 4
    %v4285 = vsel %vm4253, %v4284, %v4283
    %v4286 = vrot.slane %v4104, 3
    %v4287 = vsel %vm4256, %v4286, %v4285
    %v4288 = vrot.slane %v4105, 2
    %v4289 = vsel %vm4259, %v4288, %v4287
    %v4290 = vrot.slane %v4106, 1
    %v4291 = vsel %vm4262, %v4290, %v4289
    %v4292 = vrot.slane %v4108, 7
    %v4293 = vsel %vm4244, %v4292, %v4107
    %v4294 = vrot.slane %v4109, 6
    %v4295 = vsel %vm4247, %v4294, %v4293
    %v4296 = vrot.slane %v4110, 5
    %v4297 = vsel %vm4250, %v4296, %v4295
    %v4298 = vrot.slane %v4111, 4
    %v4299 = vsel %vm4253, %v4298, %v4297
    %v4300 = vrot.slane %v4112, 3
    %v4301 = vsel %vm4256, %v4300, %v4299
    %v4302 = vrot.slane %v4113, 2
    %v4303 = vsel %vm4259, %v4302, %v4301
    %v4304 = vrot.slane %v4114, 1
    %v4305 = vsel %vm4262, %v4304, %v4303
    %v4306 = vrot.slane %v4116, 7
    %v4307 = vsel %vm4244, %v4306, %v4115
    %v4308 = vrot.slane %v4117, 6
    %v4309 = vsel %vm4247, %v4308, %v4307
    %v4310 = vrot.slane %v4118, 5
    %v4311 = vsel %vm4250, %v4310, %v4309
    %v4312 = vrot.slane %v4119, 4
    %v4313 = vsel %vm4253, %v4312, %v4311
    %v4314 = vrot.slane %v4120, 3
    %v4315 = vsel %vm4256, %v4314, %v4313
    %v4316 = vrot.slane %v4121, 2
    %v4317 = vsel %vm4259, %v4316, %v4315
    %v4318 = vrot.slane %v4122, 1
    %v4319 = vsel %vm4262, %v4318, %v4317
    %v4320 = vrot.slane %v4124, 7
    %v4321 = vsel %vm4244, %v4320, %v4123
    %v4322 = vrot.slane %v4125, 6
    %v4323 = vsel %vm4247, %v4322, %v4321
    %v4324 = vrot.slane %v4126, 5
    %v4325 = vsel %vm4250, %v4324, %v4323
    %v4326 = vrot.slane %v4127, 4
    %v4327 = vsel %vm4253, %v4326, %v4325
    %v4328 = vrot.slane %v4128, 3
    %v4329 = vsel %vm4256, %v4328, %v4327
    %v4330 = vrot.slane %v4129, 2
    %v4331 = vsel %vm4259, %v4330, %v4329
    %v4332 = vrot.slane %v4130, 1
    %v4333 = vsel %vm4262, %v4332, %v4331
    %v4334 = vrot.slane %v4132, 7
    %v4335 = vsel %vm4244, %v4334, %v4131
    %v4336 = vrot.slane %v4133, 6
    %v4337 = vsel %vm4247, %v4336, %v4335
    %v4338 = vrot.slane %v4134, 5
    %v4339 = vsel %vm4250, %v4338, %v4337
    %v4340 = vrot.slane %v4135, 4
    %v4341 = vsel %vm4253, %v4340, %v4339
    %v4342 = vrot.slane %v4136, 3
    %v4343 = vsel %vm4256, %v4342, %v4341
    %v4344 = vrot.slane %v4137, 2
    %v4345 = vsel %vm4259, %v4344, %v4343
    %v4346 = vrot.slane %v4138, 1
    %v4347 = vsel %vm4262, %v4346, %v4345
    %v4348 = vrot.slane %v4140, 7
    %v4349 = vsel %vm4244, %v4348, %v4139
    %v4350 = vrot.slane %v4141, 6
    %v4351 = vsel %vm4247, %v4350, %v4349
    %v4352 = vrot.slane %v4142, 5
    %v4353 = vsel %vm4250, %v4352, %v4351
    %v4354 = vrot.slane %v4143, 4
    %v4355 = vsel %vm4253, %v4354, %v4353
    %v4356 = vrot.slane %v4144, 3
    %v4357 = vsel %vm4256, %v4356, %v4355
    %v4358 = vrot.slane %v4145, 2
    %v4359 = vsel %vm4259, %v4358, %v4357
    %v4360 = vrot.slane %v4146, 1
    %v4361 = vsel %vm4262, %v4360, %v4359
    %v4362 = vrot.slane %v4148, 7
    %v4363 = vsel %vm4244, %v4362, %v4147
    %v4364 = vrot.slane %v4149, 6
    %v4365 = vsel %vm4247, %v4364, %v4363
    %v4366 = vrot.slane %v4150, 5
    %v4367 = vsel %vm4250, %v4366, %v4365
    %v4368 = vrot.slane %v4151, 4
    %v4369 = vsel %vm4253, %v4368, %v4367
    %v4370 = vrot.slane %v4152, 3
    %v4371 = vsel %vm4256, %v4370, %v4369
    %v4372 = vrot.slane %v4153, 2
    %v4373 = vsel %vm4259, %v4372, %v4371
    %v4374 = vrot.slane %v4154, 1
    %v4375 = vsel %vm4262, %v4374, %v4373
    %v4376 = vrot.slane %v4156, 7
    %v4377 = vsel %vm4244, %v4376, %v4155
    %v4378 = vrot.slane %v4157, 6
    %v4379 = vsel %vm4247, %v4378, %v4377
    %v4380 = vrot.slane %v4158, 5
    %v4381 = vsel %vm4250, %v4380, %v4379
    %v4382 = vrot.slane %v4159, 4
    %v4383 = vsel %vm4253, %v4382, %v4381
    %v4384 = vrot.slane %v4160, 3
    %v4385 = vsel %vm4256, %v4384, %v4383
    %v4386 = vrot.slane %v4161, 2
    %v4387 = vsel %vm4259, %v4386, %v4385
    %v4388 = vrot.slane %v4162, 1
    %v4389 = vsel %vm4262, %v4388, %v4387
    %vm4400 = vcmask 654336
    %v4401 = vsel %vm4400, %v38, 0
    %4403 = vmatprep.subr.mxu0 0.0
    %4404 = vmatpush1.msra.mxu0 %v4263
    %4405 = vmatprep.subr.mxu0 0.0
    %4406 = vmatpush1.msra.mxu0 %v4277
    %4407 = vmatprep.subr.mxu0 0.0
    %4408 = vmatpush1.msra.mxu0 %v4291
    %4409 = vmatprep.subr.mxu0 0.0
    %4410 = vmatpush1.msra.mxu0 %v4305
    %4411 = vmatprep.subr.mxu0 0.0
    %4412 = vmatpush1.msra.mxu0 %v4319
    %4413 = vmatprep.subr.mxu0 0.0
    %4414 = vmatpush1.msra.mxu0 %v4333
    %4415 = vmatprep.subr.mxu0 0.0
    %4416 = vmatpush1.msra.mxu0 %v4347
    %4417 = vmatprep.subr.mxu0 0.0
    %4418 = vmatpush1.msra.mxu0 %v4361
    %4419 = vmatprep.subr.mxu0 0.0
    %4420 = vmatpush1.msra.mxu0 %v4375
    %4421 = vmatprep.subr.mxu0 0.0
    %4422 = vmatpush1.msra.mxu0 %v4389
    %4423 = vmatprep.subr.mxu0 0.0
    %4424 = vmatpush1.msra.mxu0 0.0
    %4425 = vmatprep.subr.mxu0 0.0
    %4426 = vmatpush1.msra.mxu0 0.0
    %4427 = vmatprep.subr.mxu0 0.0
    %4428 = vmatpush1.msra.mxu0 0.0
    %4429 = vmatprep.subr.mxu0 0.0
    %4430 = vmatpush1.msra.mxu0 0.0
    %4431 = vmatprep.subr.mxu0 0.0
    %4432 = vmatpush1.msra.mxu0 0.0
    %4433 = vmatprep.subr.mxu0 0.0
    %4434 = vmatpush1.msra.mxu0 0.0
    %4435 = vmatprep.subr.mxu0 0.0
    %4436 = vmatpush1.msra.mxu0 0.0
    %4437 = vmatprep.subr.mxu0 0.0
    %4438 = vmatpush1.msra.mxu0 0.0
    %4439 = vmatprep.subr.mxu0 0.0
    %4440 = vmatpush1.msra.mxu0 0.0
    %4441 = vmatprep.subr.mxu0 0.0
    %4442 = vmatpush1.msra.mxu0 0.0
    %4443 = vmatprep.subr.mxu0 0.0
    %4444 = vmatpush1.msra.mxu0 0.0
    %4445 = vmatprep.subr.mxu0 0.0
    %4446 = vmatpush1.msra.mxu0 0.0
    %4447 = vmatprep.subr.mxu0 0.0
    %4448 = vmatpush1.msra.mxu0 0.0
    %4449 = vmatprep.subr.mxu0 0.0
    %4450 = vmatpush1.msra.mxu0 0.0
    %4451 = vmatprep.subr.mxu0 0.0
    %4452 = vmatpush1.msra.mxu0 0.0
    %4453 = vmatprep.subr.mxu0 0.0
    %4454 = vmatpush1.msra.mxu0 0.0
    %4455 = vmatprep.subr.mxu0 0.0
    %4456 = vmatpush1.msra.mxu0 0.0
    %4457 = vmatprep.subr.mxu0 0.0
    %4458 = vmatpush1.msra.mxu0 0.0
    %4459 = vmatprep.subr.mxu0 0.0
    %4460 = vmatpush1.msra.mxu0 0.0
    %4461 = vmatprep.subr.mxu0 0.0
    %4462 = vmatpush1.msra.mxu0 0.0
    %4463 = vmatprep.subr.mxu0 0.0
    %4464 = vmatpush1.msra.mxu0 0.0
    %4465 = vmatprep.subr.mxu0 0.0
    %4466 = vmatpush1.msra.mxu0 0.0
    %4467 = vmatprep.mubr.f32.mxu0 0.0
    %4468 = vmatmul.mubr.f32.gmra.mrb[0].mxu0 %v4401
    %v4469 = vpop.f32.mrb[0].mxu0
    %v4470 = vadd.f32 0.0, %v4469
    %v4471 = vpop.f32.mrb[0].mxu0
    %4472 = vdwg.mxu0
    %v4473 = vld [vmem:[#allocation2 + $0x1] sm:$0x1]
    %v4474 = vld [vmem:[#allocation2 + $0x9] sm:$0x1]
    %v4475 = vld [vmem:[#allocation2 + $0x11] sm:$0x1]
    %v4476 = vld [vmem:[#allocation2 + $0x19] sm:$0x1]
    %v4477 = vld [vmem:[#allocation2 + $0x21] sm:$0x1]
    %v4478 = vld [vmem:[#allocation2 + $0x29] sm:$0x1]
    %v4479 = vld [vmem:[#allocation2 + $0x31] sm:$0x1]
    %v4480 = vld [vmem:[#allocation2 + $0x39] sm:$0x1]
    %v4481 = vld [vmem:[#allocation2 + $0x41] sm:$0x1]
    %v4482 = vld [vmem:[#allocation2 + $0x49] sm:$0x1]
    %v4483 = vld [vmem:[#allocation2 + $0x51] sm:$0x1]
    %v4484 = vld [vmem:[#allocation2 + $0x59] sm:$0x1]
    %v4485 = vld [vmem:[#allocation2 + $0x61] sm:$0x1]
    %v4486 = vld [vmem:[#allocation2 + $0x69] sm:$0x1]
    %v4487 = vld [vmem:[#allocation2 + $0x71] sm:$0x1]
    %v4488 = vld [vmem:[#allocation2 + $0x79] sm:$0x1]
    %v4489 = vld [vmem:[#allocation2 + $0x81] sm:$0x1]
    %v4490 = vld [vmem:[#allocation2 + $0x89] sm:$0x1]
    %v4491 = vld [vmem:[#allocation2 + $0x91] sm:$0x1]
    %v4492 = vld [vmem:[#allocation2 + $0x99] sm:$0x1]
    %v4493 = vld [vmem:[#allocation2 + $0xa1] sm:$0x1]
    %v4494 = vld [vmem:[#allocation2 + $0xa9] sm:$0x1]
    %v4495 = vld [vmem:[#allocation2 + $0xb1] sm:$0x1]
    %v4496 = vld [vmem:[#allocation2 + $0xb9] sm:$0x1]
    %v4497 = vld [vmem:[#allocation2 + $0xc1] sm:$0x1]
    %v4498 = vld [vmem:[#allocation2 + $0xc9] sm:$0x1]
    %v4499 = vld [vmem:[#allocation2 + $0xd1] sm:$0x1]
    %v4500 = vld [vmem:[#allocation2 + $0xd9] sm:$0x1]
    %v4501 = vld [vmem:[#allocation2 + $0xe1] sm:$0x1]
    %v4502 = vld [vmem:[#allocation2 + $0xe9] sm:$0x1]
    %v4503 = vld [vmem:[#allocation2 + $0xf1] sm:$0x1]
    %v4504 = vld [vmem:[#allocation2 + $0xf9] sm:$0x1]
    %v4505 = vld [vmem:[#allocation2 + $0x101] sm:$0x1]
    %v4506 = vld [vmem:[#allocation2 + $0x109] sm:$0x1]
    %v4507 = vld [vmem:[#allocation2 + $0x111] sm:$0x1]
    %v4508 = vld [vmem:[#allocation2 + $0x119] sm:$0x1]
    %v4509 = vld [vmem:[#allocation2 + $0x121] sm:$0x1]
    %v4510 = vld [vmem:[#allocation2 + $0x129] sm:$0x1]
    %v4511 = vld [vmem:[#allocation2 + $0x131] sm:$0x1]
    %v4512 = vld [vmem:[#allocation2 + $0x139] sm:$0x1]
    %v4513 = vld [vmem:[#allocation2 + $0x141] sm:$0x1]
    %v4514 = vld [vmem:[#allocation2 + $0x149] sm:$0x1]
    %v4515 = vld [vmem:[#allocation2 + $0x151] sm:$0x1]
    %v4516 = vld [vmem:[#allocation2 + $0x159] sm:$0x1]
    %v4517 = vld [vmem:[#allocation2 + $0x161] sm:$0x1]
    %v4518 = vld [vmem:[#allocation2 + $0x169] sm:$0x1]
    %v4519 = vld [vmem:[#allocation2 + $0x171] sm:$0x1]
    %v4520 = vld [vmem:[#allocation2 + $0x179] sm:$0x1]
    %v4521 = vld [vmem:[#allocation2 + $0x181] sm:$0x1]
    %v4522 = vld [vmem:[#allocation2 + $0x189] sm:$0x1]
    %v4523 = vld [vmem:[#allocation2 + $0x191] sm:$0x1]
    %v4524 = vld [vmem:[#allocation2 + $0x199] sm:$0x1]
    %v4525 = vld [vmem:[#allocation2 + $0x1a1] sm:$0x1]
    %v4526 = vld [vmem:[#allocation2 + $0x1a9] sm:$0x1]
    %v4527 = vld [vmem:[#allocation2 + $0x1b1] sm:$0x1]
    %v4528 = vld [vmem:[#allocation2 + $0x1b9] sm:$0x1]
    %v4529 = vld [vmem:[#allocation2 + $0x1c1] sm:$0x1]
    %v4530 = vld [vmem:[#allocation2 + $0x1c9] sm:$0x1]
    %v4531 = vld [vmem:[#allocation2 + $0x1d1] sm:$0x1]
    %v4532 = vld [vmem:[#allocation2 + $0x1d9] sm:$0x1]
    %v4533 = vld [vmem:[#allocation2 + $0x1e1] sm:$0x1]
    %v4534 = vld [vmem:[#allocation2 + $0x1e9] sm:$0x1]
    %v4535 = vld [vmem:[#allocation2 + $0x1f1] sm:$0x1]
    %v4536 = vld [vmem:[#allocation2 + $0x1f9] sm:$0x1]
    %v4537 = vld [vmem:[#allocation2 + $0x201] sm:$0x1]
    %v4538 = vld [vmem:[#allocation2 + $0x209] sm:$0x1]
    %v4539 = vld [vmem:[#allocation2 + $0x211] sm:$0x1]
    %v4540 = vld [vmem:[#allocation2 + $0x219] sm:$0x1]
    %v4541 = vld [vmem:[#allocation2 + $0x221] sm:$0x1]
    %v4542 = vld [vmem:[#allocation2 + $0x229] sm:$0x1]
    %v4543 = vld [vmem:[#allocation2 + $0x231] sm:$0x1]
    %v4544 = vld [vmem:[#allocation2 + $0x239] sm:$0x1]
    %v4545 = vld [vmem:[#allocation2 + $0x241] sm:$0x1]
    %v4546 = vld [vmem:[#allocation2 + $0x249] sm:$0x1]
    %v4547 = vld [vmem:[#allocation2 + $0x251] sm:$0x1]
    %v4548 = vld [vmem:[#allocation2 + $0x259] sm:$0x1]
    %v4549 = vld [vmem:[#allocation2 + $0x261] sm:$0x1]
    %v4550 = vld [vmem:[#allocation2 + $0x269] sm:$0x1]
    %v4551 = vld [vmem:[#allocation2 + $0x271] sm:$0x1]
    %v4552 = vld [vmem:[#allocation2 + $0x279] sm:$0x1]
    %v4553 = vrot.slane %v38, 1
    %v4634 = vrot.slane %v4474, 7
    %v4635 = vsel %vm4244, %v4634, %v4473
    %v4636 = vrot.slane %v4475, 6
    %v4637 = vsel %vm4247, %v4636, %v4635
    %v4638 = vrot.slane %v4476, 5
    %v4639 = vsel %vm4250, %v4638, %v4637
    %v4640 = vrot.slane %v4477, 4
    %v4641 = vsel %vm4253, %v4640, %v4639
    %v4642 = vrot.slane %v4478, 3
    %v4643 = vsel %vm4256, %v4642, %v4641
    %v4644 = vrot.slane %v4479, 2
    %v4645 = vsel %vm4259, %v4644, %v4643
    %v4646 = vrot.slane %v4480, 1
    %v4647 = vsel %vm4262, %v4646, %v4645
    %v4648 = vrot.slane %v4482, 7
    %v4649 = vsel %vm4244, %v4648, %v4481
    %v4650 = vrot.slane %v4483, 6
    %v4651 = vsel %vm4247, %v4650, %v4649
    %v4652 = vrot.slane %v4484, 5
    %v4653 = vsel %vm4250, %v4652, %v4651
    %v4654 = vrot.slane %v4485, 4
    %v4655 = vsel %vm4253, %v4654, %v4653
    %v4656 = vrot.slane %v4486, 3
    %v4657 = vsel %vm4256, %v4656, %v4655
    %v4658 = vrot.slane %v4487, 2
    %v4659 = vsel %vm4259, %v4658, %v4657
    %v4660 = vrot.slane %v4488, 1
    %v4661 = vsel %vm4262, %v4660, %v4659
    %v4662 = vrot.slane %v4490, 7
    %v4663 = vsel %vm4244, %v4662, %v4489
    %v4664 = vrot.slane %v4491, 6
    %v4665 = vsel %vm4247, %v4664, %v4663
    %v4666 = vrot.slane %v4492, 5
    %v4667 = vsel %vm4250, %v4666, %v4665
    %v4668 = vrot.slane %v4493, 4
    %v4669 = vsel %vm4253, %v4668, %v4667
    %v4670 = vrot.slane %v4494, 3
    %v4671 = vsel %vm4256, %v4670, %v4669
    %v4672 = vrot.slane %v4495, 2
    %v4673 = vsel %vm4259, %v4672, %v4671
    %v4674 = vrot.slane %v4496, 1
    %v4675 = vsel %vm4262, %v4674, %v4673
    %v4676 = vrot.slane %v4498, 7
    %v4677 = vsel %vm4244, %v4676, %v4497
    %v4678 = vrot.slane %v4499, 6
    %v4679 = vsel %vm4247, %v4678, %v4677
    %v4680 = vrot.slane %v4500, 5
    %v4681 = vsel %vm4250, %v4680, %v4679
    %v4682 = vrot.slane %v4501, 4
    %v4683 = vsel %vm4253, %v4682, %v4681
    %v4684 = vrot.slane %v4502, 3
    %v4685 = vsel %vm4256, %v4684, %v4683
    %v4686 = vrot.slane %v4503, 2
    %v4687 = vsel %vm4259, %v4686, %v4685
    %v4688 = vrot.slane %v4504, 1
    %v4689 = vsel %vm4262, %v4688, %v4687
    %v4690 = vrot.slane %v4506, 7
    %v4691 = vsel %vm4244, %v4690, %v4505
    %v4692 = vrot.slane %v4507, 6
    %v4693 = vsel %vm4247, %v4692, %v4691
    %v4694 = vrot.slane %v4508, 5
    %v4695 = vsel %vm4250, %v4694, %v4693
    %v4696 = vrot.slane %v4509, 4
    %v4697 = vsel %vm4253, %v4696, %v4695
    %v4698 = vrot.slane %v4510, 3
    %v4699 = vsel %vm4256, %v4698, %v4697
    %v4700 = vrot.slane %v4511, 2
    %v4701 = vsel %vm4259, %v4700, %v4699
    %v4702 = vrot.slane %v4512, 1
    %v4703 = vsel %vm4262, %v4702, %v4701
    %v4704 = vrot.slane %v4514, 7
    %v4705 = vsel %vm4244, %v4704, %v4513
    %v4706 = vrot.slane %v4515, 6
    %v4707 = vsel %vm4247, %v4706, %v4705
    %v4708 = vrot.slane %v4516, 5
    %v4709 = vsel %vm4250, %v4708, %v4707
    %v4710 = vrot.slane %v4517, 4
    %v4711 = vsel %vm4253, %v4710, %v4709
    %v4712 = vrot.slane %v4518, 3
    %v4713 = vsel %vm4256, %v4712, %v4711
    %v4714 = vrot.slane %v4519, 2
    %v4715 = vsel %vm4259, %v4714, %v4713
    %v4716 = vrot.slane %v4520, 1
    %v4717 = vsel %vm4262, %v4716, %v4715
    %v4718 = vrot.slane %v4522, 7
    %v4719 = vsel %vm4244, %v4718, %v4521
    %v4720 = vrot.slane %v4523, 6
    %v4721 = vsel %vm4247, %v4720, %v4719
    %v4722 = vrot.slane %v4524, 5
    %v4723 = vsel %vm4250, %v4722, %v4721
    %v4724 = vrot.slane %v4525, 4
    %v4725 = vsel %vm4253, %v4724, %v4723
    %v4726 = vrot.slane %v4526, 3
    %v4727 = vsel %vm4256, %v4726, %v4725
    %v4728 = vrot.slane %v4527, 2
    %v4729 = vsel %vm4259, %v4728, %v4727
    %v4730 = vrot.slane %v4528, 1
    %v4731 = vsel %vm4262, %v4730, %v4729
    %v4732 = vrot.slane %v4530, 7
    %v4733 = vsel %vm4244, %v4732, %v4529
    %v4734 = vrot.slane %v4531, 6
    %v4735 = vsel %vm4247, %v4734, %v4733
    %v4736 = vrot.slane %v4532, 5
    %v4737 = vsel %vm4250, %v4736, %v4735
    %v4738 = vrot.slane %v4533, 4
    %v4739 = vsel %vm4253, %v4738, %v4737
    %v4740 = vrot.slane %v4534, 3
    %v4741 = vsel %vm4256, %v4740, %v4739
    %v4742 = vrot.slane %v4535, 2
    %v4743 = vsel %vm4259, %v4742, %v4741
    %v4744 = vrot.slane %v4536, 1
    %v4745 = vsel %vm4262, %v4744, %v4743
    %v4746 = vrot.slane %v4538, 7
    %v4747 = vsel %vm4244, %v4746, %v4537
    %v4748 = vrot.slane %v4539, 6
    %v4749 = vsel %vm4247, %v4748, %v4747
    %v4750 = vrot.slane %v4540, 5
    %v4751 = vsel %vm4250, %v4750, %v4749
    %v4752 = vrot.slane %v4541, 4
    %v4753 = vsel %vm4253, %v4752, %v4751
    %v4754 = vrot.slane %v4542, 3
    %v4755 = vsel %vm4256, %v4754, %v4753
    %v4756 = vrot.slane %v4543, 2
    %v4757 = vsel %vm4259, %v4756, %v4755
    %v4758 = vrot.slane %v4544, 1
    %v4759 = vsel %vm4262, %v4758, %v4757
    %v4760 = vrot.slane %v4546, 7
    %v4761 = vsel %vm4244, %v4760, %v4545
    %v4762 = vrot.slane %v4547, 6
    %v4763 = vsel %vm4247, %v4762, %v4761
    %v4764 = vrot.slane %v4548, 5
    %v4765 = vsel %vm4250, %v4764, %v4763
    %v4766 = vrot.slane %v4549, 4
    %v4767 = vsel %vm4253, %v4766, %v4765
    %v4768 = vrot.slane %v4550, 3
    %v4769 = vsel %vm4256, %v4768, %v4767
    %v4770 = vrot.slane %v4551, 2
    %v4771 = vsel %vm4259, %v4770, %v4769
    %v4772 = vrot.slane %v4552, 1
    %v4773 = vsel %vm4262, %v4772, %v4771
    %v4784 = vsel %vm4400, %v4553, 0
    %4786 = vmatprep.subr.mxu0 0.0
    %4787 = vmatpush1.msra.mxu0 %v4647
    %4788 = vmatprep.subr.mxu0 0.0
    %4789 = vmatpush1.msra.mxu0 %v4661
    %4790 = vmatprep.subr.mxu0 0.0
    %4791 = vmatpush1.msra.mxu0 %v4675
    %4792 = vmatprep.subr.mxu0 0.0
    %4793 = vmatpush1.msra.mxu0 %v4689
    %4794 = vmatprep.subr.mxu0 0.0
    %4795 = vmatpush1.msra.mxu0 %v4703
    %4796 = vmatprep.subr.mxu0 0.0
    %4797 = vmatpush1.msra.mxu0 %v4717
    %4798 = vmatprep.subr.mxu0 0.0
    %4799 = vmatpush1.msra.mxu0 %v4731
    %4800 = vmatprep.subr.mxu0 0.0
    %4801 = vmatpush1.msra.mxu0 %v4745
    %4802 = vmatprep.subr.mxu0 0.0
    %4803 = vmatpush1.msra.mxu0 %v4759
    %4804 = vmatprep.subr.mxu0 0.0
    %4805 = vmatpush1.msra.mxu0 %v4773
    %4806 = vmatprep.subr.mxu0 0.0
    %4807 = vmatpush1.msra.mxu0 0.0
    %4808 = vmatprep.subr.mxu0 0.0
    %4809 = vmatpush1.msra.mxu0 0.0
    %4810 = vmatprep.subr.mxu0 0.0
    %4811 = vmatpush1.msra.mxu0 0.0
    %4812 = vmatprep.subr.mxu0 0.0
    %4813 = vmatpush1.msra.mxu0 0.0
    %4814 = vmatprep.subr.mxu0 0.0
    %4815 = vmatpush1.msra.mxu0 0.0
    %4816 = vmatprep.subr.mxu0 0.0
    %4817 = vmatpush1.msra.mxu0 0.0
    %4818 = vmatprep.subr.mxu0 0.0
    %4819 = vmatpush1.msra.mxu0 0.0
    %4820 = vmatprep.subr.mxu0 0.0
    %4821 = vmatpush1.msra.mxu0 0.0
    %4822 = vmatprep.subr.mxu0 0.0
    %4823 = vmatpush1.msra.mxu0 0.0
    %4824 = vmatprep.subr.mxu0 0.0
    %4825 = vmatpush1.msra.mxu0 0.0
    %4826 = vmatprep.subr.mxu0 0.0
    %4827 = vmatpush1.msra.mxu0 0.0
    %4828 = vmatprep.subr.mxu0 0.0
    %4829 = vmatpush1.msra.mxu0 0.0
    %4830 = vmatprep.subr.mxu0 0.0
    %4831 = vmatpush1.msra.mxu0 0.0
    %4832 = vmatprep.subr.mxu0 0.0
    %4833 = vmatpush1.msra.mxu0 0.0
    %4834 = vmatprep.subr.mxu0 0.0
    %4835 = vmatpush1.msra.mxu0 0.0
    %4836 = vmatprep.subr.mxu0 0.0
    %4837 = vmatpush1.msra.mxu0 0.0
    %4838 = vmatprep.subr.mxu0 0.0
    %4839 = vmatpush1.msra.mxu0 0.0
    %4840 = vmatprep.subr.mxu0 0.0
    %4841 = vmatpush1.msra.mxu0 0.0
    %4842 = vmatprep.subr.mxu0 0.0
    %4843 = vmatpush1.msra.mxu0 0.0
    %4844 = vmatprep.subr.mxu0 0.0
    %4845 = vmatpush1.msra.mxu0 0.0
    %4846 = vmatprep.subr.mxu0 0.0
    %4847 = vmatpush1.msra.mxu0 0.0
    %4848 = vmatprep.subr.mxu0 0.0
    %4849 = vmatpush1.msra.mxu0 0.0
    %4850 = vmatprep.mubr.f32.mxu0 0.0
    %4851 = vmatmul.mubr.f32.gmra.mrb[0].mxu0 %v4784
    %v4852 = vpop.f32.mrb[0].mxu0
    %v4853 = vadd.f32 0.0, %v4852
    %v4854 = vpop.f32.mrb[0].mxu0
    %4855 = vdwg.mxu0
    %v4856 = vld [vmem:[#allocation2 + $0x2] sm:$0x1]
    %v4857 = vld [vmem:[#allocation2 + $0xa] sm:$0x1]
    %v4858 = vld [vmem:[#allocation2 + $0x12] sm:$0x1]
    %v4859 = vld [vmem:[#allocation2 + $0x1a] sm:$0x1]
    %v4860 = vld [vmem:[#allocation2 + $0x22] sm:$0x1]
    %v4861 = vld [vmem:[#allocation2 + $0x2a] sm:$0x1]
    %v4862 = vld [vmem:[#allocation2 + $0x32] sm:$0x1]
    %v4863 = vld [vmem:[#allocation2 + $0x3a] sm:$0x1]
    %v4864 = vld [vmem:[#allocation2 + $0x42] sm:$0x1]
    %v4865 = vld [vmem:[#allocation2 + $0x4a] sm:$0x1]
    %v4866 = vld [vmem:[#allocation2 + $0x52] sm:$0x1]
    %v4867 = vld [vmem:[#allocation2 + $0x5a] sm:$0x1]
    %v4868 = vld [vmem:[#allocation2 + $0x62] sm:$0x1]
    %v4869 = vld [vmem:[#allocation2 + $0x6a] sm:$0x1]
    %v4870 = vld [vmem:[#allocation2 + $0x72] sm:$0x1]
    %v4871 = vld [vmem:[#allocation2 + $0x7a] sm:$0x1]
    %v4872 = vld [vmem:[#allocation2 + $0x82] sm:$0x1]
    %v4873 = vld [vmem:[#allocation2 + $0x8a] sm:$0x1]
    %v4874 = vld [vmem:[#allocation2 + $0x92] sm:$0x1]
    %v4875 = vld [vmem:[#allocation2 + $0x9a] sm:$0x1]
    %v4876 = vld [vmem:[#allocation2 + $0xa2] sm:$0x1]
    %v4877 = vld [vmem:[#allocation2 + $0xaa] sm:$0x1]
    %v4878 = vld [vmem:[#allocation2 + $0xb2] sm:$0x1]
    %v4879 = vld [vmem:[#allocation2 + $0xba] sm:$0x1]
    %v4880 = vld [vmem:[#allocation2 + $0xc2] sm:$0x1]
    %v4881 = vld [vmem:[#allocation2 + $0xca] sm:$0x1]
    %v4882 = vld [vmem:[#allocation2 + $0xd2] sm:$0x1]
    %v4883 = vld [vmem:[#allocation2 + $0xda] sm:$0x1]
    %v4884 = vld [vmem:[#allocation2 + $0xe2] sm:$0x1]
    %v4885 = vld [vmem:[#allocation2 + $0xea] sm:$0x1]
    %v4886 = vld [vmem:[#allocation2 + $0xf2] sm:$0x1]
    %v4887 = vld [vmem:[#allocation2 + $0xfa] sm:$0x1]
    %v4888 = vld [vmem:[#allocation2 + $0x102] sm:$0x1]
    %v4889 = vld [vmem:[#allocation2 + $0x10a] sm:$0x1]
    %v4890 = vld [vmem:[#allocation2 + $0x112] sm:$0x1]
    %v4891 = vld [vmem:[#allocation2 + $0x11a] sm:$0x1]
    %v4892 = vld [vmem:[#allocation2 + $0x122] sm:$0x1]
    %v4893 = vld [vmem:[#allocation2 + $0x12a] sm:$0x1]
    %v4894 = vld [vmem:[#allocation2 + $0x132] sm:$0x1]
    %v4895 = vld [vmem:[#allocation2 + $0x13a] sm:$0x1]
    %v4896 = vld [vmem:[#allocation2 + $0x142] sm:$0x1]
    %v4897 = vld [vmem:[#allocation2 + $0x14a] sm:$0x1]
    %v4898 = vld [vmem:[#allocation2 + $0x152] sm:$0x1]
    %v4899 = vld [vmem:[#allocation2 + $0x15a] sm:$0x1]
    %v4900 = vld [vmem:[#allocation2 + $0x162] sm:$0x1]
    %v4901 = vld [vmem:[#allocation2 + $0x16a] sm:$0x1]
    %v4902 = vld [vmem:[#allocation2 + $0x172] sm:$0x1]
    %v4903 = vld [vmem:[#allocation2 + $0x17a] sm:$0x1]
    %v4904 = vld [vmem:[#allocation2 + $0x182] sm:$0x1]
    %v4905 = vld [vmem:[#allocation2 + $0x18a] sm:$0x1]
    %v4906 = vld [vmem:[#allocation2 + $0x192] sm:$0x1]
    %v4907 = vld [vmem:[#allocation2 + $0x19a] sm:$0x1]
    %v4908 = vld [vmem:[#allocation2 + $0x1a2] sm:$0x1]
    %v4909 = vld [vmem:[#allocation2 + $0x1aa] sm:$0x1]
    %v4910 = vld [vmem:[#allocation2 + $0x1b2] sm:$0x1]
    %v4911 = vld [vmem:[#allocation2 + $0x1ba] sm:$0x1]
    %v4912 = vld [vmem:[#allocation2 + $0x1c2] sm:$0x1]
    %v4913 = vld [vmem:[#allocation2 + $0x1ca] sm:$0x1]
    %v4914 = vld [vmem:[#allocation2 + $0x1d2] sm:$0x1]
    %v4915 = vld [vmem:[#allocation2 + $0x1da] sm:$0x1]
    %v4916 = vld [vmem:[#allocation2 + $0x1e2] sm:$0x1]
    %v4917 = vld [vmem:[#allocation2 + $0x1ea] sm:$0x1]
    %v4918 = vld [vmem:[#allocation2 + $0x1f2] sm:$0x1]
    %v4919 = vld [vmem:[#allocation2 + $0x1fa] sm:$0x1]
    %v4920 = vld [vmem:[#allocation2 + $0x202] sm:$0x1]
    %v4921 = vld [vmem:[#allocation2 + $0x20a] sm:$0x1]
    %v4922 = vld [vmem:[#allocation2 + $0x212] sm:$0x1]
    %v4923 = vld [vmem:[#allocation2 + $0x21a] sm:$0x1]
    %v4924 = vld [vmem:[#allocation2 + $0x222] sm:$0x1]
    %v4925 = vld [vmem:[#allocation2 + $0x22a] sm:$0x1]
    %v4926 = vld [vmem:[#allocation2 + $0x232] sm:$0x1]
    %v4927 = vld [vmem:[#allocation2 + $0x23a] sm:$0x1]
    %v4928 = vld [vmem:[#allocation2 + $0x242] sm:$0x1]
    %v4929 = vld [vmem:[#allocation2 + $0x24a] sm:$0x1]
    %v4930 = vld [vmem:[#allocation2 + $0x252] sm:$0x1]
    %v4931 = vld [vmem:[#allocation2 + $0x25a] sm:$0x1]
    %v4932 = vld [vmem:[#allocation2 + $0x262] sm:$0x1]
    %v4933 = vld [vmem:[#allocation2 + $0x26a] sm:$0x1]
    %v4934 = vld [vmem:[#allocation2 + $0x272] sm:$0x1]
    %v4935 = vld [vmem:[#allocation2 + $0x27a] sm:$0x1]
    %v4936 = vrot.slane %v38, 2
    %v5017 = vrot.slane %v4857, 7
    %v5018 = vsel %vm4244, %v5017, %v4856
    %v5019 = vrot.slane %v4858, 6
    %v5020 = vsel %vm4247, %v5019, %v5018
    %v5021 = vrot.slane %v4859, 5
    %v5022 = vsel %vm4250, %v5021, %v5020
    %v5023 = vrot.slane %v4860, 4
    %v5024 = vsel %vm4253, %v5023, %v5022
    %v5025 = vrot.slane %v4861, 3
    %v5026 = vsel %vm4256, %v5025, %v5024
    %v5027 = vrot.slane %v4862, 2
    %v5028 = vsel %vm4259, %v5027, %v5026
    %v5029 = vrot.slane %v4863, 1
    %v5030 = vsel %vm4262, %v5029, %v5028
    %v5031 = vrot.slane %v4865, 7
    %v5032 = vsel %vm4244, %v5031, %v4864
    %v5033 = vrot.slane %v4866, 6
    %v5034 = vsel %vm4247, %v5033, %v5032
    %v5035 = vrot.slane %v4867, 5
    %v5036 = vsel %vm4250, %v5035, %v5034
    %v5037 = vrot.slane %v4868, 4
    %v5038 = vsel %vm4253, %v5037, %v5036
    %v5039 = vrot.slane %v4869, 3
    %v5040 = vsel %vm4256, %v5039, %v5038
    %v5041 = vrot.slane %v4870, 2
    %v5042 = vsel %vm4259, %v5041, %v5040
    %v5043 = vrot.slane %v4871, 1
    %v5044 = vsel %vm4262, %v5043, %v5042
    %v5045 = vrot.slane %v4873, 7
    %v5046 = vsel %vm4244, %v5045, %v4872
    %v5047 = vrot.slane %v4874, 6
    %v5048 = vsel %vm4247, %v5047, %v5046
    %v5049 = vrot.slane %v4875, 5
    %v5050 = vsel %vm4250, %v5049, %v5048
    %v5051 = vrot.slane %v4876, 4
    %v5052 = vsel %vm4253, %v5051, %v5050
    %v5053 = vrot.slane %v4877, 3
    %v5054 = vsel %vm4256, %v5053, %v5052
    %v5055 = vrot.slane %v4878, 2
    %v5056 = vsel %vm4259, %v5055, %v5054
    %v5057 = vrot.slane %v4879, 1
    %v5058 = vsel %vm4262, %v5057, %v5056
    %v5059 = vrot.slane %v4881, 7
    %v5060 = vsel %vm4244, %v5059, %v4880
    %v5061 = vrot.slane %v4882, 6
    %v5062 = vsel %vm4247, %v5061, %v5060
    %v5063 = vrot.slane %v4883, 5
    %v5064 = vsel %vm4250, %v5063, %v5062
    %v5065 = vrot.slane %v4884, 4
    %v5066 = vsel %vm4253, %v5065, %v5064
    %v5067 = vrot.slane %v4885, 3
    %v5068 = vsel %vm4256, %v5067, %v5066
    %v5069 = vrot.slane %v4886, 2
    %v5070 = vsel %vm4259, %v5069, %v5068
    %v5071 = vrot.slane %v4887, 1
    %v5072 = vsel %vm4262, %v5071, %v5070
    %v5073 = vrot.slane %v4889, 7
    %v5074 = vsel %vm4244, %v5073, %v4888
    %v5075 = vrot.slane %v4890, 6
    %v5076 = vsel %vm4247, %v5075, %v5074
    %v5077 = vrot.slane %v4891, 5
    %v5078 = vsel %vm4250, %v5077, %v5076
    %v5079 = vrot.slane %v4892, 4
    %v5080 = vsel %vm4253, %v5079, %v5078
    %v5081 = vrot.slane %v4893, 3
    %v5082 = vsel %vm4256, %v5081, %v5080
    %v5083 = vrot.slane %v4894, 2
    %v5084 = vsel %vm4259, %v5083, %v5082
    %v5085 = vrot.slane %v4895, 1
    %v5086 = vsel %vm4262, %v5085, %v5084
    %v5087 = vrot.slane %v4897, 7
    %v5088 = vsel %vm4244, %v5087, %v4896
    %v5089 = vrot.slane %v4898, 6
    %v5090 = vsel %vm4247, %v5089, %v5088
    %v5091 = vrot.slane %v4899, 5
    %v5092 = vsel %vm4250, %v5091, %v5090
    %v5093 = vrot.slane %v4900, 4
    %v5094 = vsel %vm4253, %v5093, %v5092
    %v5095 = vrot.slane %v4901, 3
    %v5096 = vsel %vm4256, %v5095, %v5094
    %v5097 = vrot.slane %v4902, 2
    %v5098 = vsel %vm4259, %v5097, %v5096
    %v5099 = vrot.slane %v4903, 1
    %v5100 = vsel %vm4262, %v5099, %v5098
    %v5101 = vrot.slane %v4905, 7
    %v5102 = vsel %vm4244, %v5101, %v4904
    %v5103 = vrot.slane %v4906, 6
    %v5104 = vsel %vm4247, %v5103, %v5102
    %v5105 = vrot.slane %v4907, 5
    %v5106 = vsel %vm4250, %v5105, %v5104
    %v5107 = vrot.slane %v4908, 4
    %v5108 = vsel %vm4253, %v5107, %v5106
    %v5109 = vrot.slane %v4909, 3
    %v5110 = vsel %vm4256, %v5109, %v5108
    %v5111 = vrot.slane %v4910, 2
    %v5112 = vsel %vm4259, %v5111, %v5110
    %v5113 = vrot.slane %v4911, 1
    %v5114 = vsel %vm4262, %v5113, %v5112
    %v5115 = vrot.slane %v4913, 7
    %v5116 = vsel %vm4244, %v5115, %v4912
    %v5117 = vrot.slane %v4914, 6
    %v5118 = vsel %vm4247, %v5117, %v5116
    %v5119 = vrot.slane %v4915, 5
    %v5120 = vsel %vm4250, %v5119, %v5118
    %v5121 = vrot.slane %v4916, 4
    %v5122 = vsel %vm4253, %v5121, %v5120
    %v5123 = vrot.slane %v4917, 3
    %v5124 = vsel %vm4256, %v5123, %v5122
    %v5125 = vrot.slane %v4918, 2
    %v5126 = vsel %vm4259, %v5125, %v5124
    %v5127 = vrot.slane %v4919, 1
    %v5128 = vsel %vm4262, %v5127, %v5126
    %v5129 = vrot.slane %v4921, 7
    %v5130 = vsel %vm4244, %v5129, %v4920
    %v5131 = vrot.slane %v4922, 6
    %v5132 = vsel %vm4247, %v5131, %v5130
    %v5133 = vrot.slane %v4923, 5
    %v5134 = vsel %vm4250, %v5133, %v5132
    %v5135 = vrot.slane %v4924, 4
    %v5136 = vsel %vm4253, %v5135, %v5134
    %v5137 = vrot.slane %v4925, 3
    %v5138 = vsel %vm4256, %v5137, %v5136
    %v5139 = vrot.slane %v4926, 2
    %v5140 = vsel %vm4259, %v5139, %v5138
    %v5141 = vrot.slane %v4927, 1
    %v5142 = vsel %vm4262, %v5141, %v5140
    %v5143 = vrot.slane %v4929, 7
    %v5144 = vsel %vm4244, %v5143, %v4928
    %v5145 = vrot.slane %v4930, 6
    %v5146 = vsel %vm4247, %v5145, %v5144
    %v5147 = vrot.slane %v4931, 5
    %v5148 = vsel %vm4250, %v5147, %v5146
    %v5149 = vrot.slane %v4932, 4
    %v5150 = vsel %vm4253, %v5149, %v5148
    %v5151 = vrot.slane %v4933, 3
    %v5152 = vsel %vm4256, %v5151, %v5150
    %v5153 = vrot.slane %v4934, 2
    %v5154 = vsel %vm4259, %v5153, %v5152
    %v5155 = vrot.slane %v4935, 1
    %v5156 = vsel %vm4262, %v5155, %v5154
    %v5167 = vsel %vm4400, %v4936, 0
    %5169 = vmatprep.subr.mxu0 0.0
    %5170 = vmatpush1.msra.mxu0 %v5030
    %5171 = vmatprep.subr.mxu0 0.0
    %5172 = vmatpush1.msra.mxu0 %v5044
    %5173 = vmatprep.subr.mxu0 0.0
    %5174 = vmatpush1.msra.mxu0 %v5058
    %5175 = vmatprep.subr.mxu0 0.0
    %5176 = vmatpush1.msra.mxu0 %v5072
    %5177 = vmatprep.subr.mxu0 0.0
    %5178 = vmatpush1.msra.mxu0 %v5086
    %5179 = vmatprep.subr.mxu0 0.0
    %5180 = vmatpush1.msra.mxu0 %v5100
    %5181 = vmatprep.subr.mxu0 0.0
    %5182 = vmatpush1.msra.mxu0 %v5114
    %5183 = vmatprep.subr.mxu0 0.0
    %5184 = vmatpush1.msra.mxu0 %v5128
    %5185 = vmatprep.subr.mxu0 0.0
    %5186 = vmatpush1.msra.mxu0 %v5142
    %5187 = vmatprep.subr.mxu0 0.0
    %5188 = vmatpush1.msra.mxu0 %v5156
    %5189 = vmatprep.subr.mxu0 0.0
    %5190 = vmatpush1.msra.mxu0 0.0
    %5191 = vmatprep.subr.mxu0 0.0
    %5192 = vmatpush1.msra.mxu0 0.0
    %5193 = vmatprep.subr.mxu0 0.0
    %5194 = vmatpush1.msra.mxu0 0.0
    %5195 = vmatprep.subr.mxu0 0.0
    %5196 = vmatpush1.msra.mxu0 0.0
    %5197 = vmatprep.subr.mxu0 0.0
    %5198 = vmatpush1.msra.mxu0 0.0
    %5199 = vmatprep.subr.mxu0 0.0
    %5200 = vmatpush1.msra.mxu0 0.0
    %5201 = vmatprep.subr.mxu0 0.0
    %5202 = vmatpush1.msra.mxu0 0.0
    %5203 = vmatprep.subr.mxu0 0.0
    %5204 = vmatpush1.msra.mxu0 0.0
    %5205 = vmatprep.subr.mxu0 0.0
    %5206 = vmatpush1.msra.mxu0 0.0
    %5207 = vmatprep.subr.mxu0 0.0
    %5208 = vmatpush1.msra.mxu0 0.0
    %5209 = vmatprep.subr.mxu0 0.0
    %5210 = vmatpush1.msra.mxu0 0.0
    %5211 = vmatprep.subr.mxu0 0.0
    %5212 = vmatpush1.msra.mxu0 0.0
    %5213 = vmatprep.subr.mxu0 0.0
    %5214 = vmatpush1.msra.mxu0 0.0
    %5215 = vmatprep.subr.mxu0 0.0
    %5216 = vmatpush1.msra.mxu0 0.0
    %5217 = vmatprep.subr.mxu0 0.0
    %5218 = vmatpush1.msra.mxu0 0.0
    %5219 = vmatprep.subr.mxu0 0.0
    %5220 = vmatpush1.msra.mxu0 0.0
    %5221 = vmatprep.subr.mxu0 0.0
    %5222 = vmatpush1.msra.mxu0 0.0
    %5223 = vmatprep.subr.mxu0 0.0
    %5224 = vmatpush1.msra.mxu0 0.0
    %5225 = vmatprep.subr.mxu0 0.0
    %5226 = vmatpush1.msra.mxu0 0.0
    %5227 = vmatprep.subr.mxu0 0.0
    %5228 = vmatpush1.msra.mxu0 0.0
    %5229 = vmatprep.subr.mxu0 0.0
    %5230 = vmatpush1.msra.mxu0 0.0
    %5231 = vmatprep.subr.mxu0 0.0
    %5232 = vmatpush1.msra.mxu0 0.0
    %5233 = vmatprep.mubr.f32.mxu0 0.0
    %5234 = vmatmul.mubr.f32.gmra.mrb[0].mxu0 %v5167
    %v5235 = vpop.f32.mrb[0].mxu0
    %v5236 = vadd.f32 0.0, %v5235
    %v5237 = vpop.f32.mrb[0].mxu0
    %5238 = vdwg.mxu0
    %v5239 = vld [vmem:[#allocation2 + $0x3] sm:$0x1]
    %v5240 = vld [vmem:[#allocation2 + $0xb] sm:$0x1]
    %v5241 = vld [vmem:[#allocation2 + $0x13] sm:$0x1]
    %v5242 = vld [vmem:[#allocation2 + $0x1b] sm:$0x1]
    %v5243 = vld [vmem:[#allocation2 + $0x23] sm:$0x1]
    %v5244 = vld [vmem:[#allocation2 + $0x2b] sm:$0x1]
    %v5245 = vld [vmem:[#allocation2 + $0x33] sm:$0x1]
    %v5246 = vld [vmem:[#allocation2 + $0x3b] sm:$0x1]
    %v5247 = vld [vmem:[#allocation2 + $0x43] sm:$0x1]
    %v5248 = vld [vmem:[#allocation2 + $0x4b] sm:$0x1]
    %v5249 = vld [vmem:[#allocation2 + $0x53] sm:$0x1]
    %v5250 = vld [vmem:[#allocation2 + $0x5b] sm:$0x1]
    %v5251 = vld [vmem:[#allocation2 + $0x63] sm:$0x1]
    %v5252 = vld [vmem:[#allocation2 + $0x6b] sm:$0x1]
    %v5253 = vld [vmem:[#allocation2 + $0x73] sm:$0x1]
    %v5254 = vld [vmem:[#allocation2 + $0x7b] sm:$0x1]
    %v5255 = vld [vmem:[#allocation2 + $0x83] sm:$0x1]
    %v5256 = vld [vmem:[#allocation2 + $0x8b] sm:$0x1]
    %v5257 = vld [vmem:[#allocation2 + $0x93] sm:$0x1]
    %v5258 = vld [vmem:[#allocation2 + $0x9b] sm:$0x1]
    %v5259 = vld [vmem:[#allocation2 + $0xa3] sm:$0x1]
    %v5260 = vld [vmem:[#allocation2 + $0xab] sm:$0x1]
    %v5261 = vld [vmem:[#allocation2 + $0xb3] sm:$0x1]
    %v5262 = vld [vmem:[#allocation2 + $0xbb] sm:$0x1]
    %v5263 = vld [vmem:[#allocation2 + $0xc3] sm:$0x1]
    %v5264 = vld [vmem:[#allocation2 + $0xcb] sm:$0x1]
    %v5265 = vld [vmem:[#allocation2 + $0xd3] sm:$0x1]
    %v5266 = vld [vmem:[#allocation2 + $0xdb] sm:$0x1]
    %v5267 = vld [vmem:[#allocation2 + $0xe3] sm:$0x1]
    %v5268 = vld [vmem:[#allocation2 + $0xeb] sm:$0x1]
    %v5269 = vld [vmem:[#allocation2 + $0xf3] sm:$0x1]
    %v5270 = vld [vmem:[#allocation2 + $0xfb] sm:$0x1]
    %v5271 = vld [vmem:[#allocation2 + $0x103] sm:$0x1]
    %v5272 = vld [vmem:[#allocation2 + $0x10b] sm:$0x1]
    %v5273 = vld [vmem:[#allocation2 + $0x113] sm:$0x1]
    %v5274 = vld [vmem:[#allocation2 + $0x11b] sm:$0x1]
    %v5275 = vld [vmem:[#allocation2 + $0x123] sm:$0x1]
    %v5276 = vld [vmem:[#allocation2 + $0x12b] sm:$0x1]
    %v5277 = vld [vmem:[#allocation2 + $0x133] sm:$0x1]
    %v5278 = vld [vmem:[#allocation2 + $0x13b] sm:$0x1]
    %v5279 = vld [vmem:[#allocation2 + $0x143] sm:$0x1]
    %v5280 = vld [vmem:[#allocation2 + $0x14b] sm:$0x1]
    %v5281 = vld [vmem:[#allocation2 + $0x153] sm:$0x1]
    %v5282 = vld [vmem:[#allocation2 + $0x15b] sm:$0x1]
    %v5283 = vld [vmem:[#allocation2 + $0x163] sm:$0x1]
    %v5284 = vld [vmem:[#allocation2 + $0x16b] sm:$0x1]
    %v5285 = vld [vmem:[#allocation2 + $0x173] sm:$0x1]
    %v5286 = vld [vmem:[#allocation2 + $0x17b] sm:$0x1]
    %v5287 = vld [vmem:[#allocation2 + $0x183] sm:$0x1]
    %v5288 = vld [vmem:[#allocation2 + $0x18b] sm:$0x1]
    %v5289 = vld [vmem:[#allocation2 + $0x193] sm:$0x1]
    %v5290 = vld [vmem:[#allocation2 + $0x19b] sm:$0x1]
    %v5291 = vld [vmem:[#allocation2 + $0x1a3] sm:$0x1]
    %v5292 = vld [vmem:[#allocation2 + $0x1ab] sm:$0x1]
    %v5293 = vld [vmem:[#allocation2 + $0x1b3] sm:$0x1]
    %v5294 = vld [vmem:[#allocation2 + $0x1bb] sm:$0x1]
    %v5295 = vld [vmem:[#allocation2 + $0x1c3] sm:$0x1]
    %v5296 = vld [vmem:[#allocation2 + $0x1cb] sm:$0x1]
    %v5297 = vld [vmem:[#allocation2 + $0x1d3] sm:$0x1]
    %v5298 = vld [vmem:[#allocation2 + $0x1db] sm:$0x1]
    %v5299 = vld [vmem:[#allocation2 + $0x1e3] sm:$0x1]
    %v5300 = vld [vmem:[#allocation2 + $0x1eb] sm:$0x1]
    %v5301 = vld [vmem:[#allocation2 + $0x1f3] sm:$0x1]
    %v5302 = vld [vmem:[#allocation2 + $0x1fb] sm:$0x1]
    %v5303 = vld [vmem:[#allocation2 + $0x203] sm:$0x1]
    %v5304 = vld [vmem:[#allocation2 + $0x20b] sm:$0x1]
    %v5305 = vld [vmem:[#allocation2 + $0x213] sm:$0x1]
    %v5306 = vld [vmem:[#allocation2 + $0x21b] sm:$0x1]
    %v5307 = vld [vmem:[#allocation2 + $0x223] sm:$0x1]
    %v5308 = vld [vmem:[#allocation2 + $0x22b] sm:$0x1]
    %v5309 = vld [vmem:[#allocation2 + $0x233] sm:$0x1]
    %v5310 = vld [vmem:[#allocation2 + $0x23b] sm:$0x1]
    %v5311 = vld [vmem:[#allocation2 + $0x243] sm:$0x1]
    %v5312 = vld [vmem:[#allocation2 + $0x24b] sm:$0x1]
    %v5313 = vld [vmem:[#allocation2 + $0x253] sm:$0x1]
    %v5314 = vld [vmem:[#allocation2 + $0x25b] sm:$0x1]
    %v5315 = vld [vmem:[#allocation2 + $0x263] sm:$0x1]
    %v5316 = vld [vmem:[#allocation2 + $0x26b] sm:$0x1]
    %v5317 = vld [vmem:[#allocation2 + $0x273] sm:$0x1]
    %v5318 = vld [vmem:[#allocation2 + $0x27b] sm:$0x1]
    %v5319 = vrot.slane %v38, 3
    %v5400 = vrot.slane %v5240, 7
    %v5401 = vsel %vm4244, %v5400, %v5239
    %v5402 = vrot.slane %v5241, 6
    %v5403 = vsel %vm4247, %v5402, %v5401
    %v5404 = vrot.slane %v5242, 5
    %v5405 = vsel %vm4250, %v5404, %v5403
    %v5406 = vrot.slane %v5243, 4
    %v5407 = vsel %vm4253, %v5406, %v5405
    %v5408 = vrot.slane %v5244, 3
    %v5409 = vsel %vm4256, %v5408, %v5407
    %v5410 = vrot.slane %v5245, 2
    %v5411 = vsel %vm4259, %v5410, %v5409
    %v5412 = vrot.slane %v5246, 1
    %v5413 = vsel %vm4262, %v5412, %v5411
    %v5414 = vrot.slane %v5248, 7
    %v5415 = vsel %vm4244, %v5414, %v5247
    %v5416 = vrot.slane %v5249, 6
    %v5417 = vsel %vm4247, %v5416, %v5415
    %v5418 = vrot.slane %v5250, 5
    %v5419 = vsel %vm4250, %v5418, %v5417
    %v5420 = vrot.slane %v5251, 4
    %v5421 = vsel %vm4253, %v5420, %v5419
    %v5422 = vrot.slane %v5252, 3
    %v5423 = vsel %vm4256, %v5422, %v5421
    %v5424 = vrot.slane %v5253, 2
    %v5425 = vsel %vm4259, %v5424, %v5423
    %v5426 = vrot.slane %v5254, 1
    %v5427 = vsel %vm4262, %v5426, %v5425
    %v5428 = vrot.slane %v5256, 7
    %v5429 = vsel %vm4244, %v5428, %v5255
    %v5430 = vrot.slane %v5257, 6
    %v5431 = vsel %vm4247, %v5430, %v5429
    %v5432 = vrot.slane %v5258, 5
    %v5433 = vsel %vm4250, %v5432, %v5431
    %v5434 = vrot.slane %v5259, 4
    %v5435 = vsel %vm4253, %v5434, %v5433
    %v5436 = vrot.slane %v5260, 3
    %v5437 = vsel %vm4256, %v5436, %v5435
    %v5438 = vrot.slane %v5261, 2
    %v5439 = vsel %vm4259, %v5438, %v5437
    %v5440 = vrot.slane %v5262, 1
    %v5441 = vsel %vm4262, %v5440, %v5439
    %v5442 = vrot.slane %v5264, 7
    %v5443 = vsel %vm4244, %v5442, %v5263
    %v5444 = vrot.slane %v5265, 6
    %v5445 = vsel %vm4247, %v5444, %v5443
    %v5446 = vrot.slane %v5266, 5
    %v5447 = vsel %vm4250, %v5446, %v5445
    %v5448 = vrot.slane %v5267, 4
    %v5449 = vsel %vm4253, %v5448, %v5447
    %v5450 = vrot.slane %v5268, 3
    %v5451 = vsel %vm4256, %v5450, %v5449
    %v5452 = vrot.slane %v5269, 2
    %v5453 = vsel %vm4259, %v5452, %v5451
    %v5454 = vrot.slane %v5270, 1
    %v5455 = vsel %vm4262, %v5454, %v5453
    %v5456 = vrot.slane %v5272, 7
    %v5457 = vsel %vm4244, %v5456, %v5271
    %v5458 = vrot.slane %v5273, 6
    %v5459 = vsel %vm4247, %v5458, %v5457
    %v5460 = vrot.slane %v5274, 5
    %v5461 = vsel %vm4250, %v5460, %v5459
    %v5462 = vrot.slane %v5275, 4
    %v5463 = vsel %vm4253, %v5462, %v5461
    %v5464 = vrot.slane %v5276, 3
    %v5465 = vsel %vm4256, %v5464, %v5463
    %v5466 = vrot.slane %v5277, 2
    %v5467 = vsel %vm4259, %v5466, %v5465
    %v5468 = vrot.slane %v5278, 1
    %v5469 = vsel %vm4262, %v5468, %v5467
    %v5470 = vrot.slane %v5280, 7
    %v5471 = vsel %vm4244, %v5470, %v5279
    %v5472 = vrot.slane %v5281, 6
    %v5473 = vsel %vm4247, %v5472, %v5471
    %v5474 = vrot.slane %v5282, 5
    %v5475 = vsel %vm4250, %v5474, %v5473
    %v5476 = vrot.slane %v5283, 4
    %v5477 = vsel %vm4253, %v5476, %v5475
    %v5478 = vrot.slane %v5284, 3
    %v5479 = vsel %vm4256, %v5478, %v5477
    %v5480 = vrot.slane %v5285, 2
    %v5481 = vsel %vm4259, %v5480, %v5479
    %v5482 = vrot.slane %v5286, 1
    %v5483 = vsel %vm4262, %v5482, %v5481
    %v5484 = vrot.slane %v5288, 7
    %v5485 = vsel %vm4244, %v5484, %v5287
    %v5486 = vrot.slane %v5289, 6
    %v5487 = vsel %vm4247, %v5486, %v5485
    %v5488 = vrot.slane %v5290, 5
    %v5489 = vsel %vm4250, %v5488, %v5487
    %v5490 = vrot.slane %v5291, 4
    %v5491 = vsel %vm4253, %v5490, %v5489
    %v5492 = vrot.slane %v5292, 3
    %v5493 = vsel %vm4256, %v5492, %v5491
    %v5494 = vrot.slane %v5293, 2
    %v5495 = vsel %vm4259, %v5494, %v5493
    %v5496 = vrot.slane %v5294, 1
    %v5497 = vsel %vm4262, %v5496, %v5495
    %v5498 = vrot.slane %v5296, 7
    %v5499 = vsel %vm4244, %v5498, %v5295
    %v5500 = vrot.slane %v5297, 6
    %v5501 = vsel %vm4247, %v5500, %v5499
    %v5502 = vrot.slane %v5298, 5
    %v5503 = vsel %vm4250, %v5502, %v5501
    %v5504 = vrot.slane %v5299, 4
    %v5505 = vsel %vm4253, %v5504, %v5503
    %v5506 = vrot.slane %v5300, 3
    %v5507 = vsel %vm4256, %v5506, %v5505
    %v5508 = vrot.slane %v5301, 2
    %v5509 = vsel %vm4259, %v5508, %v5507
    %v5510 = vrot.slane %v5302, 1
    %v5511 = vsel %vm4262, %v5510, %v5509
    %v5512 = vrot.slane %v5304, 7
    %v5513 = vsel %vm4244, %v5512, %v5303
    %v5514 = vrot.slane %v5305, 6
    %v5515 = vsel %vm4247, %v5514, %v5513
    %v5516 = vrot.slane %v5306, 5
    %v5517 = vsel %vm4250, %v5516, %v5515
    %v5518 = vrot.slane %v5307, 4
    %v5519 = vsel %vm4253, %v5518, %v5517
    %v5520 = vrot.slane %v5308, 3
    %v5521 = vsel %vm4256, %v5520, %v5519
    %v5522 = vrot.slane %v5309, 2
    %v5523 = vsel %vm4259, %v5522, %v5521
    %v5524 = vrot.slane %v5310, 1
    %v5525 = vsel %vm4262, %v5524, %v5523
    %v5526 = vrot.slane %v5312, 7
    %v5527 = vsel %vm4244, %v5526, %v5311
    %v5528 = vrot.slane %v5313, 6
    %v5529 = vsel %vm4247, %v5528, %v5527
    %v5530 = vrot.slane %v5314, 5
    %v5531 = vsel %vm4250, %v5530, %v5529
    %v5532 = vrot.slane %v5315, 4
    %v5533 = vsel %vm4253, %v5532, %v5531
    %v5534 = vrot.slane %v5316, 3
    %v5535 = vsel %vm4256, %v5534, %v5533
    %v5536 = vrot.slane %v5317, 2
    %v5537 = vsel %vm4259, %v5536, %v5535
    %v5538 = vrot.slane %v5318, 1
    %v5539 = vsel %vm4262, %v5538, %v5537
    %v5550 = vsel %vm4400, %v5319, 0
    %5552 = vmatprep.subr.mxu0 0.0
    %5553 = vmatpush1.msra.mxu0 %v5413
    %5554 = vmatprep.subr.mxu0 0.0
    %5555 = vmatpush1.msra.mxu0 %v5427
    %5556 = vmatprep.subr.mxu0 0.0
    %5557 = vmatpush1.msra.mxu0 %v5441
    %5558 = vmatprep.subr.mxu0 0.0
    %5559 = vmatpush1.msra.mxu0 %v5455
    %5560 = vmatprep.subr.mxu0 0.0
    %5561 = vmatpush1.msra.mxu0 %v5469
    %5562 = vmatprep.subr.mxu0 0.0
    %5563 = vmatpush1.msra.mxu0 %v5483
    %5564 = vmatprep.subr.mxu0 0.0
    %5565 = vmatpush1.msra.mxu0 %v5497
    %5566 = vmatprep.subr.mxu0 0.0
    %5567 = vmatpush1.msra.mxu0 %v5511
    %5568 = vmatprep.subr.mxu0 0.0
    %5569 = vmatpush1.msra.mxu0 %v5525
    %5570 = vmatprep.subr.mxu0 0.0
    %5571 = vmatpush1.msra.mxu0 %v5539
    %5572 = vmatprep.subr.mxu0 0.0
    %5573 = vmatpush1.msra.mxu0 0.0
    %5574 = vmatprep.subr.mxu0 0.0
    %5575 = vmatpush1.msra.mxu0 0.0
    %5576 = vmatprep.subr.mxu0 0.0
    %5577 = vmatpush1.msra.mxu0 0.0
    %5578 = vmatprep.subr.mxu0 0.0
    %5579 = vmatpush1.msra.mxu0 0.0
    %5580 = vmatprep.subr.mxu0 0.0
    %5581 = vmatpush1.msra.mxu0 0.0
    %5582 = vmatprep.subr.mxu0 0.0
    %5583 = vmatpush1.msra.mxu0 0.0
    %5584 = vmatprep.subr.mxu0 0.0
    %5585 = vmatpush1.msra.mxu0 0.0
    %5586 = vmatprep.subr.mxu0 0.0
    %5587 = vmatpush1.msra.mxu0 0.0
    %5588 = vmatprep.subr.mxu0 0.0
    %5589 = vmatpush1.msra.mxu0 0.0
    %5590 = vmatprep.subr.mxu0 0.0
    %5591 = vmatpush1.msra.mxu0 0.0
    %5592 = vmatprep.subr.mxu0 0.0
    %5593 = vmatpush1.msra.mxu0 0.0
    %5594 = vmatprep.subr.mxu0 0.0
    %5595 = vmatpush1.msra.mxu0 0.0
    %5596 = vmatprep.subr.mxu0 0.0
    %5597 = vmatpush1.msra.mxu0 0.0
    %5598 = vmatprep.subr.mxu0 0.0
    %5599 = vmatpush1.msra.mxu0 0.0
    %5600 = vmatprep.subr.mxu0 0.0
    %5601 = vmatpush1.msra.mxu0 0.0
    %5602 = vmatprep.subr.mxu0 0.0
    %5603 = vmatpush1.msra.mxu0 0.0
    %5604 = vmatprep.subr.mxu0 0.0
    %5605 = vmatpush1.msra.mxu0 0.0
    %5606 = vmatprep.subr.mxu0 0.0
    %5607 = vmatpush1.msra.mxu0 0.0
    %5608 = vmatprep.subr.mxu0 0.0
    %5609 = vmatpush1.msra.mxu0 0.0
    %5610 = vmatprep.subr.mxu0 0.0
    %5611 = vmatpush1.msra.mxu0 0.0
    %5612 = vmatprep.subr.mxu0 0.0
    %5613 = vmatpush1.msra.mxu0 0.0
    %5614 = vmatprep.subr.mxu0 0.0
    %5615 = vmatpush1.msra.mxu0 0.0
    %5616 = vmatprep.mubr.f32.mxu0 0.0
    %5617 = vmatmul.mubr.f32.gmra.mrb[0].mxu0 %v5550
    %v5618 = vpop.f32.mrb[0].mxu0
    %v5619 = vadd.f32 0.0, %v5618
    %v5620 = vpop.f32.mrb[0].mxu0
    %5621 = vdwg.mxu0
    %v5622 = vld [vmem:[#allocation2 + $0x4] sm:$0x1]
    %v5623 = vld [vmem:[#allocation2 + $0xc] sm:$0x1]
    %v5624 = vld [vmem:[#allocation2 + $0x14] sm:$0x1]
    %v5625 = vld [vmem:[#allocation2 + $0x1c] sm:$0x1]
    %v5626 = vld [vmem:[#allocation2 + $0x24] sm:$0x1]
    %v5627 = vld [vmem:[#allocation2 + $0x2c] sm:$0x1]
    %v5628 = vld [vmem:[#allocation2 + $0x34] sm:$0x1]
    %v5629 = vld [vmem:[#allocation2 + $0x3c] sm:$0x1]
    %v5630 = vld [vmem:[#allocation2 + $0x44] sm:$0x1]
    %v5631 = vld [vmem:[#allocation2 + $0x4c] sm:$0x1]
    %v5632 = vld [vmem:[#allocation2 + $0x54] sm:$0x1]
    %v5633 = vld [vmem:[#allocation2 + $0x5c] sm:$0x1]
    %v5634 = vld [vmem:[#allocation2 + $0x64] sm:$0x1]
    %v5635 = vld [vmem:[#allocation2 + $0x6c] sm:$0x1]
    %v5636 = vld [vmem:[#allocation2 + $0x74] sm:$0x1]
    %v5637 = vld [vmem:[#allocation2 + $0x7c] sm:$0x1]
    %v5638 = vld [vmem:[#allocation2 + $0x84] sm:$0x1]
    %v5639 = vld [vmem:[#allocation2 + $0x8c] sm:$0x1]
    %v5640 = vld [vmem:[#allocation2 + $0x94] sm:$0x1]
    %v5641 = vld [vmem:[#allocation2 + $0x9c] sm:$0x1]
    %v5642 = vld [vmem:[#allocation2 + $0xa4] sm:$0x1]
    %v5643 = vld [vmem:[#allocation2 + $0xac] sm:$0x1]
    %v5644 = vld [vmem:[#allocation2 + $0xb4] sm:$0x1]
    %v5645 = vld [vmem:[#allocation2 + $0xbc] sm:$0x1]
    %v5646 = vld [vmem:[#allocation2 + $0xc4] sm:$0x1]
    %v5647 = vld [vmem:[#allocation2 + $0xcc] sm:$0x1]
    %v5648 = vld [vmem:[#allocation2 + $0xd4] sm:$0x1]
    %v5649 = vld [vmem:[#allocation2 + $0xdc] sm:$0x1]
    %v5650 = vld [vmem:[#allocation2 + $0xe4] sm:$0x1]
    %v5651 = vld [vmem:[#allocation2 + $0xec] sm:$0x1]
    %v5652 = vld [vmem:[#allocation2 + $0xf4] sm:$0x1]
    %v5653 = vld [vmem:[#allocation2 + $0xfc] sm:$0x1]
    %v5654 = vld [vmem:[#allocation2 + $0x104] sm:$0x1]
    %v5655 = vld [vmem:[#allocation2 + $0x10c] sm:$0x1]
    %v5656 = vld [vmem:[#allocation2 + $0x114] sm:$0x1]
    %v5657 = vld [vmem:[#allocation2 + $0x11c] sm:$0x1]
    %v5658 = vld [vmem:[#allocation2 + $0x124] sm:$0x1]
    %v5659 = vld [vmem:[#allocation2 + $0x12c] sm:$0x1]
    %v5660 = vld [vmem:[#allocation2 + $0x134] sm:$0x1]
    %v5661 = vld [vmem:[#allocation2 + $0x13c] sm:$0x1]
    %v5662 = vld [vmem:[#allocation2 + $0x144] sm:$0x1]
    %v5663 = vld [vmem:[#allocation2 + $0x14c] sm:$0x1]
    %v5664 = vld [vmem:[#allocation2 + $0x154] sm:$0x1]
    %v5665 = vld [vmem:[#allocation2 + $0x15c] sm:$0x1]
    %v5666 = vld [vmem:[#allocation2 + $0x164] sm:$0x1]
    %v5667 = vld [vmem:[#allocation2 + $0x16c] sm:$0x1]
    %v5668 = vld [vmem:[#allocation2 + $0x174] sm:$0x1]
    %v5669 = vld [vmem:[#allocation2 + $0x17c] sm:$0x1]
    %v5670 = vld [vmem:[#allocation2 + $0x184] sm:$0x1]
    %v5671 = vld [vmem:[#allocation2 + $0x18c] sm:$0x1]
    %v5672 = vld [vmem:[#allocation2 + $0x194] sm:$0x1]
    %v5673 = vld [vmem:[#allocation2 + $0x19c] sm:$0x1]
    %v5674 = vld [vmem:[#allocation2 + $0x1a4] sm:$0x1]
    %v5675 = vld [vmem:[#allocation2 + $0x1ac] sm:$0x1]
    %v5676 = vld [vmem:[#allocation2 + $0x1b4] sm:$0x1]
    %v5677 = vld [vmem:[#allocation2 + $0x1bc] sm:$0x1]
    %v5678 = vld [vmem:[#allocation2 + $0x1c4] sm:$0x1]
    %v5679 = vld [vmem:[#allocation2 + $0x1cc] sm:$0x1]
    %v5680 = vld [vmem:[#allocation2 + $0x1d4] sm:$0x1]
    %v5681 = vld [vmem:[#allocation2 + $0x1dc] sm:$0x1]
    %v5682 = vld [vmem:[#allocation2 + $0x1e4] sm:$0x1]
    %v5683 = vld [vmem:[#allocation2 + $0x1ec] sm:$0x1]
    %v5684 = vld [vmem:[#allocation2 + $0x1f4] sm:$0x1]
    %v5685 = vld [vmem:[#allocation2 + $0x1fc] sm:$0x1]
    %v5686 = vld [vmem:[#allocation2 + $0x204] sm:$0x1]
    %v5687 = vld [vmem:[#allocation2 + $0x20c] sm:$0x1]
    %v5688 = vld [vmem:[#allocation2 + $0x214] sm:$0x1]
    %v5689 = vld [vmem:[#allocation2 + $0x21c] sm:$0x1]
    %v5690 = vld [vmem:[#allocation2 + $0x224] sm:$0x1]
    %v5691 = vld [vmem:[#allocation2 + $0x22c] sm:$0x1]
    %v5692 = vld [vmem:[#allocation2 + $0x234] sm:$0x1]
    %v5693 = vld [vmem:[#allocation2 + $0x23c] sm:$0x1]
    %v5694 = vld [vmem:[#allocation2 + $0x244] sm:$0x1]
    %v5695 = vld [vmem:[#allocation2 + $0x24c] sm:$0x1]
    %v5696 = vld [vmem:[#allocation2 + $0x254] sm:$0x1]
    %v5697 = vld [vmem:[#allocation2 + $0x25c] sm:$0x1]
    %v5698 = vld [vmem:[#allocation2 + $0x264] sm:$0x1]
    %v5699 = vld [vmem:[#allocation2 + $0x26c] sm:$0x1]
    %v5700 = vld [vmem:[#allocation2 + $0x274] sm:$0x1]
    %v5701 = vld [vmem:[#allocation2 + $0x27c] sm:$0x1]
    %v5702 = vrot.slane %v38, 4
    %v5783 = vrot.slane %v5623, 7
    %v5784 = vsel %vm4244, %v5783, %v5622
    %v5785 = vrot.slane %v5624, 6
    %v5786 = vsel %vm4247, %v5785, %v5784
    %v5787 = vrot.slane %v5625, 5
    %v5788 = vsel %vm4250, %v5787, %v5786
    %v5789 = vrot.slane %v5626, 4
    %v5790 = vsel %vm4253, %v5789, %v5788
    %v5791 = vrot.slane %v5627, 3
    %v5792 = vsel %vm4256, %v5791, %v5790
    %v5793 = vrot.slane %v5628, 2
    %v5794 = vsel %vm4259, %v5793, %v5792
    %v5795 = vrot.slane %v5629, 1
    %v5796 = vsel %vm4262, %v5795, %v5794
    %v5797 = vrot.slane %v5631, 7
    %v5798 = vsel %vm4244, %v5797, %v5630
    %v5799 = vrot.slane %v5632, 6
    %v5800 = vsel %vm4247, %v5799, %v5798
    %v5801 = vrot.slane %v5633, 5
    %v5802 = vsel %vm4250, %v5801, %v5800
    %v5803 = vrot.slane %v5634, 4
    %v5804 = vsel %vm4253, %v5803, %v5802
    %v5805 = vrot.slane %v5635, 3
    %v5806 = vsel %vm4256, %v5805, %v5804
    %v5807 = vrot.slane %v5636, 2
    %v5808 = vsel %vm4259, %v5807, %v5806
    %v5809 = vrot.slane %v5637, 1
    %v5810 = vsel %vm4262, %v5809, %v5808
    %v5811 = vrot.slane %v5639, 7
    %v5812 = vsel %vm4244, %v5811, %v5638
    %v5813 = vrot.slane %v5640, 6
    %v5814 = vsel %vm4247, %v5813, %v5812
    %v5815 = vrot.slane %v5641, 5
    %v5816 = vsel %vm4250, %v5815, %v5814
    %v5817 = vrot.slane %v5642, 4
    %v5818 = vsel %vm4253, %v5817, %v5816
    %v5819 = vrot.slane %v5643, 3
    %v5820 = vsel %vm4256, %v5819, %v5818
    %v5821 = vrot.slane %v5644, 2
    %v5822 = vsel %vm4259, %v5821, %v5820
    %v5823 = vrot.slane %v5645, 1
    %v5824 = vsel %vm4262, %v5823, %v5822
    %v5825 = vrot.slane %v5647, 7
    %v5826 = vsel %vm4244, %v5825, %v5646
    %v5827 = vrot.slane %v5648, 6
    %v5828 = vsel %vm4247, %v5827, %v5826
    %v5829 = vrot.slane %v5649, 5
    %v5830 = vsel %vm4250, %v5829, %v5828
    %v5831 = vrot.slane %v5650, 4
    %v5832 = vsel %vm4253, %v5831, %v5830
    %v5833 = vrot.slane %v5651, 3
    %v5834 = vsel %vm4256, %v5833, %v5832
    %v5835 = vrot.slane %v5652, 2
    %v5836 = vsel %vm4259, %v5835, %v5834
    %v5837 = vrot.slane %v5653, 1
    %v5838 = vsel %vm4262, %v5837, %v5836
    %v5839 = vrot.slane %v5655, 7
    %v5840 = vsel %vm4244, %v5839, %v5654
    %v5841 = vrot.slane %v5656, 6
    %v5842 = vsel %vm4247, %v5841, %v5840
    %v5843 = vrot.slane %v5657, 5
    %v5844 = vsel %vm4250, %v5843, %v5842
    %v5845 = vrot.slane %v5658, 4
    %v5846 = vsel %vm4253, %v5845, %v5844
    %v5847 = vrot.slane %v5659, 3
    %v5848 = vsel %vm4256, %v5847, %v5846
    %v5849 = vrot.slane %v5660, 2
    %v5850 = vsel %vm4259, %v5849, %v5848
    %v5851 = vrot.slane %v5661, 1
    %v5852 = vsel %vm4262, %v5851, %v5850
    %v5853 = vrot.slane %v5663, 7
    %v5854 = vsel %vm4244, %v5853, %v5662
    %v5855 = vrot.slane %v5664, 6
    %v5856 = vsel %vm4247, %v5855, %v5854
    %v5857 = vrot.slane %v5665, 5
    %v5858 = vsel %vm4250, %v5857, %v5856
    %v5859 = vrot.slane %v5666, 4
    %v5860 = vsel %vm4253, %v5859, %v5858
    %v5861 = vrot.slane %v5667, 3
    %v5862 = vsel %vm4256, %v5861, %v5860
    %v5863 = vrot.slane %v5668, 2
    %v5864 = vsel %vm4259, %v5863, %v5862
    %v5865 = vrot.slane %v5669, 1
    %v5866 = vsel %vm4262, %v5865, %v5864
    %v5867 = vrot.slane %v5671, 7
    %v5868 = vsel %vm4244, %v5867, %v5670
    %v5869 = vrot.slane %v5672, 6
    %v5870 = vsel %vm4247, %v5869, %v5868
    %v5871 = vrot.slane %v5673, 5
    %v5872 = vsel %vm4250, %v5871, %v5870
    %v5873 = vrot.slane %v5674, 4
    %v5874 = vsel %vm4253, %v5873, %v5872
    %v5875 = vrot.slane %v5675, 3
    %v5876 = vsel %vm4256, %v5875, %v5874
    %v5877 = vrot.slane %v5676, 2
    %v5878 = vsel %vm4259, %v5877, %v5876
    %v5879 = vrot.slane %v5677, 1
    %v5880 = vsel %vm4262, %v5879, %v5878
    %v5881 = vrot.slane %v5679, 7
    %v5882 = vsel %vm4244, %v5881, %v5678
    %v5883 = vrot.slane %v5680, 6
    %v5884 = vsel %vm4247, %v5883, %v5882
    %v5885 = vrot.slane %v5681, 5
    %v5886 = vsel %vm4250, %v5885, %v5884
    %v5887 = vrot.slane %v5682, 4
    %v5888 = vsel %vm4253, %v5887, %v5886
    %v5889 = vrot.slane %v5683, 3
    %v5890 = vsel %vm4256, %v5889, %v5888
    %v5891 = vrot.slane %v5684, 2
    %v5892 = vsel %vm4259, %v5891, %v5890
    %v5893 = vrot.slane %v5685, 1
    %v5894 = vsel %vm4262, %v5893, %v5892
    %v5895 = vrot.slane %v5687, 7
    %v5896 = vsel %vm4244, %v5895, %v5686
    %v5897 = vrot.slane %v5688, 6
    %v5898 = vsel %vm4247, %v5897, %v5896
    %v5899 = vrot.slane %v5689, 5
    %v5900 = vsel %vm4250, %v5899, %v5898
    %v5901 = vrot.slane %v5690, 4
    %v5902 = vsel %vm4253, %v5901, %v5900
    %v5903 = vrot.slane %v5691, 3
    %v5904 = vsel %vm4256, %v5903, %v5902
    %v5905 = vrot.slane %v5692, 2
    %v5906 = vsel %vm4259, %v5905, %v5904
    %v5907 = vrot.slane %v5693, 1
    %v5908 = vsel %vm4262, %v5907, %v5906
    %v5909 = vrot.slane %v5695, 7
    %v5910 = vsel %vm4244, %v5909, %v5694
    %v5911 = vrot.slane %v5696, 6
    %v5912 = vsel %vm4247, %v5911, %v5910
    %v5913 = vrot.slane %v5697, 5
    %v5914 = vsel %vm4250, %v5913, %v5912
    %v5915 = vrot.slane %v5698, 4
    %v5916 = vsel %vm4253, %v5915, %v5914
    %v5917 = vrot.slane %v5699, 3
    %v5918 = vsel %vm4256, %v5917, %v5916
    %v5919 = vrot.slane %v5700, 2
    %v5920 = vsel %vm4259, %v5919, %v5918
    %v5921 = vrot.slane %v5701, 1
    %v5922 = vsel %vm4262, %v5921, %v5920
    %v5933 = vsel %vm4400, %v5702, 0
    %5935 = vmatprep.subr.mxu0 0.0
    %5936 = vmatpush1.msra.mxu0 %v5796
    %5937 = vmatprep.subr.mxu0 0.0
    %5938 = vmatpush1.msra.mxu0 %v5810
    %5939 = vmatprep.subr.mxu0 0.0
    %5940 = vmatpush1.msra.mxu0 %v5824
    %5941 = vmatprep.subr.mxu0 0.0
    %5942 = vmatpush1.msra.mxu0 %v5838
    %5943 = vmatprep.subr.mxu0 0.0
    %5944 = vmatpush1.msra.mxu0 %v5852
    %5945 = vmatprep.subr.mxu0 0.0
    %5946 = vmatpush1.msra.mxu0 %v5866
    %5947 = vmatprep.subr.mxu0 0.0
    %5948 = vmatpush1.msra.mxu0 %v5880
    %5949 = vmatprep.subr.mxu0 0.0
    %5950 = vmatpush1.msra.mxu0 %v5894
    %5951 = vmatprep.subr.mxu0 0.0
    %5952 = vmatpush1.msra.mxu0 %v5908
    %5953 = vmatprep.subr.mxu0 0.0
    %5954 = vmatpush1.msra.mxu0 %v5922
    %5955 = vmatprep.subr.mxu0 0.0
    %5956 = vmatpush1.msra.mxu0 0.0
    %5957 = vmatprep.subr.mxu0 0.0
    %5958 = vmatpush1.msra.mxu0 0.0
    %5959 = vmatprep.subr.mxu0 0.0
    %5960 = vmatpush1.msra.mxu0 0.0
    %5961 = vmatprep.subr.mxu0 0.0
    %5962 = vmatpush1.msra.mxu0 0.0
    %5963 = vmatprep.subr.mxu0 0.0
    %5964 = vmatpush1.msra.mxu0 0.0
    %5965 = vmatprep.subr.mxu0 0.0
    %5966 = vmatpush1.msra.mxu0 0.0
    %5967 = vmatprep.subr.mxu0 0.0
    %5968 = vmatpush1.msra.mxu0 0.0
    %5969 = vmatprep.subr.mxu0 0.0
    %5970 = vmatpush1.msra.mxu0 0.0
    %5971 = vmatprep.subr.mxu0 0.0
    %5972 = vmatpush1.msra.mxu0 0.0
    %5973 = vmatprep.subr.mxu0 0.0
    %5974 = vmatpush1.msra.mxu0 0.0
    %5975 = vmatprep.subr.mxu0 0.0
    %5976 = vmatpush1.msra.mxu0 0.0
    %5977 = vmatprep.subr.mxu0 0.0
    %5978 = vmatpush1.msra.mxu0 0.0
    %5979 = vmatprep.subr.mxu0 0.0
    %5980 = vmatpush1.msra.mxu0 0.0
    %5981 = vmatprep.subr.mxu0 0.0
    %5982 = vmatpush1.msra.mxu0 0.0
    %5983 = vmatprep.subr.mxu0 0.0
    %5984 = vmatpush1.msra.mxu0 0.0
    %5985 = vmatprep.subr.mxu0 0.0
    %5986 = vmatpush1.msra.mxu0 0.0
    %5987 = vmatprep.subr.mxu0 0.0
    %5988 = vmatpush1.msra.mxu0 0.0
    %5989 = vmatprep.subr.mxu0 0.0
    %5990 = vmatpush1.msra.mxu0 0.0
    %5991 = vmatprep.subr.mxu0 0.0
    %5992 = vmatpush1.msra.mxu0 0.0
    %5993 = vmatprep.subr.mxu0 0.0
    %5994 = vmatpush1.msra.mxu0 0.0
    %5995 = vmatprep.subr.mxu0 0.0
    %5996 = vmatpush1.msra.mxu0 0.0
    %5997 = vmatprep.subr.mxu0 0.0
    %5998 = vmatpush1.msra.mxu0 0.0
    %5999 = vmatprep.mubr.f32.mxu0 0.0
    %6000 = vmatmul.mubr.f32.gmra.mrb[0].mxu0 %v5933
    %v6001 = vpop.f32.mrb[0].mxu0
    %v6002 = vadd.f32 0.0, %v6001
    %v6003 = vpop.f32.mrb[0].mxu0
    %6004 = vdwg.mxu0
    %v6005 = vld [vmem:[#allocation2 + $0x5] sm:$0x1]
    %v6006 = vld [vmem:[#allocation2 + $0xd] sm:$0x1]
    %v6007 = vld [vmem:[#allocation2 + $0x15] sm:$0x1]
    %v6008 = vld [vmem:[#allocation2 + $0x1d] sm:$0x1]
    %v6009 = vld [vmem:[#allocation2 + $0x25] sm:$0x1]
    %v6010 = vld [vmem:[#allocation2 + $0x2d] sm:$0x1]
    %v6011 = vld [vmem:[#allocation2 + $0x35] sm:$0x1]
    %v6012 = vld [vmem:[#allocation2 + $0x3d] sm:$0x1]
    %v6013 = vld [vmem:[#allocation2 + $0x45] sm:$0x1]
    %v6014 = vld [vmem:[#allocation2 + $0x4d] sm:$0x1]
    %v6015 = vld [vmem:[#allocation2 + $0x55] sm:$0x1]
    %v6016 = vld [vmem:[#allocation2 + $0x5d] sm:$0x1]
    %v6017 = vld [vmem:[#allocation2 + $0x65] sm:$0x1]
    %v6018 = vld [vmem:[#allocation2 + $0x6d] sm:$0x1]
    %v6019 = vld [vmem:[#allocation2 + $0x75] sm:$0x1]
    %v6020 = vld [vmem:[#allocation2 + $0x7d] sm:$0x1]
    %v6021 = vld [vmem:[#allocation2 + $0x85] sm:$0x1]
    %v6022 = vld [vmem:[#allocation2 + $0x8d] sm:$0x1]
    %v6023 = vld [vmem:[#allocation2 + $0x95] sm:$0x1]
    %v6024 = vld [vmem:[#allocation2 + $0x9d] sm:$0x1]
    %v6025 = vld [vmem:[#allocation2 + $0xa5] sm:$0x1]
    %v6026 = vld [vmem:[#allocation2 + $0xad] sm:$0x1]
    %v6027 = vld [vmem:[#allocation2 + $0xb5] sm:$0x1]
    %v6028 = vld [vmem:[#allocation2 + $0xbd] sm:$0x1]
    %v6029 = vld [vmem:[#allocation2 + $0xc5] sm:$0x1]
    %v6030 = vld [vmem:[#allocation2 + $0xcd] sm:$0x1]
    %v6031 = vld [vmem:[#allocation2 + $0xd5] sm:$0x1]
    %v6032 = vld [vmem:[#allocation2 + $0xdd] sm:$0x1]
    %v6033 = vld [vmem:[#allocation2 + $0xe5] sm:$0x1]
    %v6034 = vld [vmem:[#allocation2 + $0xed] sm:$0x1]
    %v6035 = vld [vmem:[#allocation2 + $0xf5] sm:$0x1]
    %v6036 = vld [vmem:[#allocation2 + $0xfd] sm:$0x1]
    %v6037 = vld [vmem:[#allocation2 + $0x105] sm:$0x1]
    %v6038 = vld [vmem:[#allocation2 + $0x10d] sm:$0x1]
    %v6039 = vld [vmem:[#allocation2 + $0x115] sm:$0x1]
    %v6040 = vld [vmem:[#allocation2 + $0x11d] sm:$0x1]
    %v6041 = vld [vmem:[#allocation2 + $0x125] sm:$0x1]
    %v6042 = vld [vmem:[#allocation2 + $0x12d] sm:$0x1]
    %v6043 = vld [vmem:[#allocation2 + $0x135] sm:$0x1]
    %v6044 = vld [vmem:[#allocation2 + $0x13d] sm:$0x1]
    %v6045 = vld [vmem:[#allocation2 + $0x145] sm:$0x1]
    %v6046 = vld [vmem:[#allocation2 + $0x14d] sm:$0x1]
    %v6047 = vld [vmem:[#allocation2 + $0x155] sm:$0x1]
    %v6048 = vld [vmem:[#allocation2 + $0x15d] sm:$0x1]
    %v6049 = vld [vmem:[#allocation2 + $0x165] sm:$0x1]
    %v6050 = vld [vmem:[#allocation2 + $0x16d] sm:$0x1]
    %v6051 = vld [vmem:[#allocation2 + $0x175] sm:$0x1]
    %v6052 = vld [vmem:[#allocation2 + $0x17d] sm:$0x1]
    %v6053 = vld [vmem:[#allocation2 + $0x185] sm:$0x1]
    %v6054 = vld [vmem:[#allocation2 + $0x18d] sm:$0x1]
    %v6055 = vld [vmem:[#allocation2 + $0x195] sm:$0x1]
    %v6056 = vld [vmem:[#allocation2 + $0x19d] sm:$0x1]
    %v6057 = vld [vmem:[#allocation2 + $0x1a5] sm:$0x1]
    %v6058 = vld [vmem:[#allocation2 + $0x1ad] sm:$0x1]
    %v6059 = vld [vmem:[#allocation2 + $0x1b5] sm:$0x1]
    %v6060 = vld [vmem:[#allocation2 + $0x1bd] sm:$0x1]
    %v6061 = vld [vmem:[#allocation2 + $0x1c5] sm:$0x1]
    %v6062 = vld [vmem:[#allocation2 + $0x1cd] sm:$0x1]
    %v6063 = vld [vmem:[#allocation2 + $0x1d5] sm:$0x1]
    %v6064 = vld [vmem:[#allocation2 + $0x1dd] sm:$0x1]
    %v6065 = vld [vmem:[#allocation2 + $0x1e5] sm:$0x1]
    %v6066 = vld [vmem:[#allocation2 + $0x1ed] sm:$0x1]
    %v6067 = vld [vmem:[#allocation2 + $0x1f5] sm:$0x1]
    %v6068 = vld [vmem:[#allocation2 + $0x1fd] sm:$0x1]
    %v6069 = vld [vmem:[#allocation2 + $0x205] sm:$0x1]
    %v6070 = vld [vmem:[#allocation2 + $0x20d] sm:$0x1]
    %v6071 = vld [vmem:[#allocation2 + $0x215] sm:$0x1]
    %v6072 = vld [vmem:[#allocation2 + $0x21d] sm:$0x1]
    %v6073 = vld [vmem:[#allocation2 + $0x225] sm:$0x1]
    %v6074 = vld [vmem:[#allocation2 + $0x22d] sm:$0x1]
    %v6075 = vld [vmem:[#allocation2 + $0x235] sm:$0x1]
    %v6076 = vld [vmem:[#allocation2 + $0x23d] sm:$0x1]
    %v6077 = vld [vmem:[#allocation2 + $0x245] sm:$0x1]
    %v6078 = vld [vmem:[#allocation2 + $0x24d] sm:$0x1]
    %v6079 = vld [vmem:[#allocation2 + $0x255] sm:$0x1]
    %v6080 = vld [vmem:[#allocation2 + $0x25d] sm:$0x1]
    %v6081 = vld [vmem:[#allocation2 + $0x265] sm:$0x1]
    %v6082 = vld [vmem:[#allocation2 + $0x26d] sm:$0x1]
    %v6083 = vld [vmem:[#allocation2 + $0x275] sm:$0x1]
    %v6084 = vld [vmem:[#allocation2 + $0x27d] sm:$0x1]
    %v6085 = vrot.slane %v38, 5
    %v6166 = vrot.slane %v6006, 7
    %v6167 = vsel %vm4244, %v6166, %v6005
    %v6168 = vrot.slane %v6007, 6
    %v6169 = vsel %vm4247, %v6168, %v6167
    %v6170 = vrot.slane %v6008, 5
    %v6171 = vsel %vm4250, %v6170, %v6169
    %v6172 = vrot.slane %v6009, 4
    %v6173 = vsel %vm4253, %v6172, %v6171
    %v6174 = vrot.slane %v6010, 3
    %v6175 = vsel %vm4256, %v6174, %v6173
    %v6176 = vrot.slane %v6011, 2
    %v6177 = vsel %vm4259, %v6176, %v6175
    %v6178 = vrot.slane %v6012, 1
    %v6179 = vsel %vm4262, %v6178, %v6177
    %v6180 = vrot.slane %v6014, 7
    %v6181 = vsel %vm4244, %v6180, %v6013
    %v6182 = vrot.slane %v6015, 6
    %v6183 = vsel %vm4247, %v6182, %v6181
    %v6184 = vrot.slane %v6016, 5
    %v6185 = vsel %vm4250, %v6184, %v6183
    %v6186 = vrot.slane %v6017, 4
    %v6187 = vsel %vm4253, %v6186, %v6185
    %v6188 = vrot.slane %v6018, 3
    %v6189 = vsel %vm4256, %v6188, %v6187
    %v6190 = vrot.slane %v6019, 2
    %v6191 = vsel %vm4259, %v6190, %v6189
    %v6192 = vrot.slane %v6020, 1
    %v6193 = vsel %vm4262, %v6192, %v6191
    %v6194 = vrot.slane %v6022, 7
    %v6195 = vsel %vm4244, %v6194, %v6021
    %v6196 = vrot.slane %v6023, 6
    %v6197 = vsel %vm4247, %v6196, %v6195
    %v6198 = vrot.slane %v6024, 5
    %v6199 = vsel %vm4250, %v6198, %v6197
    %v6200 = vrot.slane %v6025, 4
    %v6201 = vsel %vm4253, %v6200, %v6199
    %v6202 = vrot.slane %v6026, 3
    %v6203 = vsel %vm4256, %v6202, %v6201
    %v6204 = vrot.slane %v6027, 2
    %v6205 = vsel %vm4259, %v6204, %v6203
    %v6206 = vrot.slane %v6028, 1
    %v6207 = vsel %vm4262, %v6206, %v6205
    %v6208 = vrot.slane %v6030, 7
    %v6209 = vsel %vm4244, %v6208, %v6029
    %v6210 = vrot.slane %v6031, 6
    %v6211 = vsel %vm4247, %v6210, %v6209
    %v6212 = vrot.slane %v6032, 5
    %v6213 = vsel %vm4250, %v6212, %v6211
    %v6214 = vrot.slane %v6033, 4
    %v6215 = vsel %vm4253, %v6214, %v6213
    %v6216 = vrot.slane %v6034, 3
    %v6217 = vsel %vm4256, %v6216, %v6215
    %v6218 = vrot.slane %v6035, 2
    %v6219 = vsel %vm4259, %v6218, %v6217
    %v6220 = vrot.slane %v6036, 1
    %v6221 = vsel %vm4262, %v6220, %v6219
    %v6222 = vrot.slane %v6038, 7
    %v6223 = vsel %vm4244, %v6222, %v6037
    %v6224 = vrot.slane %v6039, 6
    %v6225 = vsel %vm4247, %v6224, %v6223
    %v6226 = vrot.slane %v6040, 5
    %v6227 = vsel %vm4250, %v6226, %v6225
    %v6228 = vrot.slane %v6041, 4
    %v6229 = vsel %vm4253, %v6228, %v6227
    %v6230 = vrot.slane %v6042, 3
    %v6231 = vsel %vm4256, %v6230, %v6229
    %v6232 = vrot.slane %v6043, 2
    %v6233 = vsel %vm4259, %v6232, %v6231
    %v6234 = vrot.slane %v6044, 1
    %v6235 = vsel %vm4262, %v6234, %v6233
    %v6236 = vrot.slane %v6046, 7
    %v6237 = vsel %vm4244, %v6236, %v6045
    %v6238 = vrot.slane %v6047, 6
    %v6239 = vsel %vm4247, %v6238, %v6237
    %v6240 = vrot.slane %v6048, 5
    %v6241 = vsel %vm4250, %v6240, %v6239
    %v6242 = vrot.slane %v6049, 4
    %v6243 = vsel %vm4253, %v6242, %v6241
    %v6244 = vrot.slane %v6050, 3
    %v6245 = vsel %vm4256, %v6244, %v6243
    %v6246 = vrot.slane %v6051, 2
    %v6247 = vsel %vm4259, %v6246, %v6245
    %v6248 = vrot.slane %v6052, 1
    %v6249 = vsel %vm4262, %v6248, %v6247
    %v6250 = vrot.slane %v6054, 7
    %v6251 = vsel %vm4244, %v6250, %v6053
    %v6252 = vrot.slane %v6055, 6
    %v6253 = vsel %vm4247, %v6252, %v6251
    %v6254 = vrot.slane %v6056, 5
    %v6255 = vsel %vm4250, %v6254, %v6253
    %v6256 = vrot.slane %v6057, 4
    %v6257 = vsel %vm4253, %v6256, %v6255
    %v6258 = vrot.slane %v6058, 3
    %v6259 = vsel %vm4256, %v6258, %v6257
    %v6260 = vrot.slane %v6059, 2
    %v6261 = vsel %vm4259, %v6260, %v6259
    %v6262 = vrot.slane %v6060, 1
    %v6263 = vsel %vm4262, %v6262, %v6261
    %v6264 = vrot.slane %v6062, 7
    %v6265 = vsel %vm4244, %v6264, %v6061
    %v6266 = vrot.slane %v6063, 6
    %v6267 = vsel %vm4247, %v6266, %v6265
    %v6268 = vrot.slane %v6064, 5
    %v6269 = vsel %vm4250, %v6268, %v6267
    %v6270 = vrot.slane %v6065, 4
    %v6271 = vsel %vm4253, %v6270, %v6269
    %v6272 = vrot.slane %v6066, 3
    %v6273 = vsel %vm4256, %v6272, %v6271
    %v6274 = vrot.slane %v6067, 2
    %v6275 = vsel %vm4259, %v6274, %v6273
    %v6276 = vrot.slane %v6068, 1
    %v6277 = vsel %vm4262, %v6276, %v6275
    %v6278 = vrot.slane %v6070, 7
    %v6279 = vsel %vm4244, %v6278, %v6069
    %v6280 = vrot.slane %v6071, 6
    %v6281 = vsel %vm4247, %v6280, %v6279
    %v6282 = vrot.slane %v6072, 5
    %v6283 = vsel %vm4250, %v6282, %v6281
    %v6284 = vrot.slane %v6073, 4
    %v6285 = vsel %vm4253, %v6284, %v6283
    %v6286 = vrot.slane %v6074, 3
    %v6287 = vsel %vm4256, %v6286, %v6285
    %v6288 = vrot.slane %v6075, 2
    %v6289 = vsel %vm4259, %v6288, %v6287
    %v6290 = vrot.slane %v6076, 1
    %v6291 = vsel %vm4262, %v6290, %v6289
    %v6292 = vrot.slane %v6078, 7
    %v6293 = vsel %vm4244, %v6292, %v6077
    %v6294 = vrot.slane %v6079, 6
    %v6295 = vsel %vm4247, %v6294, %v6293
    %v6296 = vrot.slane %v6080, 5
    %v6297 = vsel %vm4250, %v6296, %v6295
    %v6298 = vrot.slane %v6081, 4
    %v6299 = vsel %vm4253, %v6298, %v6297
    %v6300 = vrot.slane %v6082, 3
    %v6301 = vsel %vm4256, %v6300, %v6299
    %v6302 = vrot.slane %v6083, 2
    %v6303 = vsel %vm4259, %v6302, %v6301
    %v6304 = vrot.slane %v6084, 1
    %v6305 = vsel %vm4262, %v6304, %v6303
    %v6316 = vsel %vm4400, %v6085, 0
    %6318 = vmatprep.subr.mxu0 0.0
    %6319 = vmatpush1.msra.mxu0 %v6179
    %6320 = vmatprep.subr.mxu0 0.0
    %6321 = vmatpush1.msra.mxu0 %v6193
    %6322 = vmatprep.subr.mxu0 0.0
    %6323 = vmatpush1.msra.mxu0 %v6207
    %6324 = vmatprep.subr.mxu0 0.0
    %6325 = vmatpush1.msra.mxu0 %v6221
    %6326 = vmatprep.subr.mxu0 0.0
    %6327 = vmatpush1.msra.mxu0 %v6235
    %6328 = vmatprep.subr.mxu0 0.0
    %6329 = vmatpush1.msra.mxu0 %v6249
    %6330 = vmatprep.subr.mxu0 0.0
    %6331 = vmatpush1.msra.mxu0 %v6263
    %6332 = vmatprep.subr.mxu0 0.0
    %6333 = vmatpush1.msra.mxu0 %v6277
    %6334 = vmatprep.subr.mxu0 0.0
    %6335 = vmatpush1.msra.mxu0 %v6291
    %6336 = vmatprep.subr.mxu0 0.0
    %6337 = vmatpush1.msra.mxu0 %v6305
    %6338 = vmatprep.subr.mxu0 0.0
    %6339 = vmatpush1.msra.mxu0 0.0
    %6340 = vmatprep.subr.mxu0 0.0
    %6341 = vmatpush1.msra.mxu0 0.0
    %6342 = vmatprep.subr.mxu0 0.0
    %6343 = vmatpush1.msra.mxu0 0.0
    %6344 = vmatprep.subr.mxu0 0.0
    %6345 = vmatpush1.msra.mxu0 0.0
    %6346 = vmatprep.subr.mxu0 0.0
    %6347 = vmatpush1.msra.mxu0 0.0
    %6348 = vmatprep.subr.mxu0 0.0
    %6349 = vmatpush1.msra.mxu0 0.0
    %6350 = vmatprep.subr.mxu0 0.0
    %6351 = vmatpush1.msra.mxu0 0.0
    %6352 = vmatprep.subr.mxu0 0.0
    %6353 = vmatpush1.msra.mxu0 0.0
    %6354 = vmatprep.subr.mxu0 0.0
    %6355 = vmatpush1.msra.mxu0 0.0
    %6356 = vmatprep.subr.mxu0 0.0
    %6357 = vmatpush1.msra.mxu0 0.0
    %6358 = vmatprep.subr.mxu0 0.0
    %6359 = vmatpush1.msra.mxu0 0.0
    %6360 = vmatprep.subr.mxu0 0.0
    %6361 = vmatpush1.msra.mxu0 0.0
    %6362 = vmatprep.subr.mxu0 0.0
    %6363 = vmatpush1.msra.mxu0 0.0
    %6364 = vmatprep.subr.mxu0 0.0
    %6365 = vmatpush1.msra.mxu0 0.0
    %6366 = vmatprep.subr.mxu0 0.0
    %6367 = vmatpush1.msra.mxu0 0.0
    %6368 = vmatprep.subr.mxu0 0.0
    %6369 = vmatpush1.msra.mxu0 0.0
    %6370 = vmatprep.subr.mxu0 0.0
    %6371 = vmatpush1.msra.mxu0 0.0
    %6372 = vmatprep.subr.mxu0 0.0
    %6373 = vmatpush1.msra.mxu0 0.0
    %6374 = vmatprep.subr.mxu0 0.0
    %6375 = vmatpush1.msra.mxu0 0.0
    %6376 = vmatprep.subr.mxu0 0.0
    %6377 = vmatpush1.msra.mxu0 0.0
    %6378 = vmatprep.subr.mxu0 0.0
    %6379 = vmatpush1.msra.mxu0 0.0
    %6380 = vmatprep.subr.mxu0 0.0
    %6381 = vmatpush1.msra.mxu0 0.0
    %6382 = vmatprep.mubr.f32.mxu0 0.0
    %6383 = vmatmul.mubr.f32.gmra.mrb[0].mxu0 %v6316
    %v6384 = vpop.f32.mrb[0].mxu0
    %v6385 = vadd.f32 0.0, %v6384
    %v6386 = vpop.f32.mrb[0].mxu0
    %6387 = vdwg.mxu0
    %v6388 = vld [vmem:[#allocation2 + $0x6] sm:$0x1]
    %v6389 = vld [vmem:[#allocation2 + $0xe] sm:$0x1]
    %v6390 = vld [vmem:[#allocation2 + $0x16] sm:$0x1]
    %v6391 = vld [vmem:[#allocation2 + $0x1e] sm:$0x1]
    %v6392 = vld [vmem:[#allocation2 + $0x26] sm:$0x1]
    %v6393 = vld [vmem:[#allocation2 + $0x2e] sm:$0x1]
    %v6394 = vld [vmem:[#allocation2 + $0x36] sm:$0x1]
    %v6395 = vld [vmem:[#allocation2 + $0x3e] sm:$0x1]
    %v6396 = vld [vmem:[#allocation2 + $0x46] sm:$0x1]
    %v6397 = vld [vmem:[#allocation2 + $0x4e] sm:$0x1]
    %v6398 = vld [vmem:[#allocation2 + $0x56] sm:$0x1]
    %v6399 = vld [vmem:[#allocation2 + $0x5e] sm:$0x1]
    %v6400 = vld [vmem:[#allocation2 + $0x66] sm:$0x1]
    %v6401 = vld [vmem:[#allocation2 + $0x6e] sm:$0x1]
    %v6402 = vld [vmem:[#allocation2 + $0x76] sm:$0x1]
    %v6403 = vld [vmem:[#allocation2 + $0x7e] sm:$0x1]
    %v6404 = vld [vmem:[#allocation2 + $0x86] sm:$0x1]
    %v6405 = vld [vmem:[#allocation2 + $0x8e] sm:$0x1]
    %v6406 = vld [vmem:[#allocation2 + $0x96] sm:$0x1]
    %v6407 = vld [vmem:[#allocation2 + $0x9e] sm:$0x1]
    %v6408 = vld [vmem:[#allocation2 + $0xa6] sm:$0x1]
    %v6409 = vld [vmem:[#allocation2 + $0xae] sm:$0x1]
    %v6410 = vld [vmem:[#allocation2 + $0xb6] sm:$0x1]
    %v6411 = vld [vmem:[#allocation2 + $0xbe] sm:$0x1]
    %v6412 = vld [vmem:[#allocation2 + $0xc6] sm:$0x1]
    %v6413 = vld [vmem:[#allocation2 + $0xce] sm:$0x1]
    %v6414 = vld [vmem:[#allocation2 + $0xd6] sm:$0x1]
    %v6415 = vld [vmem:[#allocation2 + $0xde] sm:$0x1]
    %v6416 = vld [vmem:[#allocation2 + $0xe6] sm:$0x1]
    %v6417 = vld [vmem:[#allocation2 + $0xee] sm:$0x1]
    %v6418 = vld [vmem:[#allocation2 + $0xf6] sm:$0x1]
    %v6419 = vld [vmem:[#allocation2 + $0xfe] sm:$0x1]
    %v6420 = vld [vmem:[#allocation2 + $0x106] sm:$0x1]
    %v6421 = vld [vmem:[#allocation2 + $0x10e] sm:$0x1]
    %v6422 = vld [vmem:[#allocation2 + $0x116] sm:$0x1]
    %v6423 = vld [vmem:[#allocation2 + $0x11e] sm:$0x1]
    %v6424 = vld [vmem:[#allocation2 + $0x126] sm:$0x1]
    %v6425 = vld [vmem:[#allocation2 + $0x12e] sm:$0x1]
    %v6426 = vld [vmem:[#allocation2 + $0x136] sm:$0x1]
    %v6427 = vld [vmem:[#allocation2 + $0x13e] sm:$0x1]
    %v6428 = vld [vmem:[#allocation2 + $0x146] sm:$0x1]
    %v6429 = vld [vmem:[#allocation2 + $0x14e] sm:$0x1]
    %v6430 = vld [vmem:[#allocation2 + $0x156] sm:$0x1]
    %v6431 = vld [vmem:[#allocation2 + $0x15e] sm:$0x1]
    %v6432 = vld [vmem:[#allocation2 + $0x166] sm:$0x1]
    %v6433 = vld [vmem:[#allocation2 + $0x16e] sm:$0x1]
    %v6434 = vld [vmem:[#allocation2 + $0x176] sm:$0x1]
    %v6435 = vld [vmem:[#allocation2 + $0x17e] sm:$0x1]
    %v6436 = vld [vmem:[#allocation2 + $0x186] sm:$0x1]
    %v6437 = vld [vmem:[#allocation2 + $0x18e] sm:$0x1]
    %v6438 = vld [vmem:[#allocation2 + $0x196] sm:$0x1]
    %v6439 = vld [vmem:[#allocation2 + $0x19e] sm:$0x1]
    %v6440 = vld [vmem:[#allocation2 + $0x1a6] sm:$0x1]
    %v6441 = vld [vmem:[#allocation2 + $0x1ae] sm:$0x1]
    %v6442 = vld [vmem:[#allocation2 + $0x1b6] sm:$0x1]
    %v6443 = vld [vmem:[#allocation2 + $0x1be] sm:$0x1]
    %v6444 = vld [vmem:[#allocation2 + $0x1c6] sm:$0x1]
    %v6445 = vld [vmem:[#allocation2 + $0x1ce] sm:$0x1]
    %v6446 = vld [vmem:[#allocation2 + $0x1d6] sm:$0x1]
    %v6447 = vld [vmem:[#allocation2 + $0x1de] sm:$0x1]
    %v6448 = vld [vmem:[#allocation2 + $0x1e6] sm:$0x1]
    %v6449 = vld [vmem:[#allocation2 + $0x1ee] sm:$0x1]
    %v6450 = vld [vmem:[#allocation2 + $0x1f6] sm:$0x1]
    %v6451 = vld [vmem:[#allocation2 + $0x1fe] sm:$0x1]
    %v6452 = vld [vmem:[#allocation2 + $0x206] sm:$0x1]
    %v6453 = vld [vmem:[#allocation2 + $0x20e] sm:$0x1]
    %v6454 = vld [vmem:[#allocation2 + $0x216] sm:$0x1]
    %v6455 = vld [vmem:[#allocation2 + $0x21e] sm:$0x1]
    %v6456 = vld [vmem:[#allocation2 + $0x226] sm:$0x1]
    %v6457 = vld [vmem:[#allocation2 + $0x22e] sm:$0x1]
    %v6458 = vld [vmem:[#allocation2 + $0x236] sm:$0x1]
    %v6459 = vld [vmem:[#allocation2 + $0x23e] sm:$0x1]
    %v6460 = vld [vmem:[#allocation2 + $0x246] sm:$0x1]
    %v6461 = vld [vmem:[#allocation2 + $0x24e] sm:$0x1]
    %v6462 = vld [vmem:[#allocation2 + $0x256] sm:$0x1]
    %v6463 = vld [vmem:[#allocation2 + $0x25e] sm:$0x1]
    %v6464 = vld [vmem:[#allocation2 + $0x266] sm:$0x1]
    %v6465 = vld [vmem:[#allocation2 + $0x26e] sm:$0x1]
    %v6466 = vld [vmem:[#allocation2 + $0x276] sm:$0x1]
    %v6467 = vld [vmem:[#allocation2 + $0x27e] sm:$0x1]
    %v6468 = vrot.slane %v38, 6
    %v6549 = vrot.slane %v6389, 7
    %v6550 = vsel %vm4244, %v6549, %v6388
    %v6551 = vrot.slane %v6390, 6
    %v6552 = vsel %vm4247, %v6551, %v6550
    %v6553 = vrot.slane %v6391, 5
    %v6554 = vsel %vm4250, %v6553, %v6552
    %v6555 = vrot.slane %v6392, 4
    %v6556 = vsel %vm4253, %v6555, %v6554
    %v6557 = vrot.slane %v6393, 3
    %v6558 = vsel %vm4256, %v6557, %v6556
    %v6559 = vrot.slane %v6394, 2
    %v6560 = vsel %vm4259, %v6559, %v6558
    %v6561 = vrot.slane %v6395, 1
    %v6562 = vsel %vm4262, %v6561, %v6560
    %v6563 = vrot.slane %v6397, 7
    %v6564 = vsel %vm4244, %v6563, %v6396
    %v6565 = vrot.slane %v6398, 6
    %v6566 = vsel %vm4247, %v6565, %v6564
    %v6567 = vrot.slane %v6399, 5
    %v6568 = vsel %vm4250, %v6567, %v6566
    %v6569 = vrot.slane %v6400, 4
    %v6570 = vsel %vm4253, %v6569, %v6568
    %v6571 = vrot.slane %v6401, 3
    %v6572 = vsel %vm4256, %v6571, %v6570
    %v6573 = vrot.slane %v6402, 2
    %v6574 = vsel %vm4259, %v6573, %v6572
    %v6575 = vrot.slane %v6403, 1
    %v6576 = vsel %vm4262, %v6575, %v6574
    %v6577 = vrot.slane %v6405, 7
    %v6578 = vsel %vm4244, %v6577, %v6404
    %v6579 = vrot.slane %v6406, 6
    %v6580 = vsel %vm4247, %v6579, %v6578
    %v6581 = vrot.slane %v6407, 5
    %v6582 = vsel %vm4250, %v6581, %v6580
    %v6583 = vrot.slane %v6408, 4
    %v6584 = vsel %vm4253, %v6583, %v6582
    %v6585 = vrot.slane %v6409, 3
    %v6586 = vsel %vm4256, %v6585, %v6584
    %v6587 = vrot.slane %v6410, 2
    %v6588 = vsel %vm4259, %v6587, %v6586
    %v6589 = vrot.slane %v6411, 1
    %v6590 = vsel %vm4262, %v6589, %v6588
    %v6591 = vrot.slane %v6413, 7
    %v6592 = vsel %vm4244, %v6591, %v6412
    %v6593 = vrot.slane %v6414, 6
    %v6594 = vsel %vm4247, %v6593, %v6592
    %v6595 = vrot.slane %v6415, 5
    %v6596 = vsel %vm4250, %v6595, %v6594
    %v6597 = vrot.slane %v6416, 4
    %v6598 = vsel %vm4253, %v6597, %v6596
    %v6599 = vrot.slane %v6417, 3
    %v6600 = vsel %vm4256, %v6599, %v6598
    %v6601 = vrot.slane %v6418, 2
    %v6602 = vsel %vm4259, %v6601, %v6600
    %v6603 = vrot.slane %v6419, 1
    %v6604 = vsel %vm4262, %v6603, %v6602
    %v6605 = vrot.slane %v6421, 7
    %v6606 = vsel %vm4244, %v6605, %v6420
    %v6607 = vrot.slane %v6422, 6
    %v6608 = vsel %vm4247, %v6607, %v6606
    %v6609 = vrot.slane %v6423, 5
    %v6610 = vsel %vm4250, %v6609, %v6608
    %v6611 = vrot.slane %v6424, 4
    %v6612 = vsel %vm4253, %v6611, %v6610
    %v6613 = vrot.slane %v6425, 3
    %v6614 = vsel %vm4256, %v6613, %v6612
    %v6615 = vrot.slane %v6426, 2
    %v6616 = vsel %vm4259, %v6615, %v6614
    %v6617 = vrot.slane %v6427, 1
    %v6618 = vsel %vm4262, %v6617, %v6616
    %v6619 = vrot.slane %v6429, 7
    %v6620 = vsel %vm4244, %v6619, %v6428
    %v6621 = vrot.slane %v6430, 6
    %v6622 = vsel %vm4247, %v6621, %v6620
    %v6623 = vrot.slane %v6431, 5
    %v6624 = vsel %vm4250, %v6623, %v6622
    %v6625 = vrot.slane %v6432, 4
    %v6626 = vsel %vm4253, %v6625, %v6624
    %v6627 = vrot.slane %v6433, 3
    %v6628 = vsel %vm4256, %v6627, %v6626
    %v6629 = vrot.slane %v6434, 2
    %v6630 = vsel %vm4259, %v6629, %v6628
    %v6631 = vrot.slane %v6435, 1
    %v6632 = vsel %vm4262, %v6631, %v6630
    %v6633 = vrot.slane %v6437, 7
    %v6634 = vsel %vm4244, %v6633, %v6436
    %v6635 = vrot.slane %v6438, 6
    %v6636 = vsel %vm4247, %v6635, %v6634
    %v6637 = vrot.slane %v6439, 5
    %v6638 = vsel %vm4250, %v6637, %v6636
    %v6639 = vrot.slane %v6440, 4
    %v6640 = vsel %vm4253, %v6639, %v6638
    %v6641 = vrot.slane %v6441, 3
    %v6642 = vsel %vm4256, %v6641, %v6640
    %v6643 = vrot.slane %v6442, 2
    %v6644 = vsel %vm4259, %v6643, %v6642
    %v6645 = vrot.slane %v6443, 1
    %v6646 = vsel %vm4262, %v6645, %v6644
    %v6647 = vrot.slane %v6445, 7
    %v6648 = vsel %vm4244, %v6647, %v6444
    %v6649 = vrot.slane %v6446, 6
    %v6650 = vsel %vm4247, %v6649, %v6648
    %v6651 = vrot.slane %v6447, 5
    %v6652 = vsel %vm4250, %v6651, %v6650
    %v6653 = vrot.slane %v6448, 4
    %v6654 = vsel %vm4253, %v6653, %v6652
    %v6655 = vrot.slane %v6449, 3
    %v6656 = vsel %vm4256, %v6655, %v6654
    %v6657 = vrot.slane %v6450, 2
    %v6658 = vsel %vm4259, %v6657, %v6656
    %v6659 = vrot.slane %v6451, 1
    %v6660 = vsel %vm4262, %v6659, %v6658
    %v6661 = vrot.slane %v6453, 7
    %v6662 = vsel %vm4244, %v6661, %v6452
    %v6663 = vrot.slane %v6454, 6
    %v6664 = vsel %vm4247, %v6663, %v6662
    %v6665 = vrot.slane %v6455, 5
    %v6666 = vsel %vm4250, %v6665, %v6664
    %v6667 = vrot.slane %v6456, 4
    %v6668 = vsel %vm4253, %v6667, %v6666
    %v6669 = vrot.slane %v6457, 3
    %v6670 = vsel %vm4256, %v6669, %v6668
    %v6671 = vrot.slane %v6458, 2
    %v6672 = vsel %vm4259, %v6671, %v6670
    %v6673 = vrot.slane %v6459, 1
    %v6674 = vsel %vm4262, %v6673, %v6672
    %v6675 = vrot.slane %v6461, 7
    %v6676 = vsel %vm4244, %v6675, %v6460
    %v6677 = vrot.slane %v6462, 6
    %v6678 = vsel %vm4247, %v6677, %v6676
    %v6679 = vrot.slane %v6463, 5
    %v6680 = vsel %vm4250, %v6679, %v6678
    %v6681 = vrot.slane %v6464, 4
    %v6682 = vsel %vm4253, %v6681, %v6680
    %v6683 = vrot.slane %v6465, 3
    %v6684 = vsel %vm4256, %v6683, %v6682
    %v6685 = vrot.slane %v6466, 2
    %v6686 = vsel %vm4259, %v6685, %v6684
    %v6687 = vrot.slane %v6467, 1
    %v6688 = vsel %vm4262, %v6687, %v6686
    %v6699 = vsel %vm4400, %v6468, 0
    %6701 = vmatprep.subr.mxu0 0.0
    %6702 = vmatpush1.msra.mxu0 %v6562
    %6703 = vmatprep.subr.mxu0 0.0
    %6704 = vmatpush1.msra.mxu0 %v6576
    %6705 = vmatprep.subr.mxu0 0.0
    %6706 = vmatpush1.msra.mxu0 %v6590
    %6707 = vmatprep.subr.mxu0 0.0
    %6708 = vmatpush1.msra.mxu0 %v6604
    %6709 = vmatprep.subr.mxu0 0.0
    %6710 = vmatpush1.msra.mxu0 %v6618
    %6711 = vmatprep.subr.mxu0 0.0
    %6712 = vmatpush1.msra.mxu0 %v6632
    %6713 = vmatprep.subr.mxu0 0.0
    %6714 = vmatpush1.msra.mxu0 %v6646
    %6715 = vmatprep.subr.mxu0 0.0
    %6716 = vmatpush1.msra.mxu0 %v6660
    %6717 = vmatprep.subr.mxu0 0.0
    %6718 = vmatpush1.msra.mxu0 %v6674
    %6719 = vmatprep.subr.mxu0 0.0
    %6720 = vmatpush1.msra.mxu0 %v6688
    %6721 = vmatprep.subr.mxu0 0.0
    %6722 = vmatpush1.msra.mxu0 0.0
    %6723 = vmatprep.subr.mxu0 0.0
    %6724 = vmatpush1.msra.mxu0 0.0
    %6725 = vmatprep.subr.mxu0 0.0
    %6726 = vmatpush1.msra.mxu0 0.0
    %6727 = vmatprep.subr.mxu0 0.0
    %6728 = vmatpush1.msra.mxu0 0.0
    %6729 = vmatprep.subr.mxu0 0.0
    %6730 = vmatpush1.msra.mxu0 0.0
    %6731 = vmatprep.subr.mxu0 0.0
    %6732 = vmatpush1.msra.mxu0 0.0
    %6733 = vmatprep.subr.mxu0 0.0
    %6734 = vmatpush1.msra.mxu0 0.0
    %6735 = vmatprep.subr.mxu0 0.0
    %6736 = vmatpush1.msra.mxu0 0.0
    %6737 = vmatprep.subr.mxu0 0.0
    %6738 = vmatpush1.msra.mxu0 0.0
    %6739 = vmatprep.subr.mxu0 0.0
    %6740 = vmatpush1.msra.mxu0 0.0
    %6741 = vmatprep.subr.mxu0 0.0
    %6742 = vmatpush1.msra.mxu0 0.0
    %6743 = vmatprep.subr.mxu0 0.0
    %6744 = vmatpush1.msra.mxu0 0.0
    %6745 = vmatprep.subr.mxu0 0.0
    %6746 = vmatpush1.msra.mxu0 0.0
    %6747 = vmatprep.subr.mxu0 0.0
    %6748 = vmatpush1.msra.mxu0 0.0
    %6749 = vmatprep.subr.mxu0 0.0
    %6750 = vmatpush1.msra.mxu0 0.0
    %6751 = vmatprep.subr.mxu0 0.0
    %6752 = vmatpush1.msra.mxu0 0.0
    %6753 = vmatprep.subr.mxu0 0.0
    %6754 = vmatpush1.msra.mxu0 0.0
    %6755 = vmatprep.subr.mxu0 0.0
    %6756 = vmatpush1.msra.mxu0 0.0
    %6757 = vmatprep.subr.mxu0 0.0
    %6758 = vmatpush1.msra.mxu0 0.0
    %6759 = vmatprep.subr.mxu0 0.0
    %6760 = vmatpush1.msra.mxu0 0.0
    %6761 = vmatprep.subr.mxu0 0.0
    %6762 = vmatpush1.msra.mxu0 0.0
    %6763 = vmatprep.subr.mxu0 0.0
    %6764 = vmatpush1.msra.mxu0 0.0
    %6765 = vmatprep.mubr.f32.mxu0 0.0
    %6766 = vmatmul.mubr.f32.gmra.mrb[0].mxu0 %v6699
    %v6767 = vpop.f32.mrb[0].mxu0
    %v6768 = vadd.f32 0.0, %v6767
    %v6769 = vpop.f32.mrb[0].mxu0
    %6770 = vdwg.mxu0
    %v6771 = vld [vmem:[#allocation2 + $0x7] sm:$0x1]
    %v6772 = vld [vmem:[#allocation2 + $0xf] sm:$0x1]
    %v6773 = vld [vmem:[#allocation2 + $0x17] sm:$0x1]
    %v6774 = vld [vmem:[#allocation2 + $0x1f] sm:$0x1]
    %v6775 = vld [vmem:[#allocation2 + $0x27] sm:$0x1]
    %v6776 = vld [vmem:[#allocation2 + $0x2f] sm:$0x1]
    %v6777 = vld [vmem:[#allocation2 + $0x37] sm:$0x1]
    %v6778 = vld [vmem:[#allocation2 + $0x3f] sm:$0x1]
    %v6779 = vld [vmem:[#allocation2 + $0x47] sm:$0x1]
    %v6780 = vld [vmem:[#allocation2 + $0x4f] sm:$0x1]
    %v6781 = vld [vmem:[#allocation2 + $0x57] sm:$0x1]
    %v6782 = vld [vmem:[#allocation2 + $0x5f] sm:$0x1]
    %v6783 = vld [vmem:[#allocation2 + $0x67] sm:$0x1]
    %v6784 = vld [vmem:[#allocation2 + $0x6f] sm:$0x1]
    %v6785 = vld [vmem:[#allocation2 + $0x77] sm:$0x1]
    %v6786 = vld [vmem:[#allocation2 + $0x7f] sm:$0x1]
    %v6787 = vld [vmem:[#allocation2 + $0x87] sm:$0x1]
    %v6788 = vld [vmem:[#allocation2 + $0x8f] sm:$0x1]
    %v6789 = vld [vmem:[#allocation2 + $0x97] sm:$0x1]
    %v6790 = vld [vmem:[#allocation2 + $0x9f] sm:$0x1]
    %v6791 = vld [vmem:[#allocation2 + $0xa7] sm:$0x1]
    %v6792 = vld [vmem:[#allocation2 + $0xaf] sm:$0x1]
    %v6793 = vld [vmem:[#allocation2 + $0xb7] sm:$0x1]
    %v6794 = vld [vmem:[#allocation2 + $0xbf] sm:$0x1]
    %v6795 = vld [vmem:[#allocation2 + $0xc7] sm:$0x1]
    %v6796 = vld [vmem:[#allocation2 + $0xcf] sm:$0x1]
    %v6797 = vld [vmem:[#allocation2 + $0xd7] sm:$0x1]
    %v6798 = vld [vmem:[#allocation2 + $0xdf] sm:$0x1]
    %v6799 = vld [vmem:[#allocation2 + $0xe7] sm:$0x1]
    %v6800 = vld [vmem:[#allocation2 + $0xef] sm:$0x1]
    %v6801 = vld [vmem:[#allocation2 + $0xf7] sm:$0x1]
    %v6802 = vld [vmem:[#allocation2 + $0xff] sm:$0x1]
    %v6803 = vld [vmem:[#allocation2 + $0x107] sm:$0x1]
    %v6804 = vld [vmem:[#allocation2 + $0x10f] sm:$0x1]
    %v6805 = vld [vmem:[#allocation2 + $0x117] sm:$0x1]
    %v6806 = vld [vmem:[#allocation2 + $0x11f] sm:$0x1]
    %v6807 = vld [vmem:[#allocation2 + $0x127] sm:$0x1]
    %v6808 = vld [vmem:[#allocation2 + $0x12f] sm:$0x1]
    %v6809 = vld [vmem:[#allocation2 + $0x137] sm:$0x1]
    %v6810 = vld [vmem:[#allocation2 + $0x13f] sm:$0x1]
    %v6811 = vld [vmem:[#allocation2 + $0x147] sm:$0x1]
    %v6812 = vld [vmem:[#allocation2 + $0x14f] sm:$0x1]
    %v6813 = vld [vmem:[#allocation2 + $0x157] sm:$0x1]
    %v6814 = vld [vmem:[#allocation2 + $0x15f] sm:$0x1]
    %v6815 = vld [vmem:[#allocation2 + $0x167] sm:$0x1]
    %v6816 = vld [vmem:[#allocation2 + $0x16f] sm:$0x1]
    %v6817 = vld [vmem:[#allocation2 + $0x177] sm:$0x1]
    %v6818 = vld [vmem:[#allocation2 + $0x17f] sm:$0x1]
    %v6819 = vld [vmem:[#allocation2 + $0x187] sm:$0x1]
    %v6820 = vld [vmem:[#allocation2 + $0x18f] sm:$0x1]
    %v6821 = vld [vmem:[#allocation2 + $0x197] sm:$0x1]
    %v6822 = vld [vmem:[#allocation2 + $0x19f] sm:$0x1]
    %v6823 = vld [vmem:[#allocation2 + $0x1a7] sm:$0x1]
    %v6824 = vld [vmem:[#allocation2 + $0x1af] sm:$0x1]
    %v6825 = vld [vmem:[#allocation2 + $0x1b7] sm:$0x1]
    %v6826 = vld [vmem:[#allocation2 + $0x1bf] sm:$0x1]
    %v6827 = vld [vmem:[#allocation2 + $0x1c7] sm:$0x1]
    %v6828 = vld [vmem:[#allocation2 + $0x1cf] sm:$0x1]
    %v6829 = vld [vmem:[#allocation2 + $0x1d7] sm:$0x1]
    %v6830 = vld [vmem:[#allocation2 + $0x1df] sm:$0x1]
    %v6831 = vld [vmem:[#allocation2 + $0x1e7] sm:$0x1]
    %v6832 = vld [vmem:[#allocation2 + $0x1ef] sm:$0x1]
    %v6833 = vld [vmem:[#allocation2 + $0x1f7] sm:$0x1]
    %v6834 = vld [vmem:[#allocation2 + $0x1ff] sm:$0x1]
    %v6835 = vld [vmem:[#allocation2 + $0x207] sm:$0x1]
    %v6836 = vld [vmem:[#allocation2 + $0x20f] sm:$0x1]
    %v6837 = vld [vmem:[#allocation2 + $0x217] sm:$0x1]
    %v6838 = vld [vmem:[#allocation2 + $0x21f] sm:$0x1]
    %v6839 = vld [vmem:[#allocation2 + $0x227] sm:$0x1]
    %v6840 = vld [vmem:[#allocation2 + $0x22f] sm:$0x1]
    %v6841 = vld [vmem:[#allocation2 + $0x237] sm:$0x1]
    %v6842 = vld [vmem:[#allocation2 + $0x23f] sm:$0x1]
    %v6843 = vld [vmem:[#allocation2 + $0x247] sm:$0x1]
    %v6844 = vld [vmem:[#allocation2 + $0x24f] sm:$0x1]
    %v6845 = vld [vmem:[#allocation2 + $0x257] sm:$0x1]
    %v6846 = vld [vmem:[#allocation2 + $0x25f] sm:$0x1]
    %v6847 = vld [vmem:[#allocation2 + $0x267] sm:$0x1]
    %v6848 = vld [vmem:[#allocation2 + $0x26f] sm:$0x1]
    %v6849 = vld [vmem:[#allocation2 + $0x277] sm:$0x1]
    %v6850 = vld [vmem:[#allocation2 + $0x27f] sm:$0x1]
    %v6851 = vrot.slane %v38, 7
    %v6932 = vrot.slane %v6772, 7
    %v6933 = vsel %vm4244, %v6932, %v6771
    %v6934 = vrot.slane %v6773, 6
    %v6935 = vsel %vm4247, %v6934, %v6933
    %v6936 = vrot.slane %v6774, 5
    %v6937 = vsel %vm4250, %v6936, %v6935
    %v6938 = vrot.slane %v6775, 4
    %v6939 = vsel %vm4253, %v6938, %v6937
    %v6940 = vrot.slane %v6776, 3
    %v6941 = vsel %vm4256, %v6940, %v6939
    %v6942 = vrot.slane %v6777, 2
    %v6943 = vsel %vm4259, %v6942, %v6941
    %v6944 = vrot.slane %v6778, 1
    %v6945 = vsel %vm4262, %v6944, %v6943
    %v6946 = vrot.slane %v6780, 7
    %v6947 = vsel %vm4244, %v6946, %v6779
    %v6948 = vrot.slane %v6781, 6
    %v6949 = vsel %vm4247, %v6948, %v6947
    %v6950 = vrot.slane %v6782, 5
    %v6951 = vsel %vm4250, %v6950, %v6949
    %v6952 = vrot.slane %v6783, 4
    %v6953 = vsel %vm4253, %v6952, %v6951
    %v6954 = vrot.slane %v6784, 3
    %v6955 = vsel %vm4256, %v6954, %v6953
    %v6956 = vrot.slane %v6785, 2
    %v6957 = vsel %vm4259, %v6956, %v6955
    %v6958 = vrot.slane %v6786, 1
    %v6959 = vsel %vm4262, %v6958, %v6957
    %v6960 = vrot.slane %v6788, 7
    %v6961 = vsel %vm4244, %v6960, %v6787
    %v6962 = vrot.slane %v6789, 6
    %v6963 = vsel %vm4247, %v6962, %v6961
    %v6964 = vrot.slane %v6790, 5
    %v6965 = vsel %vm4250, %v6964, %v6963
    %v6966 = vrot.slane %v6791, 4
    %v6967 = vsel %vm4253, %v6966, %v6965
    %v6968 = vrot.slane %v6792, 3
    %v6969 = vsel %vm4256, %v6968, %v6967
    %v6970 = vrot.slane %v6793, 2
    %v6971 = vsel %vm4259, %v6970, %v6969
    %v6972 = vrot.slane %v6794, 1
    %v6973 = vsel %vm4262, %v6972, %v6971
    %v6974 = vrot.slane %v6796, 7
    %v6975 = vsel %vm4244, %v6974, %v6795
    %v6976 = vrot.slane %v6797, 6
    %v6977 = vsel %vm4247, %v6976, %v6975
    %v6978 = vrot.slane %v6798, 5
    %v6979 = vsel %vm4250, %v6978, %v6977
    %v6980 = vrot.slane %v6799, 4
    %v6981 = vsel %vm4253, %v6980, %v6979
    %v6982 = vrot.slane %v6800, 3
    %v6983 = vsel %vm4256, %v6982, %v6981
    %v6984 = vrot.slane %v6801, 2
    %v6985 = vsel %vm4259, %v6984, %v6983
    %v6986 = vrot.slane %v6802, 1
    %v6987 = vsel %vm4262, %v6986, %v6985
    %v6988 = vrot.slane %v6804, 7
    %v6989 = vsel %vm4244, %v6988, %v6803
    %v6990 = vrot.slane %v6805, 6
    %v6991 = vsel %vm4247, %v6990, %v6989
    %v6992 = vrot.slane %v6806, 5
    %v6993 = vsel %vm4250, %v6992, %v6991
    %v6994 = vrot.slane %v6807, 4
    %v6995 = vsel %vm4253, %v6994, %v6993
    %v6996 = vrot.slane %v6808, 3
    %v6997 = vsel %vm4256, %v6996, %v6995
    %v6998 = vrot.slane %v6809, 2
    %v6999 = vsel %vm4259, %v6998, %v6997
    %v7000 = vrot.slane %v6810, 1
    %v7001 = vsel %vm4262, %v7000, %v6999
    %v7002 = vrot.slane %v6812, 7
    %v7003 = vsel %vm4244, %v7002, %v6811
    %v7004 = vrot.slane %v6813, 6
    %v7005 = vsel %vm4247, %v7004, %v7003
    %v7006 = vrot.slane %v6814, 5
    %v7007 = vsel %vm4250, %v7006, %v7005
    %v7008 = vrot.slane %v6815, 4
    %v7009 = vsel %vm4253, %v7008, %v7007
    %v7010 = vrot.slane %v6816, 3
    %v7011 = vsel %vm4256, %v7010, %v7009
    %v7012 = vrot.slane %v6817, 2
    %v7013 = vsel %vm4259, %v7012, %v7011
    %v7014 = vrot.slane %v6818, 1
    %v7015 = vsel %vm4262, %v7014, %v7013
    %v7016 = vrot.slane %v6820, 7
    %v7017 = vsel %vm4244, %v7016, %v6819
    %v7018 = vrot.slane %v6821, 6
    %v7019 = vsel %vm4247, %v7018, %v7017
    %v7020 = vrot.slane %v6822, 5
    %v7021 = vsel %vm4250, %v7020, %v7019
    %v7022 = vrot.slane %v6823, 4
    %v7023 = vsel %vm4253, %v7022, %v7021
    %v7024 = vrot.slane %v6824, 3
    %v7025 = vsel %vm4256, %v7024, %v7023
    %v7026 = vrot.slane %v6825, 2
    %v7027 = vsel %vm4259, %v7026, %v7025
    %v7028 = vrot.slane %v6826, 1
    %v7029 = vsel %vm4262, %v7028, %v7027
    %v7030 = vrot.slane %v6828, 7
    %v7031 = vsel %vm4244, %v7030, %v6827
    %v7032 = vrot.slane %v6829, 6
    %v7033 = vsel %vm4247, %v7032, %v7031
    %v7034 = vrot.slane %v6830, 5
    %v7035 = vsel %vm4250, %v7034, %v7033
    %v7036 = vrot.slane %v6831, 4
    %v7037 = vsel %vm4253, %v7036, %v7035
    %v7038 = vrot.slane %v6832, 3
    %v7039 = vsel %vm4256, %v7038, %v7037
    %v7040 = vrot.slane %v6833, 2
    %v7041 = vsel %vm4259, %v7040, %v7039
    %v7042 = vrot.slane %v6834, 1
    %v7043 = vsel %vm4262, %v7042, %v7041
    %v7044 = vrot.slane %v6836, 7
    %v7045 = vsel %vm4244, %v7044, %v6835
    %v7046 = vrot.slane %v6837, 6
    %v7047 = vsel %vm4247, %v7046, %v7045
    %v7048 = vrot.slane %v6838, 5
    %v7049 = vsel %vm4250, %v7048, %v7047
    %v7050 = vrot.slane %v6839, 4
    %v7051 = vsel %vm4253, %v7050, %v7049
    %v7052 = vrot.slane %v6840, 3
    %v7053 = vsel %vm4256, %v7052, %v7051
    %v7054 = vrot.slane %v6841, 2
    %v7055 = vsel %vm4259, %v7054, %v7053
    %v7056 = vrot.slane %v6842, 1
    %v7057 = vsel %vm4262, %v7056, %v7055
    %v7058 = vrot.slane %v6844, 7
    %v7059 = vsel %vm4244, %v7058, %v6843
    %v7060 = vrot.slane %v6845, 6
    %v7061 = vsel %vm4247, %v7060, %v7059
    %v7062 = vrot.slane %v6846, 5
    %v7063 = vsel %vm4250, %v7062, %v7061
    %v7064 = vrot.slane %v6847, 4
    %v7065 = vsel %vm4253, %v7064, %v7063
    %v7066 = vrot.slane %v6848, 3
    %v7067 = vsel %vm4256, %v7066, %v7065
    %v7068 = vrot.slane %v6849, 2
    %v7069 = vsel %vm4259, %v7068, %v7067
    %v7070 = vrot.slane %v6850, 1
    %v7071 = vsel %vm4262, %v7070, %v7069
    %v7082 = vsel %vm4400, %v6851, 0
    %7084 = vmatprep.subr.mxu0 0.0
    %7085 = vmatpush1.msra.mxu0 %v6945
    %7086 = vmatprep.subr.mxu0 0.0
    %7087 = vmatpush1.msra.mxu0 %v6959
    %7088 = vmatprep.subr.mxu0 0.0
    %7089 = vmatpush1.msra.mxu0 %v6973
    %7090 = vmatprep.subr.mxu0 0.0
    %7091 = vmatpush1.msra.mxu0 %v6987
    %7092 = vmatprep.subr.mxu0 0.0
    %7093 = vmatpush1.msra.mxu0 %v7001
    %7094 = vmatprep.subr.mxu0 0.0
    %7095 = vmatpush1.msra.mxu0 %v7015
    %7096 = vmatprep.subr.mxu0 0.0
    %7097 = vmatpush1.msra.mxu0 %v7029
    %7098 = vmatprep.subr.mxu0 0.0
    %7099 = vmatpush1.msra.mxu0 %v7043
    %7100 = vmatprep.subr.mxu0 0.0
    %7101 = vmatpush1.msra.mxu0 %v7057
    %7102 = vmatprep.subr.mxu0 0.0
    %7103 = vmatpush1.msra.mxu0 %v7071
    %7104 = vmatprep.subr.mxu0 0.0
    %7105 = vmatpush1.msra.mxu0 0.0
    %7106 = vmatprep.subr.mxu0 0.0
    %7107 = vmatpush1.msra.mxu0 0.0
    %7108 = vmatprep.subr.mxu0 0.0
    %7109 = vmatpush1.msra.mxu0 0.0
    %7110 = vmatprep.subr.mxu0 0.0
    %7111 = vmatpush1.msra.mxu0 0.0
    %7112 = vmatprep.subr.mxu0 0.0
    %7113 = vmatpush1.msra.mxu0 0.0
    %7114 = vmatprep.subr.mxu0 0.0
    %7115 = vmatpush1.msra.mxu0 0.0
    %7116 = vmatprep.subr.mxu0 0.0
    %7117 = vmatpush1.msra.mxu0 0.0
    %7118 = vmatprep.subr.mxu0 0.0
    %7119 = vmatpush1.msra.mxu0 0.0
    %7120 = vmatprep.subr.mxu0 0.0
    %7121 = vmatpush1.msra.mxu0 0.0
    %7122 = vmatprep.subr.mxu0 0.0
    %7123 = vmatpush1.msra.mxu0 0.0
    %7124 = vmatprep.subr.mxu0 0.0
    %7125 = vmatpush1.msra.mxu0 0.0
    %7126 = vmatprep.subr.mxu0 0.0
    %7127 = vmatpush1.msra.mxu0 0.0
    %7128 = vmatprep.subr.mxu0 0.0
    %7129 = vmatpush1.msra.mxu0 0.0
    %7130 = vmatprep.subr.mxu0 0.0
    %7131 = vmatpush1.msra.mxu0 0.0
    %7132 = vmatprep.subr.mxu0 0.0
    %7133 = vmatpush1.msra.mxu0 0.0
    %7134 = vmatprep.subr.mxu0 0.0
    %7135 = vmatpush1.msra.mxu0 0.0
    %7136 = vmatprep.subr.mxu0 0.0
    %7137 = vmatpush1.msra.mxu0 0.0
    %7138 = vmatprep.subr.mxu0 0.0
    %7139 = vmatpush1.msra.mxu0 0.0
    %7140 = vmatprep.subr.mxu0 0.0
    %7141 = vmatpush1.msra.mxu0 0.0
    %7142 = vmatprep.subr.mxu0 0.0
    %7143 = vmatpush1.msra.mxu0 0.0
    %7144 = vmatprep.subr.mxu0 0.0
    %7145 = vmatpush1.msra.mxu0 0.0
    %7146 = vmatprep.subr.mxu0 0.0
    %7147 = vmatpush1.msra.mxu0 0.0
    %7148 = vmatprep.mubr.f32.mxu0 0.0
    %7149 = vmatmul.mubr.f32.gmra.mrb[0].mxu0 %v7082
    %v7150 = vpop.f32.mrb[0].mxu0
    %v7151 = vadd.f32 0.0, %v7150
    %v7152 = vpop.f32.mrb[0].mxu0
    %7153 = vdwg.mxu0
    %v7155 = vsel %vm4400, %v4470, 0
    %7157 = vmatprep.subr.mxu0 0.0
    %7158 = vmatpush1.msra.mxu0 %v4263
    %7159 = vmatprep.subr.mxu0 0.0
    %7160 = vmatpush1.msra.mxu0 %v4277
    %7161 = vmatprep.subr.mxu0 0.0
    %7162 = vmatpush1.msra.mxu0 %v4291
    %7163 = vmatprep.subr.mxu0 0.0
    %7164 = vmatpush1.msra.mxu0 %v4305
    %7165 = vmatprep.subr.mxu0 0.0
    %7166 = vmatpush1.msra.mxu0 %v4319
    %7167 = vmatprep.subr.mxu0 0.0
    %7168 = vmatpush1.msra.mxu0 %v4333
    %7169 = vmatprep.subr.mxu0 0.0
    %7170 = vmatpush1.msra.mxu0 %v4347
    %7171 = vmatprep.subr.mxu0 0.0
    %7172 = vmatpush1.msra.mxu0 %v4361
    %7173 = vmatprep.subr.mxu0 0.0
    %7174 = vmatpush1.msra.mxu0 %v4375
    %7175 = vmatprep.subr.mxu0 0.0
    %7176 = vmatpush1.msra.mxu0 %v4389
    %7177 = vmatprep.subr.mxu0 0.0
    %7178 = vmatpush1.msra.mxu0 0.0
    %7179 = vmatprep.subr.mxu0 0.0
    %7180 = vmatpush1.msra.mxu0 0.0
    %7181 = vmatprep.subr.mxu0 0.0
    %7182 = vmatpush1.msra.mxu0 0.0
    %7183 = vmatprep.subr.mxu0 0.0
    %7184 = vmatpush1.msra.mxu0 0.0
    %7185 = vmatprep.subr.mxu0 0.0
    %7186 = vmatpush1.msra.mxu0 0.0
    %7187 = vmatprep.subr.mxu0 0.0
    %7188 = vmatpush1.msra.mxu0 0.0
    %7189 = vmatprep.subr.mxu0 0.0
    %7190 = vmatpush1.msra.mxu0 0.0
    %7191 = vmatprep.subr.mxu0 0.0
    %7192 = vmatpush1.msra.mxu0 0.0
    %7193 = vmatprep.subr.mxu0 0.0
    %7194 = vmatpush1.msra.mxu0 0.0
    %7195 = vmatprep.subr.mxu0 0.0
    %7196 = vmatpush1.msra.mxu0 0.0
    %7197 = vmatprep.subr.mxu0 0.0
    %7198 = vmatpush1.msra.mxu0 0.0
    %7199 = vmatprep.subr.mxu0 0.0
    %7200 = vmatpush1.msra.mxu0 0.0
    %7201 = vmatprep.subr.mxu0 0.0
    %7202 = vmatpush1.msra.mxu0 0.0
    %7203 = vmatprep.subr.mxu0 0.0
    %7204 = vmatpush1.msra.mxu0 0.0
    %7205 = vmatprep.subr.mxu0 0.0
    %7206 = vmatpush1.msra.mxu0 0.0
    %7207 = vmatprep.subr.mxu0 0.0
    %7208 = vmatpush1.msra.mxu0 0.0
    %7209 = vmatprep.subr.mxu0 0.0
    %7210 = vmatpush1.msra.mxu0 0.0
    %7211 = vmatprep.subr.mxu0 0.0
    %7212 = vmatpush1.msra.mxu0 0.0
    %7213 = vmatprep.subr.mxu0 0.0
    %7214 = vmatpush1.msra.mxu0 0.0
    %7215 = vmatprep.subr.mxu0 0.0
    %7216 = vmatpush1.msra.mxu0 0.0
    %7217 = vmatprep.subr.mxu0 0.0
    %7218 = vmatpush1.msra.mxu0 0.0
    %7219 = vmatprep.subr.mxu0 0.0
    %7220 = vmatpush1.msra.mxu0 0.0
    %7221 = vmatprep.mubr.f32.mxu0 0.0
    %7222 = vmatmul.mubr.f32.gmra.mrb[0].mxu0 %v7155
    %v7223 = vpop.f32.mrb[0].mxu0
    %v7224 = vadd.f32 0.0, %v7223
    %v7225 = vpop.f32.mrb[0].mxu0
    %7226 = vdwg.mxu0
    %v7228 = vsel %vm4400, %v4853, 0
    %7230 = vmatprep.subr.mxu0 0.0
    %7231 = vmatpush1.msra.mxu0 %v4647
    %7232 = vmatprep.subr.mxu0 0.0
    %7233 = vmatpush1.msra.mxu0 %v4661
    %7234 = vmatprep.subr.mxu0 0.0
    %7235 = vmatpush1.msra.mxu0 %v4675
    %7236 = vmatprep.subr.mxu0 0.0
    %7237 = vmatpush1.msra.mxu0 %v4689
    %7238 = vmatprep.subr.mxu0 0.0
    %7239 = vmatpush1.msra.mxu0 %v4703
    %7240 = vmatprep.subr.mxu0 0.0
    %7241 = vmatpush1.msra.mxu0 %v4717
    %7242 = vmatprep.subr.mxu0 0.0
    %7243 = vmatpush1.msra.mxu0 %v4731
    %7244 = vmatprep.subr.mxu0 0.0
    %7245 = vmatpush1.msra.mxu0 %v4745
    %7246 = vmatprep.subr.mxu0 0.0
    %7247 = vmatpush1.msra.mxu0 %v4759
    %7248 = vmatprep.subr.mxu0 0.0
    %7249 = vmatpush1.msra.mxu0 %v4773
    %7250 = vmatprep.subr.mxu0 0.0
    %7251 = vmatpush1.msra.mxu0 0.0
    %7252 = vmatprep.subr.mxu0 0.0
    %7253 = vmatpush1.msra.mxu0 0.0
    %7254 = vmatprep.subr.mxu0 0.0
    %7255 = vmatpush1.msra.mxu0 0.0
    %7256 = vmatprep.subr.mxu0 0.0
    %7257 = vmatpush1.msra.mxu0 0.0
    %7258 = vmatprep.subr.mxu0 0.0
    %7259 = vmatpush1.msra.mxu0 0.0
    %7260 = vmatprep.subr.mxu0 0.0
    %7261 = vmatpush1.msra.mxu0 0.0
    %7262 = vmatprep.subr.mxu0 0.0
    %7263 = vmatpush1.msra.mxu0 0.0
    %7264 = vmatprep.subr.mxu0 0.0
    %7265 = vmatpush1.msra.mxu0 0.0
    %7266 = vmatprep.subr.mxu0 0.0
    %7267 = vmatpush1.msra.mxu0 0.0
    %7268 = vmatprep.subr.mxu0 0.0
    %7269 = vmatpush1.msra.mxu0 0.0
    %7270 = vmatprep.subr.mxu0 0.0
    %7271 = vmatpush1.msra.mxu0 0.0
    %7272 = vmatprep.subr.mxu0 0.0
    %7273 = vmatpush1.msra.mxu0 0.0
    %7274 = vmatprep.subr.mxu0 0.0
    %7275 = vmatpush1.msra.mxu0 0.0
    %7276 = vmatprep.subr.mxu0 0.0
    %7277 = vmatpush1.msra.mxu0 0.0
    %7278 = vmatprep.subr.mxu0 0.0
    %7279 = vmatpush1.msra.mxu0 0.0
    %7280 = vmatprep.subr.mxu0 0.0
    %7281 = vmatpush1.msra.mxu0 0.0
    %7282 = vmatprep.subr.mxu0 0.0
    %7283 = vmatpush1.msra.mxu0 0.0
    %7284 = vmatprep.subr.mxu0 0.0
    %7285 = vmatpush1.msra.mxu0 0.0
    %7286 = vmatprep.subr.mxu0 0.0
    %7287 = vmatpush1.msra.mxu0 0.0
    %7288 = vmatprep.subr.mxu0 0.0
    %7289 = vmatpush1.msra.mxu0 0.0
    %7290 = vmatprep.subr.mxu0 0.0
    %7291 = vmatpush1.msra.mxu0 0.0
    %7292 = vmatprep.subr.mxu0 0.0
    %7293 = vmatpush1.msra.mxu0 0.0
    %7294 = vmatprep.mubr.f32.mxu0 0.0
    %7295 = vmatmul.mubr.f32.gmra.mrb[0].mxu0 %v7228
    %v7296 = vpop.f32.mrb[0].mxu0
    %v7297 = vadd.f32 0.0, %v7296
    %v7298 = vpop.f32.mrb[0].mxu0
    %7299 = vdwg.mxu0
    %v7301 = vsel %vm4400, %v5236, 0
    %7303 = vmatprep.subr.mxu0 0.0
    %7304 = vmatpush1.msra.mxu0 %v5030
    %7305 = vmatprep.subr.mxu0 0.0
    %7306 = vmatpush1.msra.mxu0 %v5044
    %7307 = vmatprep.subr.mxu0 0.0
    %7308 = vmatpush1.msra.mxu0 %v5058
    %7309 = vmatprep.subr.mxu0 0.0
    %7310 = vmatpush1.msra.mxu0 %v5072
    %7311 = vmatprep.subr.mxu0 0.0
    %7312 = vmatpush1.msra.mxu0 %v5086
    %7313 = vmatprep.subr.mxu0 0.0
    %7314 = vmatpush1.msra.mxu0 %v5100
    %7315 = vmatprep.subr.mxu0 0.0
    %7316 = vmatpush1.msra.mxu0 %v5114
    %7317 = vmatprep.subr.mxu0 0.0
    %7318 = vmatpush1.msra.mxu0 %v5128
    %7319 = vmatprep.subr.mxu0 0.0
    %7320 = vmatpush1.msra.mxu0 %v5142
    %7321 = vmatprep.subr.mxu0 0.0
    %7322 = vmatpush1.msra.mxu0 %v5156
    %7323 = vmatprep.subr.mxu0 0.0
    %7324 = vmatpush1.msra.mxu0 0.0
    %7325 = vmatprep.subr.mxu0 0.0
    %7326 = vmatpush1.msra.mxu0 0.0
    %7327 = vmatprep.subr.mxu0 0.0
    %7328 = vmatpush1.msra.mxu0 0.0
    %7329 = vmatprep.subr.mxu0 0.0
    %7330 = vmatpush1.msra.mxu0 0.0
    %7331 = vmatprep.subr.mxu0 0.0
    %7332 = vmatpush1.msra.mxu0 0.0
    %7333 = vmatprep.subr.mxu0 0.0
    %7334 = vmatpush1.msra.mxu0 0.0
    %7335 = vmatprep.subr.mxu0 0.0
    %7336 = vmatpush1.msra.mxu0 0.0
    %7337 = vmatprep.subr.mxu0 0.0
    %7338 = vmatpush1.msra.mxu0 0.0
    %7339 = vmatprep.subr.mxu0 0.0
    %7340 = vmatpush1.msra.mxu0 0.0
    %7341 = vmatprep.subr.mxu0 0.0
    %7342 = vmatpush1.msra.mxu0 0.0
    %7343 = vmatprep.subr.mxu0 0.0
    %7344 = vmatpush1.msra.mxu0 0.0
    %7345 = vmatprep.subr.mxu0 0.0
    %7346 = vmatpush1.msra.mxu0 0.0
    %7347 = vmatprep.subr.mxu0 0.0
    %7348 = vmatpush1.msra.mxu0 0.0
    %7349 = vmatprep.subr.mxu0 0.0
    %7350 = vmatpush1.msra.mxu0 0.0
    %7351 = vmatprep.subr.mxu0 0.0
    %7352 = vmatpush1.msra.mxu0 0.0
    %7353 = vmatprep.subr.mxu0 0.0
    %7354 = vmatpush1.msra.mxu0 0.0
    %7355 = vmatprep.subr.mxu0 0.0
    %7356 = vmatpush1.msra.mxu0 0.0
    %7357 = vmatprep.subr.mxu0 0.0
    %7358 = vmatpush1.msra.mxu0 0.0
    %7359 = vmatprep.subr.mxu0 0.0
    %7360 = vmatpush1.msra.mxu0 0.0
    %7361 = vmatprep.subr.mxu0 0.0
    %7362 = vmatpush1.msra.mxu0 0.0
    %7363 = vmatprep.subr.mxu0 0.0
    %7364 = vmatpush1.msra.mxu0 0.0
    %7365 = vmatprep.subr.mxu0 0.0
    %7366 = vmatpush1.msra.mxu0 0.0
    %7367 = vmatprep.mubr.f32.mxu0 0.0
    %7368 = vmatmul.mubr.f32.gmra.mrb[0].mxu0 %v7301
    %v7369 = vpop.f32.mrb[0].mxu0
    %v7370 = vadd.f32 0.0, %v7369
    %v7371 = vpop.f32.mrb[0].mxu0
    %7372 = vdwg.mxu0
    %v7374 = vsel %vm4400, %v5619, 0
    %7376 = vmatprep.subr.mxu0 0.0
    %7377 = vmatpush1.msra.mxu0 %v5413
    %7378 = vmatprep.subr.mxu0 0.0
    %7379 = vmatpush1.msra.mxu0 %v5427
    %7380 = vmatprep.subr.mxu0 0.0
    %7381 = vmatpush1.msra.mxu0 %v5441
    %7382 = vmatprep.subr.mxu0 0.0
    %7383 = vmatpush1.msra.mxu0 %v5455
    %7384 = vmatprep.subr.mxu0 0.0
    %7385 = vmatpush1.msra.mxu0 %v5469
    %7386 = vmatprep.subr.mxu0 0.0
    %7387 = vmatpush1.msra.mxu0 %v5483
    %7388 = vmatprep.subr.mxu0 0.0
    %7389 = vmatpush1.msra.mxu0 %v5497
    %7390 = vmatprep.subr.mxu0 0.0
    %7391 = vmatpush1.msra.mxu0 %v5511
    %7392 = vmatprep.subr.mxu0 0.0
    %7393 = vmatpush1.msra.mxu0 %v5525
    %7394 = vmatprep.subr.mxu0 0.0
    %7395 = vmatpush1.msra.mxu0 %v5539
    %7396 = vmatprep.subr.mxu0 0.0
    %7397 = vmatpush1.msra.mxu0 0.0
    %7398 = vmatprep.subr.mxu0 0.0
    %7399 = vmatpush1.msra.mxu0 0.0
    %7400 = vmatprep.subr.mxu0 0.0
    %7401 = vmatpush1.msra.mxu0 0.0
    %7402 = vmatprep.subr.mxu0 0.0
    %7403 = vmatpush1.msra.mxu0 0.0
    %7404 = vmatprep.subr.mxu0 0.0
    %7405 = vmatpush1.msra.mxu0 0.0
    %7406 = vmatprep.subr.mxu0 0.0
    %7407 = vmatpush1.msra.mxu0 0.0
    %7408 = vmatprep.subr.mxu0 0.0
    %7409 = vmatpush1.msra.mxu0 0.0
    %7410 = vmatprep.subr.mxu0 0.0
    %7411 = vmatpush1.msra.mxu0 0.0
    %7412 = vmatprep.subr.mxu0 0.0
    %7413 = vmatpush1.msra.mxu0 0.0
    %7414 = vmatprep.subr.mxu0 0.0
    %7415 = vmatpush1.msra.mxu0 0.0
    %7416 = vmatprep.subr.mxu0 0.0
    %7417 = vmatpush1.msra.mxu0 0.0
    %7418 = vmatprep.subr.mxu0 0.0
    %7419 = vmatpush1.msra.mxu0 0.0
    %7420 = vmatprep.subr.mxu0 0.0
    %7421 = vmatpush1.msra.mxu0 0.0
    %7422 = vmatprep.subr.mxu0 0.0
    %7423 = vmatpush1.msra.mxu0 0.0
    %7424 = vmatprep.subr.mxu0 0.0
    %7425 = vmatpush1.msra.mxu0 0.0
    %7426 = vmatprep.subr.mxu0 0.0
    %7427 = vmatpush1.msra.mxu0 0.0
    %7428 = vmatprep.subr.mxu0 0.0
    %7429 = vmatpush1.msra.mxu0 0.0
    %7430 = vmatprep.subr.mxu0 0.0
    %7431 = vmatpush1.msra.mxu0 0.0
    %7432 = vmatprep.subr.mxu0 0.0
    %7433 = vmatpush1.msra.mxu0 0.0
    %7434 = vmatprep.subr.mxu0 0.0
    %7435 = vmatpush1.msra.mxu0 0.0
    %7436 = vmatprep.subr.mxu0 0.0
    %7437 = vmatpush1.msra.mxu0 0.0
    %7438 = vmatprep.subr.mxu0 0.0
    %7439 = vmatpush1.msra.mxu0 0.0
    %7440 = vmatprep.mubr.f32.mxu0 0.0
    %7441 = vmatmul.mubr.f32.gmra.mrb[0].mxu0 %v7374
    %v7442 = vpop.f32.mrb[0].mxu0
    %v7443 = vadd.f32 0.0, %v7442
    %v7444 = vpop.f32.mrb[0].mxu0
    %7445 = vdwg.mxu0
    %v7447 = vsel %vm4400, %v6002, 0
    %7449 = vmatprep.subr.mxu0 0.0
    %7450 = vmatpush1.msra.mxu0 %v5796
    %7451 = vmatprep.subr.mxu0 0.0
    %7452 = vmatpush1.msra.mxu0 %v5810
    %7453 = vmatprep.subr.mxu0 0.0
    %7454 = vmatpush1.msra.mxu0 %v5824
    %7455 = vmatprep.subr.mxu0 0.0
    %7456 = vmatpush1.msra.mxu0 %v5838
    %7457 = vmatprep.subr.mxu0 0.0
    %7458 = vmatpush1.msra.mxu0 %v5852
    %7459 = vmatprep.subr.mxu0 0.0
    %7460 = vmatpush1.msra.mxu0 %v5866
    %7461 = vmatprep.subr.mxu0 0.0
    %7462 = vmatpush1.msra.mxu0 %v5880
    %7463 = vmatprep.subr.mxu0 0.0
    %7464 = vmatpush1.msra.mxu0 %v5894
    %7465 = vmatprep.subr.mxu0 0.0
    %7466 = vmatpush1.msra.mxu0 %v5908
    %7467 = vmatprep.subr.mxu0 0.0
    %7468 = vmatpush1.msra.mxu0 %v5922
    %7469 = vmatprep.subr.mxu0 0.0
    %7470 = vmatpush1.msra.mxu0 0.0
    %7471 = vmatprep.subr.mxu0 0.0
    %7472 = vmatpush1.msra.mxu0 0.0
    %7473 = vmatprep.subr.mxu0 0.0
    %7474 = vmatpush1.msra.mxu0 0.0
    %7475 = vmatprep.subr.mxu0 0.0
    %7476 = vmatpush1.msra.mxu0 0.0
    %7477 = vmatprep.subr.mxu0 0.0
    %7478 = vmatpush1.msra.mxu0 0.0
    %7479 = vmatprep.subr.mxu0 0.0
    %7480 = vmatpush1.msra.mxu0 0.0
    %7481 = vmatprep.subr.mxu0 0.0
    %7482 = vmatpush1.msra.mxu0 0.0
    %7483 = vmatprep.subr.mxu0 0.0
    %7484 = vmatpush1.msra.mxu0 0.0
    %7485 = vmatprep.subr.mxu0 0.0
    %7486 = vmatpush1.msra.mxu0 0.0
    %7487 = vmatprep.subr.mxu0 0.0
    %7488 = vmatpush1.msra.mxu0 0.0
    %7489 = vmatprep.subr.mxu0 0.0
    %7490 = vmatpush1.msra.mxu0 0.0
    %7491 = vmatprep.subr.mxu0 0.0
    %7492 = vmatpush1.msra.mxu0 0.0
    %7493 = vmatprep.subr.mxu0 0.0
    %7494 = vmatpush1.msra.mxu0 0.0
    %7495 = vmatprep.subr.mxu0 0.0
    %7496 = vmatpush1.msra.mxu0 0.0
    %7497 = vmatprep.subr.mxu0 0.0
    %7498 = vmatpush1.msra.mxu0 0.0
    %7499 = vmatprep.subr.mxu0 0.0
    %7500 = vmatpush1.msra.mxu0 0.0
    %7501 = vmatprep.subr.mxu0 0.0
    %7502 = vmatpush1.msra.mxu0 0.0
    %7503 = vmatprep.subr.mxu0 0.0
    %7504 = vmatpush1.msra.mxu0 0.0
    %7505 = vmatprep.subr.mxu0 0.0
    %7506 = vmatpush1.msra.mxu0 0.0
    %7507 = vmatprep.subr.mxu0 0.0
    %7508 = vmatpush1.msra.mxu0 0.0
    %7509 = vmatprep.subr.mxu0 0.0
    %7510 = vmatpush1.msra.mxu0 0.0
    %7511 = vmatprep.subr.mxu0 0.0
    %7512 = vmatpush1.msra.mxu0 0.0
    %7513 = vmatprep.mubr.f32.mxu0 0.0
    %7514 = vmatmul.mubr.f32.gmra.mrb[0].mxu0 %v7447
    %v7515 = vpop.f32.mrb[0].mxu0
    %v7516 = vadd.f32 0.0, %v7515
    %v7517 = vpop.f32.mrb[0].mxu0
    %7518 = vdwg.mxu0
    %v7520 = vsel %vm4400, %v6385, 0
    %7522 = vmatprep.subr.mxu0 0.0
    %7523 = vmatpush1.msra.mxu0 %v6179
    %7524 = vmatprep.subr.mxu0 0.0
    %7525 = vmatpush1.msra.mxu0 %v6193
    %7526 = vmatprep.subr.mxu0 0.0
    %7527 = vmatpush1.msra.mxu0 %v6207
    %7528 = vmatprep.subr.mxu0 0.0
    %7529 = vmatpush1.msra.mxu0 %v6221
    %7530 = vmatprep.subr.mxu0 0.0
    %7531 = vmatpush1.msra.mxu0 %v6235
    %7532 = vmatprep.subr.mxu0 0.0
    %7533 = vmatpush1.msra.mxu0 %v6249
    %7534 = vmatprep.subr.mxu0 0.0
    %7535 = vmatpush1.msra.mxu0 %v6263
    %7536 = vmatprep.subr.mxu0 0.0
    %7537 = vmatpush1.msra.mxu0 %v6277
    %7538 = vmatprep.subr.mxu0 0.0
    %7539 = vmatpush1.msra.mxu0 %v6291
    %7540 = vmatprep.subr.mxu0 0.0
    %7541 = vmatpush1.msra.mxu0 %v6305
    %7542 = vmatprep.subr.mxu0 0.0
    %7543 = vmatpush1.msra.mxu0 0.0
    %7544 = vmatprep.subr.mxu0 0.0
    %7545 = vmatpush1.msra.mxu0 0.0
    %7546 = vmatprep.subr.mxu0 0.0
    %7547 = vmatpush1.msra.mxu0 0.0
    %7548 = vmatprep.subr.mxu0 0.0
    %7549 = vmatpush1.msra.mxu0 0.0
    %7550 = vmatprep.subr.mxu0 0.0
    %7551 = vmatpush1.msra.mxu0 0.0
    %7552 = vmatprep.subr.mxu0 0.0
    %7553 = vmatpush1.msra.mxu0 0.0
    %7554 = vmatprep.subr.mxu0 0.0
    %7555 = vmatpush1.msra.mxu0 0.0
    %7556 = vmatprep.subr.mxu0 0.0
    %7557 = vmatpush1.msra.mxu0 0.0
    %7558 = vmatprep.subr.mxu0 0.0
    %7559 = vmatpush1.msra.mxu0 0.0
    %7560 = vmatprep.subr.mxu0 0.0
    %7561 = vmatpush1.msra.mxu0 0.0
    %7562 = vmatprep.subr.mxu0 0.0
    %7563 = vmatpush1.msra.mxu0 0.0
    %7564 = vmatprep.subr.mxu0 0.0
    %7565 = vmatpush1.msra.mxu0 0.0
    %7566 = vmatprep.subr.mxu0 0.0
    %7567 = vmatpush1.msra.mxu0 0.0
    %7568 = vmatprep.subr.mxu0 0.0
    %7569 = vmatpush1.msra.mxu0 0.0
    %7570 = vmatprep.subr.mxu0 0.0
    %7571 = vmatpush1.msra.mxu0 0.0
    %7572 = vmatprep.subr.mxu0 0.0
    %7573 = vmatpush1.msra.mxu0 0.0
    %7574 = vmatprep.subr.mxu0 0.0
    %7575 = vmatpush1.msra.mxu0 0.0
    %7576 = vmatprep.subr.mxu0 0.0
    %7577 = vmatpush1.msra.mxu0 0.0
    %7578 = vmatprep.subr.mxu0 0.0
    %7579 = vmatpush1.msra.mxu0 0.0
    %7580 = vmatprep.subr.mxu0 0.0
    %7581 = vmatpush1.msra.mxu0 0.0
    %7582 = vmatprep.subr.mxu0 0.0
    %7583 = vmatpush1.msra.mxu0 0.0
    %7584 = vmatprep.subr.mxu0 0.0
    %7585 = vmatpush1.msra.mxu0 0.0
    %7586 = vmatprep.mubr.f32.mxu0 0.0
    %7587 = vmatmul.mubr.f32.gmra.mrb[0].mxu0 %v7520
    %v7588 = vpop.f32.mrb[0].mxu0
    %v7589 = vadd.f32 0.0, %v7588
    %v7590 = vpop.f32.mrb[0].mxu0
    %7591 = vdwg.mxu0
    %v7593 = vsel %vm4400, %v6768, 0
    %7595 = vmatprep.subr.mxu0 0.0
    %7596 = vmatpush1.msra.mxu0 %v6562
    %7597 = vmatprep.subr.mxu0 0.0
    %7598 = vmatpush1.msra.mxu0 %v6576
    %7599 = vmatprep.subr.mxu0 0.0
    %7600 = vmatpush1.msra.mxu0 %v6590
    %7601 = vmatprep.subr.mxu0 0.0
    %7602 = vmatpush1.msra.mxu0 %v6604
    %7603 = vmatprep.subr.mxu0 0.0
    %7604 = vmatpush1.msra.mxu0 %v6618
    %7605 = vmatprep.subr.mxu0 0.0
    %7606 = vmatpush1.msra.mxu0 %v6632
    %7607 = vmatprep.subr.mxu0 0.0
    %7608 = vmatpush1.msra.mxu0 %v6646
    %7609 = vmatprep.subr.mxu0 0.0
    %7610 = vmatpush1.msra.mxu0 %v6660
    %7611 = vmatprep.subr.mxu0 0.0
    %7612 = vmatpush1.msra.mxu0 %v6674
    %7613 = vmatprep.subr.mxu0 0.0
    %7614 = vmatpush1.msra.mxu0 %v6688
    %7615 = vmatprep.subr.mxu0 0.0
    %7616 = vmatpush1.msra.mxu0 0.0
    %7617 = vmatprep.subr.mxu0 0.0
    %7618 = vmatpush1.msra.mxu0 0.0
    %7619 = vmatprep.subr.mxu0 0.0
    %7620 = vmatpush1.msra.mxu0 0.0
    %7621 = vmatprep.subr.mxu0 0.0
    %7622 = vmatpush1.msra.mxu0 0.0
    %7623 = vmatprep.subr.mxu0 0.0
    %7624 = vmatpush1.msra.mxu0 0.0
    %7625 = vmatprep.subr.mxu0 0.0
    %7626 = vmatpush1.msra.mxu0 0.0
    %7627 = vmatprep.subr.mxu0 0.0
    %7628 = vmatpush1.msra.mxu0 0.0
    %7629 = vmatprep.subr.mxu0 0.0
    %7630 = vmatpush1.msra.mxu0 0.0
    %7631 = vmatprep.subr.mxu0 0.0
    %7632 = vmatpush1.msra.mxu0 0.0
    %7633 = vmatprep.subr.mxu0 0.0
    %7634 = vmatpush1.msra.mxu0 0.0
    %7635 = vmatprep.subr.mxu0 0.0
    %7636 = vmatpush1.msra.mxu0 0.0
    %7637 = vmatprep.subr.mxu0 0.0
    %7638 = vmatpush1.msra.mxu0 0.0
    %7639 = vmatprep.subr.mxu0 0.0
    %7640 = vmatpush1.msra.mxu0 0.0
    %7641 = vmatprep.subr.mxu0 0.0
    %7642 = vmatpush1.msra.mxu0 0.0
    %7643 = vmatprep.subr.mxu0 0.0
    %7644 = vmatpush1.msra.mxu0 0.0
    %7645 = vmatprep.subr.mxu0 0.0
    %7646 = vmatpush1.msra.mxu0 0.0
    %7647 = vmatprep.subr.mxu0 0.0
    %7648 = vmatpush1.msra.mxu0 0.0
    %7649 = vmatprep.subr.mxu0 0.0
    %7650 = vmatpush1.msra.mxu0 0.0
    %7651 = vmatprep.subr.mxu0 0.0
    %7652 = vmatpush1.msra.mxu0 0.0
    %7653 = vmatprep.subr.mxu0 0.0
    %7654 = vmatpush1.msra.mxu0 0.0
    %7655 = vmatprep.subr.mxu0 0.0
    %7656 = vmatpush1.msra.mxu0 0.0
    %7657 = vmatprep.subr.mxu0 0.0
    %7658 = vmatpush1.msra.mxu0 0.0
    %7659 = vmatprep.mubr.f32.mxu0 0.0
    %7660 = vmatmul.mubr.f32.gmra.mrb[0].mxu0 %v7593
    %v7661 = vpop.f32.mrb[0].mxu0
    %v7662 = vadd.f32 0.0, %v7661
    %v7663 = vpop.f32.mrb[0].mxu0
    %7664 = vdwg.mxu0
    %v7666 = vsel %vm4400, %v7151, 0
    %7668 = vmatprep.subr.mxu0 0.0
    %7669 = vmatpush1.msra.mxu0 %v6945
    %7670 = vmatprep.subr.mxu0 0.0
    %7671 = vmatpush1.msra.mxu0 %v6959
    %7672 = vmatprep.subr.mxu0 0.0
    %7673 = vmatpush1.msra.mxu0 %v6973
    %7674 = vmatprep.subr.mxu0 0.0
    %7675 = vmatpush1.msra.mxu0 %v6987
    %7676 = vmatprep.subr.mxu0 0.0
    %7677 = vmatpush1.msra.mxu0 %v7001
    %7678 = vmatprep.subr.mxu0 0.0
    %7679 = vmatpush1.msra.mxu0 %v7015
    %7680 = vmatprep.subr.mxu0 0.0
    %7681 = vmatpush1.msra.mxu0 %v7029
    %7682 = vmatprep.subr.mxu0 0.0
    %7683 = vmatpush1.msra.mxu0 %v7043
    %7684 = vmatprep.subr.mxu0 0.0
    %7685 = vmatpush1.msra.mxu0 %v7057
    %7686 = vmatprep.subr.mxu0 0.0
    %7687 = vmatpush1.msra.mxu0 %v7071
    %7688 = vmatprep.subr.mxu0 0.0
    %7689 = vmatpush1.msra.mxu0 0.0
    %7690 = vmatprep.subr.mxu0 0.0
    %7691 = vmatpush1.msra.mxu0 0.0
    %7692 = vmatprep.subr.mxu0 0.0
    %7693 = vmatpush1.msra.mxu0 0.0
    %7694 = vmatprep.subr.mxu0 0.0
    %7695 = vmatpush1.msra.mxu0 0.0
    %7696 = vmatprep.subr.mxu0 0.0
    %7697 = vmatpush1.msra.mxu0 0.0
    %7698 = vmatprep.subr.mxu0 0.0
    %7699 = vmatpush1.msra.mxu0 0.0
    %7700 = vmatprep.subr.mxu0 0.0
    %7701 = vmatpush1.msra.mxu0 0.0
    %7702 = vmatprep.subr.mxu0 0.0
    %7703 = vmatpush1.msra.mxu0 0.0
    %7704 = vmatprep.subr.mxu0 0.0
    %7705 = vmatpush1.msra.mxu0 0.0
    %7706 = vmatprep.subr.mxu0 0.0
    %7707 = vmatpush1.msra.mxu0 0.0
    %7708 = vmatprep.subr.mxu0 0.0
    %7709 = vmatpush1.msra.mxu0 0.0
    %7710 = vmatprep.subr.mxu0 0.0
    %7711 = vmatpush1.msra.mxu0 0.0
    %7712 = vmatprep.subr.mxu0 0.0
    %7713 = vmatpush1.msra.mxu0 0.0
    %7714 = vmatprep.subr.mxu0 0.0
    %7715 = vmatpush1.msra.mxu0 0.0
    %7716 = vmatprep.subr.mxu0 0.0
    %7717 = vmatpush1.msra.mxu0 0.0
    %7718 = vmatprep.subr.mxu0 0.0
    %7719 = vmatpush1.msra.mxu0 0.0
    %7720 = vmatprep.subr.mxu0 0.0
    %7721 = vmatpush1.msra.mxu0 0.0
    %7722 = vmatprep.subr.mxu0 0.0
    %7723 = vmatpush1.msra.mxu0 0.0
    %7724 = vmatprep.subr.mxu0 0.0
    %7725 = vmatpush1.msra.mxu0 0.0
    %7726 = vmatprep.subr.mxu0 0.0
    %7727 = vmatpush1.msra.mxu0 0.0
    %7728 = vmatprep.subr.mxu0 0.0
    %7729 = vmatpush1.msra.mxu0 0.0
    %7730 = vmatprep.subr.mxu0 0.0
    %7731 = vmatpush1.msra.mxu0 0.0
    %7732 = vmatprep.mubr.f32.mxu0 0.0
    %7733 = vmatmul.mubr.f32.gmra.mrb[0].mxu0 %v7666
    %v7734 = vpop.f32.mrb[0].mxu0
    %v7735 = vadd.f32 0.0, %v7734
    %v7736 = vpop.f32.mrb[0].mxu0
    %7737 = vdwg.mxu0
    %v7739 = vsel %vm4400, %v7224, 0
    %7741 = vmatprep.subr.mxu0 0.0
    %7742 = vmatpush1.msra.mxu0 %v4263
    %7743 = vmatprep.subr.mxu0 0.0
    %7744 = vmatpush1.msra.mxu0 %v4277
    %7745 = vmatprep.subr.mxu0 0.0
    %7746 = vmatpush1.msra.mxu0 %v4291
    %7747 = vmatprep.subr.mxu0 0.0
    %7748 = vmatpush1.msra.mxu0 %v4305
    %7749 = vmatprep.subr.mxu0 0.0
    %7750 = vmatpush1.msra.mxu0 %v4319
    %7751 = vmatprep.subr.mxu0 0.0
    %7752 = vmatpush1.msra.mxu0 %v4333
    %7753 = vmatprep.subr.mxu0 0.0
    %7754 = vmatpush1.msra.mxu0 %v4347
    %7755 = vmatprep.subr.mxu0 0.0
    %7756 = vmatpush1.msra.mxu0 %v4361
    %7757 = vmatprep.subr.mxu0 0.0
    %7758 = vmatpush1.msra.mxu0 %v4375
    %7759 = vmatprep.subr.mxu0 0.0
    %7760 = vmatpush1.msra.mxu0 %v4389
    %7761 = vmatprep.subr.mxu0 0.0
    %7762 = vmatpush1.msra.mxu0 0.0
    %7763 = vmatprep.subr.mxu0 0.0
    %7764 = vmatpush1.msra.mxu0 0.0
    %7765 = vmatprep.subr.mxu0 0.0
    %7766 = vmatpush1.msra.mxu0 0.0
    %7767 = vmatprep.subr.mxu0 0.0
    %7768 = vmatpush1.msra.mxu0 0.0
    %7769 = vmatprep.subr.mxu0 0.0
    %7770 = vmatpush1.msra.mxu0 0.0
    %7771 = vmatprep.subr.mxu0 0.0
    %7772 = vmatpush1.msra.mxu0 0.0
    %7773 = vmatprep.subr.mxu0 0.0
    %7774 = vmatpush1.msra.mxu0 0.0
    %7775 = vmatprep.subr.mxu0 0.0
    %7776 = vmatpush1.msra.mxu0 0.0
    %7777 = vmatprep.subr.mxu0 0.0
    %7778 = vmatpush1.msra.mxu0 0.0
    %7779 = vmatprep.subr.mxu0 0.0
    %7780 = vmatpush1.msra.mxu0 0.0
    %7781 = vmatprep.subr.mxu0 0.0
    %7782 = vmatpush1.msra.mxu0 0.0
    %7783 = vmatprep.subr.mxu0 0.0
    %7784 = vmatpush1.msra.mxu0 0.0
    %7785 = vmatprep.subr.mxu0 0.0
    %7786 = vmatpush1.msra.mxu0 0.0
    %7787 = vmatprep.subr.mxu0 0.0
    %7788 = vmatpush1.msra.mxu0 0.0
    %7789 = vmatprep.subr.mxu0 0.0
    %7790 = vmatpush1.msra.mxu0 0.0
    %7791 = vmatprep.subr.mxu0 0.0
    %7792 = vmatpush1.msra.mxu0 0.0
    %7793 = vmatprep.subr.mxu0 0.0
    %7794 = vmatpush1.msra.mxu0 0.0
    %7795 = vmatprep.subr.mxu0 0.0
    %7796 = vmatpush1.msra.mxu0 0.0
    %7797 = vmatprep.subr.mxu0 0.0
    %7798 = vmatpush1.msra.mxu0 0.0
    %7799 = vmatprep.subr.mxu0 0.0
    %7800 = vmatpush1.msra.mxu0 0.0
    %7801 = vmatprep.subr.mxu0 0.0
    %7802 = vmatpush1.msra.mxu0 0.0
    %7803 = vmatprep.subr.mxu0 0.0
    %7804 = vmatpush1.msra.mxu0 0.0
    %7805 = vmatprep.mubr.f32.mxu0 0.0
    %7806 = vmatmul.mubr.f32.gmra.mrb[0].mxu0 %v7739
    %v7807 = vpop.f32.mrb[0].mxu0
    %v7808 = vadd.f32 0.0, %v7807
    %v7809 = vpop.f32.mrb[0].mxu0
    %7810 = vdwg.mxu0
    %v7812 = vsel %vm4400, %v7297, 0
    %7814 = vmatprep.subr.mxu0 0.0
    %7815 = vmatpush1.msra.mxu0 %v4647
    %7816 = vmatprep.subr.mxu0 0.0
    %7817 = vmatpush1.msra.mxu0 %v4661
    %7818 = vmatprep.subr.mxu0 0.0
    %7819 = vmatpush1.msra.mxu0 %v4675
    %7820 = vmatprep.subr.mxu0 0.0
    %7821 = vmatpush1.msra.mxu0 %v4689
    %7822 = vmatprep.subr.mxu0 0.0
    %7823 = vmatpush1.msra.mxu0 %v4703
    %7824 = vmatprep.subr.mxu0 0.0
    %7825 = vmatpush1.msra.mxu0 %v4717
    %7826 = vmatprep.subr.mxu0 0.0
    %7827 = vmatpush1.msra.mxu0 %v4731
    %7828 = vmatprep.subr.mxu0 0.0
    %7829 = vmatpush1.msra.mxu0 %v4745
    %7830 = vmatprep.subr.mxu0 0.0
    %7831 = vmatpush1.msra.mxu0 %v4759
    %7832 = vmatprep.subr.mxu0 0.0
    %7833 = vmatpush1.msra.mxu0 %v4773
    %7834 = vmatprep.subr.mxu0 0.0
    %7835 = vmatpush1.msra.mxu0 0.0
    %7836 = vmatprep.subr.mxu0 0.0
    %7837 = vmatpush1.msra.mxu0 0.0
    %7838 = vmatprep.subr.mxu0 0.0
    %7839 = vmatpush1.msra.mxu0 0.0
    %7840 = vmatprep.subr.mxu0 0.0
    %7841 = vmatpush1.msra.mxu0 0.0
    %7842 = vmatprep.subr.mxu0 0.0
    %7843 = vmatpush1.msra.mxu0 0.0
    %7844 = vmatprep.subr.mxu0 0.0
    %7845 = vmatpush1.msra.mxu0 0.0
    %7846 = vmatprep.subr.mxu0 0.0
    %7847 = vmatpush1.msra.mxu0 0.0
    %7848 = vmatprep.subr.mxu0 0.0
    %7849 = vmatpush1.msra.mxu0 0.0
    %7850 = vmatprep.subr.mxu0 0.0
    %7851 = vmatpush1.msra.mxu0 0.0
    %7852 = vmatprep.subr.mxu0 0.0
    %7853 = vmatpush1.msra.mxu0 0.0
    %7854 = vmatprep.subr.mxu0 0.0
    %7855 = vmatpush1.msra.mxu0 0.0
    %7856 = vmatprep.subr.mxu0 0.0
    %7857 = vmatpush1.msra.mxu0 0.0
    %7858 = vmatprep.subr.mxu0 0.0
    %7859 = vmatpush1.msra.mxu0 0.0
    %7860 = vmatprep.subr.mxu0 0.0
    %7861 = vmatpush1.msra.mxu0 0.0
    %7862 = vmatprep.subr.mxu0 0.0
    %7863 = vmatpush1.msra.mxu0 0.0
    %7864 = vmatprep.subr.mxu0 0.0
    %7865 = vmatpush1.msra.mxu0 0.0
    %7866 = vmatprep.subr.mxu0 0.0
    %7867 = vmatpush1.msra.mxu0 0.0
    %7868 = vmatprep.subr.mxu0 0.0
    %7869 = vmatpush1.msra.mxu0 0.0
    %7870 = vmatprep.subr.mxu0 0.0
    %7871 = vmatpush1.msra.mxu0 0.0
    %7872 = vmatprep.subr.mxu0 0.0
    %7873 = vmatpush1.msra.mxu0 0.0
    %7874 = vmatprep.subr.mxu0 0.0
    %7875 = vmatpush1.msra.mxu0 0.0
    %7876 = vmatprep.subr.mxu0 0.0
    %7877 = vmatpush1.msra.mxu0 0.0
    %7878 = vmatprep.mubr.f32.mxu0 0.0
    %7879 = vmatmul.mubr.f32.gmra.mrb[0].mxu0 %v7812
    %v7880 = vpop.f32.mrb[0].mxu0
    %v7881 = vadd.f32 0.0, %v7880
    %v7882 = vpop.f32.mrb[0].mxu0
    %7883 = vdwg.mxu0
    %v7885 = vsel %vm4400, %v7370, 0
    %7887 = vmatprep.subr.mxu0 0.0
    %7888 = vmatpush1.msra.mxu0 %v5030
    %7889 = vmatprep.subr.mxu0 0.0
    %7890 = vmatpush1.msra.mxu0 %v5044
    %7891 = vmatprep.subr.mxu0 0.0
    %7892 = vmatpush1.msra.mxu0 %v5058
    %7893 = vmatprep.subr.mxu0 0.0
    %7894 = vmatpush1.msra.mxu0 %v5072
    %7895 = vmatprep.subr.mxu0 0.0
    %7896 = vmatpush1.msra.mxu0 %v5086
    %7897 = vmatprep.subr.mxu0 0.0
    %7898 = vmatpush1.msra.mxu0 %v5100
    %7899 = vmatprep.subr.mxu0 0.0
    %7900 = vmatpush1.msra.mxu0 %v5114
    %7901 = vmatprep.subr.mxu0 0.0
    %7902 = vmatpush1.msra.mxu0 %v5128
    %7903 = vmatprep.subr.mxu0 0.0
    %7904 = vmatpush1.msra.mxu0 %v5142
    %7905 = vmatprep.subr.mxu0 0.0
    %7906 = vmatpush1.msra.mxu0 %v5156
    %7907 = vmatprep.subr.mxu0 0.0
    %7908 = vmatpush1.msra.mxu0 0.0
    %7909 = vmatprep.subr.mxu0 0.0
    %7910 = vmatpush1.msra.mxu0 0.0
    %7911 = vmatprep.subr.mxu0 0.0
    %7912 = vmatpush1.msra.mxu0 0.0
    %7913 = vmatprep.subr.mxu0 0.0
    %7914 = vmatpush1.msra.mxu0 0.0
    %7915 = vmatprep.subr.mxu0 0.0
    %7916 = vmatpush1.msra.mxu0 0.0
    %7917 = vmatprep.subr.mxu0 0.0
    %7918 = vmatpush1.msra.mxu0 0.0
    %7919 = vmatprep.subr.mxu0 0.0
    %7920 = vmatpush1.msra.mxu0 0.0
    %7921 = vmatprep.subr.mxu0 0.0
    %7922 = vmatpush1.msra.mxu0 0.0
    %7923 = vmatprep.subr.mxu0 0.0
    %7924 = vmatpush1.msra.mxu0 0.0
    %7925 = vmatprep.subr.mxu0 0.0
    %7926 = vmatpush1.msra.mxu0 0.0
    %7927 = vmatprep.subr.mxu0 0.0
    %7928 = vmatpush1.msra.mxu0 0.0
    %7929 = vmatprep.subr.mxu0 0.0
    %7930 = vmatpush1.msra.mxu0 0.0
    %7931 = vmatprep.subr.mxu0 0.0
    %7932 = vmatpush1.msra.mxu0 0.0
    %7933 = vmatprep.subr.mxu0 0.0
    %7934 = vmatpush1.msra.mxu0 0.0
    %7935 = vmatprep.subr.mxu0 0.0
    %7936 = vmatpush1.msra.mxu0 0.0
    %7937 = vmatprep.subr.mxu0 0.0
    %7938 = vmatpush1.msra.mxu0 0.0
    %7939 = vmatprep.subr.mxu0 0.0
    %7940 = vmatpush1.msra.mxu0 0.0
    %7941 = vmatprep.subr.mxu0 0.0
    %7942 = vmatpush1.msra.mxu0 0.0
    %7943 = vmatprep.subr.mxu0 0.0
    %7944 = vmatpush1.msra.mxu0 0.0
    %7945 = vmatprep.subr.mxu0 0.0
    %7946 = vmatpush1.msra.mxu0 0.0
    %7947 = vmatprep.subr.mxu0 0.0
    %7948 = vmatpush1.msra.mxu0 0.0
    %7949 = vmatprep.subr.mxu0 0.0
    %7950 = vmatpush1.msra.mxu0 0.0
    %7951 = vmatprep.mubr.f32.mxu0 0.0
    %7952 = vmatmul.mubr.f32.gmra.mrb[0].mxu0 %v7885
    %v7953 = vpop.f32.mrb[0].mxu0
    %v7954 = vadd.f32 0.0, %v7953
    %v7955 = vpop.f32.mrb[0].mxu0
    %7956 = vdwg.mxu0
    %v7958 = vsel %vm4400, %v7443, 0
    %7960 = vmatprep.subr.mxu0 0.0
    %7961 = vmatpush1.msra.mxu0 %v5413
    %7962 = vmatprep.subr.mxu0 0.0
    %7963 = vmatpush1.msra.mxu0 %v5427
    %7964 = vmatprep.subr.mxu0 0.0
    %7965 = vmatpush1.msra.mxu0 %v5441
    %7966 = vmatprep.subr.mxu0 0.0
    %7967 = vmatpush1.msra.mxu0 %v5455
    %7968 = vmatprep.subr.mxu0 0.0
    %7969 = vmatpush1.msra.mxu0 %v5469
    %7970 = vmatprep.subr.mxu0 0.0
    %7971 = vmatpush1.msra.mxu0 %v5483
    %7972 = vmatprep.subr.mxu0 0.0
    %7973 = vmatpush1.msra.mxu0 %v5497
    %7974 = vmatprep.subr.mxu0 0.0
    %7975 = vmatpush1.msra.mxu0 %v5511
    %7976 = vmatprep.subr.mxu0 0.0
    %7977 = vmatpush1.msra.mxu0 %v5525
    %7978 = vmatprep.subr.mxu0 0.0
    %7979 = vmatpush1.msra.mxu0 %v5539
    %7980 = vmatprep.subr.mxu0 0.0
    %7981 = vmatpush1.msra.mxu0 0.0
    %7982 = vmatprep.subr.mxu0 0.0
    %7983 = vmatpush1.msra.mxu0 0.0
    %7984 = vmatprep.subr.mxu0 0.0
    %7985 = vmatpush1.msra.mxu0 0.0
    %7986 = vmatprep.subr.mxu0 0.0
    %7987 = vmatpush1.msra.mxu0 0.0
    %7988 = vmatprep.subr.mxu0 0.0
    %7989 = vmatpush1.msra.mxu0 0.0
    %7990 = vmatprep.subr.mxu0 0.0
    %7991 = vmatpush1.msra.mxu0 0.0
    %7992 = vmatprep.subr.mxu0 0.0
    %7993 = vmatpush1.msra.mxu0 0.0
    %7994 = vmatprep.subr.mxu0 0.0
    %7995 = vmatpush1.msra.mxu0 0.0
    %7996 = vmatprep.subr.mxu0 0.0
    %7997 = vmatpush1.msra.mxu0 0.0
    %7998 = vmatprep.subr.mxu0 0.0
    %7999 = vmatpush1.msra.mxu0 0.0
    %8000 = vmatprep.subr.mxu0 0.0
    %8001 = vmatpush1.msra.mxu0 0.0
    %8002 = vmatprep.subr.mxu0 0.0
    %8003 = vmatpush1.msra.mxu0 0.0
    %8004 = vmatprep.subr.mxu0 0.0
    %8005 = vmatpush1.msra.mxu0 0.0
    %8006 = vmatprep.subr.mxu0 0.0
    %8007 = vmatpush1.msra.mxu0 0.0
    %8008 = vmatprep.subr.mxu0 0.0
    %8009 = vmatpush1.msra.mxu0 0.0
    %8010 = vmatprep.subr.mxu0 0.0
    %8011 = vmatpush1.msra.mxu0 0.0
    %8012 = vmatprep.subr.mxu0 0.0
    %8013 = vmatpush1.msra.mxu0 0.0
    %8014 = vmatprep.subr.mxu0 0.0
    %8015 = vmatpush1.msra.mxu0 0.0
    %8016 = vmatprep.subr.mxu0 0.0
    %8017 = vmatpush1.msra.mxu0 0.0
    %8018 = vmatprep.subr.mxu0 0.0
    %8019 = vmatpush1.msra.mxu0 0.0
    %8020 = vmatprep.subr.mxu0 0.0
    %8021 = vmatpush1.msra.mxu0 0.0
    %8022 = vmatprep.subr.mxu0 0.0
    %8023 = vmatpush1.msra.mxu0 0.0
    %8024 = vmatprep.mubr.f32.mxu0 0.0
    %8025 = vmatmul.mubr.f32.gmra.mrb[0].mxu0 %v7958
    %v8026 = vpop.f32.mrb[0].mxu0
    %v8027 = vadd.f32 0.0, %v8026
    %v8028 = vpop.f32.mrb[0].mxu0
    %8029 = vdwg.mxu0
    %v8031 = vsel %vm4400, %v7516, 0
    %8033 = vmatprep.subr.mxu0 0.0
    %8034 = vmatpush1.msra.mxu0 %v5796
    %8035 = vmatprep.subr.mxu0 0.0
    %8036 = vmatpush1.msra.mxu0 %v5810
    %8037 = vmatprep.subr.mxu0 0.0
    %8038 = vmatpush1.msra.mxu0 %v5824
    %8039 = vmatprep.subr.mxu0 0.0
    %8040 = vmatpush1.msra.mxu0 %v5838
    %8041 = vmatprep.subr.mxu0 0.0
    %8042 = vmatpush1.msra.mxu0 %v5852
    %8043 = vmatprep.subr.mxu0 0.0
    %8044 = vmatpush1.msra.mxu0 %v5866
    %8045 = vmatprep.subr.mxu0 0.0
    %8046 = vmatpush1.msra.mxu0 %v5880
    %8047 = vmatprep.subr.mxu0 0.0
    %8048 = vmatpush1.msra.mxu0 %v5894
    %8049 = vmatprep.subr.mxu0 0.0
    %8050 = vmatpush1.msra.mxu0 %v5908
    %8051 = vmatprep.subr.mxu0 0.0
    %8052 = vmatpush1.msra.mxu0 %v5922
    %8053 = vmatprep.subr.mxu0 0.0
    %8054 = vmatpush1.msra.mxu0 0.0
    %8055 = vmatprep.subr.mxu0 0.0
    %8056 = vmatpush1.msra.mxu0 0.0
    %8057 = vmatprep.subr.mxu0 0.0
    %8058 = vmatpush1.msra.mxu0 0.0
    %8059 = vmatprep.subr.mxu0 0.0
    %8060 = vmatpush1.msra.mxu0 0.0
    %8061 = vmatprep.subr.mxu0 0.0
    %8062 = vmatpush1.msra.mxu0 0.0
    %8063 = vmatprep.subr.mxu0 0.0
    %8064 = vmatpush1.msra.mxu0 0.0
    %8065 = vmatprep.subr.mxu0 0.0
    %8066 = vmatpush1.msra.mxu0 0.0
    %8067 = vmatprep.subr.mxu0 0.0
    %8068 = vmatpush1.msra.mxu0 0.0
    %8069 = vmatprep.subr.mxu0 0.0
    %8070 = vmatpush1.msra.mxu0 0.0
    %8071 = vmatprep.subr.mxu0 0.0
    %8072 = vmatpush1.msra.mxu0 0.0
    %8073 = vmatprep.subr.mxu0 0.0
    %8074 = vmatpush1.msra.mxu0 0.0
    %8075 = vmatprep.subr.mxu0 0.0
    %8076 = vmatpush1.msra.mxu0 0.0
    %8077 = vmatprep.subr.mxu0 0.0
    %8078 = vmatpush1.msra.mxu0 0.0
    %8079 = vmatprep.subr.mxu0 0.0
    %8080 = vmatpush1.msra.mxu0 0.0
    %8081 = vmatprep.subr.mxu0 0.0
    %8082 = vmatpush1.msra.mxu0 0.0
    %8083 = vmatprep.subr.mxu0 0.0
    %8084 = vmatpush1.msra.mxu0 0.0
    %8085 = vmatprep.subr.mxu0 0.0
    %8086 = vmatpush1.msra.mxu0 0.0
    %8087 = vmatprep.subr.mxu0 0.0
    %8088 = vmatpush1.msra.mxu0 0.0
    %8089 = vmatprep.subr.mxu0 0.0
    %8090 = vmatpush1.msra.mxu0 0.0
    %8091 = vmatprep.subr.mxu0 0.0
    %8092 = vmatpush1.msra.mxu0 0.0
    %8093 = vmatprep.subr.mxu0 0.0
    %8094 = vmatpush1.msra.mxu0 0.0
    %8095 = vmatprep.subr.mxu0 0.0
    %8096 = vmatpush1.msra.mxu0 0.0
    %8097 = vmatprep.mubr.f32.mxu0 0.0
    %8098 = vmatmul.mubr.f32.gmra.mrb[0].mxu0 %v8031
    %v8099 = vpop.f32.mrb[0].mxu0
    %v8100 = vadd.f32 0.0, %v8099
    %v8101 = vpop.f32.mrb[0].mxu0
    %8102 = vdwg.mxu0
    %v8104 = vsel %vm4400, %v7589, 0
    %8106 = vmatprep.subr.mxu0 0.0
    %8107 = vmatpush1.msra.mxu0 %v6179
    %8108 = vmatprep.subr.mxu0 0.0
    %8109 = vmatpush1.msra.mxu0 %v6193
    %8110 = vmatprep.subr.mxu0 0.0
    %8111 = vmatpush1.msra.mxu0 %v6207
    %8112 = vmatprep.subr.mxu0 0.0
    %8113 = vmatpush1.msra.mxu0 %v6221
    %8114 = vmatprep.subr.mxu0 0.0
    %8115 = vmatpush1.msra.mxu0 %v6235
    %8116 = vmatprep.subr.mxu0 0.0
    %8117 = vmatpush1.msra.mxu0 %v6249
    %8118 = vmatprep.subr.mxu0 0.0
    %8119 = vmatpush1.msra.mxu0 %v6263
    %8120 = vmatprep.subr.mxu0 0.0
    %8121 = vmatpush1.msra.mxu0 %v6277
    %8122 = vmatprep.subr.mxu0 0.0
    %8123 = vmatpush1.msra.mxu0 %v6291
    %8124 = vmatprep.subr.mxu0 0.0
    %8125 = vmatpush1.msra.mxu0 %v6305
    %8126 = vmatprep.subr.mxu0 0.0
    %8127 = vmatpush1.msra.mxu0 0.0
    %8128 = vmatprep.subr.mxu0 0.0
    %8129 = vmatpush1.msra.mxu0 0.0
    %8130 = vmatprep.subr.mxu0 0.0
    %8131 = vmatpush1.msra.mxu0 0.0
    %8132 = vmatprep.subr.mxu0 0.0
    %8133 = vmatpush1.msra.mxu0 0.0
    %8134 = vmatprep.subr.mxu0 0.0
    %8135 = vmatpush1.msra.mxu0 0.0
    %8136 = vmatprep.subr.mxu0 0.0
    %8137 = vmatpush1.msra.mxu0 0.0
    %8138 = vmatprep.subr.mxu0 0.0
    %8139 = vmatpush1.msra.mxu0 0.0
    %8140 = vmatprep.subr.mxu0 0.0
    %8141 = vmatpush1.msra.mxu0 0.0
    %8142 = vmatprep.subr.mxu0 0.0
    %8143 = vmatpush1.msra.mxu0 0.0
    %8144 = vmatprep.subr.mxu0 0.0
    %8145 = vmatpush1.msra.mxu0 0.0
    %8146 = vmatprep.subr.mxu0 0.0
    %8147 = vmatpush1.msra.mxu0 0.0
    %8148 = vmatprep.subr.mxu0 0.0
    %8149 = vmatpush1.msra.mxu0 0.0
    %8150 = vmatprep.subr.mxu0 0.0
    %8151 = vmatpush1.msra.mxu0 0.0
    %8152 = vmatprep.subr.mxu0 0.0
    %8153 = vmatpush1.msra.mxu0 0.0
    %8154 = vmatprep.subr.mxu0 0.0
    %8155 = vmatpush1.msra.mxu0 0.0
    %8156 = vmatprep.subr.mxu0 0.0
    %8157 = vmatpush1.msra.mxu0 0.0
    %8158 = vmatprep.subr.mxu0 0.0
    %8159 = vmatpush1.msra.mxu0 0.0
    %8160 = vmatprep.subr.mxu0 0.0
    %8161 = vmatpush1.msra.mxu0 0.0
    %8162 = vmatprep.subr.mxu0 0.0
    %8163 = vmatpush1.msra.mxu0 0.0
    %8164 = vmatprep.subr.mxu0 0.0
    %8165 = vmatpush1.msra.mxu0 0.0
    %8166 = vmatprep.subr.mxu0 0.0
    %8167 = vmatpush1.msra.mxu0 0.0
    %8168 = vmatprep.subr.mxu0 0.0
    %8169 = vmatpush1.msra.mxu0 0.0
    %8170 = vmatprep.mubr.f32.mxu0 0.0
    %8171 = vmatmul.mubr.f32.gmra.mrb[0].mxu0 %v8104
    %v8172 = vpop.f32.mrb[0].mxu0
    %v8173 = vadd.f32 0.0, %v8172
    %v8174 = vpop.f32.mrb[0].mxu0
    %8175 = vdwg.mxu0
    %v8177 = vsel %vm4400, %v7662, 0
    %8179 = vmatprep.subr.mxu0 0.0
    %8180 = vmatpush1.msra.mxu0 %v6562
    %8181 = vmatprep.subr.mxu0 0.0
    %8182 = vmatpush1.msra.mxu0 %v6576
    %8183 = vmatprep.subr.mxu0 0.0
    %8184 = vmatpush1.msra.mxu0 %v6590
    %8185 = vmatprep.subr.mxu0 0.0
    %8186 = vmatpush1.msra.mxu0 %v6604
    %8187 = vmatprep.subr.mxu0 0.0
    %8188 = vmatpush1.msra.mxu0 %v6618
    %8189 = vmatprep.subr.mxu0 0.0
    %8190 = vmatpush1.msra.mxu0 %v6632
    %8191 = vmatprep.subr.mxu0 0.0
    %8192 = vmatpush1.msra.mxu0 %v6646
    %8193 = vmatprep.subr.mxu0 0.0
    %8194 = vmatpush1.msra.mxu0 %v6660
    %8195 = vmatprep.subr.mxu0 0.0
    %8196 = vmatpush1.msra.mxu0 %v6674
    %8197 = vmatprep.subr.mxu0 0.0
    %8198 = vmatpush1.msra.mxu0 %v6688
    %8199 = vmatprep.subr.mxu0 0.0
    %8200 = vmatpush1.msra.mxu0 0.0
    %8201 = vmatprep.subr.mxu0 0.0
    %8202 = vmatpush1.msra.mxu0 0.0
    %8203 = vmatprep.subr.mxu0 0.0
    %8204 = vmatpush1.msra.mxu0 0.0
    %8205 = vmatprep.subr.mxu0 0.0
    %8206 = vmatpush1.msra.mxu0 0.0
    %8207 = vmatprep.subr.mxu0 0.0
    %8208 = vmatpush1.msra.mxu0 0.0
    %8209 = vmatprep.subr.mxu0 0.0
    %8210 = vmatpush1.msra.mxu0 0.0
    %8211 = vmatprep.subr.mxu0 0.0
    %8212 = vmatpush1.msra.mxu0 0.0
    %8213 = vmatprep.subr.mxu0 0.0
    %8214 = vmatpush1.msra.mxu0 0.0
    %8215 = vmatprep.subr.mxu0 0.0
    %8216 = vmatpush1.msra.mxu0 0.0
    %8217 = vmatprep.subr.mxu0 0.0
    %8218 = vmatpush1.msra.mxu0 0.0
    %8219 = vmatprep.subr.mxu0 0.0
    %8220 = vmatpush1.msra.mxu0 0.0
    %8221 = vmatprep.subr.mxu0 0.0
    %8222 = vmatpush1.msra.mxu0 0.0
    %8223 = vmatprep.subr.mxu0 0.0
    %8224 = vmatpush1.msra.mxu0 0.0
    %8225 = vmatprep.subr.mxu0 0.0
    %8226 = vmatpush1.msra.mxu0 0.0
    %8227 = vmatprep.subr.mxu0 0.0
    %8228 = vmatpush1.msra.mxu0 0.0
    %8229 = vmatprep.subr.mxu0 0.0
    %8230 = vmatpush1.msra.mxu0 0.0
    %8231 = vmatprep.subr.mxu0 0.0
    %8232 = vmatpush1.msra.mxu0 0.0
    %8233 = vmatprep.subr.mxu0 0.0
    %8234 = vmatpush1.msra.mxu0 0.0
    %8235 = vmatprep.subr.mxu0 0.0
    %8236 = vmatpush1.msra.mxu0 0.0
    %8237 = vmatprep.subr.mxu0 0.0
    %8238 = vmatpush1.msra.mxu0 0.0
    %8239 = vmatprep.subr.mxu0 0.0
    %8240 = vmatpush1.msra.mxu0 0.0
    %8241 = vmatprep.subr.mxu0 0.0
    %8242 = vmatpush1.msra.mxu0 0.0
    %8243 = vmatprep.mubr.f32.mxu0 0.0
    %8244 = vmatmul.mubr.f32.gmra.mrb[0].mxu0 %v8177
    %v8245 = vpop.f32.mrb[0].mxu0
    %v8246 = vadd.f32 0.0, %v8245
    %v8247 = vpop.f32.mrb[0].mxu0
    %8248 = vdwg.mxu0
    %v8250 = vsel %vm4400, %v7735, 0
    %8252 = vmatprep.subr.mxu0 0.0
    %8253 = vmatpush1.msra.mxu0 %v6945
    %8254 = vmatprep.subr.mxu0 0.0
    %8255 = vmatpush1.msra.mxu0 %v6959
    %8256 = vmatprep.subr.mxu0 0.0
    %8257 = vmatpush1.msra.mxu0 %v6973
    %8258 = vmatprep.subr.mxu0 0.0
    %8259 = vmatpush1.msra.mxu0 %v6987
    %8260 = vmatprep.subr.mxu0 0.0
    %8261 = vmatpush1.msra.mxu0 %v7001
    %8262 = vmatprep.subr.mxu0 0.0
    %8263 = vmatpush1.msra.mxu0 %v7015
    %8264 = vmatprep.subr.mxu0 0.0
    %8265 = vmatpush1.msra.mxu0 %v7029
    %8266 = vmatprep.subr.mxu0 0.0
    %8267 = vmatpush1.msra.mxu0 %v7043
    %8268 = vmatprep.subr.mxu0 0.0
    %8269 = vmatpush1.msra.mxu0 %v7057
    %8270 = vmatprep.subr.mxu0 0.0
    %8271 = vmatpush1.msra.mxu0 %v7071
    %8272 = vmatprep.subr.mxu0 0.0
    %8273 = vmatpush1.msra.mxu0 0.0
    %8274 = vmatprep.subr.mxu0 0.0
    %8275 = vmatpush1.msra.mxu0 0.0
    %8276 = vmatprep.subr.mxu0 0.0
    %8277 = vmatpush1.msra.mxu0 0.0
    %8278 = vmatprep.subr.mxu0 0.0
    %8279 = vmatpush1.msra.mxu0 0.0
    %8280 = vmatprep.subr.mxu0 0.0
    %8281 = vmatpush1.msra.mxu0 0.0
    %8282 = vmatprep.subr.mxu0 0.0
    %8283 = vmatpush1.msra.mxu0 0.0
    %8284 = vmatprep.subr.mxu0 0.0
    %8285 = vmatpush1.msra.mxu0 0.0
    %8286 = vmatprep.subr.mxu0 0.0
    %8287 = vmatpush1.msra.mxu0 0.0
    %8288 = vmatprep.subr.mxu0 0.0
    %8289 = vmatpush1.msra.mxu0 0.0
    %8290 = vmatprep.subr.mxu0 0.0
    %8291 = vmatpush1.msra.mxu0 0.0
    %8292 = vmatprep.subr.mxu0 0.0
    %8293 = vmatpush1.msra.mxu0 0.0
    %8294 = vmatprep.subr.mxu0 0.0
    %8295 = vmatpush1.msra.mxu0 0.0
    %8296 = vmatprep.subr.mxu0 0.0
    %8297 = vmatpush1.msra.mxu0 0.0
    %8298 = vmatprep.subr.mxu0 0.0
    %8299 = vmatpush1.msra.mxu0 0.0
    %8300 = vmatprep.subr.mxu0 0.0
    %8301 = vmatpush1.msra.mxu0 0.0
    %8302 = vmatprep.subr.mxu0 0.0
    %8303 = vmatpush1.msra.mxu0 0.0
    %8304 = vmatprep.subr.mxu0 0.0
    %8305 = vmatpush1.msra.mxu0 0.0
    %8306 = vmatprep.subr.mxu0 0.0
    %8307 = vmatpush1.msra.mxu0 0.0
    %8308 = vmatprep.subr.mxu0 0.0
    %8309 = vmatpush1.msra.mxu0 0.0
    %8310 = vmatprep.subr.mxu0 0.0
    %8311 = vmatpush1.msra.mxu0 0.0
    %8312 = vmatprep.subr.mxu0 0.0
    %8313 = vmatpush1.msra.mxu0 0.0
    %8314 = vmatprep.subr.mxu0 0.0
    %8315 = vmatpush1.msra.mxu0 0.0
    %8316 = vmatprep.mubr.f32.mxu0 0.0
    %8317 = vmatmul.mubr.f32.gmra.mrb[0].mxu0 %v8250
    %v8318 = vpop.f32.mrb[0].mxu0
    %v8319 = vadd.f32 0.0, %v8318
    %v8320 = vpop.f32.mrb[0].mxu0
    %8321 = vdwg.mxu0
    %v8323 = vrot.slane %v7881, 7
    %v8326 = vrot.slane %v7954, 6
    %v8329 = vrot.slane %v8027, 5
    %v8332 = vrot.slane %v8100, 4
    %v8335 = vrot.slane %v8173, 3
    %v8338 = vrot.slane %v8246, 2
    %v8341 = vrot.slane %v8319, 1
    %vm8343 = vcmask 1040384
    %v8344 = vsel %vm8343, %v7808, %v8323
    %vm8345 = vcmask 1041408
    %v8346 = vsel %vm8345, %v8344, %v8326
    %v8347 = vsel %vm203, %v8346, %v8329
    %vm8348 = vcmask 1043456
    %v8349 = vsel %vm8348, %v8347, %v8332
    %vm8350 = vcmask 1044480
    %v8351 = vsel %vm8350, %v8349, %v8335
    %vm8352 = vcmask 1045504
    %v8353 = vsel %vm8352, %v8351, %v8338
    %vm8354 = vcmask 1046528
    %v8355 = vsel %vm8354, %v8353, %v8341
    %8356 = vst [vmem:[#allocation8] sm:$0xff] %v8355
    // Predicated region
    $region18: #{tpu_custom_call.1} parent=1 // pred_check
      _
    $region19: #{tpu_custom_call.1} parent=1 // pred_check_branch
      %8358 = sbr.rel (0) target = $region21
    $region20: #{tpu_custom_call.1} parent=1 // pred_region
      %s8360 = ssub.s32 128, 128
      %8361 = vsyncadd [#allocation5], %s8360
      %s8363 = sshll.u32 [#allocation8], 4
      %s8364 = int_to_ptr.vmem [resolvable:$true] %s8363
      %8366 = dma.vmem_to_hbm [thread:$0]  %s8364, 128, %s2, [#allocation5]
    $region21: #{tpu_custom_call.1} parent=1 // pred_fallthru
      _
    // Predicated region
    $region22: #{tpu_custom_call.1} parent=1 // pred_check
      _
    $region23: #{tpu_custom_call.1} parent=1 // pred_check_branch
      %8368 = sbr.rel (0) target = $region25
    $region24: #{tpu_custom_call.1} parent=1 // pred_region
      %8369 = dma.done [#allocation5], 128
    $region25: #{tpu_custom_call.1} parent=1 // pred_fallthru
      _
    %8370 = vsyncpa [#allocation4], 1
    %8371 = vsyncpa [#allocation7], 1
    %8372 = vsyncpa [#allocation5], 1

</llo_original>
